<compile_context>
chip_gen: v7x
topology: tpu7x:2x2x1
jax: 0.10.0
libtpu: 0.0.40
codegen_flags: <defaults>
</compile_context>

<pallas_src>
import functools

import jax
import jax.numpy as jnp
from jax.experimental import pallas as pl
from jax.experimental.pallas import tpu as pltpu

BN_EPS = 1e-5


def _bn(y, gamma, beta, count, mask=None):
    """Training-mode BatchNorm over the row axis (single-pass statistics).

    `count` = number of valid pixel rows; `mask` ([rows,1], 0/1) excludes the
    zero-padding rows from the statistics when the input is nonzero there."""
    ym = y if mask is None else y * mask
    s1 = jnp.sum(ym, axis=0, keepdims=True)
    s2 = jnp.sum(ym * ym, axis=0, keepdims=True)
    inv = 1.0 / count
    mean = s1 * inv
    var = s2 * inv - mean * mean
    scale = gamma * jax.lax.rsqrt(var + BN_EPS)
    shift = beta - mean * scale
    return y * scale + shift


def _bottleneck_kernel(x_ref, mv_ref,
                       w1_ref, g1_ref, b1_ref,
                       w2_ref, g2_ref, b2_ref,
                       w3_ref, g3_ref, b3_ref,
                       o_ref, buf_ref, col_ref,
                       *, rows, row_stride, width, count, margin):
    mv = mv_ref[...]                                           # [rows, 1] f32

    # ---- conv1 (1x1) -> BN1 -> ReLU ------------------------------------
    # x is zero on all padding rows, so conv1's output is exactly zero there
    # and BN1's statistics need no mask.
    y = jnp.dot(x_ref[...], w1_ref[...],
                preferred_element_type=jnp.float32)            # [rows, width]
    y = _bn(y, g1_ref[...], b1_ref[...], count)
    y = jnp.maximum(y, 0.0) * mv                               # re-zero pad rows

    # ---- conv2 (3x3, stride 1, pad 1) as one im2col matmul --------------
    # Zero only the margins; the interior is fully overwritten by y below.
    zeros_m = jnp.zeros((margin, width), jnp.bfloat16)
    buf_ref[0:margin, :] = zeros_m
    buf_ref[margin + rows:margin + rows + margin, :] = zeros_m
    buf_ref[margin:margin + rows, :] = y.astype(jnp.bfloat16)  # single bf16 store

    # Copy the 9 statically-shifted windows into a [rows, 9*width] bf16
    # scratch (vld/vst work that overlaps the MXU), then one K=9*width matmul.
    for dy in range(3):
        for dx in range(3):
            t = dy * 3 + dx
            start = margin + (dy - 1) * row_stride + (dx - 1)  # static offset
            col_ref[:, t * width:(t + 1) * width] = buf_ref[start:start + rows, :]

    acc = jnp.dot(col_ref[...], w2_ref[...],
                  preferred_element_type=jnp.float32)          # [rows, width]

    # BN2 statistics must exclude padding rows (their 3x3 windows see real
    # neighbours); zero them again after ReLU so conv3/BN3 stay exact.
    y = _bn(acc, g2_ref[...], b2_ref[...], count, mask=mv)
    y = jnp.maximum(y, 0.0) * mv

    # ---- conv3 (1x1) -> BN3 -> residual add -> ReLU ----------------------
    y = jnp.dot(y.astype(jnp.bfloat16), w3_ref[...],
                preferred_element_type=jnp.float32)            # [rows, Cout]
    y = _bn(y, g3_ref[...], b3_ref[...], count)
    identity = x_ref[...].astype(jnp.float32)                  # re-read (short live range)
    o_ref[...] = jnp.maximum(y + identity, 0.0)                # lane-dense store


def _full_spec(shape):
    return pl.BlockSpec(shape, lambda i: (0,) * len(shape))


def bottleneck_forward(x, params):
    """x: [N, Cin, H, W] f32 (NCHW, like the PyTorch module). Returns NCHW f32."""
    (w1, g1, b1), (w2, g2, b2), (w3, g3, b3) = params
    n, cin, h, w = x.shape
    width = w1.shape[0]
    cout = w3.shape[0]
    assert cin == cout, "downsample is None -> residual requires Cin == Cout"

    row_stride = w + 1                 # one shared zero column per image row
    img_rows = h + 2                   # one zero row above and below each image
    rows = n * img_rows * row_stride   # flattened rows fed to the kernel
    margin = ((w + 2 + 7) // 8) * 8    # zero margin so all 9 shifts stay in-bounds

    # NHWC with the conv padding built into the layout, then flatten + bf16.
    xs = x.transpose(0, 2, 3, 1)                               # [n, h, w, c]
    xs = jnp.pad(xs, ((0, 0), (1, 1), (0, 1), (0, 0)))         # [n, h+2, w+1, c]
    x2d = xs.reshape(rows, cin).astype(jnp.bfloat16)

    # Validity mask (real pixel rows). Tiny, computed once outside the kernel.
    r = jnp.arange(rows)
    rblk = (r // row_stride) % img_rows
    cblk = r % row_stride
    mv = ((rblk >= 1) & (rblk <= h) & (cblk < w)).astype(jnp.float32).reshape(rows, 1)

    # Weights in matmul layout, bf16 for the MXU. conv2 weights are stacked
    # [9*width, width] matching the im2col tap order (dy*3 + dx).
    w1_t = w1[:, :, 0, 0].T.astype(jnp.bfloat16)                              # [Cin, width]
    w2_t = jnp.transpose(w2, (2, 3, 1, 0)).reshape(9 * width, width)          # [9*in, out]
    w2_t = w2_t.astype(jnp.bfloat16)
    w3_t = w3[:, :, 0, 0].T.astype(jnp.bfloat16)                              # [width, Cout]

    kernel = functools.partial(_bottleneck_kernel, rows=rows, row_stride=row_stride,
                               width=width, count=float(n * h * w), margin=margin)

    out2d = pl.pallas_call(
        kernel,
        out_shape=jax.ShapeDtypeStruct((rows, cout), jnp.float32),
        grid=(1,),
        in_specs=[
            _full_spec((rows, cin)),
            _full_spec((rows, 1)),
            _full_spec((cin, width)), _full_spec((1, width)), _full_spec((1, width)),
            _full_spec((9 * width, width)), _full_spec((1, width)), _full_spec((1, width)),
            _full_spec((width, cout)), _full_spec((1, cout)), _full_spec((1, cout)),
        ],
        out_specs=_full_spec((rows, cout)),
        scratch_shapes=[
            pltpu.VMEM((rows + 2 * margin, width), jnp.bfloat16),   # padded y1
            pltpu.VMEM((rows, 9 * width), jnp.bfloat16),            # im2col buffer
        ],
        compiler_params=pltpu.CompilerParams(dimension_semantics=("arbitrary",)),
    )(x2d, mv, w1_t, g1, b1, w2_t, g2, b2, w3_t, g3, b3)

    # Drop the built-in padding rows/column and go back to NCHW.
    out = out2d.reshape(n, img_rows, row_stride, cout)[:, 1:h + 1, :w]
    return out.transpose(0, 3, 1, 2)


def init_params(key, inplanes, planes, base_width=64, groups=1):
    """Deterministic synthetic params in PyTorch layouts (OIHW weights)."""
    width = int(planes * (base_width / 64.0)) * groups
    cout = planes * 4
    shapes = [(width, inplanes, 1, 1), (width, width, 3, 3), (cout, width, 1, 1)]
    params = []
    for shp in shapes:
        key, kw, kg, kb = jax.random.split(key, 4)
        fan_in = shp[1] * shp[2] * shp[3]
        wgt = jax.random.normal(kw, shp, jnp.float32) * (2.0 / fan_in) ** 0.5
        gamma = 1.0 + 0.1 * jax.random.normal(kg, (1, shp[0]), jnp.float32)
        beta = 0.1 * jax.random.normal(kb, (1, shp[0]), jnp.float32)
        params.append((wgt, gamma, beta))
    return params


def _reference(x, params):
    """Pure-JAX reference (f32 convs, training-mode BN)."""
    (w1, g1, b1), (w2, g2, b2), (w3, g3, b3) = params

    def conv(inp, wgt, pad):
        return jax.lax.conv_general_dilated(
            inp, wgt, window_strides=(1, 1), padding=((pad, pad), (pad, pad)),
            dimension_numbers=("NCHW", "OIHW", "NCHW"),
            precision=jax.lax.Precision.HIGHEST)

    def bn(y, g, b):
        mean = y.mean(axis=(0, 2, 3), keepdims=True)
        var = ((y - mean) ** 2).mean(axis=(0, 2, 3), keepdims=True)
        yn = (y - mean) * jax.lax.rsqrt(var + BN_EPS)
        return yn * g.reshape(1, -1, 1, 1) + b.reshape(1, -1, 1, 1)

    out = jax.nn.relu(bn(conv(x, w1, 0), g1, b1))
    out = jax.nn.relu(bn(conv(out, w2, 1), g2, b2))
    out = bn(conv(out, w3, 0), g3, b3)
    return jax.nn.relu(out + x)


if __name__ == "__main__":
    key = jax.random.PRNGKey(0)
    kx, kp = jax.random.split(key)

    # Bottleneck(inplanes=128, planes=32): width=32, out channels=128
    # (= inplanes so the identity shortcut is valid). Batch=2, 16x16 spatial.
    n, planes, h, w = 2, 32, 16, 16
    inplanes = planes * 4
    x = jax.random.normal(kx, (n, inplanes, h, w), jnp.float32)
    params = init_params(kp, inplanes, planes)

    fwd = jax.jit(bottleneck_forward)
    out = jax.block_until_ready(fwd(x, params))
    assert out.shape == (n, inplanes, h, w), out.shape
    assert bool(jnp.all(jnp.isfinite(out)))

    ref = jax.block_until_ready(_reference(x, params))
    err = float(jnp.max(jnp.abs(out - ref)))
    assert err < 2e-1, f"max abs err vs reference: {err}"  # bf16 MXU vs f32 ref

    print("KERNEL_OK")
</pallas_src>

<mosaic_0001>
module attributes {stable_mosaic.version = 11 : i64} {
  func.func @_bottleneck_kernel(%arg0: i32, %arg1: memref<612x128xbf16, #tpu.memory_space<vmem>>, %arg2: memref<612x1xf32, #tpu.memory_space<vmem>>, %arg3: memref<128x32xbf16, #tpu.memory_space<vmem>>, %arg4: memref<1x32xf32, #tpu.memory_space<vmem>>, %arg5: memref<1x32xf32, #tpu.memory_space<vmem>>, %arg6: memref<288x32xbf16, #tpu.memory_space<vmem>>, %arg7: memref<1x32xf32, #tpu.memory_space<vmem>>, %arg8: memref<1x32xf32, #tpu.memory_space<vmem>>, %arg9: memref<32x128xbf16, #tpu.memory_space<vmem>>, %arg10: memref<1x128xf32, #tpu.memory_space<vmem>>, %arg11: memref<1x128xf32, #tpu.memory_space<vmem>>, %arg12: memref<612x128xf32, #tpu.memory_space<vmem>>, %arg13: memref<660x32xbf16, #tpu.memory_space<vmem>>, %arg14: memref<612x288xbf16, #tpu.memory_space<vmem>>) attributes {dimension_semantics = [#tpu.dimension_semantics<arbitrary>], iteration_bounds = array<i64: 1>, scalar_prefetch = 0 : i64, scratch_operands = 2 : i64, tpu.core_type = #tpu.core_type<tc>, window_params = [{pipeline_mode = #tpu.pipeline_mode<synchronous>, transform_indices = @transform_0, window_bounds = array<i64: 612, 128>}, {pipeline_mode = #tpu.pipeline_mode<synchronous>, transform_indices = @transform_1, window_bounds = array<i64: 612, 1>}, {pipeline_mode = #tpu.pipeline_mode<synchronous>, transform_indices = @transform_2, window_bounds = array<i64: 128, 32>}, {pipeline_mode = #tpu.pipeline_mode<synchronous>, transform_indices = @transform_3, window_bounds = array<i64: 1, 32>}, {pipeline_mode = #tpu.pipeline_mode<synchronous>, transform_indices = @transform_4, window_bounds = array<i64: 1, 32>}, {pipeline_mode = #tpu.pipeline_mode<synchronous>, transform_indices = @transform_5, window_bounds = array<i64: 288, 32>}, {pipeline_mode = #tpu.pipeline_mode<synchronous>, transform_indices = @transform_6, window_bounds = array<i64: 1, 32>}, {pipeline_mode = #tpu.pipeline_mode<synchronous>, transform_indices = @transform_7, window_bounds = array<i64: 1, 32>}, {pipeline_mode = #tpu.pipeline_mode<synchronous>, transform_indices = @transform_8, window_bounds = array<i64: 32, 128>}, {pipeline_mode = #tpu.pipeline_mode<synchronous>, transform_indices = @transform_9, window_bounds = array<i64: 1, 128>}, {pipeline_mode = #tpu.pipeline_mode<synchronous>, transform_indices = @transform_10, window_bounds = array<i64: 1, 128>}, {pipeline_mode = #tpu.pipeline_mode<synchronous>, transform_indices = @transform_11, window_bounds = array<i64: 612, 128>}]} {
    %c0 = arith.constant 0 : index
    %c0_0 = arith.constant 0 : index
    %0 = vector.load %arg2[%c0, %c0_0] : memref<612x1xf32, #tpu.memory_space<vmem>>, vector<612x1xf32>
    %c0_1 = arith.constant 0 : index
    %c0_2 = arith.constant 0 : index
    %1 = vector.load %arg1[%c0_1, %c0_2] : memref<612x128xbf16, #tpu.memory_space<vmem>>, vector<612x128xbf16>
    %c0_3 = arith.constant 0 : index
    %c0_4 = arith.constant 0 : index
    %2 = vector.load %arg3[%c0_3, %c0_4] : memref<128x32xbf16, #tpu.memory_space<vmem>>, vector<128x32xbf16>
    %cst = arith.constant dense<0.000000e+00> : vector<612x32xf32>
    %3 = tpu.matmul %1, %2, %cst {dimension_numbers = #tpu.dot_dimension_numbers<[1], [0], [0], [1], [0, 0, 1, 1], [], []>} : vector<612x128xbf16>, vector<128x32xbf16>, vector<612x32xf32> -> vector<612x32xf32>
    %c0_5 = arith.constant 0 : index
    %c0_6 = arith.constant 0 : index
    %4 = vector.load %arg4[%c0_5, %c0_6] : memref<1x32xf32, #tpu.memory_space<vmem>>, vector<1x32xf32>
    %c0_7 = arith.constant 0 : index
    %c0_8 = arith.constant 0 : index
    %5 = vector.load %arg5[%c0_7, %c0_8] : memref<1x32xf32, #tpu.memory_space<vmem>>, vector<1x32xf32>
    %cst_9 = arith.constant dense<0.000000e+00> : vector<32xf32>
    %6 = vector.multi_reduction <add>, %3, %cst_9 [0] : vector<612x32xf32> to vector<32xf32>
    %7 = vector.shape_cast %6 : vector<32xf32> to vector<1x32xf32>
    %8 = arith.mulf %3, %3 : vector<612x32xf32>
    %cst_10 = arith.constant dense<0.000000e+00> : vector<32xf32>
    %9 = vector.multi_reduction <add>, %8, %cst_10 [0] : vector<612x32xf32> to vector<32xf32>
    %10 = vector.shape_cast %9 : vector<32xf32> to vector<1x32xf32>
    %cst_11 = arith.constant 0.001953125 : f32
    %11 = vector.broadcast %cst_11 : f32 to vector<1x32xf32>
    %12 = arith.mulf %7, %11 : vector<1x32xf32>
    %cst_12 = arith.constant 0.001953125 : f32
    %13 = vector.broadcast %cst_12 : f32 to vector<1x32xf32>
    %14 = arith.mulf %10, %13 : vector<1x32xf32>
    %15 = arith.mulf %12, %12 : vector<1x32xf32>
    %16 = arith.subf %14, %15 : vector<1x32xf32>
    %cst_13 = arith.constant 9.99999974E-6 : f32
    %17 = vector.broadcast %cst_13 : f32 to vector<1x32xf32>
    %18 = arith.addf %16, %17 : vector<1x32xf32>
    %19 = math.rsqrt %18 : vector<1x32xf32>
    %20 = arith.mulf %4, %19 : vector<1x32xf32>
    %21 = arith.mulf %12, %20 : vector<1x32xf32>
    %22 = arith.subf %5, %21 : vector<1x32xf32>
    %23 = vector.broadcast %20 : vector<1x32xf32> to vector<612x32xf32>
    %24 = arith.mulf %3, %23 : vector<612x32xf32>
    %25 = vector.broadcast %22 : vector<1x32xf32> to vector<612x32xf32>
    %26 = arith.addf %24, %25 : vector<612x32xf32>
    %cst_14 = arith.constant 0.000000e+00 : f32
    %27 = vector.broadcast %cst_14 : f32 to vector<612x32xf32>
    %28 = arith.maximumf %26, %27 : vector<612x32xf32>
    %29 = vector.broadcast %0 : vector<612x1xf32> to vector<612x32xf32>
    %30 = arith.mulf %28, %29 : vector<612x32xf32>
    %cst_15 = arith.constant 0.000000e+00 : bf16
    %31 = vector.broadcast %cst_15 : bf16 to vector<24x32xbf16>
    %c0_16 = arith.constant 0 : index
    %c0_17 = arith.constant 0 : index
    %32 = vector.load %arg13[%c0_16, %c0_17] : memref<660x32xbf16, #tpu.memory_space<vmem>>, vector<24x32xbf16>
    tpu.vector_store %arg13[%c0_16, %c0_17], %31 {strides = array<i32>} : memref<660x32xbf16, #tpu.memory_space<vmem>>, vector<24x32xbf16>,
    %c636 = arith.constant 636 : index
    %c0_18 = arith.constant 0 : index
    %33 = vector.load %arg13[%c636, %c0_18] : memref<660x32xbf16, #tpu.memory_space<vmem>>, vector<24x32xbf16>
    tpu.vector_store %arg13[%c636, %c0_18], %31 {strides = array<i32>} : memref<660x32xbf16, #tpu.memory_space<vmem>>, vector<24x32xbf16>,
    %34 = arith.truncf %30 : vector<612x32xf32> to vector<612x32xbf16>
    %c24 = arith.constant 24 : index
    %c0_19 = arith.constant 0 : index
    %35 = vector.load %arg13[%c24, %c0_19] : memref<660x32xbf16, #tpu.memory_space<vmem>>, vector<612x32xbf16>
    tpu.vector_store %arg13[%c24, %c0_19], %34 {strides = array<i32>} : memref<660x32xbf16, #tpu.memory_space<vmem>>, vector<612x32xbf16>,
    %c6 = arith.constant 6 : index
    %c0_20 = arith.constant 0 : index
    %36 = vector.load %arg13[%c6, %c0_20] : memref<660x32xbf16, #tpu.memory_space<vmem>>, vector<612x32xbf16>
    %c0_21 = arith.constant 0 : index
    %c0_22 = arith.constant 0 : index
    %37 = vector.load %arg14[%c0_21, %c0_22] : memref<612x288xbf16, #tpu.memory_space<vmem>>, vector<612x32xbf16>
    tpu.vector_store %arg14[%c0_21, %c0_22], %36 {strides = array<i32>} : memref<612x288xbf16, #tpu.memory_space<vmem>>, vector<612x32xbf16>,
    %c7 = arith.constant 7 : index
    %c0_23 = arith.constant 0 : index
    %38 = vector.load %arg13[%c7, %c0_23] : memref<660x32xbf16, #tpu.memory_space<vmem>>, vector<612x32xbf16>
    %c0_24 = arith.constant 0 : index
    %c32 = arith.constant 32 : index
    %39 = vector.load %arg14[%c0_24, %c32] : memref<612x288xbf16, #tpu.memory_space<vmem>>, vector<612x32xbf16>
    tpu.vector_store %arg14[%c0_24, %c32], %38 {strides = array<i32>} : memref<612x288xbf16, #tpu.memory_space<vmem>>, vector<612x32xbf16>,
    %c8 = arith.constant 8 : index
    %c0_25 = arith.constant 0 : index
    %40 = vector.load %arg13[%c8, %c0_25] : memref<660x32xbf16, #tpu.memory_space<vmem>>, vector<612x32xbf16>
    %c0_26 = arith.constant 0 : index
    %c64 = arith.constant 64 : index
    %41 = vector.load %arg14[%c0_26, %c64] : memref<612x288xbf16, #tpu.memory_space<vmem>>, vector<612x32xbf16>
    tpu.vector_store %arg14[%c0_26, %c64], %40 {strides = array<i32>} : memref<612x288xbf16, #tpu.memory_space<vmem>>, vector<612x32xbf16>,
    %c23 = arith.constant 23 : index
    %c0_27 = arith.constant 0 : index
    %42 = vector.load %arg13[%c23, %c0_27] : memref<660x32xbf16, #tpu.memory_space<vmem>>, vector<612x32xbf16>
    %c0_28 = arith.constant 0 : index
    %c96 = arith.constant 96 : index
    %43 = vector.load %arg14[%c0_28, %c96] : memref<612x288xbf16, #tpu.memory_space<vmem>>, vector<612x32xbf16>
    tpu.vector_store %arg14[%c0_28, %c96], %42 {strides = array<i32>} : memref<612x288xbf16, #tpu.memory_space<vmem>>, vector<612x32xbf16>,
    %c24_29 = arith.constant 24 : index
    %c0_30 = arith.constant 0 : index
    %44 = vector.load %arg13[%c24_29, %c0_30] : memref<660x32xbf16, #tpu.memory_space<vmem>>, vector<612x32xbf16>
    %c0_31 = arith.constant 0 : index
    %c128 = arith.constant 128 : index
    %45 = vector.load %arg14[%c0_31, %c128] : memref<612x288xbf16, #tpu.memory_space<vmem>>, vector<612x32xbf16>
    tpu.vector_store %arg14[%c0_31, %c128], %44 {strides = array<i32>} : memref<612x288xbf16, #tpu.memory_space<vmem>>, vector<612x32xbf16>,
    %c25 = arith.constant 25 : index
    %c0_32 = arith.constant 0 : index
    %46 = vector.load %arg13[%c25, %c0_32] : memref<660x32xbf16, #tpu.memory_space<vmem>>, vector<612x32xbf16>
    %c0_33 = arith.constant 0 : index
    %c160 = arith.constant 160 : index
    %47 = vector.load %arg14[%c0_33, %c160] : memref<612x288xbf16, #tpu.memory_space<vmem>>, vector<612x32xbf16>
    tpu.vector_store %arg14[%c0_33, %c160], %46 {strides = array<i32>} : memref<612x288xbf16, #tpu.memory_space<vmem>>, vector<612x32xbf16>,
    %c40 = arith.constant 40 : index
    %c0_34 = arith.constant 0 : index
    %48 = vector.load %arg13[%c40, %c0_34] : memref<660x32xbf16, #tpu.memory_space<vmem>>, vector<612x32xbf16>
    %c0_35 = arith.constant 0 : index
    %c192 = arith.constant 192 : index
    %49 = vector.load %arg14[%c0_35, %c192] : memref<612x288xbf16, #tpu.memory_space<vmem>>, vector<612x32xbf16>
    tpu.vector_store %arg14[%c0_35, %c192], %48 {strides = array<i32>} : memref<612x288xbf16, #tpu.memory_space<vmem>>, vector<612x32xbf16>,
    %c41 = arith.constant 41 : index
    %c0_36 = arith.constant 0 : index
    %50 = vector.load %arg13[%c41, %c0_36] : memref<660x32xbf16, #tpu.memory_space<vmem>>, vector<612x32xbf16>
    %c0_37 = arith.constant 0 : index
    %c224 = arith.constant 224 : index
    %51 = vector.load %arg14[%c0_37, %c224] : memref<612x288xbf16, #tpu.memory_space<vmem>>, vector<612x32xbf16>
    tpu.vector_store %arg14[%c0_37, %c224], %50 {strides = array<i32>} : memref<612x288xbf16, #tpu.memory_space<vmem>>, vector<612x32xbf16>,
    %c42 = arith.constant 42 : index
    %c0_38 = arith.constant 0 : index
    %52 = vector.load %arg13[%c42, %c0_38] : memref<660x32xbf16, #tpu.memory_space<vmem>>, vector<612x32xbf16>
    %c0_39 = arith.constant 0 : index
    %c256 = arith.constant 256 : index
    %53 = vector.load %arg14[%c0_39, %c256] : memref<612x288xbf16, #tpu.memory_space<vmem>>, vector<612x32xbf16>
    tpu.vector_store %arg14[%c0_39, %c256], %52 {strides = array<i32>} : memref<612x288xbf16, #tpu.memory_space<vmem>>, vector<612x32xbf16>,
    %c0_40 = arith.constant 0 : index
    %c0_41 = arith.constant 0 : index
    %54 = vector.load %arg14[%c0_40, %c0_41] : memref<612x288xbf16, #tpu.memory_space<vmem>>, vector<612x288xbf16>
    %c0_42 = arith.constant 0 : index
    %c0_43 = arith.constant 0 : index
    %55 = vector.load %arg6[%c0_42, %c0_43] : memref<288x32xbf16, #tpu.memory_space<vmem>>, vector<288x32xbf16>
    %cst_44 = arith.constant dense<0.000000e+00> : vector<612x32xf32>
    %56 = tpu.matmul %54, %55, %cst_44 {dimension_numbers = #tpu.dot_dimension_numbers<[1], [0], [0], [1], [0, 0, 1, 1], [], []>} : vector<612x288xbf16>, vector<288x32xbf16>, vector<612x32xf32> -> vector<612x32xf32>
    %c0_45 = arith.constant 0 : index
    %c0_46 = arith.constant 0 : index
    %57 = vector.load %arg7[%c0_45, %c0_46] : memref<1x32xf32, #tpu.memory_space<vmem>>, vector<1x32xf32>
    %c0_47 = arith.constant 0 : index
    %c0_48 = arith.constant 0 : index
    %58 = vector.load %arg8[%c0_47, %c0_48] : memref<1x32xf32, #tpu.memory_space<vmem>>, vector<1x32xf32>
    %59 = vector.broadcast %0 : vector<612x1xf32> to vector<612x32xf32>
    %60 = arith.mulf %56, %59 : vector<612x32xf32>
    %cst_49 = arith.constant dense<0.000000e+00> : vector<32xf32>
    %61 = vector.multi_reduction <add>, %60, %cst_49 [0] : vector<612x32xf32> to vector<32xf32>
    %62 = vector.shape_cast %61 : vector<32xf32> to vector<1x32xf32>
    %63 = arith.mulf %60, %60 : vector<612x32xf32>
    %cst_50 = arith.constant dense<0.000000e+00> : vector<32xf32>
    %64 = vector.multi_reduction <add>, %63, %cst_50 [0] : vector<612x32xf32> to vector<32xf32>
    %65 = vector.shape_cast %64 : vector<32xf32> to vector<1x32xf32>
    %cst_51 = arith.constant 0.001953125 : f32
    %66 = vector.broadcast %cst_51 : f32 to vector<1x32xf32>
    %67 = arith.mulf %62, %66 : vector<1x32xf32>
    %cst_52 = arith.constant 0.001953125 : f32
    %68 = vector.broadcast %cst_52 : f32 to vector<1x32xf32>
    %69 = arith.mulf %65, %68 : vector<1x32xf32>
    %70 = arith.mulf %67, %67 : vector<1x32xf32>
    %71 = arith.subf %69, %70 : vector<1x32xf32>
    %cst_53 = arith.constant 9.99999974E-6 : f32
    %72 = vector.broadcast %cst_53 : f32 to vector<1x32xf32>
    %73 = arith.addf %71, %72 : vector<1x32xf32>
    %74 = math.rsqrt %73 : vector<1x32xf32>
    %75 = arith.mulf %57, %74 : vector<1x32xf32>
    %76 = arith.mulf %67, %75 : vector<1x32xf32>
    %77 = arith.subf %58, %76 : vector<1x32xf32>
    %78 = vector.broadcast %75 : vector<1x32xf32> to vector<612x32xf32>
    %79 = arith.mulf %56, %78 : vector<612x32xf32>
    %80 = vector.broadcast %77 : vector<1x32xf32> to vector<612x32xf32>
    %81 = arith.addf %79, %80 : vector<612x32xf32>
    %cst_54 = arith.constant 0.000000e+00 : f32
    %82 = vector.broadcast %cst_54 : f32 to vector<612x32xf32>
    %83 = arith.maximumf %81, %82 : vector<612x32xf32>
    %84 = vector.broadcast %0 : vector<612x1xf32> to vector<612x32xf32>
    %85 = arith.mulf %83, %84 : vector<612x32xf32>
    %86 = arith.truncf %85 : vector<612x32xf32> to vector<612x32xbf16>
    %c0_55 = arith.constant 0 : index
    %c0_56 = arith.constant 0 : index
    %87 = vector.load %arg9[%c0_55, %c0_56] : memref<32x128xbf16, #tpu.memory_space<vmem>>, vector<32x128xbf16>
    %cst_57 = arith.constant dense<0.000000e+00> : vector<612x128xf32>
    %88 = tpu.matmul %86, %87, %cst_57 {dimension_numbers = #tpu.dot_dimension_numbers<[1], [0], [0], [1], [0, 0, 1, 1], [], []>} : vector<612x32xbf16>, vector<32x128xbf16>, vector<612x128xf32> -> vector<612x128xf32>
    %c0_58 = arith.constant 0 : index
    %c0_59 = arith.constant 0 : index
    %89 = vector.load %arg10[%c0_58, %c0_59] : memref<1x128xf32, #tpu.memory_space<vmem>>, vector<1x128xf32>
    %c0_60 = arith.constant 0 : index
    %c0_61 = arith.constant 0 : index
    %90 = vector.load %arg11[%c0_60, %c0_61] : memref<1x128xf32, #tpu.memory_space<vmem>>, vector<1x128xf32>
    %cst_62 = arith.constant dense<0.000000e+00> : vector<128xf32>
    %91 = vector.multi_reduction <add>, %88, %cst_62 [0] : vector<612x128xf32> to vector<128xf32>
    %92 = vector.shape_cast %91 : vector<128xf32> to vector<1x128xf32>
    %93 = arith.mulf %88, %88 : vector<612x128xf32>
    %cst_63 = arith.constant dense<0.000000e+00> : vector<128xf32>
    %94 = vector.multi_reduction <add>, %93, %cst_63 [0] : vector<612x128xf32> to vector<128xf32>
    %95 = vector.shape_cast %94 : vector<128xf32> to vector<1x128xf32>
    %cst_64 = arith.constant 0.001953125 : f32
    %96 = vector.broadcast %cst_64 : f32 to vector<1x128xf32>
    %97 = arith.mulf %92, %96 : vector<1x128xf32>
    %cst_65 = arith.constant 0.001953125 : f32
    %98 = vector.broadcast %cst_65 : f32 to vector<1x128xf32>
    %99 = arith.mulf %95, %98 : vector<1x128xf32>
    %100 = arith.mulf %97, %97 : vector<1x128xf32>
    %101 = arith.subf %99, %100 : vector<1x128xf32>
    %cst_66 = arith.constant 9.99999974E-6 : f32
    %102 = vector.broadcast %cst_66 : f32 to vector<1x128xf32>
    %103 = arith.addf %101, %102 : vector<1x128xf32>
    %104 = math.rsqrt %103 : vector<1x128xf32>
    %105 = arith.mulf %89, %104 : vector<1x128xf32>
    %106 = arith.mulf %97, %105 : vector<1x128xf32>
    %107 = arith.subf %90, %106 : vector<1x128xf32>
    %108 = vector.broadcast %105 : vector<1x128xf32> to vector<612x128xf32>
    %109 = arith.mulf %88, %108 : vector<612x128xf32>
    %110 = vector.broadcast %107 : vector<1x128xf32> to vector<612x128xf32>
    %111 = arith.addf %109, %110 : vector<612x128xf32>
    %c0_67 = arith.constant 0 : index
    %c0_68 = arith.constant 0 : index
    %112 = vector.load %arg1[%c0_67, %c0_68] : memref<612x128xbf16, #tpu.memory_space<vmem>>, vector<612x128xbf16>
    %113 = arith.extf %112 : vector<612x128xbf16> to vector<612x128xf32>
    %114 = arith.addf %111, %113 : vector<612x128xf32>
    %cst_69 = arith.constant 0.000000e+00 : f32
    %115 = vector.broadcast %cst_69 : f32 to vector<612x128xf32>
    %116 = arith.maximumf %114, %115 : vector<612x128xf32>
    %c0_70 = arith.constant 0 : index
    %c0_71 = arith.constant 0 : index
    %117 = vector.load %arg12[%c0_70, %c0_71] : memref<612x128xf32, #tpu.memory_space<vmem>>, vector<612x128xf32>
    tpu.vector_store %arg12[%c0_70, %c0_71], %116 {strides = array<i32>} : memref<612x128xf32, #tpu.memory_space<vmem>>, vector<612x128xf32>,
    return
  }
  func.func @transform_0(%arg0: i32) -> (i32, i32) {
    %c0_i32 = arith.constant 0 : i32
    %c0_i32_0 = arith.constant 0 : i32
    %c0_i32_1 = arith.constant 0 : i32
    return %c0_i32, %c0_i32_0 : i32, i32
  }
  func.func @transform_1(%arg0: i32) -> (i32, i32) {
    %c0_i32 = arith.constant 0 : i32
    %c0_i32_0 = arith.constant 0 : i32
    %c0_i32_1 = arith.constant 0 : i32
    return %c0_i32, %c0_i32_0 : i32, i32
  }
  func.func @transform_2(%arg0: i32) -> (i32, i32) {
    %c0_i32 = arith.constant 0 : i32
    %c0_i32_0 = arith.constant 0 : i32
    %c0_i32_1 = arith.constant 0 : i32
    return %c0_i32, %c0_i32_0 : i32, i32
  }
  func.func @transform_3(%arg0: i32) -> (i32, i32) {
    %c0_i32 = arith.constant 0 : i32
    %c0_i32_0 = arith.constant 0 : i32
    %c0_i32_1 = arith.constant 0 : i32
    return %c0_i32, %c0_i32_0 : i32, i32
  }
  func.func @transform_4(%arg0: i32) -> (i32, i32) {
    %c0_i32 = arith.constant 0 : i32
    %c0_i32_0 = arith.constant 0 : i32
    %c0_i32_1 = arith.constant 0 : i32
    return %c0_i32, %c0_i32_0 : i32, i32
  }
  func.func @transform_5(%arg0: i32) -> (i32, i32) {
    %c0_i32 = arith.constant 0 : i32
    %c0_i32_0 = arith.constant 0 : i32
    %c0_i32_1 = arith.constant 0 : i32
    return %c0_i32, %c0_i32_0 : i32, i32
  }
  func.func @transform_6(%arg0: i32) -> (i32, i32) {
    %c0_i32 = arith.constant 0 : i32
    %c0_i32_0 = arith.constant 0 : i32
    %c0_i32_1 = arith.constant 0 : i32
    return %c0_i32, %c0_i32_0 : i32, i32
  }
  func.func @transform_7(%arg0: i32) -> (i32, i32) {
    %c0_i32 = arith.constant 0 : i32
    %c0_i32_0 = arith.constant 0 : i32
    %c0_i32_1 = arith.constant 0 : i32
    return %c0_i32, %c0_i32_0 : i32, i32
  }
  func.func @transform_8(%arg0: i32) -> (i32, i32) {
    %c0_i32 = arith.constant 0 : i32
    %c0_i32_0 = arith.constant 0 : i32
    %c0_i32_1 = arith.constant 0 : i32
    return %c0_i32, %c0_i32_0 : i32, i32
  }
  func.func @transform_9(%arg0: i32) -> (i32, i32) {
    %c0_i32 = arith.constant 0 : i32
    %c0_i32_0 = arith.constant 0 : i32
    %c0_i32_1 = arith.constant 0 : i32
    return %c0_i32, %c0_i32_0 : i32, i32
  }
  func.func @transform_10(%arg0: i32) -> (i32, i32) {
    %c0_i32 = arith.constant 0 : i32
    %c0_i32_0 = arith.constant 0 : i32
    %c0_i32_1 = arith.constant 0 : i32
    return %c0_i32, %c0_i32_0 : i32, i32
  }
  func.func @transform_11(%arg0: i32) -> (i32, i32) {
    %c0_i32 = arith.constant 0 : i32
    %c0_i32_0 = arith.constant 0 : i32
    %c0_i32_1 = arith.constant 0 : i32
    return %c0_i32, %c0_i32_0 : i32, i32
  }
}

</mosaic_0001>

<llo_original>
// kernel: bottleneck_forward.1
$region0: #{bottleneck_forward.1}
  #allocation0 [shape = 'u32[]', space=smem, size = 0x4, offset = 0x4, fixed_abs, tag = 'smem constant byte address 0x4 - core index']
  #allocation1 [shape = 'u32[144,128]{1,0:T(1,128)}', space=vmem, size = 0x12000, scoped, tag = 'internal scratch']
  #allocation2 [shape = 'bf16[660,32]{1,0:T(8,128)(2,1)}', space=vmem, size = 0x29800, scoped, tag = 'scratch operand']
  #allocation3 [shape = 'bf16[612,288]{1,0:T(8,128)(2,1)}', space=vmem, size = 0x73800, scoped, tag = 'scratch operand']
  %s0 = inlined_call_operand.vmem [shape: bf16[612,128], index: 0, kind: input, shape index: {}]
  %s1 = inlined_call_operand.vmem [shape: f32[612,1], index: 1, kind: input, shape index: {}]
  %s2 = inlined_call_operand.vmem [shape: bf16[128,32], index: 2, kind: input, shape index: {}]
  %s3 = inlined_call_operand.vmem [shape: f32[1,32], index: 3, kind: input, shape index: {}]
  %s4 = inlined_call_operand.vmem [shape: f32[1,32], index: 4, kind: input, shape index: {}]
  %s5 = inlined_call_operand.vmem [shape: bf16[288,32], index: 5, kind: input, shape index: {}]
  %s6 = inlined_call_operand.vmem [shape: f32[1,32], index: 6, kind: input, shape index: {}]
  %s7 = inlined_call_operand.vmem [shape: f32[1,32], index: 7, kind: input, shape index: {}]
  %s8 = inlined_call_operand.vmem [shape: bf16[32,128], index: 8, kind: input, shape index: {}]
  %s9 = inlined_call_operand.vmem [shape: f32[1,128], index: 9, kind: input, shape index: {}]
  %s10 = inlined_call_operand.vmem [shape: f32[1,128], index: 10, kind: input, shape index: {}]
  %s11 = inlined_call_operand.vmem [shape: f32[612,128], index: 11, kind: output, shape index: {}]
  %s12 = sld [smem:[#allocation0]]
  $region54: #{bottleneck_forward.1} parent=0
    _
  %s14 = ssub.s32 1, %s12
  %s15 = scalar_select 0, %s14, %s12
  // Predicated region
  $region2: #{bottleneck_forward.1} parent=0 // pred_check
    _
  $region3: #{bottleneck_forward.1} parent=0 // pred_check_branch
    %17 = sbr.rel (0) target = $region5
  $region4: #{bottleneck_forward.1} parent=0 // pred_region
    _
  $region5: #{bottleneck_forward.1} parent=0 // pred_fallthru
    _
  // Predicated region
  $region6: #{bottleneck_forward.1} parent=0 // pred_check
    _
  $region7: #{bottleneck_forward.1} parent=0 // pred_check_branch
    %19 = sbr.rel (0) target = $region9
  $region8: #{bottleneck_forward.1} parent=0 // pred_region
    _
  $region9: #{bottleneck_forward.1} parent=0 // pred_fallthru
    _
  // Predicated region
  $region10: #{bottleneck_forward.1} parent=0 // pred_check
    _
  $region11: #{bottleneck_forward.1} parent=0 // pred_check_branch
    %21 = sbr.rel (0) target = $region13
  $region12: #{bottleneck_forward.1} parent=0 // pred_region
    _
  $region13: #{bottleneck_forward.1} parent=0 // pred_fallthru
    _
  // Predicated region
  $region14: #{bottleneck_forward.1} parent=0 // pred_check
    _
  $region15: #{bottleneck_forward.1} parent=0 // pred_check_branch
    %23 = sbr.rel (0) target = $region17
  $region16: #{bottleneck_forward.1} parent=0 // pred_region
    _
  $region17: #{bottleneck_forward.1} parent=0 // pred_fallthru
    _
  // Predicated region
  $region18: #{bottleneck_forward.1} parent=0 // pred_check
    _
  $region19: #{bottleneck_forward.1} parent=0 // pred_check_branch
    %25 = sbr.rel (0) target = $region21
  $region20: #{bottleneck_forward.1} parent=0 // pred_region
    _
  $region21: #{bottleneck_forward.1} parent=0 // pred_fallthru
    _
  // Predicated region
  $region22: #{bottleneck_forward.1} parent=0 // pred_check
    _
  $region23: #{bottleneck_forward.1} parent=0 // pred_check_branch
    %27 = sbr.rel (0) target = $region25
  $region24: #{bottleneck_forward.1} parent=0 // pred_region
    _
  $region25: #{bottleneck_forward.1} parent=0 // pred_fallthru
    _
  // Predicated region
  $region26: #{bottleneck_forward.1} parent=0 // pred_check
    _
  $region27: #{bottleneck_forward.1} parent=0 // pred_check_branch
    %29 = sbr.rel (0) target = $region29
  $region28: #{bottleneck_forward.1} parent=0 // pred_region
    _
  $region29: #{bottleneck_forward.1} parent=0 // pred_fallthru
    _
  // Predicated region
  $region30: #{bottleneck_forward.1} parent=0 // pred_check
    _
  $region31: #{bottleneck_forward.1} parent=0 // pred_check_branch
    %31 = sbr.rel (0) target = $region33
  $region32: #{bottleneck_forward.1} parent=0 // pred_region
    _
  $region33: #{bottleneck_forward.1} parent=0 // pred_fallthru
    _
  // Predicated region
  $region34: #{bottleneck_forward.1} parent=0 // pred_check
    _
  $region35: #{bottleneck_forward.1} parent=0 // pred_check_branch
    %33 = sbr.rel (0) target = $region37
  $region36: #{bottleneck_forward.1} parent=0 // pred_region
    _
  $region37: #{bottleneck_forward.1} parent=0 // pred_fallthru
    _
  // Predicated region
  $region38: #{bottleneck_forward.1} parent=0 // pred_check
    _
  $region39: #{bottleneck_forward.1} parent=0 // pred_check_branch
    %35 = sbr.rel (0) target = $region41
  $region40: #{bottleneck_forward.1} parent=0 // pred_region
    _
  $region41: #{bottleneck_forward.1} parent=0 // pred_fallthru
    _
  // Predicated region
  $region42: #{bottleneck_forward.1} parent=0 // pred_check
    _
  $region43: #{bottleneck_forward.1} parent=0 // pred_check_branch
    %37 = sbr.rel (0) target = $region45
  $region44: #{bottleneck_forward.1} parent=0 // pred_region
    _
  $region45: #{bottleneck_forward.1} parent=0 // pred_fallthru
    _
  %v39 = vld [vmem:[%s1] sm:$0xff]
  %v40 = vld [vmem:[%s1 + $0x8] sm:$0xff]
  %v41 = vld [vmem:[%s1 + $0x10] sm:$0xff]
  %v42 = vld [vmem:[%s1 + $0x18] sm:$0xff]
  %v43 = vld [vmem:[%s1 + $0x20] sm:$0xff]
  %v44 = vld [vmem:[%s1 + $0x28] sm:$0xff]
  %v45 = vld [vmem:[%s1 + $0x30] sm:$0xff]
  %v46 = vld [vmem:[%s1 + $0x38] sm:$0xff]
  %v47 = vld [vmem:[%s1 + $0x40] sm:$0xff]
  %v48 = vld [vmem:[%s1 + $0x48] sm:$0xff]
  %v49 = vld [vmem:[%s1 + $0x50] sm:$0xff]
  %v50 = vld [vmem:[%s1 + $0x58] sm:$0xff]
  %v51 = vld [vmem:[%s1 + $0x60] sm:$0xff]
  %v52 = vld [vmem:[%s1 + $0x68] sm:$0xff]
  %v53 = vld [vmem:[%s1 + $0x70] sm:$0xff]
  %v54 = vld [vmem:[%s1 + $0x78] sm:$0xff]
  %v55 = vld [vmem:[%s1 + $0x80] sm:$0xff]
  %v56 = vld [vmem:[%s1 + $0x88] sm:$0xff]
  %v57 = vld [vmem:[%s1 + $0x90] sm:$0xff]
  %v58 = vld [vmem:[%s1 + $0x98] sm:$0xff]
  %v59 = vld [vmem:[%s1 + $0xa0] sm:$0xff]
  %v60 = vld [vmem:[%s1 + $0xa8] sm:$0xff]
  %v61 = vld [vmem:[%s1 + $0xb0] sm:$0xff]
  %v62 = vld [vmem:[%s1 + $0xb8] sm:$0xff]
  %v63 = vld [vmem:[%s1 + $0xc0] sm:$0xff]
  %v64 = vld [vmem:[%s1 + $0xc8] sm:$0xff]
  %v65 = vld [vmem:[%s1 + $0xd0] sm:$0xff]
  %v66 = vld [vmem:[%s1 + $0xd8] sm:$0xff]
  %v67 = vld [vmem:[%s1 + $0xe0] sm:$0xff]
  %v68 = vld [vmem:[%s1 + $0xe8] sm:$0xff]
  %v69 = vld [vmem:[%s1 + $0xf0] sm:$0xff]
  %v70 = vld [vmem:[%s1 + $0xf8] sm:$0xff]
  %v71 = vld [vmem:[%s1 + $0x100] sm:$0xff]
  %v72 = vld [vmem:[%s1 + $0x108] sm:$0xff]
  %v73 = vld [vmem:[%s1 + $0x110] sm:$0xff]
  %v74 = vld [vmem:[%s1 + $0x118] sm:$0xff]
  %v75 = vld [vmem:[%s1 + $0x120] sm:$0xff]
  %v76 = vld [vmem:[%s1 + $0x128] sm:$0xff]
  %v77 = vld [vmem:[%s1 + $0x130] sm:$0xff]
  %v78 = vld [vmem:[%s1 + $0x138] sm:$0xff]
  %v79 = vld [vmem:[%s1 + $0x140] sm:$0xff]
  %v80 = vld [vmem:[%s1 + $0x148] sm:$0xff]
  %v81 = vld [vmem:[%s1 + $0x150] sm:$0xff]
  %v82 = vld [vmem:[%s1 + $0x158] sm:$0xff]
  %v83 = vld [vmem:[%s1 + $0x160] sm:$0xff]
  %v84 = vld [vmem:[%s1 + $0x168] sm:$0xff]
  %v85 = vld [vmem:[%s1 + $0x170] sm:$0xff]
  %v86 = vld [vmem:[%s1 + $0x178] sm:$0xff]
  %v87 = vld [vmem:[%s1 + $0x180] sm:$0xff]
  %v88 = vld [vmem:[%s1 + $0x188] sm:$0xff]
  %v89 = vld [vmem:[%s1 + $0x190] sm:$0xff]
  %v90 = vld [vmem:[%s1 + $0x198] sm:$0xff]
  %v91 = vld [vmem:[%s1 + $0x1a0] sm:$0xff]
  %v92 = vld [vmem:[%s1 + $0x1a8] sm:$0xff]
  %v93 = vld [vmem:[%s1 + $0x1b0] sm:$0xff]
  %v94 = vld [vmem:[%s1 + $0x1b8] sm:$0xff]
  %v95 = vld [vmem:[%s1 + $0x1c0] sm:$0xff]
  %v96 = vld [vmem:[%s1 + $0x1c8] sm:$0xff]
  %v97 = vld [vmem:[%s1 + $0x1d0] sm:$0xff]
  %v98 = vld [vmem:[%s1 + $0x1d8] sm:$0xff]
  %v99 = vld [vmem:[%s1 + $0x1e0] sm:$0xff]
  %v100 = vld [vmem:[%s1 + $0x1e8] sm:$0xff]
  %v101 = vld [vmem:[%s1 + $0x1f0] sm:$0xff]
  %v102 = vld [vmem:[%s1 + $0x1f8] sm:$0xff]
  %v103 = vld [vmem:[%s1 + $0x200] sm:$0xff]
  %v104 = vld [vmem:[%s1 + $0x208] sm:$0xff]
  %v105 = vld [vmem:[%s1 + $0x210] sm:$0xff]
  %v106 = vld [vmem:[%s1 + $0x218] sm:$0xff]
  %v107 = vld [vmem:[%s1 + $0x220] sm:$0xff]
  %v108 = vld [vmem:[%s1 + $0x228] sm:$0xff]
  %v109 = vld [vmem:[%s1 + $0x230] sm:$0xff]
  %v110 = vld [vmem:[%s1 + $0x238] sm:$0xff]
  %v111 = vld [vmem:[%s1 + $0x240] sm:$0xff]
  %v112 = vld [vmem:[%s1 + $0x248] sm:$0xff]
  %v113 = vld [vmem:[%s1 + $0x250] sm:$0xff]
  %v114 = vld [vmem:[%s1 + $0x258] sm:$0xff]
  %v115 = vld [vmem:[%s1 + $0x260] sm:$0xf]
  %v116 = vld [vmem:[%s0] sm:$0xf]
  %v117 = vld [vmem:[%s0 + $0x4] sm:$0xf]
  %v118 = vld [vmem:[%s0 + $0x8] sm:$0xf]
  %v119 = vld [vmem:[%s0 + $0xc] sm:$0xf]
  %v120 = vld [vmem:[%s0 + $0x10] sm:$0xf]
  %v121 = vld [vmem:[%s0 + $0x14] sm:$0xf]
  %v122 = vld [vmem:[%s0 + $0x18] sm:$0xf]
  %v123 = vld [vmem:[%s0 + $0x1c] sm:$0xf]
  %v124 = vld [vmem:[%s0 + $0x20] sm:$0xf]
  %v125 = vld [vmem:[%s0 + $0x24] sm:$0xf]
  %v126 = vld [vmem:[%s0 + $0x28] sm:$0xf]
  %v127 = vld [vmem:[%s0 + $0x2c] sm:$0xf]
  %v128 = vld [vmem:[%s0 + $0x30] sm:$0xf]
  %v129 = vld [vmem:[%s0 + $0x34] sm:$0xf]
  %v130 = vld [vmem:[%s0 + $0x38] sm:$0xf]
  %v131 = vld [vmem:[%s0 + $0x3c] sm:$0xf]
  %v132 = vld [vmem:[%s0 + $0x40] sm:$0xf]
  %v133 = vld [vmem:[%s0 + $0x44] sm:$0xf]
  %v134 = vld [vmem:[%s0 + $0x48] sm:$0xf]
  %v135 = vld [vmem:[%s0 + $0x4c] sm:$0xf]
  %v136 = vld [vmem:[%s0 + $0x50] sm:$0xf]
  %v137 = vld [vmem:[%s0 + $0x54] sm:$0xf]
  %v138 = vld [vmem:[%s0 + $0x58] sm:$0xf]
  %v139 = vld [vmem:[%s0 + $0x5c] sm:$0xf]
  %v140 = vld [vmem:[%s0 + $0x60] sm:$0xf]
  %v141 = vld [vmem:[%s0 + $0x64] sm:$0xf]
  %v142 = vld [vmem:[%s0 + $0x68] sm:$0xf]
  %v143 = vld [vmem:[%s0 + $0x6c] sm:$0xf]
  %v144 = vld [vmem:[%s0 + $0x70] sm:$0xf]
  %v145 = vld [vmem:[%s0 + $0x74] sm:$0xf]
  %v146 = vld [vmem:[%s0 + $0x78] sm:$0xf]
  %v147 = vld [vmem:[%s0 + $0x7c] sm:$0xf]
  %v148 = vld [vmem:[%s0 + $0x80] sm:$0xf]
  %v149 = vld [vmem:[%s0 + $0x84] sm:$0xf]
  %v150 = vld [vmem:[%s0 + $0x88] sm:$0xf]
  %v151 = vld [vmem:[%s0 + $0x8c] sm:$0xf]
  %v152 = vld [vmem:[%s0 + $0x90] sm:$0xf]
  %v153 = vld [vmem:[%s0 + $0x94] sm:$0xf]
  %v154 = vld [vmem:[%s0 + $0x98] sm:$0xf]
  %v155 = vld [vmem:[%s0 + $0x9c] sm:$0xf]
  %v156 = vld [vmem:[%s0 + $0xa0] sm:$0xf]
  %v157 = vld [vmem:[%s0 + $0xa4] sm:$0xf]
  %v158 = vld [vmem:[%s0 + $0xa8] sm:$0xf]
  %v159 = vld [vmem:[%s0 + $0xac] sm:$0xf]
  %v160 = vld [vmem:[%s0 + $0xb0] sm:$0xf]
  %v161 = vld [vmem:[%s0 + $0xb4] sm:$0xf]
  %v162 = vld [vmem:[%s0 + $0xb8] sm:$0xf]
  %v163 = vld [vmem:[%s0 + $0xbc] sm:$0xf]
  %v164 = vld [vmem:[%s0 + $0xc0] sm:$0xf]
  %v165 = vld [vmem:[%s0 + $0xc4] sm:$0xf]
  %v166 = vld [vmem:[%s0 + $0xc8] sm:$0xf]
  %v167 = vld [vmem:[%s0 + $0xcc] sm:$0xf]
  %v168 = vld [vmem:[%s0 + $0xd0] sm:$0xf]
  %v169 = vld [vmem:[%s0 + $0xd4] sm:$0xf]
  %v170 = vld [vmem:[%s0 + $0xd8] sm:$0xf]
  %v171 = vld [vmem:[%s0 + $0xdc] sm:$0xf]
  %v172 = vld [vmem:[%s0 + $0xe0] sm:$0xf]
  %v173 = vld [vmem:[%s0 + $0xe4] sm:$0xf]
  %v174 = vld [vmem:[%s0 + $0xe8] sm:$0xf]
  %v175 = vld [vmem:[%s0 + $0xec] sm:$0xf]
  %v176 = vld [vmem:[%s0 + $0xf0] sm:$0xf]
  %v177 = vld [vmem:[%s0 + $0xf4] sm:$0xf]
  %v178 = vld [vmem:[%s0 + $0xf8] sm:$0xf]
  %v179 = vld [vmem:[%s0 + $0xfc] sm:$0xf]
  %v180 = vld [vmem:[%s0 + $0x100] sm:$0xf]
  %v181 = vld [vmem:[%s0 + $0x104] sm:$0xf]
  %v182 = vld [vmem:[%s0 + $0x108] sm:$0xf]
  %v183 = vld [vmem:[%s0 + $0x10c] sm:$0xf]
  %v184 = vld [vmem:[%s0 + $0x110] sm:$0xf]
  %v185 = vld [vmem:[%s0 + $0x114] sm:$0xf]
  %v186 = vld [vmem:[%s0 + $0x118] sm:$0xf]
  %v187 = vld [vmem:[%s0 + $0x11c] sm:$0xf]
  %v188 = vld [vmem:[%s0 + $0x120] sm:$0xf]
  %v189 = vld [vmem:[%s0 + $0x124] sm:$0xf]
  %v190 = vld [vmem:[%s0 + $0x128] sm:$0xf]
  %v191 = vld [vmem:[%s0 + $0x12c] sm:$0xf]
  %v192 = vld [vmem:[%s0 + $0x130] sm:$0x3]
  %v193 = vld [vmem:[%s2] sm:$0xf]
  %v194 = vld [vmem:[%s2 + $0x4] sm:$0xf]
  %v195 = vld [vmem:[%s2 + $0x8] sm:$0xf]
  %v196 = vld [vmem:[%s2 + $0xc] sm:$0xf]
  %v197 = vld [vmem:[%s2 + $0x10] sm:$0xf]
  %v198 = vld [vmem:[%s2 + $0x14] sm:$0xf]
  %v199 = vld [vmem:[%s2 + $0x18] sm:$0xf]
  %v200 = vld [vmem:[%s2 + $0x1c] sm:$0xf]
  %v201 = vld [vmem:[%s2 + $0x20] sm:$0xf]
  %v202 = vld [vmem:[%s2 + $0x24] sm:$0xf]
  %v203 = vld [vmem:[%s2 + $0x28] sm:$0xf]
  %v204 = vld [vmem:[%s2 + $0x2c] sm:$0xf]
  %v205 = vld [vmem:[%s2 + $0x30] sm:$0xf]
  %v206 = vld [vmem:[%s2 + $0x34] sm:$0xf]
  %v207 = vld [vmem:[%s2 + $0x38] sm:$0xf]
  %v208 = vld [vmem:[%s2 + $0x3c] sm:$0xf]
  %v286 = vunpack.c.l.b16 %v116
  %v287 = vunpack.c.l.b16 %v117
  %v288 = vunpack.c.l.b16 %v118
  %v289 = vunpack.c.l.b16 %v119
  %v290 = vunpack.c.l.b16 %v120
  %v291 = vunpack.c.l.b16 %v121
  %v292 = vunpack.c.l.b16 %v122
  %v293 = vunpack.c.l.b16 %v123
  %v294 = vunpack.c.l.b16 %v124
  %v295 = vunpack.c.l.b16 %v125
  %v296 = vunpack.c.l.b16 %v126
  %v297 = vunpack.c.l.b16 %v127
  %v298 = vunpack.c.l.b16 %v128
  %v299 = vunpack.c.l.b16 %v129
  %v300 = vunpack.c.l.b16 %v130
  %v301 = vunpack.c.l.b16 %v131
  %v302 = vunpack.c.l.b16 %v132
  %v303 = vunpack.c.l.b16 %v133
  %v304 = vunpack.c.l.b16 %v134
  %v305 = vunpack.c.l.b16 %v135
  %v306 = vunpack.c.l.b16 %v136
  %v307 = vunpack.c.l.b16 %v137
  %v308 = vunpack.c.l.b16 %v138
  %v309 = vunpack.c.l.b16 %v139
  %v310 = vunpack.c.l.b16 %v140
  %v311 = vunpack.c.l.b16 %v141
  %v312 = vunpack.c.l.b16 %v142
  %v313 = vunpack.c.l.b16 %v143
  %v314 = vunpack.c.l.b16 %v144
  %v315 = vunpack.c.l.b16 %v145
  %v316 = vunpack.c.l.b16 %v146
  %v317 = vunpack.c.l.b16 %v147
  %v318 = vunpack.c.l.b16 %v148
  %v319 = vunpack.c.l.b16 %v149
  %v320 = vunpack.c.l.b16 %v150
  %v321 = vunpack.c.l.b16 %v151
  %v322 = vunpack.c.l.b16 %v152
  %v323 = vunpack.c.l.b16 %v153
  %v324 = vunpack.c.l.b16 %v154
  %v325 = vunpack.c.l.b16 %v155
  %v326 = vunpack.c.l.b16 %v156
  %v327 = vunpack.c.l.b16 %v157
  %v328 = vunpack.c.l.b16 %v158
  %v329 = vunpack.c.l.b16 %v159
  %v330 = vunpack.c.l.b16 %v160
  %v331 = vunpack.c.l.b16 %v161
  %v332 = vunpack.c.l.b16 %v162
  %v333 = vunpack.c.l.b16 %v163
  %v334 = vunpack.c.l.b16 %v164
  %v335 = vunpack.c.l.b16 %v165
  %v336 = vunpack.c.l.b16 %v166
  %v337 = vunpack.c.l.b16 %v167
  %v338 = vunpack.c.l.b16 %v168
  %v339 = vunpack.c.l.b16 %v169
  %v340 = vunpack.c.l.b16 %v170
  %v341 = vunpack.c.l.b16 %v171
  %v342 = vunpack.c.l.b16 %v172
  %v343 = vunpack.c.l.b16 %v173
  %v344 = vunpack.c.l.b16 %v174
  %v345 = vunpack.c.l.b16 %v175
  %v346 = vunpack.c.l.b16 %v176
  %v347 = vunpack.c.l.b16 %v177
  %v348 = vunpack.c.l.b16 %v178
  %v349 = vunpack.c.l.b16 %v179
  %v350 = vunpack.c.l.b16 %v180
  %v351 = vunpack.c.l.b16 %v181
  %v352 = vunpack.c.l.b16 %v182
  %v353 = vunpack.c.l.b16 %v183
  %v354 = vunpack.c.l.b16 %v184
  %v355 = vunpack.c.l.b16 %v185
  %v356 = vunpack.c.l.b16 %v186
  %v357 = vunpack.c.l.b16 %v187
  %v358 = vunpack.c.l.b16 %v188
  %v359 = vunpack.c.l.b16 %v189
  %v360 = vunpack.c.l.b16 %v190
  %v361 = vunpack.c.l.b16 %v191
  %v362 = vunpack.c.l.b16 %v192
  %v363 = vpack.c.b16 %v287, %v286
  %v364 = vpack.c.b16 %v289, %v288
  %v365 = vpack.c.b16 %v291, %v290
  %v366 = vpack.c.b16 %v293, %v292
  %v367 = vpack.c.b16 %v295, %v294
  %v368 = vpack.c.b16 %v297, %v296
  %v369 = vpack.c.b16 %v299, %v298
  %v370 = vpack.c.b16 %v301, %v300
  %v371 = vpack.c.b16 %v303, %v302
  %v372 = vpack.c.b16 %v305, %v304
  %v373 = vpack.c.b16 %v307, %v306
  %v374 = vpack.c.b16 %v309, %v308
  %v375 = vpack.c.b16 %v311, %v310
  %v376 = vpack.c.b16 %v313, %v312
  %v377 = vpack.c.b16 %v315, %v314
  %v378 = vpack.c.b16 %v317, %v316
  %v379 = vpack.c.b16 %v319, %v318
  %v380 = vpack.c.b16 %v321, %v320
  %v381 = vpack.c.b16 %v323, %v322
  %v382 = vpack.c.b16 %v325, %v324
  %v383 = vpack.c.b16 %v327, %v326
  %v384 = vpack.c.b16 %v329, %v328
  %v385 = vpack.c.b16 %v331, %v330
  %v386 = vpack.c.b16 %v333, %v332
  %v387 = vpack.c.b16 %v335, %v334
  %v388 = vpack.c.b16 %v337, %v336
  %v389 = vpack.c.b16 %v339, %v338
  %v390 = vpack.c.b16 %v341, %v340
  %v391 = vpack.c.b16 %v343, %v342
  %v392 = vpack.c.b16 %v345, %v344
  %v393 = vpack.c.b16 %v347, %v346
  %v394 = vpack.c.b16 %v349, %v348
  %v395 = vpack.c.b16 %v351, %v350
  %v396 = vpack.c.b16 %v353, %v352
  %v397 = vpack.c.b16 %v355, %v354
  %v398 = vpack.c.b16 %v357, %v356
  %v399 = vpack.c.b16 %v359, %v358
  %v400 = vpack.c.b16 %v361, %v360
  %v401 = vpack.c.b16 %v362, %v362
  %v457 = vunpack.c.l.b16 %v193
  %v458 = vunpack.c.l.b16 %v194
  %v459 = vunpack.c.l.b16 %v195
  %v460 = vunpack.c.l.b16 %v196
  %v461 = vunpack.c.l.b16 %v197
  %v462 = vunpack.c.l.b16 %v198
  %v463 = vunpack.c.l.b16 %v199
  %v464 = vunpack.c.l.b16 %v200
  %v465 = vunpack.c.l.b16 %v201
  %v466 = vunpack.c.l.b16 %v202
  %v467 = vunpack.c.l.b16 %v203
  %v468 = vunpack.c.l.b16 %v204
  %v469 = vunpack.c.l.b16 %v205
  %v470 = vunpack.c.l.b16 %v206
  %v471 = vunpack.c.l.b16 %v207
  %v472 = vunpack.c.l.b16 %v208
  %v473 = vpack.c.b16 %v458, %v457
  %v474 = vpack.c.b16 %v460, %v459
  %v475 = vpack.c.b16 %v462, %v461
  %v476 = vpack.c.b16 %v464, %v463
  %v477 = vpack.c.b16 %v466, %v465
  %v478 = vpack.c.b16 %v468, %v467
  %v479 = vpack.c.b16 %v470, %v469
  %v480 = vpack.c.b16 %v472, %v471
  %489 = vmatprep.subr.bf16.mxu0 0
  %490 = vmatpush1.bf16.msra.mxu0 %v473
  %491 = vmatprep.subr.bf16.mxu0 0
  %492 = vmatpush1.bf16.msra.mxu0 %v474
  %493 = vmatprep.subr.bf16.mxu0 0
  %494 = vmatpush1.bf16.msra.mxu0 %v475
  %495 = vmatprep.subr.bf16.mxu0 0
  %496 = vmatpush1.bf16.msra.mxu0 %v476
  %497 = vmatprep.subr.bf16.mxu0 0
  %498 = vmatpush1.bf16.msra.mxu0 %v477
  %499 = vmatprep.subr.bf16.mxu0 0
  %500 = vmatpush1.bf16.msra.mxu0 %v478
  %501 = vmatprep.subr.bf16.mxu0 0
  %502 = vmatpush1.bf16.msra.mxu0 %v479
  %503 = vmatprep.subr.bf16.mxu0 0
  %504 = vmatpush1.bf16.msra.mxu0 %v480
  %505 = vmatprep.subr.bf16.mxu0 0
  %506 = vmatpush1.bf16.msra.mxu0 0
  %507 = vmatprep.subr.bf16.mxu0 0
  %508 = vmatpush1.bf16.msra.mxu0 0
  %509 = vmatprep.subr.bf16.mxu0 0
  %510 = vmatpush1.bf16.msra.mxu0 0
  %511 = vmatprep.subr.bf16.mxu0 0
  %512 = vmatpush1.bf16.msra.mxu0 0
  %513 = vmatprep.subr.bf16.mxu0 0
  %514 = vmatpush1.bf16.msra.mxu0 0
  %515 = vmatprep.subr.bf16.mxu0 0
  %516 = vmatpush1.bf16.msra.mxu0 0
  %517 = vmatprep.subr.bf16.mxu0 0
  %518 = vmatpush1.bf16.msra.mxu0 0
  %519 = vmatprep.subr.bf16.mxu0 0
  %520 = vmatpush1.bf16.msra.mxu0 0
  %521 = vmatprep.mubr.bf16.mxu0 0
  %522 = vmatmul.mubr.bf16.gmra.mrb[0].mxu0 %v363
  %v523 = vpop.f32.mrb[0].mxu0
  %v524 = vadd.f32 0.0, %v523
  %v525 = vpop.f32.mrb[0].mxu0
  %v526 = vpop.f32.mrb[0].mxu0
  %v527 = vadd.f32 0.0, %v526
  %v528 = vpop.f32.mrb[0].mxu0
  %529 = vmatprep.mubr.bf16.mxu0 0
  %530 = vmatmul.mubr.bf16.gmra.mrb[0].mxu0 %v364
  %v531 = vpop.f32.mrb[0].mxu0
  %v532 = vadd.f32 0.0, %v531
  %v533 = vpop.f32.mrb[0].mxu0
  %v534 = vpop.f32.mrb[0].mxu0
  %v535 = vadd.f32 0.0, %v534
  %v536 = vpop.f32.mrb[0].mxu0
  %537 = vmatprep.mubr.bf16.mxu0 0
  %538 = vmatmul.mubr.bf16.gmra.mrb[0].mxu0 %v365
  %v539 = vpop.f32.mrb[0].mxu0
  %v540 = vadd.f32 0.0, %v539
  %v541 = vpop.f32.mrb[0].mxu0
  %v542 = vpop.f32.mrb[0].mxu0
  %v543 = vadd.f32 0.0, %v542
  %v544 = vpop.f32.mrb[0].mxu0
  %545 = vmatprep.mubr.bf16.mxu0 0
  %546 = vmatmul.mubr.bf16.gmra.mrb[0].mxu0 %v366
  %v547 = vpop.f32.mrb[0].mxu0
  %v548 = vadd.f32 0.0, %v547
  %v549 = vpop.f32.mrb[0].mxu0
  %v550 = vpop.f32.mrb[0].mxu0
  %v551 = vadd.f32 0.0, %v550
  %v552 = vpop.f32.mrb[0].mxu0
  %553 = vmatprep.mubr.bf16.mxu0 0
  %554 = vmatmul.mubr.bf16.gmra.mrb[0].mxu0 %v367
  %v555 = vpop.f32.mrb[0].mxu0
  %v556 = vadd.f32 0.0, %v555
  %v557 = vpop.f32.mrb[0].mxu0
  %v558 = vpop.f32.mrb[0].mxu0
  %v559 = vadd.f32 0.0, %v558
  %v560 = vpop.f32.mrb[0].mxu0
  %561 = vmatprep.mubr.bf16.mxu0 0
  %562 = vmatmul.mubr.bf16.gmra.mrb[0].mxu0 %v368
  %v563 = vpop.f32.mrb[0].mxu0
  %v564 = vadd.f32 0.0, %v563
  %v565 = vpop.f32.mrb[0].mxu0
  %v566 = vpop.f32.mrb[0].mxu0
  %v567 = vadd.f32 0.0, %v566
  %v568 = vpop.f32.mrb[0].mxu0
  %569 = vmatprep.mubr.bf16.mxu0 0
  %570 = vmatmul.mubr.bf16.gmra.mrb[0].mxu0 %v369
  %v571 = vpop.f32.mrb[0].mxu0
  %v572 = vadd.f32 0.0, %v571
  %v573 = vpop.f32.mrb[0].mxu0
  %v574 = vpop.f32.mrb[0].mxu0
  %v575 = vadd.f32 0.0, %v574
  %v576 = vpop.f32.mrb[0].mxu0
  %577 = vmatprep.mubr.bf16.mxu0 0
  %578 = vmatmul.mubr.bf16.gmra.mrb[0].mxu0 %v370
  %v579 = vpop.f32.mrb[0].mxu0
  %v580 = vadd.f32 0.0, %v579
  %v581 = vpop.f32.mrb[0].mxu0
  %v582 = vpop.f32.mrb[0].mxu0
  %v583 = vadd.f32 0.0, %v582
  %v584 = vpop.f32.mrb[0].mxu0
  %585 = vmatprep.mubr.bf16.mxu0 0
  %586 = vmatmul.mubr.bf16.gmra.mrb[0].mxu0 %v371
  %v587 = vpop.f32.mrb[0].mxu0
  %v588 = vadd.f32 0.0, %v587
  %v589 = vpop.f32.mrb[0].mxu0
  %v590 = vpop.f32.mrb[0].mxu0
  %v591 = vadd.f32 0.0, %v590
  %v592 = vpop.f32.mrb[0].mxu0
  %593 = vmatprep.mubr.bf16.mxu0 0
  %594 = vmatmul.mubr.bf16.gmra.mrb[0].mxu0 %v372
  %v595 = vpop.f32.mrb[0].mxu0
  %v596 = vadd.f32 0.0, %v595
  %v597 = vpop.f32.mrb[0].mxu0
  %v598 = vpop.f32.mrb[0].mxu0
  %v599 = vadd.f32 0.0, %v598
  %v600 = vpop.f32.mrb[0].mxu0
  %601 = vmatprep.mubr.bf16.mxu0 0
  %602 = vmatmul.mubr.bf16.gmra.mrb[0].mxu0 %v373
  %v603 = vpop.f32.mrb[0].mxu0
  %v604 = vadd.f32 0.0, %v603
  %v605 = vpop.f32.mrb[0].mxu0
  %v606 = vpop.f32.mrb[0].mxu0
  %v607 = vadd.f32 0.0, %v606
  %v608 = vpop.f32.mrb[0].mxu0
  %609 = vmatprep.mubr.bf16.mxu0 0
  %610 = vmatmul.mubr.bf16.gmra.mrb[0].mxu0 %v374
  %v611 = vpop.f32.mrb[0].mxu0
  %v612 = vadd.f32 0.0, %v611
  %v613 = vpop.f32.mrb[0].mxu0
  %v614 = vpop.f32.mrb[0].mxu0
  %v615 = vadd.f32 0.0, %v614
  %v616 = vpop.f32.mrb[0].mxu0
  %617 = vmatprep.mubr.bf16.mxu0 0
  %618 = vmatmul.mubr.bf16.gmra.mrb[0].mxu0 %v375
  %v619 = vpop.f32.mrb[0].mxu0
  %v620 = vadd.f32 0.0, %v619
  %v621 = vpop.f32.mrb[0].mxu0
  %v622 = vpop.f32.mrb[0].mxu0
  %v623 = vadd.f32 0.0, %v622
  %v624 = vpop.f32.mrb[0].mxu0
  %625 = vmatprep.mubr.bf16.mxu0 0
  %626 = vmatmul.mubr.bf16.gmra.mrb[0].mxu0 %v376
  %v627 = vpop.f32.mrb[0].mxu0
  %v628 = vadd.f32 0.0, %v627
  %v629 = vpop.f32.mrb[0].mxu0
  %v630 = vpop.f32.mrb[0].mxu0
  %v631 = vadd.f32 0.0, %v630
  %v632 = vpop.f32.mrb[0].mxu0
  %633 = vmatprep.mubr.bf16.mxu0 0
  %634 = vmatmul.mubr.bf16.gmra.mrb[0].mxu0 %v377
  %v635 = vpop.f32.mrb[0].mxu0
  %v636 = vadd.f32 0.0, %v635
  %v637 = vpop.f32.mrb[0].mxu0
  %v638 = vpop.f32.mrb[0].mxu0
  %v639 = vadd.f32 0.0, %v638
  %v640 = vpop.f32.mrb[0].mxu0
  %641 = vmatprep.mubr.bf16.mxu0 0
  %642 = vmatmul.mubr.bf16.gmra.mrb[0].mxu0 %v378
  %v643 = vpop.f32.mrb[0].mxu0
  %v644 = vadd.f32 0.0, %v643
  %v645 = vpop.f32.mrb[0].mxu0
  %v646 = vpop.f32.mrb[0].mxu0
  %v647 = vadd.f32 0.0, %v646
  %v648 = vpop.f32.mrb[0].mxu0
  %649 = vmatprep.mubr.bf16.mxu0 0
  %650 = vmatmul.mubr.bf16.gmra.mrb[0].mxu0 %v379
  %v651 = vpop.f32.mrb[0].mxu0
  %v652 = vadd.f32 0.0, %v651
  %v653 = vpop.f32.mrb[0].mxu0
  %v654 = vpop.f32.mrb[0].mxu0
  %v655 = vadd.f32 0.0, %v654
  %v656 = vpop.f32.mrb[0].mxu0
  %657 = vmatprep.mubr.bf16.mxu0 0
  %658 = vmatmul.mubr.bf16.gmra.mrb[0].mxu0 %v380
  %v659 = vpop.f32.mrb[0].mxu0
  %v660 = vadd.f32 0.0, %v659
  %v661 = vpop.f32.mrb[0].mxu0
  %v662 = vpop.f32.mrb[0].mxu0
  %v663 = vadd.f32 0.0, %v662
  %v664 = vpop.f32.mrb[0].mxu0
  %665 = vmatprep.mubr.bf16.mxu0 0
  %666 = vmatmul.mubr.bf16.gmra.mrb[0].mxu0 %v381
  %v667 = vpop.f32.mrb[0].mxu0
  %v668 = vadd.f32 0.0, %v667
  %v669 = vpop.f32.mrb[0].mxu0
  %v670 = vpop.f32.mrb[0].mxu0
  %v671 = vadd.f32 0.0, %v670
  %v672 = vpop.f32.mrb[0].mxu0
  %673 = vmatprep.mubr.bf16.mxu0 0
  %674 = vmatmul.mubr.bf16.gmra.mrb[0].mxu0 %v382
  %v675 = vpop.f32.mrb[0].mxu0
  %v676 = vadd.f32 0.0, %v675
  %v677 = vpop.f32.mrb[0].mxu0
  %v678 = vpop.f32.mrb[0].mxu0
  %v679 = vadd.f32 0.0, %v678
  %v680 = vpop.f32.mrb[0].mxu0
  %681 = vmatprep.mubr.bf16.mxu0 0
  %682 = vmatmul.mubr.bf16.gmra.mrb[0].mxu0 %v383
  %v683 = vpop.f32.mrb[0].mxu0
  %v684 = vadd.f32 0.0, %v683
  %v685 = vpop.f32.mrb[0].mxu0
  %v686 = vpop.f32.mrb[0].mxu0
  %v687 = vadd.f32 0.0, %v686
  %v688 = vpop.f32.mrb[0].mxu0
  %689 = vmatprep.mubr.bf16.mxu0 0
  %690 = vmatmul.mubr.bf16.gmra.mrb[0].mxu0 %v384
  %v691 = vpop.f32.mrb[0].mxu0
  %v692 = vadd.f32 0.0, %v691
  %v693 = vpop.f32.mrb[0].mxu0
  %v694 = vpop.f32.mrb[0].mxu0
  %v695 = vadd.f32 0.0, %v694
  %v696 = vpop.f32.mrb[0].mxu0
  %697 = vmatprep.mubr.bf16.mxu0 0
  %698 = vmatmul.mubr.bf16.gmra.mrb[0].mxu0 %v385
  %v699 = vpop.f32.mrb[0].mxu0
  %v700 = vadd.f32 0.0, %v699
  %v701 = vpop.f32.mrb[0].mxu0
  %v702 = vpop.f32.mrb[0].mxu0
  %v703 = vadd.f32 0.0, %v702
  %v704 = vpop.f32.mrb[0].mxu0
  %705 = vmatprep.mubr.bf16.mxu0 0
  %706 = vmatmul.mubr.bf16.gmra.mrb[0].mxu0 %v386
  %v707 = vpop.f32.mrb[0].mxu0
  %v708 = vadd.f32 0.0, %v707
  %v709 = vpop.f32.mrb[0].mxu0
  %v710 = vpop.f32.mrb[0].mxu0
  %v711 = vadd.f32 0.0, %v710
  %v712 = vpop.f32.mrb[0].mxu0
  %713 = vmatprep.mubr.bf16.mxu0 0
  %714 = vmatmul.mubr.bf16.gmra.mrb[0].mxu0 %v387
  %v715 = vpop.f32.mrb[0].mxu0
  %v716 = vadd.f32 0.0, %v715
  %v717 = vpop.f32.mrb[0].mxu0
  %v718 = vpop.f32.mrb[0].mxu0
  %v719 = vadd.f32 0.0, %v718
  %v720 = vpop.f32.mrb[0].mxu0
  %721 = vmatprep.mubr.bf16.mxu0 0
  %722 = vmatmul.mubr.bf16.gmra.mrb[0].mxu0 %v388
  %v723 = vpop.f32.mrb[0].mxu0
  %v724 = vadd.f32 0.0, %v723
  %v725 = vpop.f32.mrb[0].mxu0
  %v726 = vpop.f32.mrb[0].mxu0
  %v727 = vadd.f32 0.0, %v726
  %v728 = vpop.f32.mrb[0].mxu0
  %729 = vmatprep.mubr.bf16.mxu0 0
  %730 = vmatmul.mubr.bf16.gmra.mrb[0].mxu0 %v389
  %v731 = vpop.f32.mrb[0].mxu0
  %v732 = vadd.f32 0.0, %v731
  %v733 = vpop.f32.mrb[0].mxu0
  %v734 = vpop.f32.mrb[0].mxu0
  %v735 = vadd.f32 0.0, %v734
  %v736 = vpop.f32.mrb[0].mxu0
  %737 = vmatprep.mubr.bf16.mxu0 0
  %738 = vmatmul.mubr.bf16.gmra.mrb[0].mxu0 %v390
  %v739 = vpop.f32.mrb[0].mxu0
  %v740 = vadd.f32 0.0, %v739
  %v741 = vpop.f32.mrb[0].mxu0
  %v742 = vpop.f32.mrb[0].mxu0
  %v743 = vadd.f32 0.0, %v742
  %v744 = vpop.f32.mrb[0].mxu0
  %745 = vmatprep.mubr.bf16.mxu0 0
  %746 = vmatmul.mubr.bf16.gmra.mrb[0].mxu0 %v391
  %v747 = vpop.f32.mrb[0].mxu0
  %v748 = vadd.f32 0.0, %v747
  %v749 = vpop.f32.mrb[0].mxu0
  %v750 = vpop.f32.mrb[0].mxu0
  %v751 = vadd.f32 0.0, %v750
  %v752 = vpop.f32.mrb[0].mxu0
  %753 = vmatprep.mubr.bf16.mxu0 0
  %754 = vmatmul.mubr.bf16.gmra.mrb[0].mxu0 %v392
  %v755 = vpop.f32.mrb[0].mxu0
  %v756 = vadd.f32 0.0, %v755
  %v757 = vpop.f32.mrb[0].mxu0
  %v758 = vpop.f32.mrb[0].mxu0
  %v759 = vadd.f32 0.0, %v758
  %v760 = vpop.f32.mrb[0].mxu0
  %761 = vmatprep.mubr.bf16.mxu0 0
  %762 = vmatmul.mubr.bf16.gmra.mrb[0].mxu0 %v393
  %v763 = vpop.f32.mrb[0].mxu0
  %v764 = vadd.f32 0.0, %v763
  %v765 = vpop.f32.mrb[0].mxu0
  %v766 = vpop.f32.mrb[0].mxu0
  %v767 = vadd.f32 0.0, %v766
  %v768 = vpop.f32.mrb[0].mxu0
  %769 = vmatprep.mubr.bf16.mxu0 0
  %770 = vmatmul.mubr.bf16.gmra.mrb[0].mxu0 %v394
  %v771 = vpop.f32.mrb[0].mxu0
  %v772 = vadd.f32 0.0, %v771
  %v773 = vpop.f32.mrb[0].mxu0
  %v774 = vpop.f32.mrb[0].mxu0
  %v775 = vadd.f32 0.0, %v774
  %v776 = vpop.f32.mrb[0].mxu0
  %777 = vmatprep.mubr.bf16.mxu0 0
  %778 = vmatmul.mubr.bf16.gmra.mrb[0].mxu0 %v395
  %v779 = vpop.f32.mrb[0].mxu0
  %v780 = vadd.f32 0.0, %v779
  %v781 = vpop.f32.mrb[0].mxu0
  %v782 = vpop.f32.mrb[0].mxu0
  %v783 = vadd.f32 0.0, %v782
  %v784 = vpop.f32.mrb[0].mxu0
  %785 = vmatprep.mubr.bf16.mxu0 0
  %786 = vmatmul.mubr.bf16.gmra.mrb[0].mxu0 %v396
  %v787 = vpop.f32.mrb[0].mxu0
  %v788 = vadd.f32 0.0, %v787
  %v789 = vpop.f32.mrb[0].mxu0
  %v790 = vpop.f32.mrb[0].mxu0
  %v791 = vadd.f32 0.0, %v790
  %v792 = vpop.f32.mrb[0].mxu0
  %793 = vmatprep.mubr.bf16.mxu0 0
  %794 = vmatmul.mubr.bf16.gmra.mrb[0].mxu0 %v397
  %v795 = vpop.f32.mrb[0].mxu0
  %v796 = vadd.f32 0.0, %v795
  %v797 = vpop.f32.mrb[0].mxu0
  %v798 = vpop.f32.mrb[0].mxu0
  %v799 = vadd.f32 0.0, %v798
  %v800 = vpop.f32.mrb[0].mxu0
  %801 = vmatprep.mubr.bf16.mxu0 0
  %802 = vmatmul.mubr.bf16.gmra.mrb[0].mxu0 %v398
  %v803 = vpop.f32.mrb[0].mxu0
  %v804 = vadd.f32 0.0, %v803
  %v805 = vpop.f32.mrb[0].mxu0
  %v806 = vpop.f32.mrb[0].mxu0
  %v807 = vadd.f32 0.0, %v806
  %v808 = vpop.f32.mrb[0].mxu0
  %809 = vmatprep.mubr.bf16.mxu0 0
  %810 = vmatmul.mubr.bf16.gmra.mrb[0].mxu0 %v399
  %v811 = vpop.f32.mrb[0].mxu0
  %v812 = vadd.f32 0.0, %v811
  %v813 = vpop.f32.mrb[0].mxu0
  %v814 = vpop.f32.mrb[0].mxu0
  %v815 = vadd.f32 0.0, %v814
  %v816 = vpop.f32.mrb[0].mxu0
  %817 = vmatprep.mubr.bf16.mxu0 0
  %818 = vmatmul.mubr.bf16.gmra.mrb[0].mxu0 %v400
  %v819 = vpop.f32.mrb[0].mxu0
  %v820 = vadd.f32 0.0, %v819
  %v821 = vpop.f32.mrb[0].mxu0
  %v822 = vpop.f32.mrb[0].mxu0
  %v823 = vadd.f32 0.0, %v822
  %v824 = vpop.f32.mrb[0].mxu0
  %825 = vmatprep.mubr.bf16.mxu0 0
  %826 = vmatmul.mubr.bf16.gmra.mrb[0].mxu0 %v401
  %v827 = vpop.f32.mrb[0].mxu0
  %v828 = vadd.f32 0.0, %v827
  %v829 = vpop.f32.mrb[0].mxu0
  %v830 = vpop.f32.mrb[0].mxu0
  %v831 = vpop.f32.mrb[0].mxu0
  %832 = vdwg.mxu0
  %v833 = vld [vmem:[%s3] sm:$0x1]
  %v834 = vld [vmem:[%s4] sm:$0x1]
  %vm835 = vcmask 261120
  %v836 = vsel %vm835, %v524, 0.0
  %v837 = vsel %vm835, %v527, 0.0
  %v838 = vadd.f32 %v836, %v837
  %v839 = vsel %vm835, %v532, 0.0
  %v840 = vadd.f32 %v838, %v839
  %v841 = vsel %vm835, %v535, 0.0
  %v842 = vadd.f32 %v840, %v841
  %v843 = vsel %vm835, %v540, 0.0
  %v844 = vadd.f32 %v842, %v843
  %v845 = vsel %vm835, %v543, 0.0
  %v846 = vadd.f32 %v844, %v845
  %v847 = vsel %vm835, %v548, 0.0
  %v848 = vadd.f32 %v846, %v847
  %v849 = vsel %vm835, %v551, 0.0
  %v850 = vadd.f32 %v848, %v849
  %v851 = vsel %vm835, %v556, 0.0
  %v852 = vadd.f32 %v850, %v851
  %v853 = vsel %vm835, %v559, 0.0
  %v854 = vadd.f32 %v852, %v853
  %v855 = vsel %vm835, %v564, 0.0
  %v856 = vadd.f32 %v854, %v855
  %v857 = vsel %vm835, %v567, 0.0
  %v858 = vadd.f32 %v856, %v857
  %v859 = vsel %vm835, %v572, 0.0
  %v860 = vadd.f32 %v858, %v859
  %v861 = vsel %vm835, %v575, 0.0
  %v862 = vadd.f32 %v860, %v861
  %v863 = vsel %vm835, %v580, 0.0
  %v864 = vadd.f32 %v862, %v863
  %v865 = vsel %vm835, %v583, 0.0
  %v866 = vadd.f32 %v864, %v865
  %v867 = vsel %vm835, %v588, 0.0
  %v868 = vadd.f32 %v866, %v867
  %v869 = vsel %vm835, %v591, 0.0
  %v870 = vadd.f32 %v868, %v869
  %v871 = vsel %vm835, %v596, 0.0
  %v872 = vadd.f32 %v870, %v871
  %v873 = vsel %vm835, %v599, 0.0
  %v874 = vadd.f32 %v872, %v873
  %v875 = vsel %vm835, %v604, 0.0
  %v876 = vadd.f32 %v874, %v875
  %v877 = vsel %vm835, %v607, 0.0
  %v878 = vadd.f32 %v876, %v877
  %v879 = vsel %vm835, %v612, 0.0
  %v880 = vadd.f32 %v878, %v879
  %v881 = vsel %vm835, %v615, 0.0
  %v882 = vadd.f32 %v880, %v881
  %v883 = vsel %vm835, %v620, 0.0
  %v884 = vadd.f32 %v882, %v883
  %v885 = vsel %vm835, %v623, 0.0
  %v886 = vadd.f32 %v884, %v885
  %v887 = vsel %vm835, %v628, 0.0
  %v888 = vadd.f32 %v886, %v887
  %v889 = vsel %vm835, %v631, 0.0
  %v890 = vadd.f32 %v888, %v889
  %v891 = vsel %vm835, %v636, 0.0
  %v892 = vadd.f32 %v890, %v891
  %v893 = vsel %vm835, %v639, 0.0
  %v894 = vadd.f32 %v892, %v893
  %v895 = vsel %vm835, %v644, 0.0
  %v896 = vadd.f32 %v894, %v895
  %v897 = vsel %vm835, %v647, 0.0
  %v898 = vadd.f32 %v896, %v897
  %v899 = vsel %vm835, %v652, 0.0
  %v900 = vadd.f32 %v898, %v899
  %v901 = vsel %vm835, %v655, 0.0
  %v902 = vadd.f32 %v900, %v901
  %v903 = vsel %vm835, %v660, 0.0
  %v904 = vadd.f32 %v902, %v903
  %v905 = vsel %vm835, %v663, 0.0
  %v906 = vadd.f32 %v904, %v905
  %v907 = vsel %vm835, %v668, 0.0
  %v908 = vadd.f32 %v906, %v907
  %v909 = vsel %vm835, %v671, 0.0
  %v910 = vadd.f32 %v908, %v909
  %v911 = vsel %vm835, %v676, 0.0
  %v912 = vadd.f32 %v910, %v911
  %v913 = vsel %vm835, %v679, 0.0
  %v914 = vadd.f32 %v912, %v913
  %v915 = vsel %vm835, %v684, 0.0
  %v916 = vadd.f32 %v914, %v915
  %v917 = vsel %vm835, %v687, 0.0
  %v918 = vadd.f32 %v916, %v917
  %v919 = vsel %vm835, %v692, 0.0
  %v920 = vadd.f32 %v918, %v919
  %v921 = vsel %vm835, %v695, 0.0
  %v922 = vadd.f32 %v920, %v921
  %v923 = vsel %vm835, %v700, 0.0
  %v924 = vadd.f32 %v922, %v923
  %v925 = vsel %vm835, %v703, 0.0
  %v926 = vadd.f32 %v924, %v925
  %v927 = vsel %vm835, %v708, 0.0
  %v928 = vadd.f32 %v926, %v927
  %v929 = vsel %vm835, %v711, 0.0
  %v930 = vadd.f32 %v928, %v929
  %v931 = vsel %vm835, %v716, 0.0
  %v932 = vadd.f32 %v930, %v931
  %v933 = vsel %vm835, %v719, 0.0
  %v934 = vadd.f32 %v932, %v933
  %v935 = vsel %vm835, %v724, 0.0
  %v936 = vadd.f32 %v934, %v935
  %v937 = vsel %vm835, %v727, 0.0
  %v938 = vadd.f32 %v936, %v937
  %v939 = vsel %vm835, %v732, 0.0
  %v940 = vadd.f32 %v938, %v939
  %v941 = vsel %vm835, %v735, 0.0
  %v942 = vadd.f32 %v940, %v941
  %v943 = vsel %vm835, %v740, 0.0
  %v944 = vadd.f32 %v942, %v943
  %v945 = vsel %vm835, %v743, 0.0
  %v946 = vadd.f32 %v944, %v945
  %v947 = vsel %vm835, %v748, 0.0
  %v948 = vadd.f32 %v946, %v947
  %v949 = vsel %vm835, %v751, 0.0
  %v950 = vadd.f32 %v948, %v949
  %v951 = vsel %vm835, %v756, 0.0
  %v952 = vadd.f32 %v950, %v951
  %v953 = vsel %vm835, %v759, 0.0
  %v954 = vadd.f32 %v952, %v953
  %v955 = vsel %vm835, %v764, 0.0
  %v956 = vadd.f32 %v954, %v955
  %v957 = vsel %vm835, %v767, 0.0
  %v958 = vadd.f32 %v956, %v957
  %v959 = vsel %vm835, %v772, 0.0
  %v960 = vadd.f32 %v958, %v959
  %v961 = vsel %vm835, %v775, 0.0
  %v962 = vadd.f32 %v960, %v961
  %v963 = vsel %vm835, %v780, 0.0
  %v964 = vadd.f32 %v962, %v963
  %v965 = vsel %vm835, %v783, 0.0
  %v966 = vadd.f32 %v964, %v965
  %v967 = vsel %vm835, %v788, 0.0
  %v968 = vadd.f32 %v966, %v967
  %v969 = vsel %vm835, %v791, 0.0
  %v970 = vadd.f32 %v968, %v969
  %v971 = vsel %vm835, %v796, 0.0
  %v972 = vadd.f32 %v970, %v971
  %v973 = vsel %vm835, %v799, 0.0
  %v974 = vadd.f32 %v972, %v973
  %v975 = vsel %vm835, %v804, 0.0
  %v976 = vadd.f32 %v974, %v975
  %v977 = vsel %vm835, %v807, 0.0
  %v978 = vadd.f32 %v976, %v977
  %v979 = vsel %vm835, %v812, 0.0
  %v980 = vadd.f32 %v978, %v979
  %v981 = vsel %vm835, %v815, 0.0
  %v982 = vadd.f32 %v980, %v981
  %v983 = vsel %vm835, %v820, 0.0
  %v984 = vadd.f32 %v982, %v983
  %v985 = vsel %vm835, %v823, 0.0
  %v986 = vadd.f32 %v984, %v985
  %vm987 = vcmask 257024
  %v988 = vsel %vm987, %v828, 0.0
  %v989 = vadd.f32 %v986, %v988
  %v990 = vrot.slane %v989, 4
  %v991 = vadd.f32 %v989, %v990
  %v992 = vrot.slane %v991, 2
  %v993 = vadd.f32 %v991, %v992
  %v994 = vrot.slane %v993, 1
  %v995 = vadd.f32 %v993, %v994
  %v996 = vmul.f32 %v524, %v524
  %v997 = vmul.f32 %v527, %v527
  %v998 = vmul.f32 %v532, %v532
  %v999 = vmul.f32 %v535, %v535
  %v1000 = vmul.f32 %v540, %v540
  %v1001 = vmul.f32 %v543, %v543
  %v1002 = vmul.f32 %v548, %v548
  %v1003 = vmul.f32 %v551, %v551
  %v1004 = vmul.f32 %v556, %v556
  %v1005 = vmul.f32 %v559, %v559
  %v1006 = vmul.f32 %v564, %v564
  %v1007 = vmul.f32 %v567, %v567
  %v1008 = vmul.f32 %v572, %v572
  %v1009 = vmul.f32 %v575, %v575
  %v1010 = vmul.f32 %v580, %v580
  %v1011 = vmul.f32 %v583, %v583
  %v1012 = vmul.f32 %v588, %v588
  %v1013 = vmul.f32 %v591, %v591
  %v1014 = vmul.f32 %v596, %v596
  %v1015 = vmul.f32 %v599, %v599
  %v1016 = vmul.f32 %v604, %v604
  %v1017 = vmul.f32 %v607, %v607
  %v1018 = vmul.f32 %v612, %v612
  %v1019 = vmul.f32 %v615, %v615
  %v1020 = vmul.f32 %v620, %v620
  %v1021 = vmul.f32 %v623, %v623
  %v1022 = vmul.f32 %v628, %v628
  %v1023 = vmul.f32 %v631, %v631
  %v1024 = vmul.f32 %v636, %v636
  %v1025 = vmul.f32 %v639, %v639
  %v1026 = vmul.f32 %v644, %v644
  %v1027 = vmul.f32 %v647, %v647
  %v1028 = vmul.f32 %v652, %v652
  %v1029 = vmul.f32 %v655, %v655
  %v1030 = vmul.f32 %v660, %v660
  %v1031 = vmul.f32 %v663, %v663
  %v1032 = vmul.f32 %v668, %v668
  %v1033 = vmul.f32 %v671, %v671
  %v1034 = vmul.f32 %v676, %v676
  %v1035 = vmul.f32 %v679, %v679
  %v1036 = vmul.f32 %v684, %v684
  %v1037 = vmul.f32 %v687, %v687
  %v1038 = vmul.f32 %v692, %v692
  %v1039 = vmul.f32 %v695, %v695
  %v1040 = vmul.f32 %v700, %v700
  %v1041 = vmul.f32 %v703, %v703
  %v1042 = vmul.f32 %v708, %v708
  %v1043 = vmul.f32 %v711, %v711
  %v1044 = vmul.f32 %v716, %v716
  %v1045 = vmul.f32 %v719, %v719
  %v1046 = vmul.f32 %v724, %v724
  %v1047 = vmul.f32 %v727, %v727
  %v1048 = vmul.f32 %v732, %v732
  %v1049 = vmul.f32 %v735, %v735
  %v1050 = vmul.f32 %v740, %v740
  %v1051 = vmul.f32 %v743, %v743
  %v1052 = vmul.f32 %v748, %v748
  %v1053 = vmul.f32 %v751, %v751
  %v1054 = vmul.f32 %v756, %v756
  %v1055 = vmul.f32 %v759, %v759
  %v1056 = vmul.f32 %v764, %v764
  %v1057 = vmul.f32 %v767, %v767
  %v1058 = vmul.f32 %v772, %v772
  %v1059 = vmul.f32 %v775, %v775
  %v1060 = vmul.f32 %v780, %v780
  %v1061 = vmul.f32 %v783, %v783
  %v1062 = vmul.f32 %v788, %v788
  %v1063 = vmul.f32 %v791, %v791
  %v1064 = vmul.f32 %v796, %v796
  %v1065 = vmul.f32 %v799, %v799
  %v1066 = vmul.f32 %v804, %v804
  %v1067 = vmul.f32 %v807, %v807
  %v1068 = vmul.f32 %v812, %v812
  %v1069 = vmul.f32 %v815, %v815
  %v1070 = vmul.f32 %v820, %v820
  %v1071 = vmul.f32 %v823, %v823
  %v1072 = vmul.f32 %v828, %v828
  %v1073 = vsel %vm835, %v996, 0.0
  %v1074 = vsel %vm835, %v997, 0.0
  %v1075 = vadd.f32 %v1073, %v1074
  %v1076 = vsel %vm835, %v998, 0.0
  %v1077 = vadd.f32 %v1075, %v1076
  %v1078 = vsel %vm835, %v999, 0.0
  %v1079 = vadd.f32 %v1077, %v1078
  %v1080 = vsel %vm835, %v1000, 0.0
  %v1081 = vadd.f32 %v1079, %v1080
  %v1082 = vsel %vm835, %v1001, 0.0
  %v1083 = vadd.f32 %v1081, %v1082
  %v1084 = vsel %vm835, %v1002, 0.0
  %v1085 = vadd.f32 %v1083, %v1084
  %v1086 = vsel %vm835, %v1003, 0.0
  %v1087 = vadd.f32 %v1085, %v1086
  %v1088 = vsel %vm835, %v1004, 0.0
  %v1089 = vadd.f32 %v1087, %v1088
  %v1090 = vsel %vm835, %v1005, 0.0
  %v1091 = vadd.f32 %v1089, %v1090
  %v1092 = vsel %vm835, %v1006, 0.0
  %v1093 = vadd.f32 %v1091, %v1092
  %v1094 = vsel %vm835, %v1007, 0.0
  %v1095 = vadd.f32 %v1093, %v1094
  %v1096 = vsel %vm835, %v1008, 0.0
  %v1097 = vadd.f32 %v1095, %v1096
  %v1098 = vsel %vm835, %v1009, 0.0
  %v1099 = vadd.f32 %v1097, %v1098
  %v1100 = vsel %vm835, %v1010, 0.0
  %v1101 = vadd.f32 %v1099, %v1100
  %v1102 = vsel %vm835, %v1011, 0.0
  %v1103 = vadd.f32 %v1101, %v1102
  %v1104 = vsel %vm835, %v1012, 0.0
  %v1105 = vadd.f32 %v1103, %v1104
  %v1106 = vsel %vm835, %v1013, 0.0
  %v1107 = vadd.f32 %v1105, %v1106
  %v1108 = vsel %vm835, %v1014, 0.0
  %v1109 = vadd.f32 %v1107, %v1108
  %v1110 = vsel %vm835, %v1015, 0.0
  %v1111 = vadd.f32 %v1109, %v1110
  %v1112 = vsel %vm835, %v1016, 0.0
  %v1113 = vadd.f32 %v1111, %v1112
  %v1114 = vsel %vm835, %v1017, 0.0
  %v1115 = vadd.f32 %v1113, %v1114
  %v1116 = vsel %vm835, %v1018, 0.0
  %v1117 = vadd.f32 %v1115, %v1116
  %v1118 = vsel %vm835, %v1019, 0.0
  %v1119 = vadd.f32 %v1117, %v1118
  %v1120 = vsel %vm835, %v1020, 0.0
  %v1121 = vadd.f32 %v1119, %v1120
  %v1122 = vsel %vm835, %v1021, 0.0
  %v1123 = vadd.f32 %v1121, %v1122
  %v1124 = vsel %vm835, %v1022, 0.0
  %v1125 = vadd.f32 %v1123, %v1124
  %v1126 = vsel %vm835, %v1023, 0.0
  %v1127 = vadd.f32 %v1125, %v1126
  %v1128 = vsel %vm835, %v1024, 0.0
  %v1129 = vadd.f32 %v1127, %v1128
  %v1130 = vsel %vm835, %v1025, 0.0
  %v1131 = vadd.f32 %v1129, %v1130
  %v1132 = vsel %vm835, %v1026, 0.0
  %v1133 = vadd.f32 %v1131, %v1132
  %v1134 = vsel %vm835, %v1027, 0.0
  %v1135 = vadd.f32 %v1133, %v1134
  %v1136 = vsel %vm835, %v1028, 0.0
  %v1137 = vadd.f32 %v1135, %v1136
  %v1138 = vsel %vm835, %v1029, 0.0
  %v1139 = vadd.f32 %v1137, %v1138
  %v1140 = vsel %vm835, %v1030, 0.0
  %v1141 = vadd.f32 %v1139, %v1140
  %v1142 = vsel %vm835, %v1031, 0.0
  %v1143 = vadd.f32 %v1141, %v1142
  %v1144 = vsel %vm835, %v1032, 0.0
  %v1145 = vadd.f32 %v1143, %v1144
  %v1146 = vsel %vm835, %v1033, 0.0
  %v1147 = vadd.f32 %v1145, %v1146
  %v1148 = vsel %vm835, %v1034, 0.0
  %v1149 = vadd.f32 %v1147, %v1148
  %v1150 = vsel %vm835, %v1035, 0.0
  %v1151 = vadd.f32 %v1149, %v1150
  %v1152 = vsel %vm835, %v1036, 0.0
  %v1153 = vadd.f32 %v1151, %v1152
  %v1154 = vsel %vm835, %v1037, 0.0
  %v1155 = vadd.f32 %v1153, %v1154
  %v1156 = vsel %vm835, %v1038, 0.0
  %v1157 = vadd.f32 %v1155, %v1156
  %v1158 = vsel %vm835, %v1039, 0.0
  %v1159 = vadd.f32 %v1157, %v1158
  %v1160 = vsel %vm835, %v1040, 0.0
  %v1161 = vadd.f32 %v1159, %v1160
  %v1162 = vsel %vm835, %v1041, 0.0
  %v1163 = vadd.f32 %v1161, %v1162
  %v1164 = vsel %vm835, %v1042, 0.0
  %v1165 = vadd.f32 %v1163, %v1164
  %v1166 = vsel %vm835, %v1043, 0.0
  %v1167 = vadd.f32 %v1165, %v1166
  %v1168 = vsel %vm835, %v1044, 0.0
  %v1169 = vadd.f32 %v1167, %v1168
  %v1170 = vsel %vm835, %v1045, 0.0
  %v1171 = vadd.f32 %v1169, %v1170
  %v1172 = vsel %vm835, %v1046, 0.0
  %v1173 = vadd.f32 %v1171, %v1172
  %v1174 = vsel %vm835, %v1047, 0.0
  %v1175 = vadd.f32 %v1173, %v1174
  %v1176 = vsel %vm835, %v1048, 0.0
  %v1177 = vadd.f32 %v1175, %v1176
  %v1178 = vsel %vm835, %v1049, 0.0
  %v1179 = vadd.f32 %v1177, %v1178
  %v1180 = vsel %vm835, %v1050, 0.0
  %v1181 = vadd.f32 %v1179, %v1180
  %v1182 = vsel %vm835, %v1051, 0.0
  %v1183 = vadd.f32 %v1181, %v1182
  %v1184 = vsel %vm835, %v1052, 0.0
  %v1185 = vadd.f32 %v1183, %v1184
  %v1186 = vsel %vm835, %v1053, 0.0
  %v1187 = vadd.f32 %v1185, %v1186
  %v1188 = vsel %vm835, %v1054, 0.0
  %v1189 = vadd.f32 %v1187, %v1188
  %v1190 = vsel %vm835, %v1055, 0.0
  %v1191 = vadd.f32 %v1189, %v1190
  %v1192 = vsel %vm835, %v1056, 0.0
  %v1193 = vadd.f32 %v1191, %v1192
  %v1194 = vsel %vm835, %v1057, 0.0
  %v1195 = vadd.f32 %v1193, %v1194
  %v1196 = vsel %vm835, %v1058, 0.0
  %v1197 = vadd.f32 %v1195, %v1196
  %v1198 = vsel %vm835, %v1059, 0.0
  %v1199 = vadd.f32 %v1197, %v1198
  %v1200 = vsel %vm835, %v1060, 0.0
  %v1201 = vadd.f32 %v1199, %v1200
  %v1202 = vsel %vm835, %v1061, 0.0
  %v1203 = vadd.f32 %v1201, %v1202
  %v1204 = vsel %vm835, %v1062, 0.0
  %v1205 = vadd.f32 %v1203, %v1204
  %v1206 = vsel %vm835, %v1063, 0.0
  %v1207 = vadd.f32 %v1205, %v1206
  %v1208 = vsel %vm835, %v1064, 0.0
  %v1209 = vadd.f32 %v1207, %v1208
  %v1210 = vsel %vm835, %v1065, 0.0
  %v1211 = vadd.f32 %v1209, %v1210
  %v1212 = vsel %vm835, %v1066, 0.0
  %v1213 = vadd.f32 %v1211, %v1212
  %v1214 = vsel %vm835, %v1067, 0.0
  %v1215 = vadd.f32 %v1213, %v1214
  %v1216 = vsel %vm835, %v1068, 0.0
  %v1217 = vadd.f32 %v1215, %v1216
  %v1218 = vsel %vm835, %v1069, 0.0
  %v1219 = vadd.f32 %v1217, %v1218
  %v1220 = vsel %vm835, %v1070, 0.0
  %v1221 = vadd.f32 %v1219, %v1220
  %v1222 = vsel %vm835, %v1071, 0.0
  %v1223 = vadd.f32 %v1221, %v1222
  %v1224 = vsel %vm987, %v1072, 0.0
  %v1225 = vadd.f32 %v1223, %v1224
  %v1226 = vrot.slane %v1225, 4
  %v1227 = vadd.f32 %v1225, %v1226
  %v1228 = vrot.slane %v1227, 2
  %v1229 = vadd.f32 %v1227, %v1228
  %v1230 = vrot.slane %v1229, 1
  %v1231 = vadd.f32 %v1229, %v1230
  %v1232 = vmul.f32 %v995, 0.001953125
  %v1233 = vmul.f32 %v1231, 0.001953125
  %v1234 = vmul.f32 %v1232, %v1232
  %v1235 = vsub.f32 %v1233, %v1234
  %v1236 = vadd.f32 %v1235, 1e-05
  %v1237 = vrsqrt.pop %v1236
  %v1238 = vmul.f32 %v833, %v1237
  %v1239 = vmul.f32 %v1232, %v1238
  %v1240 = vsub.f32 %v834, %v1239
  %v1242 = vlaneseq
  %v1243 = vshrl.u32 %v1242, 7
  %v1244 = vsub.s32 0, %v1243
  %v1245 = vrot.slane %v1238, %v1244
  %v1247 = vmul.f32 %v524, %v1245
  %v1248 = vmul.f32 %v527, %v1245
  %v1249 = vmul.f32 %v532, %v1245
  %v1250 = vmul.f32 %v535, %v1245
  %v1251 = vmul.f32 %v540, %v1245
  %v1252 = vmul.f32 %v543, %v1245
  %v1253 = vmul.f32 %v548, %v1245
  %v1254 = vmul.f32 %v551, %v1245
  %v1255 = vmul.f32 %v556, %v1245
  %v1256 = vmul.f32 %v559, %v1245
  %v1257 = vmul.f32 %v564, %v1245
  %v1258 = vmul.f32 %v567, %v1245
  %v1259 = vmul.f32 %v572, %v1245
  %v1260 = vmul.f32 %v575, %v1245
  %v1261 = vmul.f32 %v580, %v1245
  %v1262 = vmul.f32 %v583, %v1245
  %v1263 = vmul.f32 %v588, %v1245
  %v1264 = vmul.f32 %v591, %v1245
  %v1265 = vmul.f32 %v596, %v1245
  %v1266 = vmul.f32 %v599, %v1245
  %v1267 = vmul.f32 %v604, %v1245
  %v1268 = vmul.f32 %v607, %v1245
  %v1269 = vmul.f32 %v612, %v1245
  %v1270 = vmul.f32 %v615, %v1245
  %v1271 = vmul.f32 %v620, %v1245
  %v1272 = vmul.f32 %v623, %v1245
  %v1273 = vmul.f32 %v628, %v1245
  %v1274 = vmul.f32 %v631, %v1245
  %v1275 = vmul.f32 %v636, %v1245
  %v1276 = vmul.f32 %v639, %v1245
  %v1277 = vmul.f32 %v644, %v1245
  %v1278 = vmul.f32 %v647, %v1245
  %v1279 = vmul.f32 %v652, %v1245
  %v1280 = vmul.f32 %v655, %v1245
  %v1281 = vmul.f32 %v660, %v1245
  %v1282 = vmul.f32 %v663, %v1245
  %v1283 = vmul.f32 %v668, %v1245
  %v1284 = vmul.f32 %v671, %v1245
  %v1285 = vmul.f32 %v676, %v1245
  %v1286 = vmul.f32 %v679, %v1245
  %v1287 = vmul.f32 %v684, %v1245
  %v1288 = vmul.f32 %v687, %v1245
  %v1289 = vmul.f32 %v692, %v1245
  %v1290 = vmul.f32 %v695, %v1245
  %v1291 = vmul.f32 %v700, %v1245
  %v1292 = vmul.f32 %v703, %v1245
  %v1293 = vmul.f32 %v708, %v1245
  %v1294 = vmul.f32 %v711, %v1245
  %v1295 = vmul.f32 %v716, %v1245
  %v1296 = vmul.f32 %v719, %v1245
  %v1297 = vmul.f32 %v724, %v1245
  %v1298 = vmul.f32 %v727, %v1245
  %v1299 = vmul.f32 %v732, %v1245
  %v1300 = vmul.f32 %v735, %v1245
  %v1301 = vmul.f32 %v740, %v1245
  %v1302 = vmul.f32 %v743, %v1245
  %v1303 = vmul.f32 %v748, %v1245
  %v1304 = vmul.f32 %v751, %v1245
  %v1305 = vmul.f32 %v756, %v1245
  %v1306 = vmul.f32 %v759, %v1245
  %v1307 = vmul.f32 %v764, %v1245
  %v1308 = vmul.f32 %v767, %v1245
  %v1309 = vmul.f32 %v772, %v1245
  %v1310 = vmul.f32 %v775, %v1245
  %v1311 = vmul.f32 %v780, %v1245
  %v1312 = vmul.f32 %v783, %v1245
  %v1313 = vmul.f32 %v788, %v1245
  %v1314 = vmul.f32 %v791, %v1245
  %v1315 = vmul.f32 %v796, %v1245
  %v1316 = vmul.f32 %v799, %v1245
  %v1317 = vmul.f32 %v804, %v1245
  %v1318 = vmul.f32 %v807, %v1245
  %v1319 = vmul.f32 %v812, %v1245
  %v1320 = vmul.f32 %v815, %v1245
  %v1321 = vmul.f32 %v820, %v1245
  %v1322 = vmul.f32 %v823, %v1245
  %v1323 = vmul.f32 %v828, %v1245
  %v1325 = vlaneseq
  %v1326 = vshrl.u32 %v1325, 7
  %v1327 = vsub.s32 0, %v1326
  %v1328 = vrot.slane %v1240, %v1327
  %v1330 = vadd.f32 %v1247, %v1328
  %v1331 = vadd.f32 %v1248, %v1328
  %v1332 = vadd.f32 %v1249, %v1328
  %v1333 = vadd.f32 %v1250, %v1328
  %v1334 = vadd.f32 %v1251, %v1328
  %v1335 = vadd.f32 %v1252, %v1328
  %v1336 = vadd.f32 %v1253, %v1328
  %v1337 = vadd.f32 %v1254, %v1328
  %v1338 = vadd.f32 %v1255, %v1328
  %v1339 = vadd.f32 %v1256, %v1328
  %v1340 = vadd.f32 %v1257, %v1328
  %v1341 = vadd.f32 %v1258, %v1328
  %v1342 = vadd.f32 %v1259, %v1328
  %v1343 = vadd.f32 %v1260, %v1328
  %v1344 = vadd.f32 %v1261, %v1328
  %v1345 = vadd.f32 %v1262, %v1328
  %v1346 = vadd.f32 %v1263, %v1328
  %v1347 = vadd.f32 %v1264, %v1328
  %v1348 = vadd.f32 %v1265, %v1328
  %v1349 = vadd.f32 %v1266, %v1328
  %v1350 = vadd.f32 %v1267, %v1328
  %v1351 = vadd.f32 %v1268, %v1328
  %v1352 = vadd.f32 %v1269, %v1328
  %v1353 = vadd.f32 %v1270, %v1328
  %v1354 = vadd.f32 %v1271, %v1328
  %v1355 = vadd.f32 %v1272, %v1328
  %v1356 = vadd.f32 %v1273, %v1328
  %v1357 = vadd.f32 %v1274, %v1328
  %v1358 = vadd.f32 %v1275, %v1328
  %v1359 = vadd.f32 %v1276, %v1328
  %v1360 = vadd.f32 %v1277, %v1328
  %v1361 = vadd.f32 %v1278, %v1328
  %v1362 = vadd.f32 %v1279, %v1328
  %v1363 = vadd.f32 %v1280, %v1328
  %v1364 = vadd.f32 %v1281, %v1328
  %v1365 = vadd.f32 %v1282, %v1328
  %v1366 = vadd.f32 %v1283, %v1328
  %v1367 = vadd.f32 %v1284, %v1328
  %v1368 = vadd.f32 %v1285, %v1328
  %v1369 = vadd.f32 %v1286, %v1328
  %v1370 = vadd.f32 %v1287, %v1328
  %v1371 = vadd.f32 %v1288, %v1328
  %v1372 = vadd.f32 %v1289, %v1328
  %v1373 = vadd.f32 %v1290, %v1328
  %v1374 = vadd.f32 %v1291, %v1328
  %v1375 = vadd.f32 %v1292, %v1328
  %v1376 = vadd.f32 %v1293, %v1328
  %v1377 = vadd.f32 %v1294, %v1328
  %v1378 = vadd.f32 %v1295, %v1328
  %v1379 = vadd.f32 %v1296, %v1328
  %v1380 = vadd.f32 %v1297, %v1328
  %v1381 = vadd.f32 %v1298, %v1328
  %v1382 = vadd.f32 %v1299, %v1328
  %v1383 = vadd.f32 %v1300, %v1328
  %v1384 = vadd.f32 %v1301, %v1328
  %v1385 = vadd.f32 %v1302, %v1328
  %v1386 = vadd.f32 %v1303, %v1328
  %v1387 = vadd.f32 %v1304, %v1328
  %v1388 = vadd.f32 %v1305, %v1328
  %v1389 = vadd.f32 %v1306, %v1328
  %v1390 = vadd.f32 %v1307, %v1328
  %v1391 = vadd.f32 %v1308, %v1328
  %v1392 = vadd.f32 %v1309, %v1328
  %v1393 = vadd.f32 %v1310, %v1328
  %v1394 = vadd.f32 %v1311, %v1328
  %v1395 = vadd.f32 %v1312, %v1328
  %v1396 = vadd.f32 %v1313, %v1328
  %v1397 = vadd.f32 %v1314, %v1328
  %v1398 = vadd.f32 %v1315, %v1328
  %v1399 = vadd.f32 %v1316, %v1328
  %v1400 = vadd.f32 %v1317, %v1328
  %v1401 = vadd.f32 %v1318, %v1328
  %v1402 = vadd.f32 %v1319, %v1328
  %v1403 = vadd.f32 %v1320, %v1328
  %v1404 = vadd.f32 %v1321, %v1328
  %v1405 = vadd.f32 %v1322, %v1328
  %v1406 = vadd.f32 %v1323, %v1328
  %v1407 = vmax.f32 %v1330, 0.0
  %v1408 = vmax.f32 %v1331, 0.0
  %v1409 = vmax.f32 %v1332, 0.0
  %v1410 = vmax.f32 %v1333, 0.0
  %v1411 = vmax.f32 %v1334, 0.0
  %v1412 = vmax.f32 %v1335, 0.0
  %v1413 = vmax.f32 %v1336, 0.0
  %v1414 = vmax.f32 %v1337, 0.0
  %v1415 = vmax.f32 %v1338, 0.0
  %v1416 = vmax.f32 %v1339, 0.0
  %v1417 = vmax.f32 %v1340, 0.0
  %v1418 = vmax.f32 %v1341, 0.0
  %v1419 = vmax.f32 %v1342, 0.0
  %v1420 = vmax.f32 %v1343, 0.0
  %v1421 = vmax.f32 %v1344, 0.0
  %v1422 = vmax.f32 %v1345, 0.0
  %v1423 = vmax.f32 %v1346, 0.0
  %v1424 = vmax.f32 %v1347, 0.0
  %v1425 = vmax.f32 %v1348, 0.0
  %v1426 = vmax.f32 %v1349, 0.0
  %v1427 = vmax.f32 %v1350, 0.0
  %v1428 = vmax.f32 %v1351, 0.0
  %v1429 = vmax.f32 %v1352, 0.0
  %v1430 = vmax.f32 %v1353, 0.0
  %v1431 = vmax.f32 %v1354, 0.0
  %v1432 = vmax.f32 %v1355, 0.0
  %v1433 = vmax.f32 %v1356, 0.0
  %v1434 = vmax.f32 %v1357, 0.0
  %v1435 = vmax.f32 %v1358, 0.0
  %v1436 = vmax.f32 %v1359, 0.0
  %v1437 = vmax.f32 %v1360, 0.0
  %v1438 = vmax.f32 %v1361, 0.0
  %v1439 = vmax.f32 %v1362, 0.0
  %v1440 = vmax.f32 %v1363, 0.0
  %v1441 = vmax.f32 %v1364, 0.0
  %v1442 = vmax.f32 %v1365, 0.0
  %v1443 = vmax.f32 %v1366, 0.0
  %v1444 = vmax.f32 %v1367, 0.0
  %v1445 = vmax.f32 %v1368, 0.0
  %v1446 = vmax.f32 %v1369, 0.0
  %v1447 = vmax.f32 %v1370, 0.0
  %v1448 = vmax.f32 %v1371, 0.0
  %v1449 = vmax.f32 %v1372, 0.0
  %v1450 = vmax.f32 %v1373, 0.0
  %v1451 = vmax.f32 %v1374, 0.0
  %v1452 = vmax.f32 %v1375, 0.0
  %v1453 = vmax.f32 %v1376, 0.0
  %v1454 = vmax.f32 %v1377, 0.0
  %v1455 = vmax.f32 %v1378, 0.0
  %v1456 = vmax.f32 %v1379, 0.0
  %v1457 = vmax.f32 %v1380, 0.0
  %v1458 = vmax.f32 %v1381, 0.0
  %v1459 = vmax.f32 %v1382, 0.0
  %v1460 = vmax.f32 %v1383, 0.0
  %v1461 = vmax.f32 %v1384, 0.0
  %v1462 = vmax.f32 %v1385, 0.0
  %v1463 = vmax.f32 %v1386, 0.0
  %v1464 = vmax.f32 %v1387, 0.0
  %v1465 = vmax.f32 %v1388, 0.0
  %v1466 = vmax.f32 %v1389, 0.0
  %v1467 = vmax.f32 %v1390, 0.0
  %v1468 = vmax.f32 %v1391, 0.0
  %v1469 = vmax.f32 %v1392, 0.0
  %v1470 = vmax.f32 %v1393, 0.0
  %v1471 = vmax.f32 %v1394, 0.0
  %v1472 = vmax.f32 %v1395, 0.0
  %v1473 = vmax.f32 %v1396, 0.0
  %v1474 = vmax.f32 %v1397, 0.0
  %v1475 = vmax.f32 %v1398, 0.0
  %v1476 = vmax.f32 %v1399, 0.0
  %v1477 = vmax.f32 %v1400, 0.0
  %v1478 = vmax.f32 %v1401, 0.0
  %v1479 = vmax.f32 %v1402, 0.0
  %v1480 = vmax.f32 %v1403, 0.0
  %v1481 = vmax.f32 %v1404, 0.0
  %v1482 = vmax.f32 %v1405, 0.0
  %v1483 = vmax.f32 %v1406, 0.0
  %1485 = vset.pattern.permute.xlu0 0
  %1486 = vperm.xlu0 %1485, %v39
  %v1487 = vpop.permute.xlu0 %1486
  %1490 = vset.pattern.permute.xlu0 0
  %1491 = vperm.xlu0 %1490, %v40
  %v1492 = vpop.permute.xlu0 %1491
  %1495 = vset.pattern.permute.xlu0 0
  %1496 = vperm.xlu0 %1495, %v41
  %v1497 = vpop.permute.xlu0 %1496
  %1500 = vset.pattern.permute.xlu0 0
  %1501 = vperm.xlu0 %1500, %v42
  %v1502 = vpop.permute.xlu0 %1501
  %1505 = vset.pattern.permute.xlu0 0
  %1506 = vperm.xlu0 %1505, %v43
  %v1507 = vpop.permute.xlu0 %1506
  %1510 = vset.pattern.permute.xlu0 0
  %1511 = vperm.xlu0 %1510, %v44
  %v1512 = vpop.permute.xlu0 %1511
  %1515 = vset.pattern.permute.xlu0 0
  %1516 = vperm.xlu0 %1515, %v45
  %v1517 = vpop.permute.xlu0 %1516
  %1520 = vset.pattern.permute.xlu0 0
  %1521 = vperm.xlu0 %1520, %v46
  %v1522 = vpop.permute.xlu0 %1521
  %1525 = vset.pattern.permute.xlu0 0
  %1526 = vperm.xlu0 %1525, %v47
  %v1527 = vpop.permute.xlu0 %1526
  %1530 = vset.pattern.permute.xlu0 0
  %1531 = vperm.xlu0 %1530, %v48
  %v1532 = vpop.permute.xlu0 %1531
  %1535 = vset.pattern.permute.xlu0 0
  %1536 = vperm.xlu0 %1535, %v49
  %v1537 = vpop.permute.xlu0 %1536
  %1540 = vset.pattern.permute.xlu0 0
  %1541 = vperm.xlu0 %1540, %v50
  %v1542 = vpop.permute.xlu0 %1541
  %1545 = vset.pattern.permute.xlu0 0
  %1546 = vperm.xlu0 %1545, %v51
  %v1547 = vpop.permute.xlu0 %1546
  %1550 = vset.pattern.permute.xlu0 0
  %1551 = vperm.xlu0 %1550, %v52
  %v1552 = vpop.permute.xlu0 %1551
  %1555 = vset.pattern.permute.xlu0 0
  %1556 = vperm.xlu0 %1555, %v53
  %v1557 = vpop.permute.xlu0 %1556
  %1560 = vset.pattern.permute.xlu0 0
  %1561 = vperm.xlu0 %1560, %v54
  %v1562 = vpop.permute.xlu0 %1561
  %1565 = vset.pattern.permute.xlu0 0
  %1566 = vperm.xlu0 %1565, %v55
  %v1567 = vpop.permute.xlu0 %1566
  %1570 = vset.pattern.permute.xlu0 0
  %1571 = vperm.xlu0 %1570, %v56
  %v1572 = vpop.permute.xlu0 %1571
  %1575 = vset.pattern.permute.xlu0 0
  %1576 = vperm.xlu0 %1575, %v57
  %v1577 = vpop.permute.xlu0 %1576
  %1580 = vset.pattern.permute.xlu0 0
  %1581 = vperm.xlu0 %1580, %v58
  %v1582 = vpop.permute.xlu0 %1581
  %1585 = vset.pattern.permute.xlu0 0
  %1586 = vperm.xlu0 %1585, %v59
  %v1587 = vpop.permute.xlu0 %1586
  %1590 = vset.pattern.permute.xlu0 0
  %1591 = vperm.xlu0 %1590, %v60
  %v1592 = vpop.permute.xlu0 %1591
  %1595 = vset.pattern.permute.xlu0 0
  %1596 = vperm.xlu0 %1595, %v61
  %v1597 = vpop.permute.xlu0 %1596
  %1600 = vset.pattern.permute.xlu0 0
  %1601 = vperm.xlu0 %1600, %v62
  %v1602 = vpop.permute.xlu0 %1601
  %1605 = vset.pattern.permute.xlu0 0
  %1606 = vperm.xlu0 %1605, %v63
  %v1607 = vpop.permute.xlu0 %1606
  %1610 = vset.pattern.permute.xlu0 0
  %1611 = vperm.xlu0 %1610, %v64
  %v1612 = vpop.permute.xlu0 %1611
  %1615 = vset.pattern.permute.xlu0 0
  %1616 = vperm.xlu0 %1615, %v65
  %v1617 = vpop.permute.xlu0 %1616
  %1620 = vset.pattern.permute.xlu0 0
  %1621 = vperm.xlu0 %1620, %v66
  %v1622 = vpop.permute.xlu0 %1621
  %1625 = vset.pattern.permute.xlu0 0
  %1626 = vperm.xlu0 %1625, %v67
  %v1627 = vpop.permute.xlu0 %1626
  %1630 = vset.pattern.permute.xlu0 0
  %1631 = vperm.xlu0 %1630, %v68
  %v1632 = vpop.permute.xlu0 %1631
  %1635 = vset.pattern.permute.xlu0 0
  %1636 = vperm.xlu0 %1635, %v69
  %v1637 = vpop.permute.xlu0 %1636
  %1640 = vset.pattern.permute.xlu0 0
  %1641 = vperm.xlu0 %1640, %v70
  %v1642 = vpop.permute.xlu0 %1641
  %1645 = vset.pattern.permute.xlu0 0
  %1646 = vperm.xlu0 %1645, %v71
  %v1647 = vpop.permute.xlu0 %1646
  %1650 = vset.pattern.permute.xlu0 0
  %1651 = vperm.xlu0 %1650, %v72
  %v1652 = vpop.permute.xlu0 %1651
  %1655 = vset.pattern.permute.xlu0 0
  %1656 = vperm.xlu0 %1655, %v73
  %v1657 = vpop.permute.xlu0 %1656
  %1660 = vset.pattern.permute.xlu0 0
  %1661 = vperm.xlu0 %1660, %v74
  %v1662 = vpop.permute.xlu0 %1661
  %1665 = vset.pattern.permute.xlu0 0
  %1666 = vperm.xlu0 %1665, %v75
  %v1667 = vpop.permute.xlu0 %1666
  %1670 = vset.pattern.permute.xlu0 0
  %1671 = vperm.xlu0 %1670, %v76
  %v1672 = vpop.permute.xlu0 %1671
  %1675 = vset.pattern.permute.xlu0 0
  %1676 = vperm.xlu0 %1675, %v77
  %v1677 = vpop.permute.xlu0 %1676
  %1680 = vset.pattern.permute.xlu0 0
  %1681 = vperm.xlu0 %1680, %v78
  %v1682 = vpop.permute.xlu0 %1681
  %1685 = vset.pattern.permute.xlu0 0
  %1686 = vperm.xlu0 %1685, %v79
  %v1687 = vpop.permute.xlu0 %1686
  %1690 = vset.pattern.permute.xlu0 0
  %1691 = vperm.xlu0 %1690, %v80
  %v1692 = vpop.permute.xlu0 %1691
  %1695 = vset.pattern.permute.xlu0 0
  %1696 = vperm.xlu0 %1695, %v81
  %v1697 = vpop.permute.xlu0 %1696
  %1700 = vset.pattern.permute.xlu0 0
  %1701 = vperm.xlu0 %1700, %v82
  %v1702 = vpop.permute.xlu0 %1701
  %1705 = vset.pattern.permute.xlu0 0
  %1706 = vperm.xlu0 %1705, %v83
  %v1707 = vpop.permute.xlu0 %1706
  %1710 = vset.pattern.permute.xlu0 0
  %1711 = vperm.xlu0 %1710, %v84
  %v1712 = vpop.permute.xlu0 %1711
  %1715 = vset.pattern.permute.xlu0 0
  %1716 = vperm.xlu0 %1715, %v85
  %v1717 = vpop.permute.xlu0 %1716
  %1720 = vset.pattern.permute.xlu0 0
  %1721 = vperm.xlu0 %1720, %v86
  %v1722 = vpop.permute.xlu0 %1721
  %1725 = vset.pattern.permute.xlu0 0
  %1726 = vperm.xlu0 %1725, %v87
  %v1727 = vpop.permute.xlu0 %1726
  %1730 = vset.pattern.permute.xlu0 0
  %1731 = vperm.xlu0 %1730, %v88
  %v1732 = vpop.permute.xlu0 %1731
  %1735 = vset.pattern.permute.xlu0 0
  %1736 = vperm.xlu0 %1735, %v89
  %v1737 = vpop.permute.xlu0 %1736
  %1740 = vset.pattern.permute.xlu0 0
  %1741 = vperm.xlu0 %1740, %v90
  %v1742 = vpop.permute.xlu0 %1741
  %1745 = vset.pattern.permute.xlu0 0
  %1746 = vperm.xlu0 %1745, %v91
  %v1747 = vpop.permute.xlu0 %1746
  %1750 = vset.pattern.permute.xlu0 0
  %1751 = vperm.xlu0 %1750, %v92
  %v1752 = vpop.permute.xlu0 %1751
  %1755 = vset.pattern.permute.xlu0 0
  %1756 = vperm.xlu0 %1755, %v93
  %v1757 = vpop.permute.xlu0 %1756
  %1760 = vset.pattern.permute.xlu0 0
  %1761 = vperm.xlu0 %1760, %v94
  %v1762 = vpop.permute.xlu0 %1761
  %1765 = vset.pattern.permute.xlu0 0
  %1766 = vperm.xlu0 %1765, %v95
  %v1767 = vpop.permute.xlu0 %1766
  %1770 = vset.pattern.permute.xlu0 0
  %1771 = vperm.xlu0 %1770, %v96
  %v1772 = vpop.permute.xlu0 %1771
  %1775 = vset.pattern.permute.xlu0 0
  %1776 = vperm.xlu0 %1775, %v97
  %v1777 = vpop.permute.xlu0 %1776
  %1780 = vset.pattern.permute.xlu0 0
  %1781 = vperm.xlu0 %1780, %v98
  %v1782 = vpop.permute.xlu0 %1781
  %1785 = vset.pattern.permute.xlu0 0
  %1786 = vperm.xlu0 %1785, %v99
  %v1787 = vpop.permute.xlu0 %1786
  %1790 = vset.pattern.permute.xlu0 0
  %1791 = vperm.xlu0 %1790, %v100
  %v1792 = vpop.permute.xlu0 %1791
  %1795 = vset.pattern.permute.xlu0 0
  %1796 = vperm.xlu0 %1795, %v101
  %v1797 = vpop.permute.xlu0 %1796
  %1800 = vset.pattern.permute.xlu0 0
  %1801 = vperm.xlu0 %1800, %v102
  %v1802 = vpop.permute.xlu0 %1801
  %1805 = vset.pattern.permute.xlu0 0
  %1806 = vperm.xlu0 %1805, %v103
  %v1807 = vpop.permute.xlu0 %1806
  %1810 = vset.pattern.permute.xlu0 0
  %1811 = vperm.xlu0 %1810, %v104
  %v1812 = vpop.permute.xlu0 %1811
  %1815 = vset.pattern.permute.xlu0 0
  %1816 = vperm.xlu0 %1815, %v105
  %v1817 = vpop.permute.xlu0 %1816
  %1820 = vset.pattern.permute.xlu0 0
  %1821 = vperm.xlu0 %1820, %v106
  %v1822 = vpop.permute.xlu0 %1821
  %1825 = vset.pattern.permute.xlu0 0
  %1826 = vperm.xlu0 %1825, %v107
  %v1827 = vpop.permute.xlu0 %1826
  %1830 = vset.pattern.permute.xlu0 0
  %1831 = vperm.xlu0 %1830, %v108
  %v1832 = vpop.permute.xlu0 %1831
  %1835 = vset.pattern.permute.xlu0 0
  %1836 = vperm.xlu0 %1835, %v109
  %v1837 = vpop.permute.xlu0 %1836
  %1840 = vset.pattern.permute.xlu0 0
  %1841 = vperm.xlu0 %1840, %v110
  %v1842 = vpop.permute.xlu0 %1841
  %1845 = vset.pattern.permute.xlu0 0
  %1846 = vperm.xlu0 %1845, %v111
  %v1847 = vpop.permute.xlu0 %1846
  %1850 = vset.pattern.permute.xlu0 0
  %1851 = vperm.xlu0 %1850, %v112
  %v1852 = vpop.permute.xlu0 %1851
  %1855 = vset.pattern.permute.xlu0 0
  %1856 = vperm.xlu0 %1855, %v113
  %v1857 = vpop.permute.xlu0 %1856
  %1860 = vset.pattern.permute.xlu0 0
  %1861 = vperm.xlu0 %1860, %v114
  %v1862 = vpop.permute.xlu0 %1861
  %1865 = vset.pattern.permute.xlu0 0
  %1866 = vperm.xlu0 %1865, %v115
  %v1867 = vpop.permute.xlu0 %1866
  %v1869 = vmul.f32 %v1407, %v1487
  %v1870 = vmul.f32 %v1408, %v1492
  %v1871 = vmul.f32 %v1409, %v1497
  %v1872 = vmul.f32 %v1410, %v1502
  %v1873 = vmul.f32 %v1411, %v1507
  %v1874 = vmul.f32 %v1412, %v1512
  %v1875 = vmul.f32 %v1413, %v1517
  %v1876 = vmul.f32 %v1414, %v1522
  %v1877 = vmul.f32 %v1415, %v1527
  %v1878 = vmul.f32 %v1416, %v1532
  %v1879 = vmul.f32 %v1417, %v1537
  %v1880 = vmul.f32 %v1418, %v1542
  %v1881 = vmul.f32 %v1419, %v1547
  %v1882 = vmul.f32 %v1420, %v1552
  %v1883 = vmul.f32 %v1421, %v1557
  %v1884 = vmul.f32 %v1422, %v1562
  %v1885 = vmul.f32 %v1423, %v1567
  %v1886 = vmul.f32 %v1424, %v1572
  %v1887 = vmul.f32 %v1425, %v1577
  %v1888 = vmul.f32 %v1426, %v1582
  %v1889 = vmul.f32 %v1427, %v1587
  %v1890 = vmul.f32 %v1428, %v1592
  %v1891 = vmul.f32 %v1429, %v1597
  %v1892 = vmul.f32 %v1430, %v1602
  %v1893 = vmul.f32 %v1431, %v1607
  %v1894 = vmul.f32 %v1432, %v1612
  %v1895 = vmul.f32 %v1433, %v1617
  %v1896 = vmul.f32 %v1434, %v1622
  %v1897 = vmul.f32 %v1435, %v1627
  %v1898 = vmul.f32 %v1436, %v1632
  %v1899 = vmul.f32 %v1437, %v1637
  %v1900 = vmul.f32 %v1438, %v1642
  %v1901 = vmul.f32 %v1439, %v1647
  %v1902 = vmul.f32 %v1440, %v1652
  %v1903 = vmul.f32 %v1441, %v1657
  %v1904 = vmul.f32 %v1442, %v1662
  %v1905 = vmul.f32 %v1443, %v1667
  %v1906 = vmul.f32 %v1444, %v1672
  %v1907 = vmul.f32 %v1445, %v1677
  %v1908 = vmul.f32 %v1446, %v1682
  %v1909 = vmul.f32 %v1447, %v1687
  %v1910 = vmul.f32 %v1448, %v1692
  %v1911 = vmul.f32 %v1449, %v1697
  %v1912 = vmul.f32 %v1450, %v1702
  %v1913 = vmul.f32 %v1451, %v1707
  %v1914 = vmul.f32 %v1452, %v1712
  %v1915 = vmul.f32 %v1453, %v1717
  %v1916 = vmul.f32 %v1454, %v1722
  %v1917 = vmul.f32 %v1455, %v1727
  %v1918 = vmul.f32 %v1456, %v1732
  %v1919 = vmul.f32 %v1457, %v1737
  %v1920 = vmul.f32 %v1458, %v1742
  %v1921 = vmul.f32 %v1459, %v1747
  %v1922 = vmul.f32 %v1460, %v1752
  %v1923 = vmul.f32 %v1461, %v1757
  %v1924 = vmul.f32 %v1462, %v1762
  %v1925 = vmul.f32 %v1463, %v1767
  %v1926 = vmul.f32 %v1464, %v1772
  %v1927 = vmul.f32 %v1465, %v1777
  %v1928 = vmul.f32 %v1466, %v1782
  %v1929 = vmul.f32 %v1467, %v1787
  %v1930 = vmul.f32 %v1468, %v1792
  %v1931 = vmul.f32 %v1469, %v1797
  %v1932 = vmul.f32 %v1470, %v1802
  %v1933 = vmul.f32 %v1471, %v1807
  %v1934 = vmul.f32 %v1472, %v1812
  %v1935 = vmul.f32 %v1473, %v1817
  %v1936 = vmul.f32 %v1474, %v1822
  %v1937 = vmul.f32 %v1475, %v1827
  %v1938 = vmul.f32 %v1476, %v1832
  %v1939 = vmul.f32 %v1477, %v1837
  %v1940 = vmul.f32 %v1478, %v1842
  %v1941 = vmul.f32 %v1479, %v1847
  %v1942 = vmul.f32 %v1480, %v1852
  %v1943 = vmul.f32 %v1481, %v1857
  %v1944 = vmul.f32 %v1482, %v1862
  %v1945 = vmul.f32 %v1483, %v1867
  %1946 = vst.msk [vmem:[#allocation2] sm:$0xf] %vm987, 0
  %1947 = vst.msk [vmem:[#allocation2 + $0x4] sm:$0xf] %vm987, 0
  %1948 = vst.msk [vmem:[#allocation2 + $0x8] sm:$0xf] %vm987, 0
  %vm1949 = vcmask 257026
  %1950 = vst.msk [vmem:[#allocation2 + $0x13c] sm:$0xc] %vm1949, 0
  %1951 = vst.msk [vmem:[#allocation2 + $0x140] sm:$0xf] %vm987, 0
  %1952 = vst.msk [vmem:[#allocation2 + $0x144] sm:$0xf] %vm987, 0
  %vm1953 = vcmask 254976
  %1954 = vst.msk [vmem:[#allocation2 + $0x148] sm:$0x3] %vm1953, 0
  %v1955 = vpack.c.bf16 %v1870, %v1869
  %v1956 = vpack.c.bf16 %v1872, %v1871
  %v1957 = vpack.c.bf16 %v1874, %v1873
  %v1958 = vpack.c.bf16 %v1876, %v1875
  %v1959 = vpack.c.bf16 %v1878, %v1877
  %v1960 = vpack.c.bf16 %v1880, %v1879
  %v1961 = vpack.c.bf16 %v1882, %v1881
  %v1962 = vpack.c.bf16 %v1884, %v1883
  %v1963 = vpack.c.bf16 %v1886, %v1885
  %v1964 = vpack.c.bf16 %v1888, %v1887
  %v1965 = vpack.c.bf16 %v1890, %v1889
  %v1966 = vpack.c.bf16 %v1892, %v1891
  %v1967 = vpack.c.bf16 %v1894, %v1893
  %v1968 = vpack.c.bf16 %v1896, %v1895
  %v1969 = vpack.c.bf16 %v1898, %v1897
  %v1970 = vpack.c.bf16 %v1900, %v1899
  %v1971 = vpack.c.bf16 %v1902, %v1901
  %v1972 = vpack.c.bf16 %v1904, %v1903
  %v1973 = vpack.c.bf16 %v1906, %v1905
  %v1974 = vpack.c.bf16 %v1908, %v1907
  %v1975 = vpack.c.bf16 %v1910, %v1909
  %v1976 = vpack.c.bf16 %v1912, %v1911
  %v1977 = vpack.c.bf16 %v1914, %v1913
  %v1978 = vpack.c.bf16 %v1916, %v1915
  %v1979 = vpack.c.bf16 %v1918, %v1917
  %v1980 = vpack.c.bf16 %v1920, %v1919
  %v1981 = vpack.c.bf16 %v1922, %v1921
  %v1982 = vpack.c.bf16 %v1924, %v1923
  %v1983 = vpack.c.bf16 %v1926, %v1925
  %v1984 = vpack.c.bf16 %v1928, %v1927
  %v1985 = vpack.c.bf16 %v1930, %v1929
  %v1986 = vpack.c.bf16 %v1932, %v1931
  %v1987 = vpack.c.bf16 %v1934, %v1933
  %v1988 = vpack.c.bf16 %v1936, %v1935
  %v1989 = vpack.c.bf16 %v1938, %v1937
  %v1990 = vpack.c.bf16 %v1940, %v1939
  %v1991 = vpack.c.bf16 %v1942, %v1941
  %v1992 = vpack.c.bf16 %v1944, %v1943
  %v1993 = vpack.c.bf16 %v1945, %v1945
  %v2033 = vunpack.c.l.b16 %v1955
  %v2034 = vunpack.c.h.b16 %v1955
  %v2035 = vunpack.c.l.b16 %v1956
  %v2036 = vunpack.c.h.b16 %v1956
  %v2037 = vunpack.c.l.b16 %v1957
  %v2038 = vunpack.c.h.b16 %v1957
  %v2039 = vunpack.c.l.b16 %v1958
  %v2040 = vunpack.c.h.b16 %v1958
  %v2041 = vunpack.c.l.b16 %v1959
  %v2042 = vunpack.c.h.b16 %v1959
  %v2043 = vunpack.c.l.b16 %v1960
  %v2044 = vunpack.c.h.b16 %v1960
  %v2045 = vunpack.c.l.b16 %v1961
  %v2046 = vunpack.c.h.b16 %v1961
  %v2047 = vunpack.c.l.b16 %v1962
  %v2048 = vunpack.c.h.b16 %v1962
  %v2049 = vunpack.c.l.b16 %v1963
  %v2050 = vunpack.c.h.b16 %v1963
  %v2051 = vunpack.c.l.b16 %v1964
  %v2052 = vunpack.c.h.b16 %v1964
  %v2053 = vunpack.c.l.b16 %v1965
  %v2054 = vunpack.c.h.b16 %v1965
  %v2055 = vunpack.c.l.b16 %v1966
  %v2056 = vunpack.c.h.b16 %v1966
  %v2057 = vunpack.c.l.b16 %v1967
  %v2058 = vunpack.c.h.b16 %v1967
  %v2059 = vunpack.c.l.b16 %v1968
  %v2060 = vunpack.c.h.b16 %v1968
  %v2061 = vunpack.c.l.b16 %v1969
  %v2062 = vunpack.c.h.b16 %v1969
  %v2063 = vunpack.c.l.b16 %v1970
  %v2064 = vunpack.c.h.b16 %v1970
  %v2065 = vunpack.c.l.b16 %v1971
  %v2066 = vunpack.c.h.b16 %v1971
  %v2067 = vunpack.c.l.b16 %v1972
  %v2068 = vunpack.c.h.b16 %v1972
  %v2069 = vunpack.c.l.b16 %v1973
  %v2070 = vunpack.c.h.b16 %v1973
  %v2071 = vunpack.c.l.b16 %v1974
  %v2072 = vunpack.c.h.b16 %v1974
  %v2073 = vunpack.c.l.b16 %v1975
  %v2074 = vunpack.c.h.b16 %v1975
  %v2075 = vunpack.c.l.b16 %v1976
  %v2076 = vunpack.c.h.b16 %v1976
  %v2077 = vunpack.c.l.b16 %v1977
  %v2078 = vunpack.c.h.b16 %v1977
  %v2079 = vunpack.c.l.b16 %v1978
  %v2080 = vunpack.c.h.b16 %v1978
  %v2081 = vunpack.c.l.b16 %v1979
  %v2082 = vunpack.c.h.b16 %v1979
  %v2083 = vunpack.c.l.b16 %v1980
  %v2084 = vunpack.c.h.b16 %v1980
  %v2085 = vunpack.c.l.b16 %v1981
  %v2086 = vunpack.c.h.b16 %v1981
  %v2087 = vunpack.c.l.b16 %v1982
  %v2088 = vunpack.c.h.b16 %v1982
  %v2089 = vunpack.c.l.b16 %v1983
  %v2090 = vunpack.c.h.b16 %v1983
  %v2091 = vunpack.c.l.b16 %v1984
  %v2092 = vunpack.c.h.b16 %v1984
  %v2093 = vunpack.c.l.b16 %v1985
  %v2094 = vunpack.c.h.b16 %v1985
  %v2095 = vunpack.c.l.b16 %v1986
  %v2096 = vunpack.c.h.b16 %v1986
  %v2097 = vunpack.c.l.b16 %v1987
  %v2098 = vunpack.c.h.b16 %v1987
  %v2099 = vunpack.c.l.b16 %v1988
  %v2100 = vunpack.c.h.b16 %v1988
  %v2101 = vunpack.c.l.b16 %v1989
  %v2102 = vunpack.c.h.b16 %v1989
  %v2103 = vunpack.c.l.b16 %v1990
  %v2104 = vunpack.c.h.b16 %v1990
  %v2105 = vunpack.c.l.b16 %v1991
  %v2106 = vunpack.c.h.b16 %v1991
  %v2107 = vunpack.c.l.b16 %v1992
  %v2108 = vunpack.c.h.b16 %v1992
  %v2109 = vunpack.c.l.b16 %v1993
  %v2110 = vpack.c.b16 %v2033, %v2033
  %v2111 = vpack.c.b16 %v2034, %v2034
  %v2112 = vpack.c.b16 %v2035, %v2035
  %v2113 = vpack.c.b16 %v2036, %v2036
  %v2114 = vpack.c.b16 %v2037, %v2037
  %v2115 = vpack.c.b16 %v2038, %v2038
  %v2116 = vpack.c.b16 %v2039, %v2039
  %v2117 = vpack.c.b16 %v2040, %v2040
  %v2118 = vpack.c.b16 %v2041, %v2041
  %v2119 = vpack.c.b16 %v2042, %v2042
  %v2120 = vpack.c.b16 %v2043, %v2043
  %v2121 = vpack.c.b16 %v2044, %v2044
  %v2122 = vpack.c.b16 %v2045, %v2045
  %v2123 = vpack.c.b16 %v2046, %v2046
  %v2124 = vpack.c.b16 %v2047, %v2047
  %v2125 = vpack.c.b16 %v2048, %v2048
  %v2126 = vpack.c.b16 %v2049, %v2049
  %v2127 = vpack.c.b16 %v2050, %v2050
  %v2128 = vpack.c.b16 %v2051, %v2051
  %v2129 = vpack.c.b16 %v2052, %v2052
  %v2130 = vpack.c.b16 %v2053, %v2053
  %v2131 = vpack.c.b16 %v2054, %v2054
  %v2132 = vpack.c.b16 %v2055, %v2055
  %v2133 = vpack.c.b16 %v2056, %v2056
  %v2134 = vpack.c.b16 %v2057, %v2057
  %v2135 = vpack.c.b16 %v2058, %v2058
  %v2136 = vpack.c.b16 %v2059, %v2059
  %v2137 = vpack.c.b16 %v2060, %v2060
  %v2138 = vpack.c.b16 %v2061, %v2061
  %v2139 = vpack.c.b16 %v2062, %v2062
  %v2140 = vpack.c.b16 %v2063, %v2063
  %v2141 = vpack.c.b16 %v2064, %v2064
  %v2142 = vpack.c.b16 %v2065, %v2065
  %v2143 = vpack.c.b16 %v2066, %v2066
  %v2144 = vpack.c.b16 %v2067, %v2067
  %v2145 = vpack.c.b16 %v2068, %v2068
  %v2146 = vpack.c.b16 %v2069, %v2069
  %v2147 = vpack.c.b16 %v2070, %v2070
  %v2148 = vpack.c.b16 %v2071, %v2071
  %v2149 = vpack.c.b16 %v2072, %v2072
  %v2150 = vpack.c.b16 %v2073, %v2073
  %v2151 = vpack.c.b16 %v2074, %v2074
  %v2152 = vpack.c.b16 %v2075, %v2075
  %v2153 = vpack.c.b16 %v2076, %v2076
  %v2154 = vpack.c.b16 %v2077, %v2077
  %v2155 = vpack.c.b16 %v2078, %v2078
  %v2156 = vpack.c.b16 %v2079, %v2079
  %v2157 = vpack.c.b16 %v2080, %v2080
  %v2158 = vpack.c.b16 %v2081, %v2081
  %v2159 = vpack.c.b16 %v2082, %v2082
  %v2160 = vpack.c.b16 %v2083, %v2083
  %v2161 = vpack.c.b16 %v2084, %v2084
  %v2162 = vpack.c.b16 %v2085, %v2085
  %v2163 = vpack.c.b16 %v2086, %v2086
  %v2164 = vpack.c.b16 %v2087, %v2087
  %v2165 = vpack.c.b16 %v2088, %v2088
  %v2166 = vpack.c.b16 %v2089, %v2089
  %v2167 = vpack.c.b16 %v2090, %v2090
  %v2168 = vpack.c.b16 %v2091, %v2091
  %v2169 = vpack.c.b16 %v2092, %v2092
  %v2170 = vpack.c.b16 %v2093, %v2093
  %v2171 = vpack.c.b16 %v2094, %v2094
  %v2172 = vpack.c.b16 %v2095, %v2095
  %v2173 = vpack.c.b16 %v2096, %v2096
  %v2174 = vpack.c.b16 %v2097, %v2097
  %v2175 = vpack.c.b16 %v2098, %v2098
  %v2176 = vpack.c.b16 %v2099, %v2099
  %v2177 = vpack.c.b16 %v2100, %v2100
  %v2178 = vpack.c.b16 %v2101, %v2101
  %v2179 = vpack.c.b16 %v2102, %v2102
  %v2180 = vpack.c.b16 %v2103, %v2103
  %v2181 = vpack.c.b16 %v2104, %v2104
  %v2182 = vpack.c.b16 %v2105, %v2105
  %v2183 = vpack.c.b16 %v2106, %v2106
  %v2184 = vpack.c.b16 %v2107, %v2107
  %v2185 = vpack.c.b16 %v2108, %v2108
  %v2186 = vpack.c.b16 %v2109, %v2109
  %2264 = vst.msk [vmem:[#allocation2 + $0xc] sm:$0xf] %vm987, %v2110
  %2265 = vst.msk [vmem:[#allocation2 + $0x10] sm:$0xf] %vm987, %v2111
  %2266 = vst.msk [vmem:[#allocation2 + $0x14] sm:$0xf] %vm987, %v2112
  %2267 = vst.msk [vmem:[#allocation2 + $0x18] sm:$0xf] %vm987, %v2113
  %2268 = vst.msk [vmem:[#allocation2 + $0x1c] sm:$0xf] %vm987, %v2114
  %2269 = vst.msk [vmem:[#allocation2 + $0x20] sm:$0xf] %vm987, %v2115
  %2270 = vst.msk [vmem:[#allocation2 + $0x24] sm:$0xf] %vm987, %v2116
  %2271 = vst.msk [vmem:[#allocation2 + $0x28] sm:$0xf] %vm987, %v2117
  %2272 = vst.msk [vmem:[#allocation2 + $0x2c] sm:$0xf] %vm987, %v2118
  %2273 = vst.msk [vmem:[#allocation2 + $0x30] sm:$0xf] %vm987, %v2119
  %2274 = vst.msk [vmem:[#allocation2 + $0x34] sm:$0xf] %vm987, %v2120
  %2275 = vst.msk [vmem:[#allocation2 + $0x38] sm:$0xf] %vm987, %v2121
  %2276 = vst.msk [vmem:[#allocation2 + $0x3c] sm:$0xf] %vm987, %v2122
  %2277 = vst.msk [vmem:[#allocation2 + $0x40] sm:$0xf] %vm987, %v2123
  %2278 = vst.msk [vmem:[#allocation2 + $0x44] sm:$0xf] %vm987, %v2124
  %2279 = vst.msk [vmem:[#allocation2 + $0x48] sm:$0xf] %vm987, %v2125
  %2280 = vst.msk [vmem:[#allocation2 + $0x4c] sm:$0xf] %vm987, %v2126
  %2281 = vst.msk [vmem:[#allocation2 + $0x50] sm:$0xf] %vm987, %v2127
  %2282 = vst.msk [vmem:[#allocation2 + $0x54] sm:$0xf] %vm987, %v2128
  %2283 = vst.msk [vmem:[#allocation2 + $0x58] sm:$0xf] %vm987, %v2129
  %2284 = vst.msk [vmem:[#allocation2 + $0x5c] sm:$0xf] %vm987, %v2130
  %2285 = vst.msk [vmem:[#allocation2 + $0x60] sm:$0xf] %vm987, %v2131
  %2286 = vst.msk [vmem:[#allocation2 + $0x64] sm:$0xf] %vm987, %v2132
  %2287 = vst.msk [vmem:[#allocation2 + $0x68] sm:$0xf] %vm987, %v2133
  %2288 = vst.msk [vmem:[#allocation2 + $0x6c] sm:$0xf] %vm987, %v2134
  %2289 = vst.msk [vmem:[#allocation2 + $0x70] sm:$0xf] %vm987, %v2135
  %2290 = vst.msk [vmem:[#allocation2 + $0x74] sm:$0xf] %vm987, %v2136
  %2291 = vst.msk [vmem:[#allocation2 + $0x78] sm:$0xf] %vm987, %v2137
  %2292 = vst.msk [vmem:[#allocation2 + $0x7c] sm:$0xf] %vm987, %v2138
  %2293 = vst.msk [vmem:[#allocation2 + $0x80] sm:$0xf] %vm987, %v2139
  %2294 = vst.msk [vmem:[#allocation2 + $0x84] sm:$0xf] %vm987, %v2140
  %2295 = vst.msk [vmem:[#allocation2 + $0x88] sm:$0xf] %vm987, %v2141
  %2296 = vst.msk [vmem:[#allocation2 + $0x8c] sm:$0xf] %vm987, %v2142
  %2297 = vst.msk [vmem:[#allocation2 + $0x90] sm:$0xf] %vm987, %v2143
  %2298 = vst.msk [vmem:[#allocation2 + $0x94] sm:$0xf] %vm987, %v2144
  %2299 = vst.msk [vmem:[#allocation2 + $0x98] sm:$0xf] %vm987, %v2145
  %2300 = vst.msk [vmem:[#allocation2 + $0x9c] sm:$0xf] %vm987, %v2146
  %2301 = vst.msk [vmem:[#allocation2 + $0xa0] sm:$0xf] %vm987, %v2147
  %2302 = vst.msk [vmem:[#allocation2 + $0xa4] sm:$0xf] %vm987, %v2148
  %2303 = vst.msk [vmem:[#allocation2 + $0xa8] sm:$0xf] %vm987, %v2149
  %2304 = vst.msk [vmem:[#allocation2 + $0xac] sm:$0xf] %vm987, %v2150
  %2305 = vst.msk [vmem:[#allocation2 + $0xb0] sm:$0xf] %vm987, %v2151
  %2306 = vst.msk [vmem:[#allocation2 + $0xb4] sm:$0xf] %vm987, %v2152
  %2307 = vst.msk [vmem:[#allocation2 + $0xb8] sm:$0xf] %vm987, %v2153
  %2308 = vst.msk [vmem:[#allocation2 + $0xbc] sm:$0xf] %vm987, %v2154
  %2309 = vst.msk [vmem:[#allocation2 + $0xc0] sm:$0xf] %vm987, %v2155
  %2310 = vst.msk [vmem:[#allocation2 + $0xc4] sm:$0xf] %vm987, %v2156
  %2311 = vst.msk [vmem:[#allocation2 + $0xc8] sm:$0xf] %vm987, %v2157
  %2312 = vst.msk [vmem:[#allocation2 + $0xcc] sm:$0xf] %vm987, %v2158
  %2313 = vst.msk [vmem:[#allocation2 + $0xd0] sm:$0xf] %vm987, %v2159
  %2314 = vst.msk [vmem:[#allocation2 + $0xd4] sm:$0xf] %vm987, %v2160
  %2315 = vst.msk [vmem:[#allocation2 + $0xd8] sm:$0xf] %vm987, %v2161
  %2316 = vst.msk [vmem:[#allocation2 + $0xdc] sm:$0xf] %vm987, %v2162
  %2317 = vst.msk [vmem:[#allocation2 + $0xe0] sm:$0xf] %vm987, %v2163
  %2318 = vst.msk [vmem:[#allocation2 + $0xe4] sm:$0xf] %vm987, %v2164
  %2319 = vst.msk [vmem:[#allocation2 + $0xe8] sm:$0xf] %vm987, %v2165
  %2320 = vst.msk [vmem:[#allocation2 + $0xec] sm:$0xf] %vm987, %v2166
  %2321 = vst.msk [vmem:[#allocation2 + $0xf0] sm:$0xf] %vm987, %v2167
  %2322 = vst.msk [vmem:[#allocation2 + $0xf4] sm:$0xf] %vm987, %v2168
  %2323 = vst.msk [vmem:[#allocation2 + $0xf8] sm:$0xf] %vm987, %v2169
  %2324 = vst.msk [vmem:[#allocation2 + $0xfc] sm:$0xf] %vm987, %v2170
  %2325 = vst.msk [vmem:[#allocation2 + $0x100] sm:$0xf] %vm987, %v2171
  %2326 = vst.msk [vmem:[#allocation2 + $0x104] sm:$0xf] %vm987, %v2172
  %2327 = vst.msk [vmem:[#allocation2 + $0x108] sm:$0xf] %vm987, %v2173
  %2328 = vst.msk [vmem:[#allocation2 + $0x10c] sm:$0xf] %vm987, %v2174
  %2329 = vst.msk [vmem:[#allocation2 + $0x110] sm:$0xf] %vm987, %v2175
  %2330 = vst.msk [vmem:[#allocation2 + $0x114] sm:$0xf] %vm987, %v2176
  %2331 = vst.msk [vmem:[#allocation2 + $0x118] sm:$0xf] %vm987, %v2177
  %2332 = vst.msk [vmem:[#allocation2 + $0x11c] sm:$0xf] %vm987, %v2178
  %2333 = vst.msk [vmem:[#allocation2 + $0x120] sm:$0xf] %vm987, %v2179
  %2334 = vst.msk [vmem:[#allocation2 + $0x124] sm:$0xf] %vm987, %v2180
  %2335 = vst.msk [vmem:[#allocation2 + $0x128] sm:$0xf] %vm987, %v2181
  %2336 = vst.msk [vmem:[#allocation2 + $0x12c] sm:$0xf] %vm987, %v2182
  %2337 = vst.msk [vmem:[#allocation2 + $0x130] sm:$0xf] %vm987, %v2183
  %2338 = vst.msk [vmem:[#allocation2 + $0x134] sm:$0xf] %vm987, %v2184
  %2339 = vst.msk [vmem:[#allocation2 + $0x138] sm:$0xf] %vm987, %v2185
  %2340 = vst.msk [vmem:[#allocation2 + $0x13c] sm:$0x3] %vm1953, %v2186
  %v2341 = vld [vmem:[#allocation2] sm:$0x8]
  %v2342 = vld [vmem:[#allocation2 + $0x4] sm:$0xf]
  %v2343 = vld [vmem:[#allocation2 + $0x8] sm:$0xf]
  %v2344 = vld [vmem:[#allocation2 + $0xc] sm:$0xf]
  %v2345 = vld [vmem:[#allocation2 + $0x10] sm:$0xf]
  %v2346 = vld [vmem:[#allocation2 + $0x14] sm:$0xf]
  %v2347 = vld [vmem:[#allocation2 + $0x18] sm:$0xf]
  %v2348 = vld [vmem:[#allocation2 + $0x1c] sm:$0xf]
  %v2349 = vld [vmem:[#allocation2 + $0x20] sm:$0xf]
  %v2350 = vld [vmem:[#allocation2 + $0x24] sm:$0xf]
  %v2351 = vld [vmem:[#allocation2 + $0x28] sm:$0xf]
  %v2352 = vld [vmem:[#allocation2 + $0x2c] sm:$0xf]
  %v2353 = vld [vmem:[#allocation2 + $0x30] sm:$0xf]
  %v2354 = vld [vmem:[#allocation2 + $0x34] sm:$0xf]
  %v2355 = vld [vmem:[#allocation2 + $0x38] sm:$0xf]
  %v2356 = vld [vmem:[#allocation2 + $0x3c] sm:$0xf]
  %v2357 = vld [vmem:[#allocation2 + $0x40] sm:$0xf]
  %v2358 = vld [vmem:[#allocation2 + $0x44] sm:$0xf]
  %v2359 = vld [vmem:[#allocation2 + $0x48] sm:$0xf]
  %v2360 = vld [vmem:[#allocation2 + $0x4c] sm:$0xf]
  %v2361 = vld [vmem:[#allocation2 + $0x50] sm:$0xf]
  %v2362 = vld [vmem:[#allocation2 + $0x54] sm:$0xf]
  %v2363 = vld [vmem:[#allocation2 + $0x58] sm:$0xf]
  %v2364 = vld [vmem:[#allocation2 + $0x5c] sm:$0xf]
  %v2365 = vld [vmem:[#allocation2 + $0x60] sm:$0xf]
  %v2366 = vld [vmem:[#allocation2 + $0x64] sm:$0xf]
  %v2367 = vld [vmem:[#allocation2 + $0x68] sm:$0xf]
  %v2368 = vld [vmem:[#allocation2 + $0x6c] sm:$0xf]
  %v2369 = vld [vmem:[#allocation2 + $0x70] sm:$0xf]
  %v2370 = vld [vmem:[#allocation2 + $0x74] sm:$0xf]
  %v2371 = vld [vmem:[#allocation2 + $0x78] sm:$0xf]
  %v2372 = vld [vmem:[#allocation2 + $0x7c] sm:$0xf]
  %v2373 = vld [vmem:[#allocation2 + $0x80] sm:$0xf]
  %v2374 = vld [vmem:[#allocation2 + $0x84] sm:$0xf]
  %v2375 = vld [vmem:[#allocation2 + $0x88] sm:$0xf]
  %v2376 = vld [vmem:[#allocation2 + $0x8c] sm:$0xf]
  %v2377 = vld [vmem:[#allocation2 + $0x90] sm:$0xf]
  %v2378 = vld [vmem:[#allocation2 + $0x94] sm:$0xf]
  %v2379 = vld [vmem:[#allocation2 + $0x98] sm:$0xf]
  %v2380 = vld [vmem:[#allocation2 + $0x9c] sm:$0xf]
  %v2381 = vld [vmem:[#allocation2 + $0xa0] sm:$0xf]
  %v2382 = vld [vmem:[#allocation2 + $0xa4] sm:$0xf]
  %v2383 = vld [vmem:[#allocation2 + $0xa8] sm:$0xf]
  %v2384 = vld [vmem:[#allocation2 + $0xac] sm:$0xf]
  %v2385 = vld [vmem:[#allocation2 + $0xb0] sm:$0xf]
  %v2386 = vld [vmem:[#allocation2 + $0xb4] sm:$0xf]
  %v2387 = vld [vmem:[#allocation2 + $0xb8] sm:$0xf]
  %v2388 = vld [vmem:[#allocation2 + $0xbc] sm:$0xf]
  %v2389 = vld [vmem:[#allocation2 + $0xc0] sm:$0xf]
  %v2390 = vld [vmem:[#allocation2 + $0xc4] sm:$0xf]
  %v2391 = vld [vmem:[#allocation2 + $0xc8] sm:$0xf]
  %v2392 = vld [vmem:[#allocation2 + $0xcc] sm:$0xf]
  %v2393 = vld [vmem:[#allocation2 + $0xd0] sm:$0xf]
  %v2394 = vld [vmem:[#allocation2 + $0xd4] sm:$0xf]
  %v2395 = vld [vmem:[#allocation2 + $0xd8] sm:$0xf]
  %v2396 = vld [vmem:[#allocation2 + $0xdc] sm:$0xf]
  %v2397 = vld [vmem:[#allocation2 + $0xe0] sm:$0xf]
  %v2398 = vld [vmem:[#allocation2 + $0xe4] sm:$0xf]
  %v2399 = vld [vmem:[#allocation2 + $0xe8] sm:$0xf]
  %v2400 = vld [vmem:[#allocation2 + $0xec] sm:$0xf]
  %v2401 = vld [vmem:[#allocation2 + $0xf0] sm:$0xf]
  %v2402 = vld [vmem:[#allocation2 + $0xf4] sm:$0xf]
  %v2403 = vld [vmem:[#allocation2 + $0xf8] sm:$0xf]
  %v2404 = vld [vmem:[#allocation2 + $0xfc] sm:$0xf]
  %v2405 = vld [vmem:[#allocation2 + $0x100] sm:$0xf]
  %v2406 = vld [vmem:[#allocation2 + $0x104] sm:$0xf]
  %v2407 = vld [vmem:[#allocation2 + $0x108] sm:$0xf]
  %v2408 = vld [vmem:[#allocation2 + $0x10c] sm:$0xf]
  %v2409 = vld [vmem:[#allocation2 + $0x110] sm:$0xf]
  %v2410 = vld [vmem:[#allocation2 + $0x114] sm:$0xf]
  %v2411 = vld [vmem:[#allocation2 + $0x118] sm:$0xf]
  %v2412 = vld [vmem:[#allocation2 + $0x11c] sm:$0xf]
  %v2413 = vld [vmem:[#allocation2 + $0x120] sm:$0xf]
  %v2414 = vld [vmem:[#allocation2 + $0x124] sm:$0xf]
  %v2415 = vld [vmem:[#allocation2 + $0x128] sm:$0xf]
  %v2416 = vld [vmem:[#allocation2 + $0x12c] sm:$0xf]
  %v2417 = vld [vmem:[#allocation2 + $0x130] sm:$0xf]
  %v2418 = vld [vmem:[#allocation2 + $0x134] sm:$0x1]
  %vm2497 = vcmask 1040384
  %vm2498 = vcmask 1044484
  %vm2499 = vmor %vm2497, %vm2498
  %v2500 = vrot.slane %v2341, 7
  %v2501 = vrot.slane %v2500, 4
  %v2502 = vrot.slane %v2342, 7
  %v2503 = vsel %vm2499, %v2501, %v2502
  %v2504 = vrot.slane %v2502, 4
  %v2505 = vrot.slane %v2343, 7
  %v2506 = vsel %vm2499, %v2504, %v2505
  %v2507 = vrot.slane %v2505, 4
  %v2508 = vrot.slane %v2344, 7
  %v2509 = vsel %vm2499, %v2507, %v2508
  %v2510 = vrot.slane %v2508, 4
  %v2511 = vrot.slane %v2345, 7
  %v2512 = vsel %vm2499, %v2510, %v2511
  %v2513 = vrot.slane %v2511, 4
  %v2514 = vrot.slane %v2346, 7
  %v2515 = vsel %vm2499, %v2513, %v2514
  %v2516 = vrot.slane %v2514, 4
  %v2517 = vrot.slane %v2347, 7
  %v2518 = vsel %vm2499, %v2516, %v2517
  %v2519 = vrot.slane %v2517, 4
  %v2520 = vrot.slane %v2348, 7
  %v2521 = vsel %vm2499, %v2519, %v2520
  %v2522 = vrot.slane %v2520, 4
  %v2523 = vrot.slane %v2349, 7
  %v2524 = vsel %vm2499, %v2522, %v2523
  %v2525 = vrot.slane %v2523, 4
  %v2526 = vrot.slane %v2350, 7
  %v2527 = vsel %vm2499, %v2525, %v2526
  %v2528 = vrot.slane %v2526, 4
  %v2529 = vrot.slane %v2351, 7
  %v2530 = vsel %vm2499, %v2528, %v2529
  %v2531 = vrot.slane %v2529, 4
  %v2532 = vrot.slane %v2352, 7
  %v2533 = vsel %vm2499, %v2531, %v2532
  %v2534 = vrot.slane %v2532, 4
  %v2535 = vrot.slane %v2353, 7
  %v2536 = vsel %vm2499, %v2534, %v2535
  %v2537 = vrot.slane %v2535, 4
  %v2538 = vrot.slane %v2354, 7
  %v2539 = vsel %vm2499, %v2537, %v2538
  %v2540 = vrot.slane %v2538, 4
  %v2541 = vrot.slane %v2355, 7
  %v2542 = vsel %vm2499, %v2540, %v2541
  %v2543 = vrot.slane %v2541, 4
  %v2544 = vrot.slane %v2356, 7
  %v2545 = vsel %vm2499, %v2543, %v2544
  %v2546 = vrot.slane %v2544, 4
  %v2547 = vrot.slane %v2357, 7
  %v2548 = vsel %vm2499, %v2546, %v2547
  %v2549 = vrot.slane %v2547, 4
  %v2550 = vrot.slane %v2358, 7
  %v2551 = vsel %vm2499, %v2549, %v2550
  %v2552 = vrot.slane %v2550, 4
  %v2553 = vrot.slane %v2359, 7
  %v2554 = vsel %vm2499, %v2552, %v2553
  %v2555 = vrot.slane %v2553, 4
  %v2556 = vrot.slane %v2360, 7
  %v2557 = vsel %vm2499, %v2555, %v2556
  %v2558 = vrot.slane %v2556, 4
  %v2559 = vrot.slane %v2361, 7
  %v2560 = vsel %vm2499, %v2558, %v2559
  %v2561 = vrot.slane %v2559, 4
  %v2562 = vrot.slane %v2362, 7
  %v2563 = vsel %vm2499, %v2561, %v2562
  %v2564 = vrot.slane %v2562, 4
  %v2565 = vrot.slane %v2363, 7
  %v2566 = vsel %vm2499, %v2564, %v2565
  %v2567 = vrot.slane %v2565, 4
  %v2568 = vrot.slane %v2364, 7
  %v2569 = vsel %vm2499, %v2567, %v2568
  %v2570 = vrot.slane %v2568, 4
  %v2571 = vrot.slane %v2365, 7
  %v2572 = vsel %vm2499, %v2570, %v2571
  %v2573 = vrot.slane %v2571, 4
  %v2574 = vrot.slane %v2366, 7
  %v2575 = vsel %vm2499, %v2573, %v2574
  %v2576 = vrot.slane %v2574, 4
  %v2577 = vrot.slane %v2367, 7
  %v2578 = vsel %vm2499, %v2576, %v2577
  %v2579 = vrot.slane %v2577, 4
  %v2580 = vrot.slane %v2368, 7
  %v2581 = vsel %vm2499, %v2579, %v2580
  %v2582 = vrot.slane %v2580, 4
  %v2583 = vrot.slane %v2369, 7
  %v2584 = vsel %vm2499, %v2582, %v2583
  %v2585 = vrot.slane %v2583, 4
  %v2586 = vrot.slane %v2370, 7
  %v2587 = vsel %vm2499, %v2585, %v2586
  %v2588 = vrot.slane %v2586, 4
  %v2589 = vrot.slane %v2371, 7
  %v2590 = vsel %vm2499, %v2588, %v2589
  %v2591 = vrot.slane %v2589, 4
  %v2592 = vrot.slane %v2372, 7
  %v2593 = vsel %vm2499, %v2591, %v2592
  %v2594 = vrot.slane %v2592, 4
  %v2595 = vrot.slane %v2373, 7
  %v2596 = vsel %vm2499, %v2594, %v2595
  %v2597 = vrot.slane %v2595, 4
  %v2598 = vrot.slane %v2374, 7
  %v2599 = vsel %vm2499, %v2597, %v2598
  %v2600 = vrot.slane %v2598, 4
  %v2601 = vrot.slane %v2375, 7
  %v2602 = vsel %vm2499, %v2600, %v2601
  %v2603 = vrot.slane %v2601, 4
  %v2604 = vrot.slane %v2376, 7
  %v2605 = vsel %vm2499, %v2603, %v2604
  %v2606 = vrot.slane %v2604, 4
  %v2607 = vrot.slane %v2377, 7
  %v2608 = vsel %vm2499, %v2606, %v2607
  %v2609 = vrot.slane %v2607, 4
  %v2610 = vrot.slane %v2378, 7
  %v2611 = vsel %vm2499, %v2609, %v2610
  %v2612 = vrot.slane %v2610, 4
  %v2613 = vrot.slane %v2379, 7
  %v2614 = vsel %vm2499, %v2612, %v2613
  %v2615 = vrot.slane %v2613, 4
  %v2616 = vrot.slane %v2380, 7
  %v2617 = vsel %vm2499, %v2615, %v2616
  %v2618 = vrot.slane %v2616, 4
  %v2619 = vrot.slane %v2381, 7
  %v2620 = vsel %vm2499, %v2618, %v2619
  %v2621 = vrot.slane %v2619, 4
  %v2622 = vrot.slane %v2382, 7
  %v2623 = vsel %vm2499, %v2621, %v2622
  %v2624 = vrot.slane %v2622, 4
  %v2625 = vrot.slane %v2383, 7
  %v2626 = vsel %vm2499, %v2624, %v2625
  %v2627 = vrot.slane %v2625, 4
  %v2628 = vrot.slane %v2384, 7
  %v2629 = vsel %vm2499, %v2627, %v2628
  %v2630 = vrot.slane %v2628, 4
  %v2631 = vrot.slane %v2385, 7
  %v2632 = vsel %vm2499, %v2630, %v2631
  %v2633 = vrot.slane %v2631, 4
  %v2634 = vrot.slane %v2386, 7
  %v2635 = vsel %vm2499, %v2633, %v2634
  %v2636 = vrot.slane %v2634, 4
  %v2637 = vrot.slane %v2387, 7
  %v2638 = vsel %vm2499, %v2636, %v2637
  %v2639 = vrot.slane %v2637, 4
  %v2640 = vrot.slane %v2388, 7
  %v2641 = vsel %vm2499, %v2639, %v2640
  %v2642 = vrot.slane %v2640, 4
  %v2643 = vrot.slane %v2389, 7
  %v2644 = vsel %vm2499, %v2642, %v2643
  %v2645 = vrot.slane %v2643, 4
  %v2646 = vrot.slane %v2390, 7
  %v2647 = vsel %vm2499, %v2645, %v2646
  %v2648 = vrot.slane %v2646, 4
  %v2649 = vrot.slane %v2391, 7
  %v2650 = vsel %vm2499, %v2648, %v2649
  %v2651 = vrot.slane %v2649, 4
  %v2652 = vrot.slane %v2392, 7
  %v2653 = vsel %vm2499, %v2651, %v2652
  %v2654 = vrot.slane %v2652, 4
  %v2655 = vrot.slane %v2393, 7
  %v2656 = vsel %vm2499, %v2654, %v2655
  %v2657 = vrot.slane %v2655, 4
  %v2658 = vrot.slane %v2394, 7
  %v2659 = vsel %vm2499, %v2657, %v2658
  %v2660 = vrot.slane %v2658, 4
  %v2661 = vrot.slane %v2395, 7
  %v2662 = vsel %vm2499, %v2660, %v2661
  %v2663 = vrot.slane %v2661, 4
  %v2664 = vrot.slane %v2396, 7
  %v2665 = vsel %vm2499, %v2663, %v2664
  %v2666 = vrot.slane %v2664, 4
  %v2667 = vrot.slane %v2397, 7
  %v2668 = vsel %vm2499, %v2666, %v2667
  %v2669 = vrot.slane %v2667, 4
  %v2670 = vrot.slane %v2398, 7
  %v2671 = vsel %vm2499, %v2669, %v2670
  %v2672 = vrot.slane %v2670, 4
  %v2673 = vrot.slane %v2399, 7
  %v2674 = vsel %vm2499, %v2672, %v2673
  %v2675 = vrot.slane %v2673, 4
  %v2676 = vrot.slane %v2400, 7
  %v2677 = vsel %vm2499, %v2675, %v2676
  %v2678 = vrot.slane %v2676, 4
  %v2679 = vrot.slane %v2401, 7
  %v2680 = vsel %vm2499, %v2678, %v2679
  %v2681 = vrot.slane %v2679, 4
  %v2682 = vrot.slane %v2402, 7
  %v2683 = vsel %vm2499, %v2681, %v2682
  %v2684 = vrot.slane %v2682, 4
  %v2685 = vrot.slane %v2403, 7
  %v2686 = vsel %vm2499, %v2684, %v2685
  %v2687 = vrot.slane %v2685, 4
  %v2688 = vrot.slane %v2404, 7
  %v2689 = vsel %vm2499, %v2687, %v2688
  %v2690 = vrot.slane %v2688, 4
  %v2691 = vrot.slane %v2405, 7
  %v2692 = vsel %vm2499, %v2690, %v2691
  %v2693 = vrot.slane %v2691, 4
  %v2694 = vrot.slane %v2406, 7
  %v2695 = vsel %vm2499, %v2693, %v2694
  %v2696 = vrot.slane %v2694, 4
  %v2697 = vrot.slane %v2407, 7
  %v2698 = vsel %vm2499, %v2696, %v2697
  %v2699 = vrot.slane %v2697, 4
  %v2700 = vrot.slane %v2408, 7
  %v2701 = vsel %vm2499, %v2699, %v2700
  %v2702 = vrot.slane %v2700, 4
  %v2703 = vrot.slane %v2409, 7
  %v2704 = vsel %vm2499, %v2702, %v2703
  %v2705 = vrot.slane %v2703, 4
  %v2706 = vrot.slane %v2410, 7
  %v2707 = vsel %vm2499, %v2705, %v2706
  %v2708 = vrot.slane %v2706, 4
  %v2709 = vrot.slane %v2411, 7
  %v2710 = vsel %vm2499, %v2708, %v2709
  %v2711 = vrot.slane %v2709, 4
  %v2712 = vrot.slane %v2412, 7
  %v2713 = vsel %vm2499, %v2711, %v2712
  %v2714 = vrot.slane %v2712, 4
  %v2715 = vrot.slane %v2413, 7
  %v2716 = vsel %vm2499, %v2714, %v2715
  %v2717 = vrot.slane %v2715, 4
  %v2718 = vrot.slane %v2414, 7
  %v2719 = vsel %vm2499, %v2717, %v2718
  %v2720 = vrot.slane %v2718, 4
  %v2721 = vrot.slane %v2415, 7
  %v2722 = vsel %vm2499, %v2720, %v2721
  %v2723 = vrot.slane %v2721, 4
  %v2724 = vrot.slane %v2416, 7
  %v2725 = vsel %vm2499, %v2723, %v2724
  %v2726 = vrot.slane %v2724, 4
  %v2727 = vrot.slane %v2417, 7
  %v2728 = vsel %vm2499, %v2726, %v2727
  %v2729 = vrot.slane %v2727, 4
  %v2730 = vrot.slane %v2418, 7
  %v2731 = vsel %vm2499, %v2729, %v2730
  %2809 = vst.msk [vmem:[#allocation3] sm:$0xf] %vm987, %v2503
  %2810 = vst.msk [vmem:[#allocation3 + $0xc] sm:$0xf] %vm987, %v2506
  %2811 = vst.msk [vmem:[#allocation3 + $0x18] sm:$0xf] %vm987, %v2509
  %2812 = vst.msk [vmem:[#allocation3 + $0x24] sm:$0xf] %vm987, %v2512
  %2813 = vst.msk [vmem:[#allocation3 + $0x30] sm:$0xf] %vm987, %v2515
  %2814 = vst.msk [vmem:[#allocation3 + $0x3c] sm:$0xf] %vm987, %v2518
  %2815 = vst.msk [vmem:[#allocation3 + $0x48] sm:$0xf] %vm987, %v2521
  %2816 = vst.msk [vmem:[#allocation3 + $0x54] sm:$0xf] %vm987, %v2524
  %2817 = vst.msk [vmem:[#allocation3 + $0x60] sm:$0xf] %vm987, %v2527
  %2818 = vst.msk [vmem:[#allocation3 + $0x6c] sm:$0xf] %vm987, %v2530
  %2819 = vst.msk [vmem:[#allocation3 + $0x78] sm:$0xf] %vm987, %v2533
  %2820 = vst.msk [vmem:[#allocation3 + $0x84] sm:$0xf] %vm987, %v2536
  %2821 = vst.msk [vmem:[#allocation3 + $0x90] sm:$0xf] %vm987, %v2539
  %2822 = vst.msk [vmem:[#allocation3 + $0x9c] sm:$0xf] %vm987, %v2542
  %2823 = vst.msk [vmem:[#allocation3 + $0xa8] sm:$0xf] %vm987, %v2545
  %2824 = vst.msk [vmem:[#allocation3 + $0xb4] sm:$0xf] %vm987, %v2548
  %2825 = vst.msk [vmem:[#allocation3 + $0xc0] sm:$0xf] %vm987, %v2551
  %2826 = vst.msk [vmem:[#allocation3 + $0xcc] sm:$0xf] %vm987, %v2554
  %2827 = vst.msk [vmem:[#allocation3 + $0xd8] sm:$0xf] %vm987, %v2557
  %2828 = vst.msk [vmem:[#allocation3 + $0xe4] sm:$0xf] %vm987, %v2560
  %2829 = vst.msk [vmem:[#allocation3 + $0xf0] sm:$0xf] %vm987, %v2563
  %2830 = vst.msk [vmem:[#allocation3 + $0xfc] sm:$0xf] %vm987, %v2566
  %2831 = vst.msk [vmem:[#allocation3 + $0x108] sm:$0xf] %vm987, %v2569
  %2832 = vst.msk [vmem:[#allocation3 + $0x114] sm:$0xf] %vm987, %v2572
  %2833 = vst.msk [vmem:[#allocation3 + $0x120] sm:$0xf] %vm987, %v2575
  %2834 = vst.msk [vmem:[#allocation3 + $0x12c] sm:$0xf] %vm987, %v2578
  %2835 = vst.msk [vmem:[#allocation3 + $0x138] sm:$0xf] %vm987, %v2581
  %2836 = vst.msk [vmem:[#allocation3 + $0x144] sm:$0xf] %vm987, %v2584
  %2837 = vst.msk [vmem:[#allocation3 + $0x150] sm:$0xf] %vm987, %v2587
  %2838 = vst.msk [vmem:[#allocation3 + $0x15c] sm:$0xf] %vm987, %v2590
  %2839 = vst.msk [vmem:[#allocation3 + $0x168] sm:$0xf] %vm987, %v2593
  %2840 = vst.msk [vmem:[#allocation3 + $0x174] sm:$0xf] %vm987, %v2596
  %2841 = vst.msk [vmem:[#allocation3 + $0x180] sm:$0xf] %vm987, %v2599
  %2842 = vst.msk [vmem:[#allocation3 + $0x18c] sm:$0xf] %vm987, %v2602
  %2843 = vst.msk [vmem:[#allocation3 + $0x198] sm:$0xf] %vm987, %v2605
  %2844 = vst.msk [vmem:[#allocation3 + $0x1a4] sm:$0xf] %vm987, %v2608
  %2845 = vst.msk [vmem:[#allocation3 + $0x1b0] sm:$0xf] %vm987, %v2611
  %2846 = vst.msk [vmem:[#allocation3 + $0x1bc] sm:$0xf] %vm987, %v2614
  %2847 = vst.msk [vmem:[#allocation3 + $0x1c8] sm:$0xf] %vm987, %v2617
  %2848 = vst.msk [vmem:[#allocation3 + $0x1d4] sm:$0xf] %vm987, %v2620
  %2849 = vst.msk [vmem:[#allocation3 + $0x1e0] sm:$0xf] %vm987, %v2623
  %2850 = vst.msk [vmem:[#allocation3 + $0x1ec] sm:$0xf] %vm987, %v2626
  %2851 = vst.msk [vmem:[#allocation3 + $0x1f8] sm:$0xf] %vm987, %v2629
  %2852 = vst.msk [vmem:[#allocation3 + $0x204] sm:$0xf] %vm987, %v2632
  %2853 = vst.msk [vmem:[#allocation3 + $0x210] sm:$0xf] %vm987, %v2635
  %2854 = vst.msk [vmem:[#allocation3 + $0x21c] sm:$0xf] %vm987, %v2638
  %2855 = vst.msk [vmem:[#allocation3 + $0x228] sm:$0xf] %vm987, %v2641
  %2856 = vst.msk [vmem:[#allocation3 + $0x234] sm:$0xf] %vm987, %v2644
  %2857 = vst.msk [vmem:[#allocation3 + $0x240] sm:$0xf] %vm987, %v2647
  %2858 = vst.msk [vmem:[#allocation3 + $0x24c] sm:$0xf] %vm987, %v2650
  %2859 = vst.msk [vmem:[#allocation3 + $0x258] sm:$0xf] %vm987, %v2653
  %2860 = vst.msk [vmem:[#allocation3 + $0x264] sm:$0xf] %vm987, %v2656
  %2861 = vst.msk [vmem:[#allocation3 + $0x270] sm:$0xf] %vm987, %v2659
  %2862 = vst.msk [vmem:[#allocation3 + $0x27c] sm:$0xf] %vm987, %v2662
  %2863 = vst.msk [vmem:[#allocation3 + $0x288] sm:$0xf] %vm987, %v2665
  %2864 = vst.msk [vmem:[#allocation3 + $0x294] sm:$0xf] %vm987, %v2668
  %2865 = vst.msk [vmem:[#allocation3 + $0x2a0] sm:$0xf] %vm987, %v2671
  %2866 = vst.msk [vmem:[#allocation3 + $0x2ac] sm:$0xf] %vm987, %v2674
  %2867 = vst.msk [vmem:[#allocation3 + $0x2b8] sm:$0xf] %vm987, %v2677
  %2868 = vst.msk [vmem:[#allocation3 + $0x2c4] sm:$0xf] %vm987, %v2680
  %2869 = vst.msk [vmem:[#allocation3 + $0x2d0] sm:$0xf] %vm987, %v2683
  %2870 = vst.msk [vmem:[#allocation3 + $0x2dc] sm:$0xf] %vm987, %v2686
  %2871 = vst.msk [vmem:[#allocation3 + $0x2e8] sm:$0xf] %vm987, %v2689
  %2872 = vst.msk [vmem:[#allocation3 + $0x2f4] sm:$0xf] %vm987, %v2692
  %2873 = vst.msk [vmem:[#allocation3 + $0x300] sm:$0xf] %vm987, %v2695
  %2874 = vst.msk [vmem:[#allocation3 + $0x30c] sm:$0xf] %vm987, %v2698
  %2875 = vst.msk [vmem:[#allocation3 + $0x318] sm:$0xf] %vm987, %v2701
  %2876 = vst.msk [vmem:[#allocation3 + $0x324] sm:$0xf] %vm987, %v2704
  %2877 = vst.msk [vmem:[#allocation3 + $0x330] sm:$0xf] %vm987, %v2707
  %2878 = vst.msk [vmem:[#allocation3 + $0x33c] sm:$0xf] %vm987, %v2710
  %2879 = vst.msk [vmem:[#allocation3 + $0x348] sm:$0xf] %vm987, %v2713
  %2880 = vst.msk [vmem:[#allocation3 + $0x354] sm:$0xf] %vm987, %v2716
  %2881 = vst.msk [vmem:[#allocation3 + $0x360] sm:$0xf] %vm987, %v2719
  %2882 = vst.msk [vmem:[#allocation3 + $0x36c] sm:$0xf] %vm987, %v2722
  %2883 = vst.msk [vmem:[#allocation3 + $0x378] sm:$0xf] %vm987, %v2725
  %2884 = vst.msk [vmem:[#allocation3 + $0x384] sm:$0xf] %vm987, %v2728
  %2885 = vst.msk [vmem:[#allocation3 + $0x390] sm:$0x3] %vm1953, %v2731
  %v2886 = vld [vmem:[#allocation2] sm:$0x8]
  %v2887 = vld [vmem:[#allocation2 + $0x4] sm:$0xf]
  %v2888 = vld [vmem:[#allocation2 + $0x8] sm:$0xf]
  %v2889 = vld [vmem:[#allocation2 + $0xc] sm:$0xf]
  %v2890 = vld [vmem:[#allocation2 + $0x10] sm:$0xf]
  %v2891 = vld [vmem:[#allocation2 + $0x14] sm:$0xf]
  %v2892 = vld [vmem:[#allocation2 + $0x18] sm:$0xf]
  %v2893 = vld [vmem:[#allocation2 + $0x1c] sm:$0xf]
  %v2894 = vld [vmem:[#allocation2 + $0x20] sm:$0xf]
  %v2895 = vld [vmem:[#allocation2 + $0x24] sm:$0xf]
  %v2896 = vld [vmem:[#allocation2 + $0x28] sm:$0xf]
  %v2897 = vld [vmem:[#allocation2 + $0x2c] sm:$0xf]
  %v2898 = vld [vmem:[#allocation2 + $0x30] sm:$0xf]
  %v2899 = vld [vmem:[#allocation2 + $0x34] sm:$0xf]
  %v2900 = vld [vmem:[#allocation2 + $0x38] sm:$0xf]
  %v2901 = vld [vmem:[#allocation2 + $0x3c] sm:$0xf]
  %v2902 = vld [vmem:[#allocation2 + $0x40] sm:$0xf]
  %v2903 = vld [vmem:[#allocation2 + $0x44] sm:$0xf]
  %v2904 = vld [vmem:[#allocation2 + $0x48] sm:$0xf]
  %v2905 = vld [vmem:[#allocation2 + $0x4c] sm:$0xf]
  %v2906 = vld [vmem:[#allocation2 + $0x50] sm:$0xf]
  %v2907 = vld [vmem:[#allocation2 + $0x54] sm:$0xf]
  %v2908 = vld [vmem:[#allocation2 + $0x58] sm:$0xf]
  %v2909 = vld [vmem:[#allocation2 + $0x5c] sm:$0xf]
  %v2910 = vld [vmem:[#allocation2 + $0x60] sm:$0xf]
  %v2911 = vld [vmem:[#allocation2 + $0x64] sm:$0xf]
  %v2912 = vld [vmem:[#allocation2 + $0x68] sm:$0xf]
  %v2913 = vld [vmem:[#allocation2 + $0x6c] sm:$0xf]
  %v2914 = vld [vmem:[#allocation2 + $0x70] sm:$0xf]
  %v2915 = vld [vmem:[#allocation2 + $0x74] sm:$0xf]
  %v2916 = vld [vmem:[#allocation2 + $0x78] sm:$0xf]
  %v2917 = vld [vmem:[#allocation2 + $0x7c] sm:$0xf]
  %v2918 = vld [vmem:[#allocation2 + $0x80] sm:$0xf]
  %v2919 = vld [vmem:[#allocation2 + $0x84] sm:$0xf]
  %v2920 = vld [vmem:[#allocation2 + $0x88] sm:$0xf]
  %v2921 = vld [vmem:[#allocation2 + $0x8c] sm:$0xf]
  %v2922 = vld [vmem:[#allocation2 + $0x90] sm:$0xf]
  %v2923 = vld [vmem:[#allocation2 + $0x94] sm:$0xf]
  %v2924 = vld [vmem:[#allocation2 + $0x98] sm:$0xf]
  %v2925 = vld [vmem:[#allocation2 + $0x9c] sm:$0xf]
  %v2926 = vld [vmem:[#allocation2 + $0xa0] sm:$0xf]
  %v2927 = vld [vmem:[#allocation2 + $0xa4] sm:$0xf]
  %v2928 = vld [vmem:[#allocation2 + $0xa8] sm:$0xf]
  %v2929 = vld [vmem:[#allocation2 + $0xac] sm:$0xf]
  %v2930 = vld [vmem:[#allocation2 + $0xb0] sm:$0xf]
  %v2931 = vld [vmem:[#allocation2 + $0xb4] sm:$0xf]
  %v2932 = vld [vmem:[#allocation2 + $0xb8] sm:$0xf]
  %v2933 = vld [vmem:[#allocation2 + $0xbc] sm:$0xf]
  %v2934 = vld [vmem:[#allocation2 + $0xc0] sm:$0xf]
  %v2935 = vld [vmem:[#allocation2 + $0xc4] sm:$0xf]
  %v2936 = vld [vmem:[#allocation2 + $0xc8] sm:$0xf]
  %v2937 = vld [vmem:[#allocation2 + $0xcc] sm:$0xf]
  %v2938 = vld [vmem:[#allocation2 + $0xd0] sm:$0xf]
  %v2939 = vld [vmem:[#allocation2 + $0xd4] sm:$0xf]
  %v2940 = vld [vmem:[#allocation2 + $0xd8] sm:$0xf]
  %v2941 = vld [vmem:[#allocation2 + $0xdc] sm:$0xf]
  %v2942 = vld [vmem:[#allocation2 + $0xe0] sm:$0xf]
  %v2943 = vld [vmem:[#allocation2 + $0xe4] sm:$0xf]
  %v2944 = vld [vmem:[#allocation2 + $0xe8] sm:$0xf]
  %v2945 = vld [vmem:[#allocation2 + $0xec] sm:$0xf]
  %v2946 = vld [vmem:[#allocation2 + $0xf0] sm:$0xf]
  %v2947 = vld [vmem:[#allocation2 + $0xf4] sm:$0xf]
  %v2948 = vld [vmem:[#allocation2 + $0xf8] sm:$0xf]
  %v2949 = vld [vmem:[#allocation2 + $0xfc] sm:$0xf]
  %v2950 = vld [vmem:[#allocation2 + $0x100] sm:$0xf]
  %v2951 = vld [vmem:[#allocation2 + $0x104] sm:$0xf]
  %v2952 = vld [vmem:[#allocation2 + $0x108] sm:$0xf]
  %v2953 = vld [vmem:[#allocation2 + $0x10c] sm:$0xf]
  %v2954 = vld [vmem:[#allocation2 + $0x110] sm:$0xf]
  %v2955 = vld [vmem:[#allocation2 + $0x114] sm:$0xf]
  %v2956 = vld [vmem:[#allocation2 + $0x118] sm:$0xf]
  %v2957 = vld [vmem:[#allocation2 + $0x11c] sm:$0xf]
  %v2958 = vld [vmem:[#allocation2 + $0x120] sm:$0xf]
  %v2959 = vld [vmem:[#allocation2 + $0x124] sm:$0xf]
  %v2960 = vld [vmem:[#allocation2 + $0x128] sm:$0xf]
  %v2961 = vld [vmem:[#allocation2 + $0x12c] sm:$0xf]
  %v2962 = vld [vmem:[#allocation2 + $0x130] sm:$0xf]
  %v2963 = vld [vmem:[#allocation2 + $0x134] sm:$0x3]
  %vm2964 = vsmask.f32 256
  %vm2965 = vsmask.f32 4368
  %vm2966 = vmor %vm2964, %vm2965
  %v2968 = vshrl.u32 %v2886, 16
  %v2970 = vrot.slane %v2968, 7
  %v2971 = vrot.slane %v2970, 4
  %v2973 = vshrl.u32 %v2887, 16
  %v2975 = vrot.slane %v2973, 7
  %v2976 = vshll.u32 %v2887, 16
  %v2978 = vor.u32 %v2975, %v2976
  %v2979 = vsel %vm2966, %v2971, %v2978
  %v2980 = vrot.slane %v2975, 4
  %v2982 = vshrl.u32 %v2888, 16
  %v2984 = vrot.slane %v2982, 7
  %v2985 = vshll.u32 %v2888, 16
  %v2987 = vor.u32 %v2984, %v2985
  %v2988 = vsel %vm2966, %v2980, %v2987
  %v2989 = vrot.slane %v2984, 4
  %v2991 = vshrl.u32 %v2889, 16
  %v2993 = vrot.slane %v2991, 7
  %v2994 = vshll.u32 %v2889, 16
  %v2996 = vor.u32 %v2993, %v2994
  %v2997 = vsel %vm2966, %v2989, %v2996
  %v2998 = vrot.slane %v2993, 4
  %v3000 = vshrl.u32 %v2890, 16
  %v3002 = vrot.slane %v3000, 7
  %v3003 = vshll.u32 %v2890, 16
  %v3005 = vor.u32 %v3002, %v3003
  %v3006 = vsel %vm2966, %v2998, %v3005
  %v3007 = vrot.slane %v3002, 4
  %v3009 = vshrl.u32 %v2891, 16
  %v3011 = vrot.slane %v3009, 7
  %v3012 = vshll.u32 %v2891, 16
  %v3014 = vor.u32 %v3011, %v3012
  %v3015 = vsel %vm2966, %v3007, %v3014
  %v3016 = vrot.slane %v3011, 4
  %v3018 = vshrl.u32 %v2892, 16
  %v3020 = vrot.slane %v3018, 7
  %v3021 = vshll.u32 %v2892, 16
  %v3023 = vor.u32 %v3020, %v3021
  %v3024 = vsel %vm2966, %v3016, %v3023
  %v3025 = vrot.slane %v3020, 4
  %v3027 = vshrl.u32 %v2893, 16
  %v3029 = vrot.slane %v3027, 7
  %v3030 = vshll.u32 %v2893, 16
  %v3032 = vor.u32 %v3029, %v3030
  %v3033 = vsel %vm2966, %v3025, %v3032
  %v3034 = vrot.slane %v3029, 4
  %v3036 = vshrl.u32 %v2894, 16
  %v3038 = vrot.slane %v3036, 7
  %v3039 = vshll.u32 %v2894, 16
  %v3041 = vor.u32 %v3038, %v3039
  %v3042 = vsel %vm2966, %v3034, %v3041
  %v3043 = vrot.slane %v3038, 4
  %v3045 = vshrl.u32 %v2895, 16
  %v3047 = vrot.slane %v3045, 7
  %v3048 = vshll.u32 %v2895, 16
  %v3050 = vor.u32 %v3047, %v3048
  %v3051 = vsel %vm2966, %v3043, %v3050
  %v3052 = vrot.slane %v3047, 4
  %v3054 = vshrl.u32 %v2896, 16
  %v3056 = vrot.slane %v3054, 7
  %v3057 = vshll.u32 %v2896, 16
  %v3059 = vor.u32 %v3056, %v3057
  %v3060 = vsel %vm2966, %v3052, %v3059
  %v3061 = vrot.slane %v3056, 4
  %v3063 = vshrl.u32 %v2897, 16
  %v3065 = vrot.slane %v3063, 7
  %v3066 = vshll.u32 %v2897, 16
  %v3068 = vor.u32 %v3065, %v3066
  %v3069 = vsel %vm2966, %v3061, %v3068
  %v3070 = vrot.slane %v3065, 4
  %v3072 = vshrl.u32 %v2898, 16
  %v3074 = vrot.slane %v3072, 7
  %v3075 = vshll.u32 %v2898, 16
  %v3077 = vor.u32 %v3074, %v3075
  %v3078 = vsel %vm2966, %v3070, %v3077
  %v3079 = vrot.slane %v3074, 4
  %v3081 = vshrl.u32 %v2899, 16
  %v3083 = vrot.slane %v3081, 7
  %v3084 = vshll.u32 %v2899, 16
  %v3086 = vor.u32 %v3083, %v3084
  %v3087 = vsel %vm2966, %v3079, %v3086
  %v3088 = vrot.slane %v3083, 4
  %v3090 = vshrl.u32 %v2900, 16
  %v3092 = vrot.slane %v3090, 7
  %v3093 = vshll.u32 %v2900, 16
  %v3095 = vor.u32 %v3092, %v3093
  %v3096 = vsel %vm2966, %v3088, %v3095
  %v3097 = vrot.slane %v3092, 4
  %v3099 = vshrl.u32 %v2901, 16
  %v3101 = vrot.slane %v3099, 7
  %v3102 = vshll.u32 %v2901, 16
  %v3104 = vor.u32 %v3101, %v3102
  %v3105 = vsel %vm2966, %v3097, %v3104
  %v3106 = vrot.slane %v3101, 4
  %v3108 = vshrl.u32 %v2902, 16
  %v3110 = vrot.slane %v3108, 7
  %v3111 = vshll.u32 %v2902, 16
  %v3113 = vor.u32 %v3110, %v3111
  %v3114 = vsel %vm2966, %v3106, %v3113
  %v3115 = vrot.slane %v3110, 4
  %v3117 = vshrl.u32 %v2903, 16
  %v3119 = vrot.slane %v3117, 7
  %v3120 = vshll.u32 %v2903, 16
  %v3122 = vor.u32 %v3119, %v3120
  %v3123 = vsel %vm2966, %v3115, %v3122
  %v3124 = vrot.slane %v3119, 4
  %v3126 = vshrl.u32 %v2904, 16
  %v3128 = vrot.slane %v3126, 7
  %v3129 = vshll.u32 %v2904, 16
  %v3131 = vor.u32 %v3128, %v3129
  %v3132 = vsel %vm2966, %v3124, %v3131
  %v3133 = vrot.slane %v3128, 4
  %v3135 = vshrl.u32 %v2905, 16
  %v3137 = vrot.slane %v3135, 7
  %v3138 = vshll.u32 %v2905, 16
  %v3140 = vor.u32 %v3137, %v3138
  %v3141 = vsel %vm2966, %v3133, %v3140
  %v3142 = vrot.slane %v3137, 4
  %v3144 = vshrl.u32 %v2906, 16
  %v3146 = vrot.slane %v3144, 7
  %v3147 = vshll.u32 %v2906, 16
  %v3149 = vor.u32 %v3146, %v3147
  %v3150 = vsel %vm2966, %v3142, %v3149
  %v3151 = vrot.slane %v3146, 4
  %v3153 = vshrl.u32 %v2907, 16
  %v3155 = vrot.slane %v3153, 7
  %v3156 = vshll.u32 %v2907, 16
  %v3158 = vor.u32 %v3155, %v3156
  %v3159 = vsel %vm2966, %v3151, %v3158
  %v3160 = vrot.slane %v3155, 4
  %v3162 = vshrl.u32 %v2908, 16
  %v3164 = vrot.slane %v3162, 7
  %v3165 = vshll.u32 %v2908, 16
  %v3167 = vor.u32 %v3164, %v3165
  %v3168 = vsel %vm2966, %v3160, %v3167
  %v3169 = vrot.slane %v3164, 4
  %v3171 = vshrl.u32 %v2909, 16
  %v3173 = vrot.slane %v3171, 7
  %v3174 = vshll.u32 %v2909, 16
  %v3176 = vor.u32 %v3173, %v3174
  %v3177 = vsel %vm2966, %v3169, %v3176
  %v3178 = vrot.slane %v3173, 4
  %v3180 = vshrl.u32 %v2910, 16
  %v3182 = vrot.slane %v3180, 7
  %v3183 = vshll.u32 %v2910, 16
  %v3185 = vor.u32 %v3182, %v3183
  %v3186 = vsel %vm2966, %v3178, %v3185
  %v3187 = vrot.slane %v3182, 4
  %v3189 = vshrl.u32 %v2911, 16
  %v3191 = vrot.slane %v3189, 7
  %v3192 = vshll.u32 %v2911, 16
  %v3194 = vor.u32 %v3191, %v3192
  %v3195 = vsel %vm2966, %v3187, %v3194
  %v3196 = vrot.slane %v3191, 4
  %v3198 = vshrl.u32 %v2912, 16
  %v3200 = vrot.slane %v3198, 7
  %v3201 = vshll.u32 %v2912, 16
  %v3203 = vor.u32 %v3200, %v3201
  %v3204 = vsel %vm2966, %v3196, %v3203
  %v3205 = vrot.slane %v3200, 4
  %v3207 = vshrl.u32 %v2913, 16
  %v3209 = vrot.slane %v3207, 7
  %v3210 = vshll.u32 %v2913, 16
  %v3212 = vor.u32 %v3209, %v3210
  %v3213 = vsel %vm2966, %v3205, %v3212
  %v3214 = vrot.slane %v3209, 4
  %v3216 = vshrl.u32 %v2914, 16
  %v3218 = vrot.slane %v3216, 7
  %v3219 = vshll.u32 %v2914, 16
  %v3221 = vor.u32 %v3218, %v3219
  %v3222 = vsel %vm2966, %v3214, %v3221
  %v3223 = vrot.slane %v3218, 4
  %v3225 = vshrl.u32 %v2915, 16
  %v3227 = vrot.slane %v3225, 7
  %v3228 = vshll.u32 %v2915, 16
  %v3230 = vor.u32 %v3227, %v3228
  %v3231 = vsel %vm2966, %v3223, %v3230
  %v3232 = vrot.slane %v3227, 4
  %v3234 = vshrl.u32 %v2916, 16
  %v3236 = vrot.slane %v3234, 7
  %v3237 = vshll.u32 %v2916, 16
  %v3239 = vor.u32 %v3236, %v3237
  %v3240 = vsel %vm2966, %v3232, %v3239
  %v3241 = vrot.slane %v3236, 4
  %v3243 = vshrl.u32 %v2917, 16
  %v3245 = vrot.slane %v3243, 7
  %v3246 = vshll.u32 %v2917, 16
  %v3248 = vor.u32 %v3245, %v3246
  %v3249 = vsel %vm2966, %v3241, %v3248
  %v3250 = vrot.slane %v3245, 4
  %v3252 = vshrl.u32 %v2918, 16
  %v3254 = vrot.slane %v3252, 7
  %v3255 = vshll.u32 %v2918, 16
  %v3257 = vor.u32 %v3254, %v3255
  %v3258 = vsel %vm2966, %v3250, %v3257
  %v3259 = vrot.slane %v3254, 4
  %v3261 = vshrl.u32 %v2919, 16
  %v3263 = vrot.slane %v3261, 7
  %v3264 = vshll.u32 %v2919, 16
  %v3266 = vor.u32 %v3263, %v3264
  %v3267 = vsel %vm2966, %v3259, %v3266
  %v3268 = vrot.slane %v3263, 4
  %v3270 = vshrl.u32 %v2920, 16
  %v3272 = vrot.slane %v3270, 7
  %v3273 = vshll.u32 %v2920, 16
  %v3275 = vor.u32 %v3272, %v3273
  %v3276 = vsel %vm2966, %v3268, %v3275
  %v3277 = vrot.slane %v3272, 4
  %v3279 = vshrl.u32 %v2921, 16
  %v3281 = vrot.slane %v3279, 7
  %v3282 = vshll.u32 %v2921, 16
  %v3284 = vor.u32 %v3281, %v3282
  %v3285 = vsel %vm2966, %v3277, %v3284
  %v3286 = vrot.slane %v3281, 4
  %v3288 = vshrl.u32 %v2922, 16
  %v3290 = vrot.slane %v3288, 7
  %v3291 = vshll.u32 %v2922, 16
  %v3293 = vor.u32 %v3290, %v3291
  %v3294 = vsel %vm2966, %v3286, %v3293
  %v3295 = vrot.slane %v3290, 4
  %v3297 = vshrl.u32 %v2923, 16
  %v3299 = vrot.slane %v3297, 7
  %v3300 = vshll.u32 %v2923, 16
  %v3302 = vor.u32 %v3299, %v3300
  %v3303 = vsel %vm2966, %v3295, %v3302
  %v3304 = vrot.slane %v3299, 4
  %v3306 = vshrl.u32 %v2924, 16
  %v3308 = vrot.slane %v3306, 7
  %v3309 = vshll.u32 %v2924, 16
  %v3311 = vor.u32 %v3308, %v3309
  %v3312 = vsel %vm2966, %v3304, %v3311
  %v3313 = vrot.slane %v3308, 4
  %v3315 = vshrl.u32 %v2925, 16
  %v3317 = vrot.slane %v3315, 7
  %v3318 = vshll.u32 %v2925, 16
  %v3320 = vor.u32 %v3317, %v3318
  %v3321 = vsel %vm2966, %v3313, %v3320
  %v3322 = vrot.slane %v3317, 4
  %v3324 = vshrl.u32 %v2926, 16
  %v3326 = vrot.slane %v3324, 7
  %v3327 = vshll.u32 %v2926, 16
  %v3329 = vor.u32 %v3326, %v3327
  %v3330 = vsel %vm2966, %v3322, %v3329
  %v3331 = vrot.slane %v3326, 4
  %v3333 = vshrl.u32 %v2927, 16
  %v3335 = vrot.slane %v3333, 7
  %v3336 = vshll.u32 %v2927, 16
  %v3338 = vor.u32 %v3335, %v3336
  %v3339 = vsel %vm2966, %v3331, %v3338
  %v3340 = vrot.slane %v3335, 4
  %v3342 = vshrl.u32 %v2928, 16
  %v3344 = vrot.slane %v3342, 7
  %v3345 = vshll.u32 %v2928, 16
  %v3347 = vor.u32 %v3344, %v3345
  %v3348 = vsel %vm2966, %v3340, %v3347
  %v3349 = vrot.slane %v3344, 4
  %v3351 = vshrl.u32 %v2929, 16
  %v3353 = vrot.slane %v3351, 7
  %v3354 = vshll.u32 %v2929, 16
  %v3356 = vor.u32 %v3353, %v3354
  %v3357 = vsel %vm2966, %v3349, %v3356
  %v3358 = vrot.slane %v3353, 4
  %v3360 = vshrl.u32 %v2930, 16
  %v3362 = vrot.slane %v3360, 7
  %v3363 = vshll.u32 %v2930, 16
  %v3365 = vor.u32 %v3362, %v3363
  %v3366 = vsel %vm2966, %v3358, %v3365
  %v3367 = vrot.slane %v3362, 4
  %v3369 = vshrl.u32 %v2931, 16
  %v3371 = vrot.slane %v3369, 7
  %v3372 = vshll.u32 %v2931, 16
  %v3374 = vor.u32 %v3371, %v3372
  %v3375 = vsel %vm2966, %v3367, %v3374
  %v3376 = vrot.slane %v3371, 4
  %v3378 = vshrl.u32 %v2932, 16
  %v3380 = vrot.slane %v3378, 7
  %v3381 = vshll.u32 %v2932, 16
  %v3383 = vor.u32 %v3380, %v3381
  %v3384 = vsel %vm2966, %v3376, %v3383
  %v3385 = vrot.slane %v3380, 4
  %v3387 = vshrl.u32 %v2933, 16
  %v3389 = vrot.slane %v3387, 7
  %v3390 = vshll.u32 %v2933, 16
  %v3392 = vor.u32 %v3389, %v3390
  %v3393 = vsel %vm2966, %v3385, %v3392
  %v3394 = vrot.slane %v3389, 4
  %v3396 = vshrl.u32 %v2934, 16
  %v3398 = vrot.slane %v3396, 7
  %v3399 = vshll.u32 %v2934, 16
  %v3401 = vor.u32 %v3398, %v3399
  %v3402 = vsel %vm2966, %v3394, %v3401
  %v3403 = vrot.slane %v3398, 4
  %v3405 = vshrl.u32 %v2935, 16
  %v3407 = vrot.slane %v3405, 7
  %v3408 = vshll.u32 %v2935, 16
  %v3410 = vor.u32 %v3407, %v3408
  %v3411 = vsel %vm2966, %v3403, %v3410
  %v3412 = vrot.slane %v3407, 4
  %v3414 = vshrl.u32 %v2936, 16
  %v3416 = vrot.slane %v3414, 7
  %v3417 = vshll.u32 %v2936, 16
  %v3419 = vor.u32 %v3416, %v3417
  %v3420 = vsel %vm2966, %v3412, %v3419
  %v3421 = vrot.slane %v3416, 4
  %v3423 = vshrl.u32 %v2937, 16
  %v3425 = vrot.slane %v3423, 7
  %v3426 = vshll.u32 %v2937, 16
  %v3428 = vor.u32 %v3425, %v3426
  %v3429 = vsel %vm2966, %v3421, %v3428
  %v3430 = vrot.slane %v3425, 4
  %v3432 = vshrl.u32 %v2938, 16
  %v3434 = vrot.slane %v3432, 7
  %v3435 = vshll.u32 %v2938, 16
  %v3437 = vor.u32 %v3434, %v3435
  %v3438 = vsel %vm2966, %v3430, %v3437
  %v3439 = vrot.slane %v3434, 4
  %v3441 = vshrl.u32 %v2939, 16
  %v3443 = vrot.slane %v3441, 7
  %v3444 = vshll.u32 %v2939, 16
  %v3446 = vor.u32 %v3443, %v3444
  %v3447 = vsel %vm2966, %v3439, %v3446
  %v3448 = vrot.slane %v3443, 4
  %v3450 = vshrl.u32 %v2940, 16
  %v3452 = vrot.slane %v3450, 7
  %v3453 = vshll.u32 %v2940, 16
  %v3455 = vor.u32 %v3452, %v3453
  %v3456 = vsel %vm2966, %v3448, %v3455
  %v3457 = vrot.slane %v3452, 4
  %v3459 = vshrl.u32 %v2941, 16
  %v3461 = vrot.slane %v3459, 7
  %v3462 = vshll.u32 %v2941, 16
  %v3464 = vor.u32 %v3461, %v3462
  %v3465 = vsel %vm2966, %v3457, %v3464
  %v3466 = vrot.slane %v3461, 4
  %v3468 = vshrl.u32 %v2942, 16
  %v3470 = vrot.slane %v3468, 7
  %v3471 = vshll.u32 %v2942, 16
  %v3473 = vor.u32 %v3470, %v3471
  %v3474 = vsel %vm2966, %v3466, %v3473
  %v3475 = vrot.slane %v3470, 4
  %v3477 = vshrl.u32 %v2943, 16
  %v3479 = vrot.slane %v3477, 7
  %v3480 = vshll.u32 %v2943, 16
  %v3482 = vor.u32 %v3479, %v3480
  %v3483 = vsel %vm2966, %v3475, %v3482
  %v3484 = vrot.slane %v3479, 4
  %v3486 = vshrl.u32 %v2944, 16
  %v3488 = vrot.slane %v3486, 7
  %v3489 = vshll.u32 %v2944, 16
  %v3491 = vor.u32 %v3488, %v3489
  %v3492 = vsel %vm2966, %v3484, %v3491
  %v3493 = vrot.slane %v3488, 4
  %v3495 = vshrl.u32 %v2945, 16
  %v3497 = vrot.slane %v3495, 7
  %v3498 = vshll.u32 %v2945, 16
  %v3500 = vor.u32 %v3497, %v3498
  %v3501 = vsel %vm2966, %v3493, %v3500
  %v3502 = vrot.slane %v3497, 4
  %v3504 = vshrl.u32 %v2946, 16
  %v3506 = vrot.slane %v3504, 7
  %v3507 = vshll.u32 %v2946, 16
  %v3509 = vor.u32 %v3506, %v3507
  %v3510 = vsel %vm2966, %v3502, %v3509
  %v3511 = vrot.slane %v3506, 4
  %v3513 = vshrl.u32 %v2947, 16
  %v3515 = vrot.slane %v3513, 7
  %v3516 = vshll.u32 %v2947, 16
  %v3518 = vor.u32 %v3515, %v3516
  %v3519 = vsel %vm2966, %v3511, %v3518
  %v3520 = vrot.slane %v3515, 4
  %v3522 = vshrl.u32 %v2948, 16
  %v3524 = vrot.slane %v3522, 7
  %v3525 = vshll.u32 %v2948, 16
  %v3527 = vor.u32 %v3524, %v3525
  %v3528 = vsel %vm2966, %v3520, %v3527
  %v3529 = vrot.slane %v3524, 4
  %v3531 = vshrl.u32 %v2949, 16
  %v3533 = vrot.slane %v3531, 7
  %v3534 = vshll.u32 %v2949, 16
  %v3536 = vor.u32 %v3533, %v3534
  %v3537 = vsel %vm2966, %v3529, %v3536
  %v3538 = vrot.slane %v3533, 4
  %v3540 = vshrl.u32 %v2950, 16
  %v3542 = vrot.slane %v3540, 7
  %v3543 = vshll.u32 %v2950, 16
  %v3545 = vor.u32 %v3542, %v3543
  %v3546 = vsel %vm2966, %v3538, %v3545
  %v3547 = vrot.slane %v3542, 4
  %v3549 = vshrl.u32 %v2951, 16
  %v3551 = vrot.slane %v3549, 7
  %v3552 = vshll.u32 %v2951, 16
  %v3554 = vor.u32 %v3551, %v3552
  %v3555 = vsel %vm2966, %v3547, %v3554
  %v3556 = vrot.slane %v3551, 4
  %v3558 = vshrl.u32 %v2952, 16
  %v3560 = vrot.slane %v3558, 7
  %v3561 = vshll.u32 %v2952, 16
  %v3563 = vor.u32 %v3560, %v3561
  %v3564 = vsel %vm2966, %v3556, %v3563
  %v3565 = vrot.slane %v3560, 4
  %v3567 = vshrl.u32 %v2953, 16
  %v3569 = vrot.slane %v3567, 7
  %v3570 = vshll.u32 %v2953, 16
  %v3572 = vor.u32 %v3569, %v3570
  %v3573 = vsel %vm2966, %v3565, %v3572
  %v3574 = vrot.slane %v3569, 4
  %v3576 = vshrl.u32 %v2954, 16
  %v3578 = vrot.slane %v3576, 7
  %v3579 = vshll.u32 %v2954, 16
  %v3581 = vor.u32 %v3578, %v3579
  %v3582 = vsel %vm2966, %v3574, %v3581
  %v3583 = vrot.slane %v3578, 4
  %v3585 = vshrl.u32 %v2955, 16
  %v3587 = vrot.slane %v3585, 7
  %v3588 = vshll.u32 %v2955, 16
  %v3590 = vor.u32 %v3587, %v3588
  %v3591 = vsel %vm2966, %v3583, %v3590
  %v3592 = vrot.slane %v3587, 4
  %v3594 = vshrl.u32 %v2956, 16
  %v3596 = vrot.slane %v3594, 7
  %v3597 = vshll.u32 %v2956, 16
  %v3599 = vor.u32 %v3596, %v3597
  %v3600 = vsel %vm2966, %v3592, %v3599
  %v3601 = vrot.slane %v3596, 4
  %v3603 = vshrl.u32 %v2957, 16
  %v3605 = vrot.slane %v3603, 7
  %v3606 = vshll.u32 %v2957, 16
  %v3608 = vor.u32 %v3605, %v3606
  %v3609 = vsel %vm2966, %v3601, %v3608
  %v3610 = vrot.slane %v3605, 4
  %v3612 = vshrl.u32 %v2958, 16
  %v3614 = vrot.slane %v3612, 7
  %v3615 = vshll.u32 %v2958, 16
  %v3617 = vor.u32 %v3614, %v3615
  %v3618 = vsel %vm2966, %v3610, %v3617
  %v3619 = vrot.slane %v3614, 4
  %v3621 = vshrl.u32 %v2959, 16
  %v3623 = vrot.slane %v3621, 7
  %v3624 = vshll.u32 %v2959, 16
  %v3626 = vor.u32 %v3623, %v3624
  %v3627 = vsel %vm2966, %v3619, %v3626
  %v3628 = vrot.slane %v3623, 4
  %v3630 = vshrl.u32 %v2960, 16
  %v3632 = vrot.slane %v3630, 7
  %v3633 = vshll.u32 %v2960, 16
  %v3635 = vor.u32 %v3632, %v3633
  %v3636 = vsel %vm2966, %v3628, %v3635
  %v3637 = vrot.slane %v3632, 4
  %v3639 = vshrl.u32 %v2961, 16
  %v3641 = vrot.slane %v3639, 7
  %v3642 = vshll.u32 %v2961, 16
  %v3644 = vor.u32 %v3641, %v3642
  %v3645 = vsel %vm2966, %v3637, %v3644
  %v3646 = vrot.slane %v3641, 4
  %v3648 = vshrl.u32 %v2962, 16
  %v3650 = vrot.slane %v3648, 7
  %v3651 = vshll.u32 %v2962, 16
  %v3653 = vor.u32 %v3650, %v3651
  %v3654 = vsel %vm2966, %v3646, %v3653
  %v3655 = vrot.slane %v3650, 4
  %v3657 = vshrl.u32 %v2963, 16
  %v3659 = vrot.slane %v3657, 7
  %v3660 = vshll.u32 %v2963, 16
  %v3662 = vor.u32 %v3659, %v3660
  %v3663 = vsel %vm2966, %v3655, %v3662
  %3664 = vrot.lane.b32.xlu0 %v2979, 32
  %v3665 = vpop.permute.xlu0 %3664
  %3666 = vrot.lane.b32.xlu0 %v2988, 32
  %v3667 = vpop.permute.xlu0 %3666
  %3668 = vrot.lane.b32.xlu0 %v2997, 32
  %v3669 = vpop.permute.xlu0 %3668
  %3670 = vrot.lane.b32.xlu0 %v3006, 32
  %v3671 = vpop.permute.xlu0 %3670
  %3672 = vrot.lane.b32.xlu0 %v3015, 32
  %v3673 = vpop.permute.xlu0 %3672
  %3674 = vrot.lane.b32.xlu0 %v3024, 32
  %v3675 = vpop.permute.xlu0 %3674
  %3676 = vrot.lane.b32.xlu0 %v3033, 32
  %v3677 = vpop.permute.xlu0 %3676
  %3678 = vrot.lane.b32.xlu0 %v3042, 32
  %v3679 = vpop.permute.xlu0 %3678
  %3680 = vrot.lane.b32.xlu0 %v3051, 32
  %v3681 = vpop.permute.xlu0 %3680
  %3682 = vrot.lane.b32.xlu0 %v3060, 32
  %v3683 = vpop.permute.xlu0 %3682
  %3684 = vrot.lane.b32.xlu0 %v3069, 32
  %v3685 = vpop.permute.xlu0 %3684
  %3686 = vrot.lane.b32.xlu0 %v3078, 32
  %v3687 = vpop.permute.xlu0 %3686
  %3688 = vrot.lane.b32.xlu0 %v3087, 32
  %v3689 = vpop.permute.xlu0 %3688
  %3690 = vrot.lane.b32.xlu0 %v3096, 32
  %v3691 = vpop.permute.xlu0 %3690
  %3692 = vrot.lane.b32.xlu0 %v3105, 32
  %v3693 = vpop.permute.xlu0 %3692
  %3694 = vrot.lane.b32.xlu0 %v3114, 32
  %v3695 = vpop.permute.xlu0 %3694
  %3696 = vrot.lane.b32.xlu0 %v3123, 32
  %v3697 = vpop.permute.xlu0 %3696
  %3698 = vrot.lane.b32.xlu0 %v3132, 32
  %v3699 = vpop.permute.xlu0 %3698
  %3700 = vrot.lane.b32.xlu0 %v3141, 32
  %v3701 = vpop.permute.xlu0 %3700
  %3702 = vrot.lane.b32.xlu0 %v3150, 32
  %v3703 = vpop.permute.xlu0 %3702
  %3704 = vrot.lane.b32.xlu0 %v3159, 32
  %v3705 = vpop.permute.xlu0 %3704
  %3706 = vrot.lane.b32.xlu0 %v3168, 32
  %v3707 = vpop.permute.xlu0 %3706
  %3708 = vrot.lane.b32.xlu0 %v3177, 32
  %v3709 = vpop.permute.xlu0 %3708
  %3710 = vrot.lane.b32.xlu0 %v3186, 32
  %v3711 = vpop.permute.xlu0 %3710
  %3712 = vrot.lane.b32.xlu0 %v3195, 32
  %v3713 = vpop.permute.xlu0 %3712
  %3714 = vrot.lane.b32.xlu0 %v3204, 32
  %v3715 = vpop.permute.xlu0 %3714
  %3716 = vrot.lane.b32.xlu0 %v3213, 32
  %v3717 = vpop.permute.xlu0 %3716
  %3718 = vrot.lane.b32.xlu0 %v3222, 32
  %v3719 = vpop.permute.xlu0 %3718
  %3720 = vrot.lane.b32.xlu0 %v3231, 32
  %v3721 = vpop.permute.xlu0 %3720
  %3722 = vrot.lane.b32.xlu0 %v3240, 32
  %v3723 = vpop.permute.xlu0 %3722
  %3724 = vrot.lane.b32.xlu0 %v3249, 32
  %v3725 = vpop.permute.xlu0 %3724
  %3726 = vrot.lane.b32.xlu0 %v3258, 32
  %v3727 = vpop.permute.xlu0 %3726
  %3728 = vrot.lane.b32.xlu0 %v3267, 32
  %v3729 = vpop.permute.xlu0 %3728
  %3730 = vrot.lane.b32.xlu0 %v3276, 32
  %v3731 = vpop.permute.xlu0 %3730
  %3732 = vrot.lane.b32.xlu0 %v3285, 32
  %v3733 = vpop.permute.xlu0 %3732
  %3734 = vrot.lane.b32.xlu0 %v3294, 32
  %v3735 = vpop.permute.xlu0 %3734
  %3736 = vrot.lane.b32.xlu0 %v3303, 32
  %v3737 = vpop.permute.xlu0 %3736
  %3738 = vrot.lane.b32.xlu0 %v3312, 32
  %v3739 = vpop.permute.xlu0 %3738
  %3740 = vrot.lane.b32.xlu0 %v3321, 32
  %v3741 = vpop.permute.xlu0 %3740
  %3742 = vrot.lane.b32.xlu0 %v3330, 32
  %v3743 = vpop.permute.xlu0 %3742
  %3744 = vrot.lane.b32.xlu0 %v3339, 32
  %v3745 = vpop.permute.xlu0 %3744
  %3746 = vrot.lane.b32.xlu0 %v3348, 32
  %v3747 = vpop.permute.xlu0 %3746
  %3748 = vrot.lane.b32.xlu0 %v3357, 32
  %v3749 = vpop.permute.xlu0 %3748
  %3750 = vrot.lane.b32.xlu0 %v3366, 32
  %v3751 = vpop.permute.xlu0 %3750
  %3752 = vrot.lane.b32.xlu0 %v3375, 32
  %v3753 = vpop.permute.xlu0 %3752
  %3754 = vrot.lane.b32.xlu0 %v3384, 32
  %v3755 = vpop.permute.xlu0 %3754
  %3756 = vrot.lane.b32.xlu0 %v3393, 32
  %v3757 = vpop.permute.xlu0 %3756
  %3758 = vrot.lane.b32.xlu0 %v3402, 32
  %v3759 = vpop.permute.xlu0 %3758
  %3760 = vrot.lane.b32.xlu0 %v3411, 32
  %v3761 = vpop.permute.xlu0 %3760
  %3762 = vrot.lane.b32.xlu0 %v3420, 32
  %v3763 = vpop.permute.xlu0 %3762
  %3764 = vrot.lane.b32.xlu0 %v3429, 32
  %v3765 = vpop.permute.xlu0 %3764
  %3766 = vrot.lane.b32.xlu0 %v3438, 32
  %v3767 = vpop.permute.xlu0 %3766
  %3768 = vrot.lane.b32.xlu0 %v3447, 32
  %v3769 = vpop.permute.xlu0 %3768
  %3770 = vrot.lane.b32.xlu0 %v3456, 32
  %v3771 = vpop.permute.xlu0 %3770
  %3772 = vrot.lane.b32.xlu0 %v3465, 32
  %v3773 = vpop.permute.xlu0 %3772
  %3774 = vrot.lane.b32.xlu0 %v3474, 32
  %v3775 = vpop.permute.xlu0 %3774
  %3776 = vrot.lane.b32.xlu0 %v3483, 32
  %v3777 = vpop.permute.xlu0 %3776
  %3778 = vrot.lane.b32.xlu0 %v3492, 32
  %v3779 = vpop.permute.xlu0 %3778
  %3780 = vrot.lane.b32.xlu0 %v3501, 32
  %v3781 = vpop.permute.xlu0 %3780
  %3782 = vrot.lane.b32.xlu0 %v3510, 32
  %v3783 = vpop.permute.xlu0 %3782
  %3784 = vrot.lane.b32.xlu0 %v3519, 32
  %v3785 = vpop.permute.xlu0 %3784
  %3786 = vrot.lane.b32.xlu0 %v3528, 32
  %v3787 = vpop.permute.xlu0 %3786
  %3788 = vrot.lane.b32.xlu0 %v3537, 32
  %v3789 = vpop.permute.xlu0 %3788
  %3790 = vrot.lane.b32.xlu0 %v3546, 32
  %v3791 = vpop.permute.xlu0 %3790
  %3792 = vrot.lane.b32.xlu0 %v3555, 32
  %v3793 = vpop.permute.xlu0 %3792
  %3794 = vrot.lane.b32.xlu0 %v3564, 32
  %v3795 = vpop.permute.xlu0 %3794
  %3796 = vrot.lane.b32.xlu0 %v3573, 32
  %v3797 = vpop.permute.xlu0 %3796
  %3798 = vrot.lane.b32.xlu0 %v3582, 32
  %v3799 = vpop.permute.xlu0 %3798
  %3800 = vrot.lane.b32.xlu0 %v3591, 32
  %v3801 = vpop.permute.xlu0 %3800
  %3802 = vrot.lane.b32.xlu0 %v3600, 32
  %v3803 = vpop.permute.xlu0 %3802
  %3804 = vrot.lane.b32.xlu0 %v3609, 32
  %v3805 = vpop.permute.xlu0 %3804
  %3806 = vrot.lane.b32.xlu0 %v3618, 32
  %v3807 = vpop.permute.xlu0 %3806
  %3808 = vrot.lane.b32.xlu0 %v3627, 32
  %v3809 = vpop.permute.xlu0 %3808
  %3810 = vrot.lane.b32.xlu0 %v3636, 32
  %v3811 = vpop.permute.xlu0 %3810
  %3812 = vrot.lane.b32.xlu0 %v3645, 32
  %v3813 = vpop.permute.xlu0 %3812
  %3814 = vrot.lane.b32.xlu0 %v3654, 32
  %v3815 = vpop.permute.xlu0 %3814
  %3816 = vrot.lane.b32.xlu0 %v3663, 32
  %v3817 = vpop.permute.xlu0 %3816
  %vm3895 = vcmask 519424
  %3896 = vst.msk [vmem:[#allocation3] sm:$0xf] %vm3895, %v3665
  %3897 = vst.msk [vmem:[#allocation3 + $0xc] sm:$0xf] %vm3895, %v3667
  %3898 = vst.msk [vmem:[#allocation3 + $0x18] sm:$0xf] %vm3895, %v3669
  %3899 = vst.msk [vmem:[#allocation3 + $0x24] sm:$0xf] %vm3895, %v3671
  %3900 = vst.msk [vmem:[#allocation3 + $0x30] sm:$0xf] %vm3895, %v3673
  %3901 = vst.msk [vmem:[#allocation3 + $0x3c] sm:$0xf] %vm3895, %v3675
  %3902 = vst.msk [vmem:[#allocation3 + $0x48] sm:$0xf] %vm3895, %v3677
  %3903 = vst.msk [vmem:[#allocation3 + $0x54] sm:$0xf] %vm3895, %v3679
  %3904 = vst.msk [vmem:[#allocation3 + $0x60] sm:$0xf] %vm3895, %v3681
  %3905 = vst.msk [vmem:[#allocation3 + $0x6c] sm:$0xf] %vm3895, %v3683
  %3906 = vst.msk [vmem:[#allocation3 + $0x78] sm:$0xf] %vm3895, %v3685
  %3907 = vst.msk [vmem:[#allocation3 + $0x84] sm:$0xf] %vm3895, %v3687
  %3908 = vst.msk [vmem:[#allocation3 + $0x90] sm:$0xf] %vm3895, %v3689
  %3909 = vst.msk [vmem:[#allocation3 + $0x9c] sm:$0xf] %vm3895, %v3691
  %3910 = vst.msk [vmem:[#allocation3 + $0xa8] sm:$0xf] %vm3895, %v3693
  %3911 = vst.msk [vmem:[#allocation3 + $0xb4] sm:$0xf] %vm3895, %v3695
  %3912 = vst.msk [vmem:[#allocation3 + $0xc0] sm:$0xf] %vm3895, %v3697
  %3913 = vst.msk [vmem:[#allocation3 + $0xcc] sm:$0xf] %vm3895, %v3699
  %3914 = vst.msk [vmem:[#allocation3 + $0xd8] sm:$0xf] %vm3895, %v3701
  %3915 = vst.msk [vmem:[#allocation3 + $0xe4] sm:$0xf] %vm3895, %v3703
  %3916 = vst.msk [vmem:[#allocation3 + $0xf0] sm:$0xf] %vm3895, %v3705
  %3917 = vst.msk [vmem:[#allocation3 + $0xfc] sm:$0xf] %vm3895, %v3707
  %3918 = vst.msk [vmem:[#allocation3 + $0x108] sm:$0xf] %vm3895, %v3709
  %3919 = vst.msk [vmem:[#allocation3 + $0x114] sm:$0xf] %vm3895, %v3711
  %3920 = vst.msk [vmem:[#allocation3 + $0x120] sm:$0xf] %vm3895, %v3713
  %3921 = vst.msk [vmem:[#allocation3 + $0x12c] sm:$0xf] %vm3895, %v3715
  %3922 = vst.msk [vmem:[#allocation3 + $0x138] sm:$0xf] %vm3895, %v3717
  %3923 = vst.msk [vmem:[#allocation3 + $0x144] sm:$0xf] %vm3895, %v3719
  %3924 = vst.msk [vmem:[#allocation3 + $0x150] sm:$0xf] %vm3895, %v3721
  %3925 = vst.msk [vmem:[#allocation3 + $0x15c] sm:$0xf] %vm3895, %v3723
  %3926 = vst.msk [vmem:[#allocation3 + $0x168] sm:$0xf] %vm3895, %v3725
  %3927 = vst.msk [vmem:[#allocation3 + $0x174] sm:$0xf] %vm3895, %v3727
  %3928 = vst.msk [vmem:[#allocation3 + $0x180] sm:$0xf] %vm3895, %v3729
  %3929 = vst.msk [vmem:[#allocation3 + $0x18c] sm:$0xf] %vm3895, %v3731
  %3930 = vst.msk [vmem:[#allocation3 + $0x198] sm:$0xf] %vm3895, %v3733
  %3931 = vst.msk [vmem:[#allocation3 + $0x1a4] sm:$0xf] %vm3895, %v3735
  %3932 = vst.msk [vmem:[#allocation3 + $0x1b0] sm:$0xf] %vm3895, %v3737
  %3933 = vst.msk [vmem:[#allocation3 + $0x1bc] sm:$0xf] %vm3895, %v3739
  %3934 = vst.msk [vmem:[#allocation3 + $0x1c8] sm:$0xf] %vm3895, %v3741
  %3935 = vst.msk [vmem:[#allocation3 + $0x1d4] sm:$0xf] %vm3895, %v3743
  %3936 = vst.msk [vmem:[#allocation3 + $0x1e0] sm:$0xf] %vm3895, %v3745
  %3937 = vst.msk [vmem:[#allocation3 + $0x1ec] sm:$0xf] %vm3895, %v3747
  %3938 = vst.msk [vmem:[#allocation3 + $0x1f8] sm:$0xf] %vm3895, %v3749
  %3939 = vst.msk [vmem:[#allocation3 + $0x204] sm:$0xf] %vm3895, %v3751
  %3940 = vst.msk [vmem:[#allocation3 + $0x210] sm:$0xf] %vm3895, %v3753
  %3941 = vst.msk [vmem:[#allocation3 + $0x21c] sm:$0xf] %vm3895, %v3755
  %3942 = vst.msk [vmem:[#allocation3 + $0x228] sm:$0xf] %vm3895, %v3757
  %3943 = vst.msk [vmem:[#allocation3 + $0x234] sm:$0xf] %vm3895, %v3759
  %3944 = vst.msk [vmem:[#allocation3 + $0x240] sm:$0xf] %vm3895, %v3761
  %3945 = vst.msk [vmem:[#allocation3 + $0x24c] sm:$0xf] %vm3895, %v3763
  %3946 = vst.msk [vmem:[#allocation3 + $0x258] sm:$0xf] %vm3895, %v3765
  %3947 = vst.msk [vmem:[#allocation3 + $0x264] sm:$0xf] %vm3895, %v3767
  %3948 = vst.msk [vmem:[#allocation3 + $0x270] sm:$0xf] %vm3895, %v3769
  %3949 = vst.msk [vmem:[#allocation3 + $0x27c] sm:$0xf] %vm3895, %v3771
  %3950 = vst.msk [vmem:[#allocation3 + $0x288] sm:$0xf] %vm3895, %v3773
  %3951 = vst.msk [vmem:[#allocation3 + $0x294] sm:$0xf] %vm3895, %v3775
  %3952 = vst.msk [vmem:[#allocation3 + $0x2a0] sm:$0xf] %vm3895, %v3777
  %3953 = vst.msk [vmem:[#allocation3 + $0x2ac] sm:$0xf] %vm3895, %v3779
  %3954 = vst.msk [vmem:[#allocation3 + $0x2b8] sm:$0xf] %vm3895, %v3781
  %3955 = vst.msk [vmem:[#allocation3 + $0x2c4] sm:$0xf] %vm3895, %v3783
  %3956 = vst.msk [vmem:[#allocation3 + $0x2d0] sm:$0xf] %vm3895, %v3785
  %3957 = vst.msk [vmem:[#allocation3 + $0x2dc] sm:$0xf] %vm3895, %v3787
  %3958 = vst.msk [vmem:[#allocation3 + $0x2e8] sm:$0xf] %vm3895, %v3789
  %3959 = vst.msk [vmem:[#allocation3 + $0x2f4] sm:$0xf] %vm3895, %v3791
  %3960 = vst.msk [vmem:[#allocation3 + $0x300] sm:$0xf] %vm3895, %v3793
  %3961 = vst.msk [vmem:[#allocation3 + $0x30c] sm:$0xf] %vm3895, %v3795
  %3962 = vst.msk [vmem:[#allocation3 + $0x318] sm:$0xf] %vm3895, %v3797
  %3963 = vst.msk [vmem:[#allocation3 + $0x324] sm:$0xf] %vm3895, %v3799
  %3964 = vst.msk [vmem:[#allocation3 + $0x330] sm:$0xf] %vm3895, %v3801
  %3965 = vst.msk [vmem:[#allocation3 + $0x33c] sm:$0xf] %vm3895, %v3803
  %3966 = vst.msk [vmem:[#allocation3 + $0x348] sm:$0xf] %vm3895, %v3805
  %3967 = vst.msk [vmem:[#allocation3 + $0x354] sm:$0xf] %vm3895, %v3807
  %3968 = vst.msk [vmem:[#allocation3 + $0x360] sm:$0xf] %vm3895, %v3809
  %3969 = vst.msk [vmem:[#allocation3 + $0x36c] sm:$0xf] %vm3895, %v3811
  %3970 = vst.msk [vmem:[#allocation3 + $0x378] sm:$0xf] %vm3895, %v3813
  %3971 = vst.msk [vmem:[#allocation3 + $0x384] sm:$0xf] %vm3895, %v3815
  %vm3972 = vcmask 517376
  %3973 = vst.msk [vmem:[#allocation3 + $0x390] sm:$0x3] %vm3972, %v3817
  %v3974 = vld [vmem:[#allocation2 + $0x4] sm:$0xf]
  %v3975 = vld [vmem:[#allocation2 + $0x8] sm:$0xf]
  %v3976 = vld [vmem:[#allocation2 + $0xc] sm:$0xf]
  %v3977 = vld [vmem:[#allocation2 + $0x10] sm:$0xf]
  %v3978 = vld [vmem:[#allocation2 + $0x14] sm:$0xf]
  %v3979 = vld [vmem:[#allocation2 + $0x18] sm:$0xf]
  %v3980 = vld [vmem:[#allocation2 + $0x1c] sm:$0xf]
  %v3981 = vld [vmem:[#allocation2 + $0x20] sm:$0xf]
  %v3982 = vld [vmem:[#allocation2 + $0x24] sm:$0xf]
  %v3983 = vld [vmem:[#allocation2 + $0x28] sm:$0xf]
  %v3984 = vld [vmem:[#allocation2 + $0x2c] sm:$0xf]
  %v3985 = vld [vmem:[#allocation2 + $0x30] sm:$0xf]
  %v3986 = vld [vmem:[#allocation2 + $0x34] sm:$0xf]
  %v3987 = vld [vmem:[#allocation2 + $0x38] sm:$0xf]
  %v3988 = vld [vmem:[#allocation2 + $0x3c] sm:$0xf]
  %v3989 = vld [vmem:[#allocation2 + $0x40] sm:$0xf]
  %v3990 = vld [vmem:[#allocation2 + $0x44] sm:$0xf]
  %v3991 = vld [vmem:[#allocation2 + $0x48] sm:$0xf]
  %v3992 = vld [vmem:[#allocation2 + $0x4c] sm:$0xf]
  %v3993 = vld [vmem:[#allocation2 + $0x50] sm:$0xf]
  %v3994 = vld [vmem:[#allocation2 + $0x54] sm:$0xf]
  %v3995 = vld [vmem:[#allocation2 + $0x58] sm:$0xf]
  %v3996 = vld [vmem:[#allocation2 + $0x5c] sm:$0xf]
  %v3997 = vld [vmem:[#allocation2 + $0x60] sm:$0xf]
  %v3998 = vld [vmem:[#allocation2 + $0x64] sm:$0xf]
  %v3999 = vld [vmem:[#allocation2 + $0x68] sm:$0xf]
  %v4000 = vld [vmem:[#allocation2 + $0x6c] sm:$0xf]
  %v4001 = vld [vmem:[#allocation2 + $0x70] sm:$0xf]
  %v4002 = vld [vmem:[#allocation2 + $0x74] sm:$0xf]
  %v4003 = vld [vmem:[#allocation2 + $0x78] sm:$0xf]
  %v4004 = vld [vmem:[#allocation2 + $0x7c] sm:$0xf]
  %v4005 = vld [vmem:[#allocation2 + $0x80] sm:$0xf]
  %v4006 = vld [vmem:[#allocation2 + $0x84] sm:$0xf]
  %v4007 = vld [vmem:[#allocation2 + $0x88] sm:$0xf]
  %v4008 = vld [vmem:[#allocation2 + $0x8c] sm:$0xf]
  %v4009 = vld [vmem:[#allocation2 + $0x90] sm:$0xf]
  %v4010 = vld [vmem:[#allocation2 + $0x94] sm:$0xf]
  %v4011 = vld [vmem:[#allocation2 + $0x98] sm:$0xf]
  %v4012 = vld [vmem:[#allocation2 + $0x9c] sm:$0xf]
  %v4013 = vld [vmem:[#allocation2 + $0xa0] sm:$0xf]
  %v4014 = vld [vmem:[#allocation2 + $0xa4] sm:$0xf]
  %v4015 = vld [vmem:[#allocation2 + $0xa8] sm:$0xf]
  %v4016 = vld [vmem:[#allocation2 + $0xac] sm:$0xf]
  %v4017 = vld [vmem:[#allocation2 + $0xb0] sm:$0xf]
  %v4018 = vld [vmem:[#allocation2 + $0xb4] sm:$0xf]
  %v4019 = vld [vmem:[#allocation2 + $0xb8] sm:$0xf]
  %v4020 = vld [vmem:[#allocation2 + $0xbc] sm:$0xf]
  %v4021 = vld [vmem:[#allocation2 + $0xc0] sm:$0xf]
  %v4022 = vld [vmem:[#allocation2 + $0xc4] sm:$0xf]
  %v4023 = vld [vmem:[#allocation2 + $0xc8] sm:$0xf]
  %v4024 = vld [vmem:[#allocation2 + $0xcc] sm:$0xf]
  %v4025 = vld [vmem:[#allocation2 + $0xd0] sm:$0xf]
  %v4026 = vld [vmem:[#allocation2 + $0xd4] sm:$0xf]
  %v4027 = vld [vmem:[#allocation2 + $0xd8] sm:$0xf]
  %v4028 = vld [vmem:[#allocation2 + $0xdc] sm:$0xf]
  %v4029 = vld [vmem:[#allocation2 + $0xe0] sm:$0xf]
  %v4030 = vld [vmem:[#allocation2 + $0xe4] sm:$0xf]
  %v4031 = vld [vmem:[#allocation2 + $0xe8] sm:$0xf]
  %v4032 = vld [vmem:[#allocation2 + $0xec] sm:$0xf]
  %v4033 = vld [vmem:[#allocation2 + $0xf0] sm:$0xf]
  %v4034 = vld [vmem:[#allocation2 + $0xf4] sm:$0xf]
  %v4035 = vld [vmem:[#allocation2 + $0xf8] sm:$0xf]
  %v4036 = vld [vmem:[#allocation2 + $0xfc] sm:$0xf]
  %v4037 = vld [vmem:[#allocation2 + $0x100] sm:$0xf]
  %v4038 = vld [vmem:[#allocation2 + $0x104] sm:$0xf]
  %v4039 = vld [vmem:[#allocation2 + $0x108] sm:$0xf]
  %v4040 = vld [vmem:[#allocation2 + $0x10c] sm:$0xf]
  %v4041 = vld [vmem:[#allocation2 + $0x110] sm:$0xf]
  %v4042 = vld [vmem:[#allocation2 + $0x114] sm:$0xf]
  %v4043 = vld [vmem:[#allocation2 + $0x118] sm:$0xf]
  %v4044 = vld [vmem:[#allocation2 + $0x11c] sm:$0xf]
  %v4045 = vld [vmem:[#allocation2 + $0x120] sm:$0xf]
  %v4046 = vld [vmem:[#allocation2 + $0x124] sm:$0xf]
  %v4047 = vld [vmem:[#allocation2 + $0x128] sm:$0xf]
  %v4048 = vld [vmem:[#allocation2 + $0x12c] sm:$0xf]
  %v4049 = vld [vmem:[#allocation2 + $0x130] sm:$0xf]
  %v4050 = vld [vmem:[#allocation2 + $0x134] sm:$0x3]
  %4128 = vrot.lane.b32.xlu0 %v3974, 64
  %v4129 = vpop.permute.xlu0 %4128
  %4130 = vrot.lane.b32.xlu0 %v3975, 64
  %v4131 = vpop.permute.xlu0 %4130
  %4132 = vrot.lane.b32.xlu0 %v3976, 64
  %v4133 = vpop.permute.xlu0 %4132
  %4134 = vrot.lane.b32.xlu0 %v3977, 64
  %v4135 = vpop.permute.xlu0 %4134
  %4136 = vrot.lane.b32.xlu0 %v3978, 64
  %v4137 = vpop.permute.xlu0 %4136
  %4138 = vrot.lane.b32.xlu0 %v3979, 64
  %v4139 = vpop.permute.xlu0 %4138
  %4140 = vrot.lane.b32.xlu0 %v3980, 64
  %v4141 = vpop.permute.xlu0 %4140
  %4142 = vrot.lane.b32.xlu0 %v3981, 64
  %v4143 = vpop.permute.xlu0 %4142
  %4144 = vrot.lane.b32.xlu0 %v3982, 64
  %v4145 = vpop.permute.xlu0 %4144
  %4146 = vrot.lane.b32.xlu0 %v3983, 64
  %v4147 = vpop.permute.xlu0 %4146
  %4148 = vrot.lane.b32.xlu0 %v3984, 64
  %v4149 = vpop.permute.xlu0 %4148
  %4150 = vrot.lane.b32.xlu0 %v3985, 64
  %v4151 = vpop.permute.xlu0 %4150
  %4152 = vrot.lane.b32.xlu0 %v3986, 64
  %v4153 = vpop.permute.xlu0 %4152
  %4154 = vrot.lane.b32.xlu0 %v3987, 64
  %v4155 = vpop.permute.xlu0 %4154
  %4156 = vrot.lane.b32.xlu0 %v3988, 64
  %v4157 = vpop.permute.xlu0 %4156
  %4158 = vrot.lane.b32.xlu0 %v3989, 64
  %v4159 = vpop.permute.xlu0 %4158
  %4160 = vrot.lane.b32.xlu0 %v3990, 64
  %v4161 = vpop.permute.xlu0 %4160
  %4162 = vrot.lane.b32.xlu0 %v3991, 64
  %v4163 = vpop.permute.xlu0 %4162
  %4164 = vrot.lane.b32.xlu0 %v3992, 64
  %v4165 = vpop.permute.xlu0 %4164
  %4166 = vrot.lane.b32.xlu0 %v3993, 64
  %v4167 = vpop.permute.xlu0 %4166
  %4168 = vrot.lane.b32.xlu0 %v3994, 64
  %v4169 = vpop.permute.xlu0 %4168
  %4170 = vrot.lane.b32.xlu0 %v3995, 64
  %v4171 = vpop.permute.xlu0 %4170
  %4172 = vrot.lane.b32.xlu0 %v3996, 64
  %v4173 = vpop.permute.xlu0 %4172
  %4174 = vrot.lane.b32.xlu0 %v3997, 64
  %v4175 = vpop.permute.xlu0 %4174
  %4176 = vrot.lane.b32.xlu0 %v3998, 64
  %v4177 = vpop.permute.xlu0 %4176
  %4178 = vrot.lane.b32.xlu0 %v3999, 64
  %v4179 = vpop.permute.xlu0 %4178
  %4180 = vrot.lane.b32.xlu0 %v4000, 64
  %v4181 = vpop.permute.xlu0 %4180
  %4182 = vrot.lane.b32.xlu0 %v4001, 64
  %v4183 = vpop.permute.xlu0 %4182
  %4184 = vrot.lane.b32.xlu0 %v4002, 64
  %v4185 = vpop.permute.xlu0 %4184
  %4186 = vrot.lane.b32.xlu0 %v4003, 64
  %v4187 = vpop.permute.xlu0 %4186
  %4188 = vrot.lane.b32.xlu0 %v4004, 64
  %v4189 = vpop.permute.xlu0 %4188
  %4190 = vrot.lane.b32.xlu0 %v4005, 64
  %v4191 = vpop.permute.xlu0 %4190
  %4192 = vrot.lane.b32.xlu0 %v4006, 64
  %v4193 = vpop.permute.xlu0 %4192
  %4194 = vrot.lane.b32.xlu0 %v4007, 64
  %v4195 = vpop.permute.xlu0 %4194
  %4196 = vrot.lane.b32.xlu0 %v4008, 64
  %v4197 = vpop.permute.xlu0 %4196
  %4198 = vrot.lane.b32.xlu0 %v4009, 64
  %v4199 = vpop.permute.xlu0 %4198
  %4200 = vrot.lane.b32.xlu0 %v4010, 64
  %v4201 = vpop.permute.xlu0 %4200
  %4202 = vrot.lane.b32.xlu0 %v4011, 64
  %v4203 = vpop.permute.xlu0 %4202
  %4204 = vrot.lane.b32.xlu0 %v4012, 64
  %v4205 = vpop.permute.xlu0 %4204
  %4206 = vrot.lane.b32.xlu0 %v4013, 64
  %v4207 = vpop.permute.xlu0 %4206
  %4208 = vrot.lane.b32.xlu0 %v4014, 64
  %v4209 = vpop.permute.xlu0 %4208
  %4210 = vrot.lane.b32.xlu0 %v4015, 64
  %v4211 = vpop.permute.xlu0 %4210
  %4212 = vrot.lane.b32.xlu0 %v4016, 64
  %v4213 = vpop.permute.xlu0 %4212
  %4214 = vrot.lane.b32.xlu0 %v4017, 64
  %v4215 = vpop.permute.xlu0 %4214
  %4216 = vrot.lane.b32.xlu0 %v4018, 64
  %v4217 = vpop.permute.xlu0 %4216
  %4218 = vrot.lane.b32.xlu0 %v4019, 64
  %v4219 = vpop.permute.xlu0 %4218
  %4220 = vrot.lane.b32.xlu0 %v4020, 64
  %v4221 = vpop.permute.xlu0 %4220
  %4222 = vrot.lane.b32.xlu0 %v4021, 64
  %v4223 = vpop.permute.xlu0 %4222
  %4224 = vrot.lane.b32.xlu0 %v4022, 64
  %v4225 = vpop.permute.xlu0 %4224
  %4226 = vrot.lane.b32.xlu0 %v4023, 64
  %v4227 = vpop.permute.xlu0 %4226
  %4228 = vrot.lane.b32.xlu0 %v4024, 64
  %v4229 = vpop.permute.xlu0 %4228
  %4230 = vrot.lane.b32.xlu0 %v4025, 64
  %v4231 = vpop.permute.xlu0 %4230
  %4232 = vrot.lane.b32.xlu0 %v4026, 64
  %v4233 = vpop.permute.xlu0 %4232
  %4234 = vrot.lane.b32.xlu0 %v4027, 64
  %v4235 = vpop.permute.xlu0 %4234
  %4236 = vrot.lane.b32.xlu0 %v4028, 64
  %v4237 = vpop.permute.xlu0 %4236
  %4238 = vrot.lane.b32.xlu0 %v4029, 64
  %v4239 = vpop.permute.xlu0 %4238
  %4240 = vrot.lane.b32.xlu0 %v4030, 64
  %v4241 = vpop.permute.xlu0 %4240
  %4242 = vrot.lane.b32.xlu0 %v4031, 64
  %v4243 = vpop.permute.xlu0 %4242
  %4244 = vrot.lane.b32.xlu0 %v4032, 64
  %v4245 = vpop.permute.xlu0 %4244
  %4246 = vrot.lane.b32.xlu0 %v4033, 64
  %v4247 = vpop.permute.xlu0 %4246
  %4248 = vrot.lane.b32.xlu0 %v4034, 64
  %v4249 = vpop.permute.xlu0 %4248
  %4250 = vrot.lane.b32.xlu0 %v4035, 64
  %v4251 = vpop.permute.xlu0 %4250
  %4252 = vrot.lane.b32.xlu0 %v4036, 64
  %v4253 = vpop.permute.xlu0 %4252
  %4254 = vrot.lane.b32.xlu0 %v4037, 64
  %v4255 = vpop.permute.xlu0 %4254
  %4256 = vrot.lane.b32.xlu0 %v4038, 64
  %v4257 = vpop.permute.xlu0 %4256
  %4258 = vrot.lane.b32.xlu0 %v4039, 64
  %v4259 = vpop.permute.xlu0 %4258
  %4260 = vrot.lane.b32.xlu0 %v4040, 64
  %v4261 = vpop.permute.xlu0 %4260
  %4262 = vrot.lane.b32.xlu0 %v4041, 64
  %v4263 = vpop.permute.xlu0 %4262
  %4264 = vrot.lane.b32.xlu0 %v4042, 64
  %v4265 = vpop.permute.xlu0 %4264
  %4266 = vrot.lane.b32.xlu0 %v4043, 64
  %v4267 = vpop.permute.xlu0 %4266
  %4268 = vrot.lane.b32.xlu0 %v4044, 64
  %v4269 = vpop.permute.xlu0 %4268
  %4270 = vrot.lane.b32.xlu0 %v4045, 64
  %v4271 = vpop.permute.xlu0 %4270
  %4272 = vrot.lane.b32.xlu0 %v4046, 64
  %v4273 = vpop.permute.xlu0 %4272
  %4274 = vrot.lane.b32.xlu0 %v4047, 64
  %v4275 = vpop.permute.xlu0 %4274
  %4276 = vrot.lane.b32.xlu0 %v4048, 64
  %v4277 = vpop.permute.xlu0 %4276
  %4278 = vrot.lane.b32.xlu0 %v4049, 64
  %v4279 = vpop.permute.xlu0 %4278
  %4280 = vrot.lane.b32.xlu0 %v4050, 64
  %v4281 = vpop.permute.xlu0 %4280
  %vm4359 = vcmask 781824
  %4360 = vst.msk [vmem:[#allocation3] sm:$0xf] %vm4359, %v4129
  %4361 = vst.msk [vmem:[#allocation3 + $0xc] sm:$0xf] %vm4359, %v4131
  %4362 = vst.msk [vmem:[#allocation3 + $0x18] sm:$0xf] %vm4359, %v4133
  %4363 = vst.msk [vmem:[#allocation3 + $0x24] sm:$0xf] %vm4359, %v4135
  %4364 = vst.msk [vmem:[#allocation3 + $0x30] sm:$0xf] %vm4359, %v4137
  %4365 = vst.msk [vmem:[#allocation3 + $0x3c] sm:$0xf] %vm4359, %v4139
  %4366 = vst.msk [vmem:[#allocation3 + $0x48] sm:$0xf] %vm4359, %v4141
  %4367 = vst.msk [vmem:[#allocation3 + $0x54] sm:$0xf] %vm4359, %v4143
  %4368 = vst.msk [vmem:[#allocation3 + $0x60] sm:$0xf] %vm4359, %v4145
  %4369 = vst.msk [vmem:[#allocation3 + $0x6c] sm:$0xf] %vm4359, %v4147
  %4370 = vst.msk [vmem:[#allocation3 + $0x78] sm:$0xf] %vm4359, %v4149
  %4371 = vst.msk [vmem:[#allocation3 + $0x84] sm:$0xf] %vm4359, %v4151
  %4372 = vst.msk [vmem:[#allocation3 + $0x90] sm:$0xf] %vm4359, %v4153
  %4373 = vst.msk [vmem:[#allocation3 + $0x9c] sm:$0xf] %vm4359, %v4155
  %4374 = vst.msk [vmem:[#allocation3 + $0xa8] sm:$0xf] %vm4359, %v4157
  %4375 = vst.msk [vmem:[#allocation3 + $0xb4] sm:$0xf] %vm4359, %v4159
  %4376 = vst.msk [vmem:[#allocation3 + $0xc0] sm:$0xf] %vm4359, %v4161
  %4377 = vst.msk [vmem:[#allocation3 + $0xcc] sm:$0xf] %vm4359, %v4163
  %4378 = vst.msk [vmem:[#allocation3 + $0xd8] sm:$0xf] %vm4359, %v4165
  %4379 = vst.msk [vmem:[#allocation3 + $0xe4] sm:$0xf] %vm4359, %v4167
  %4380 = vst.msk [vmem:[#allocation3 + $0xf0] sm:$0xf] %vm4359, %v4169
  %4381 = vst.msk [vmem:[#allocation3 + $0xfc] sm:$0xf] %vm4359, %v4171
  %4382 = vst.msk [vmem:[#allocation3 + $0x108] sm:$0xf] %vm4359, %v4173
  %4383 = vst.msk [vmem:[#allocation3 + $0x114] sm:$0xf] %vm4359, %v4175
  %4384 = vst.msk [vmem:[#allocation3 + $0x120] sm:$0xf] %vm4359, %v4177
  %4385 = vst.msk [vmem:[#allocation3 + $0x12c] sm:$0xf] %vm4359, %v4179
  %4386 = vst.msk [vmem:[#allocation3 + $0x138] sm:$0xf] %vm4359, %v4181
  %4387 = vst.msk [vmem:[#allocation3 + $0x144] sm:$0xf] %vm4359, %v4183
  %4388 = vst.msk [vmem:[#allocation3 + $0x150] sm:$0xf] %vm4359, %v4185
  %4389 = vst.msk [vmem:[#allocation3 + $0x15c] sm:$0xf] %vm4359, %v4187
  %4390 = vst.msk [vmem:[#allocation3 + $0x168] sm:$0xf] %vm4359, %v4189
  %4391 = vst.msk [vmem:[#allocation3 + $0x174] sm:$0xf] %vm4359, %v4191
  %4392 = vst.msk [vmem:[#allocation3 + $0x180] sm:$0xf] %vm4359, %v4193
  %4393 = vst.msk [vmem:[#allocation3 + $0x18c] sm:$0xf] %vm4359, %v4195
  %4394 = vst.msk [vmem:[#allocation3 + $0x198] sm:$0xf] %vm4359, %v4197
  %4395 = vst.msk [vmem:[#allocation3 + $0x1a4] sm:$0xf] %vm4359, %v4199
  %4396 = vst.msk [vmem:[#allocation3 + $0x1b0] sm:$0xf] %vm4359, %v4201
  %4397 = vst.msk [vmem:[#allocation3 + $0x1bc] sm:$0xf] %vm4359, %v4203
  %4398 = vst.msk [vmem:[#allocation3 + $0x1c8] sm:$0xf] %vm4359, %v4205
  %4399 = vst.msk [vmem:[#allocation3 + $0x1d4] sm:$0xf] %vm4359, %v4207
  %4400 = vst.msk [vmem:[#allocation3 + $0x1e0] sm:$0xf] %vm4359, %v4209
  %4401 = vst.msk [vmem:[#allocation3 + $0x1ec] sm:$0xf] %vm4359, %v4211
  %4402 = vst.msk [vmem:[#allocation3 + $0x1f8] sm:$0xf] %vm4359, %v4213
  %4403 = vst.msk [vmem:[#allocation3 + $0x204] sm:$0xf] %vm4359, %v4215
  %4404 = vst.msk [vmem:[#allocation3 + $0x210] sm:$0xf] %vm4359, %v4217
  %4405 = vst.msk [vmem:[#allocation3 + $0x21c] sm:$0xf] %vm4359, %v4219
  %4406 = vst.msk [vmem:[#allocation3 + $0x228] sm:$0xf] %vm4359, %v4221
  %4407 = vst.msk [vmem:[#allocation3 + $0x234] sm:$0xf] %vm4359, %v4223
  %4408 = vst.msk [vmem:[#allocation3 + $0x240] sm:$0xf] %vm4359, %v4225
  %4409 = vst.msk [vmem:[#allocation3 + $0x24c] sm:$0xf] %vm4359, %v4227
  %4410 = vst.msk [vmem:[#allocation3 + $0x258] sm:$0xf] %vm4359, %v4229
  %4411 = vst.msk [vmem:[#allocation3 + $0x264] sm:$0xf] %vm4359, %v4231
  %4412 = vst.msk [vmem:[#allocation3 + $0x270] sm:$0xf] %vm4359, %v4233
  %4413 = vst.msk [vmem:[#allocation3 + $0x27c] sm:$0xf] %vm4359, %v4235
  %4414 = vst.msk [vmem:[#allocation3 + $0x288] sm:$0xf] %vm4359, %v4237
  %4415 = vst.msk [vmem:[#allocation3 + $0x294] sm:$0xf] %vm4359, %v4239
  %4416 = vst.msk [vmem:[#allocation3 + $0x2a0] sm:$0xf] %vm4359, %v4241
  %4417 = vst.msk [vmem:[#allocation3 + $0x2ac] sm:$0xf] %vm4359, %v4243
  %4418 = vst.msk [vmem:[#allocation3 + $0x2b8] sm:$0xf] %vm4359, %v4245
  %4419 = vst.msk [vmem:[#allocation3 + $0x2c4] sm:$0xf] %vm4359, %v4247
  %4420 = vst.msk [vmem:[#allocation3 + $0x2d0] sm:$0xf] %vm4359, %v4249
  %4421 = vst.msk [vmem:[#allocation3 + $0x2dc] sm:$0xf] %vm4359, %v4251
  %4422 = vst.msk [vmem:[#allocation3 + $0x2e8] sm:$0xf] %vm4359, %v4253
  %4423 = vst.msk [vmem:[#allocation3 + $0x2f4] sm:$0xf] %vm4359, %v4255
  %4424 = vst.msk [vmem:[#allocation3 + $0x300] sm:$0xf] %vm4359, %v4257
  %4425 = vst.msk [vmem:[#allocation3 + $0x30c] sm:$0xf] %vm4359, %v4259
  %4426 = vst.msk [vmem:[#allocation3 + $0x318] sm:$0xf] %vm4359, %v4261
  %4427 = vst.msk [vmem:[#allocation3 + $0x324] sm:$0xf] %vm4359, %v4263
  %4428 = vst.msk [vmem:[#allocation3 + $0x330] sm:$0xf] %vm4359, %v4265
  %4429 = vst.msk [vmem:[#allocation3 + $0x33c] sm:$0xf] %vm4359, %v4267
  %4430 = vst.msk [vmem:[#allocation3 + $0x348] sm:$0xf] %vm4359, %v4269
  %4431 = vst.msk [vmem:[#allocation3 + $0x354] sm:$0xf] %vm4359, %v4271
  %4432 = vst.msk [vmem:[#allocation3 + $0x360] sm:$0xf] %vm4359, %v4273
  %4433 = vst.msk [vmem:[#allocation3 + $0x36c] sm:$0xf] %vm4359, %v4275
  %4434 = vst.msk [vmem:[#allocation3 + $0x378] sm:$0xf] %vm4359, %v4277
  %4435 = vst.msk [vmem:[#allocation3 + $0x384] sm:$0xf] %vm4359, %v4279
  %vm4436 = vcmask 779776
  %4437 = vst.msk [vmem:[#allocation3 + $0x390] sm:$0x3] %vm4436, %v4281
  %v4438 = vld [vmem:[#allocation2 + $0x8] sm:$0x8]
  %v4439 = vld [vmem:[#allocation2 + $0xc] sm:$0xf]
  %v4440 = vld [vmem:[#allocation2 + $0x10] sm:$0xf]
  %v4441 = vld [vmem:[#allocation2 + $0x14] sm:$0xf]
  %v4442 = vld [vmem:[#allocation2 + $0x18] sm:$0xf]
  %v4443 = vld [vmem:[#allocation2 + $0x1c] sm:$0xf]
  %v4444 = vld [vmem:[#allocation2 + $0x20] sm:$0xf]
  %v4445 = vld [vmem:[#allocation2 + $0x24] sm:$0xf]
  %v4446 = vld [vmem:[#allocation2 + $0x28] sm:$0xf]
  %v4447 = vld [vmem:[#allocation2 + $0x2c] sm:$0xf]
  %v4448 = vld [vmem:[#allocation2 + $0x30] sm:$0xf]
  %v4449 = vld [vmem:[#allocation2 + $0x34] sm:$0xf]
  %v4450 = vld [vmem:[#allocation2 + $0x38] sm:$0xf]
  %v4451 = vld [vmem:[#allocation2 + $0x3c] sm:$0xf]
  %v4452 = vld [vmem:[#allocation2 + $0x40] sm:$0xf]
  %v4453 = vld [vmem:[#allocation2 + $0x44] sm:$0xf]
  %v4454 = vld [vmem:[#allocation2 + $0x48] sm:$0xf]
  %v4455 = vld [vmem:[#allocation2 + $0x4c] sm:$0xf]
  %v4456 = vld [vmem:[#allocation2 + $0x50] sm:$0xf]
  %v4457 = vld [vmem:[#allocation2 + $0x54] sm:$0xf]
  %v4458 = vld [vmem:[#allocation2 + $0x58] sm:$0xf]
  %v4459 = vld [vmem:[#allocation2 + $0x5c] sm:$0xf]
  %v4460 = vld [vmem:[#allocation2 + $0x60] sm:$0xf]
  %v4461 = vld [vmem:[#allocation2 + $0x64] sm:$0xf]
  %v4462 = vld [vmem:[#allocation2 + $0x68] sm:$0xf]
  %v4463 = vld [vmem:[#allocation2 + $0x6c] sm:$0xf]
  %v4464 = vld [vmem:[#allocation2 + $0x70] sm:$0xf]
  %v4465 = vld [vmem:[#allocation2 + $0x74] sm:$0xf]
  %v4466 = vld [vmem:[#allocation2 + $0x78] sm:$0xf]
  %v4467 = vld [vmem:[#allocation2 + $0x7c] sm:$0xf]
  %v4468 = vld [vmem:[#allocation2 + $0x80] sm:$0xf]
  %v4469 = vld [vmem:[#allocation2 + $0x84] sm:$0xf]
  %v4470 = vld [vmem:[#allocation2 + $0x88] sm:$0xf]
  %v4471 = vld [vmem:[#allocation2 + $0x8c] sm:$0xf]
  %v4472 = vld [vmem:[#allocation2 + $0x90] sm:$0xf]
  %v4473 = vld [vmem:[#allocation2 + $0x94] sm:$0xf]
  %v4474 = vld [vmem:[#allocation2 + $0x98] sm:$0xf]
  %v4475 = vld [vmem:[#allocation2 + $0x9c] sm:$0xf]
  %v4476 = vld [vmem:[#allocation2 + $0xa0] sm:$0xf]
  %v4477 = vld [vmem:[#allocation2 + $0xa4] sm:$0xf]
  %v4478 = vld [vmem:[#allocation2 + $0xa8] sm:$0xf]
  %v4479 = vld [vmem:[#allocation2 + $0xac] sm:$0xf]
  %v4480 = vld [vmem:[#allocation2 + $0xb0] sm:$0xf]
  %v4481 = vld [vmem:[#allocation2 + $0xb4] sm:$0xf]
  %v4482 = vld [vmem:[#allocation2 + $0xb8] sm:$0xf]
  %v4483 = vld [vmem:[#allocation2 + $0xbc] sm:$0xf]
  %v4484 = vld [vmem:[#allocation2 + $0xc0] sm:$0xf]
  %v4485 = vld [vmem:[#allocation2 + $0xc4] sm:$0xf]
  %v4486 = vld [vmem:[#allocation2 + $0xc8] sm:$0xf]
  %v4487 = vld [vmem:[#allocation2 + $0xcc] sm:$0xf]
  %v4488 = vld [vmem:[#allocation2 + $0xd0] sm:$0xf]
  %v4489 = vld [vmem:[#allocation2 + $0xd4] sm:$0xf]
  %v4490 = vld [vmem:[#allocation2 + $0xd8] sm:$0xf]
  %v4491 = vld [vmem:[#allocation2 + $0xdc] sm:$0xf]
  %v4492 = vld [vmem:[#allocation2 + $0xe0] sm:$0xf]
  %v4493 = vld [vmem:[#allocation2 + $0xe4] sm:$0xf]
  %v4494 = vld [vmem:[#allocation2 + $0xe8] sm:$0xf]
  %v4495 = vld [vmem:[#allocation2 + $0xec] sm:$0xf]
  %v4496 = vld [vmem:[#allocation2 + $0xf0] sm:$0xf]
  %v4497 = vld [vmem:[#allocation2 + $0xf4] sm:$0xf]
  %v4498 = vld [vmem:[#allocation2 + $0xf8] sm:$0xf]
  %v4499 = vld [vmem:[#allocation2 + $0xfc] sm:$0xf]
  %v4500 = vld [vmem:[#allocation2 + $0x100] sm:$0xf]
  %v4501 = vld [vmem:[#allocation2 + $0x104] sm:$0xf]
  %v4502 = vld [vmem:[#allocation2 + $0x108] sm:$0xf]
  %v4503 = vld [vmem:[#allocation2 + $0x10c] sm:$0xf]
  %v4504 = vld [vmem:[#allocation2 + $0x110] sm:$0xf]
  %v4505 = vld [vmem:[#allocation2 + $0x114] sm:$0xf]
  %v4506 = vld [vmem:[#allocation2 + $0x118] sm:$0xf]
  %v4507 = vld [vmem:[#allocation2 + $0x11c] sm:$0xf]
  %v4508 = vld [vmem:[#allocation2 + $0x120] sm:$0xf]
  %v4509 = vld [vmem:[#allocation2 + $0x124] sm:$0xf]
  %v4510 = vld [vmem:[#allocation2 + $0x128] sm:$0xf]
  %v4511 = vld [vmem:[#allocation2 + $0x12c] sm:$0xf]
  %v4512 = vld [vmem:[#allocation2 + $0x130] sm:$0xf]
  %v4513 = vld [vmem:[#allocation2 + $0x134] sm:$0xf]
  %v4514 = vld [vmem:[#allocation2 + $0x138] sm:$0xf]
  %v4515 = vld [vmem:[#allocation2 + $0x13c] sm:$0x3]
  %v4517 = vshrl.u32 %v4438, 16
  %v4519 = vrot.slane %v4517, 7
  %v4520 = vrot.slane %v4519, 4
  %v4522 = vshrl.u32 %v4439, 16
  %v4524 = vrot.slane %v4522, 7
  %v4525 = vshll.u32 %v4439, 16
  %v4527 = vor.u32 %v4524, %v4525
  %v4528 = vsel %vm2966, %v4520, %v4527
  %v4529 = vrot.slane %v4524, 4
  %v4531 = vshrl.u32 %v4440, 16
  %v4533 = vrot.slane %v4531, 7
  %v4534 = vshll.u32 %v4440, 16
  %v4536 = vor.u32 %v4533, %v4534
  %v4537 = vsel %vm2966, %v4529, %v4536
  %v4538 = vrot.slane %v4533, 4
  %v4540 = vshrl.u32 %v4441, 16
  %v4542 = vrot.slane %v4540, 7
  %v4543 = vshll.u32 %v4441, 16
  %v4545 = vor.u32 %v4542, %v4543
  %v4546 = vsel %vm2966, %v4538, %v4545
  %v4547 = vrot.slane %v4542, 4
  %v4549 = vshrl.u32 %v4442, 16
  %v4551 = vrot.slane %v4549, 7
  %v4552 = vshll.u32 %v4442, 16
  %v4554 = vor.u32 %v4551, %v4552
  %v4555 = vsel %vm2966, %v4547, %v4554
  %v4556 = vrot.slane %v4551, 4
  %v4558 = vshrl.u32 %v4443, 16
  %v4560 = vrot.slane %v4558, 7
  %v4561 = vshll.u32 %v4443, 16
  %v4563 = vor.u32 %v4560, %v4561
  %v4564 = vsel %vm2966, %v4556, %v4563
  %v4565 = vrot.slane %v4560, 4
  %v4567 = vshrl.u32 %v4444, 16
  %v4569 = vrot.slane %v4567, 7
  %v4570 = vshll.u32 %v4444, 16
  %v4572 = vor.u32 %v4569, %v4570
  %v4573 = vsel %vm2966, %v4565, %v4572
  %v4574 = vrot.slane %v4569, 4
  %v4576 = vshrl.u32 %v4445, 16
  %v4578 = vrot.slane %v4576, 7
  %v4579 = vshll.u32 %v4445, 16
  %v4581 = vor.u32 %v4578, %v4579
  %v4582 = vsel %vm2966, %v4574, %v4581
  %v4583 = vrot.slane %v4578, 4
  %v4585 = vshrl.u32 %v4446, 16
  %v4587 = vrot.slane %v4585, 7
  %v4588 = vshll.u32 %v4446, 16
  %v4590 = vor.u32 %v4587, %v4588
  %v4591 = vsel %vm2966, %v4583, %v4590
  %v4592 = vrot.slane %v4587, 4
  %v4594 = vshrl.u32 %v4447, 16
  %v4596 = vrot.slane %v4594, 7
  %v4597 = vshll.u32 %v4447, 16
  %v4599 = vor.u32 %v4596, %v4597
  %v4600 = vsel %vm2966, %v4592, %v4599
  %v4601 = vrot.slane %v4596, 4
  %v4603 = vshrl.u32 %v4448, 16
  %v4605 = vrot.slane %v4603, 7
  %v4606 = vshll.u32 %v4448, 16
  %v4608 = vor.u32 %v4605, %v4606
  %v4609 = vsel %vm2966, %v4601, %v4608
  %v4610 = vrot.slane %v4605, 4
  %v4612 = vshrl.u32 %v4449, 16
  %v4614 = vrot.slane %v4612, 7
  %v4615 = vshll.u32 %v4449, 16
  %v4617 = vor.u32 %v4614, %v4615
  %v4618 = vsel %vm2966, %v4610, %v4617
  %v4619 = vrot.slane %v4614, 4
  %v4621 = vshrl.u32 %v4450, 16
  %v4623 = vrot.slane %v4621, 7
  %v4624 = vshll.u32 %v4450, 16
  %v4626 = vor.u32 %v4623, %v4624
  %v4627 = vsel %vm2966, %v4619, %v4626
  %v4628 = vrot.slane %v4623, 4
  %v4630 = vshrl.u32 %v4451, 16
  %v4632 = vrot.slane %v4630, 7
  %v4633 = vshll.u32 %v4451, 16
  %v4635 = vor.u32 %v4632, %v4633
  %v4636 = vsel %vm2966, %v4628, %v4635
  %v4637 = vrot.slane %v4632, 4
  %v4639 = vshrl.u32 %v4452, 16
  %v4641 = vrot.slane %v4639, 7
  %v4642 = vshll.u32 %v4452, 16
  %v4644 = vor.u32 %v4641, %v4642
  %v4645 = vsel %vm2966, %v4637, %v4644
  %v4646 = vrot.slane %v4641, 4
  %v4648 = vshrl.u32 %v4453, 16
  %v4650 = vrot.slane %v4648, 7
  %v4651 = vshll.u32 %v4453, 16
  %v4653 = vor.u32 %v4650, %v4651
  %v4654 = vsel %vm2966, %v4646, %v4653
  %v4655 = vrot.slane %v4650, 4
  %v4657 = vshrl.u32 %v4454, 16
  %v4659 = vrot.slane %v4657, 7
  %v4660 = vshll.u32 %v4454, 16
  %v4662 = vor.u32 %v4659, %v4660
  %v4663 = vsel %vm2966, %v4655, %v4662
  %v4664 = vrot.slane %v4659, 4
  %v4666 = vshrl.u32 %v4455, 16
  %v4668 = vrot.slane %v4666, 7
  %v4669 = vshll.u32 %v4455, 16
  %v4671 = vor.u32 %v4668, %v4669
  %v4672 = vsel %vm2966, %v4664, %v4671
  %v4673 = vrot.slane %v4668, 4
  %v4675 = vshrl.u32 %v4456, 16
  %v4677 = vrot.slane %v4675, 7
  %v4678 = vshll.u32 %v4456, 16
  %v4680 = vor.u32 %v4677, %v4678
  %v4681 = vsel %vm2966, %v4673, %v4680
  %v4682 = vrot.slane %v4677, 4
  %v4684 = vshrl.u32 %v4457, 16
  %v4686 = vrot.slane %v4684, 7
  %v4687 = vshll.u32 %v4457, 16
  %v4689 = vor.u32 %v4686, %v4687
  %v4690 = vsel %vm2966, %v4682, %v4689
  %v4691 = vrot.slane %v4686, 4
  %v4693 = vshrl.u32 %v4458, 16
  %v4695 = vrot.slane %v4693, 7
  %v4696 = vshll.u32 %v4458, 16
  %v4698 = vor.u32 %v4695, %v4696
  %v4699 = vsel %vm2966, %v4691, %v4698
  %v4700 = vrot.slane %v4695, 4
  %v4702 = vshrl.u32 %v4459, 16
  %v4704 = vrot.slane %v4702, 7
  %v4705 = vshll.u32 %v4459, 16
  %v4707 = vor.u32 %v4704, %v4705
  %v4708 = vsel %vm2966, %v4700, %v4707
  %v4709 = vrot.slane %v4704, 4
  %v4711 = vshrl.u32 %v4460, 16
  %v4713 = vrot.slane %v4711, 7
  %v4714 = vshll.u32 %v4460, 16
  %v4716 = vor.u32 %v4713, %v4714
  %v4717 = vsel %vm2966, %v4709, %v4716
  %v4718 = vrot.slane %v4713, 4
  %v4720 = vshrl.u32 %v4461, 16
  %v4722 = vrot.slane %v4720, 7
  %v4723 = vshll.u32 %v4461, 16
  %v4725 = vor.u32 %v4722, %v4723
  %v4726 = vsel %vm2966, %v4718, %v4725
  %v4727 = vrot.slane %v4722, 4
  %v4729 = vshrl.u32 %v4462, 16
  %v4731 = vrot.slane %v4729, 7
  %v4732 = vshll.u32 %v4462, 16
  %v4734 = vor.u32 %v4731, %v4732
  %v4735 = vsel %vm2966, %v4727, %v4734
  %v4736 = vrot.slane %v4731, 4
  %v4738 = vshrl.u32 %v4463, 16
  %v4740 = vrot.slane %v4738, 7
  %v4741 = vshll.u32 %v4463, 16
  %v4743 = vor.u32 %v4740, %v4741
  %v4744 = vsel %vm2966, %v4736, %v4743
  %v4745 = vrot.slane %v4740, 4
  %v4747 = vshrl.u32 %v4464, 16
  %v4749 = vrot.slane %v4747, 7
  %v4750 = vshll.u32 %v4464, 16
  %v4752 = vor.u32 %v4749, %v4750
  %v4753 = vsel %vm2966, %v4745, %v4752
  %v4754 = vrot.slane %v4749, 4
  %v4756 = vshrl.u32 %v4465, 16
  %v4758 = vrot.slane %v4756, 7
  %v4759 = vshll.u32 %v4465, 16
  %v4761 = vor.u32 %v4758, %v4759
  %v4762 = vsel %vm2966, %v4754, %v4761
  %v4763 = vrot.slane %v4758, 4
  %v4765 = vshrl.u32 %v4466, 16
  %v4767 = vrot.slane %v4765, 7
  %v4768 = vshll.u32 %v4466, 16
  %v4770 = vor.u32 %v4767, %v4768
  %v4771 = vsel %vm2966, %v4763, %v4770
  %v4772 = vrot.slane %v4767, 4
  %v4774 = vshrl.u32 %v4467, 16
  %v4776 = vrot.slane %v4774, 7
  %v4777 = vshll.u32 %v4467, 16
  %v4779 = vor.u32 %v4776, %v4777
  %v4780 = vsel %vm2966, %v4772, %v4779
  %v4781 = vrot.slane %v4776, 4
  %v4783 = vshrl.u32 %v4468, 16
  %v4785 = vrot.slane %v4783, 7
  %v4786 = vshll.u32 %v4468, 16
  %v4788 = vor.u32 %v4785, %v4786
  %v4789 = vsel %vm2966, %v4781, %v4788
  %v4790 = vrot.slane %v4785, 4
  %v4792 = vshrl.u32 %v4469, 16
  %v4794 = vrot.slane %v4792, 7
  %v4795 = vshll.u32 %v4469, 16
  %v4797 = vor.u32 %v4794, %v4795
  %v4798 = vsel %vm2966, %v4790, %v4797
  %v4799 = vrot.slane %v4794, 4
  %v4801 = vshrl.u32 %v4470, 16
  %v4803 = vrot.slane %v4801, 7
  %v4804 = vshll.u32 %v4470, 16
  %v4806 = vor.u32 %v4803, %v4804
  %v4807 = vsel %vm2966, %v4799, %v4806
  %v4808 = vrot.slane %v4803, 4
  %v4810 = vshrl.u32 %v4471, 16
  %v4812 = vrot.slane %v4810, 7
  %v4813 = vshll.u32 %v4471, 16
  %v4815 = vor.u32 %v4812, %v4813
  %v4816 = vsel %vm2966, %v4808, %v4815
  %v4817 = vrot.slane %v4812, 4
  %v4819 = vshrl.u32 %v4472, 16
  %v4821 = vrot.slane %v4819, 7
  %v4822 = vshll.u32 %v4472, 16
  %v4824 = vor.u32 %v4821, %v4822
  %v4825 = vsel %vm2966, %v4817, %v4824
  %v4826 = vrot.slane %v4821, 4
  %v4828 = vshrl.u32 %v4473, 16
  %v4830 = vrot.slane %v4828, 7
  %v4831 = vshll.u32 %v4473, 16
  %v4833 = vor.u32 %v4830, %v4831
  %v4834 = vsel %vm2966, %v4826, %v4833
  %v4835 = vrot.slane %v4830, 4
  %v4837 = vshrl.u32 %v4474, 16
  %v4839 = vrot.slane %v4837, 7
  %v4840 = vshll.u32 %v4474, 16
  %v4842 = vor.u32 %v4839, %v4840
  %v4843 = vsel %vm2966, %v4835, %v4842
  %v4844 = vrot.slane %v4839, 4
  %v4846 = vshrl.u32 %v4475, 16
  %v4848 = vrot.slane %v4846, 7
  %v4849 = vshll.u32 %v4475, 16
  %v4851 = vor.u32 %v4848, %v4849
  %v4852 = vsel %vm2966, %v4844, %v4851
  %v4853 = vrot.slane %v4848, 4
  %v4855 = vshrl.u32 %v4476, 16
  %v4857 = vrot.slane %v4855, 7
  %v4858 = vshll.u32 %v4476, 16
  %v4860 = vor.u32 %v4857, %v4858
  %v4861 = vsel %vm2966, %v4853, %v4860
  %v4862 = vrot.slane %v4857, 4
  %v4864 = vshrl.u32 %v4477, 16
  %v4866 = vrot.slane %v4864, 7
  %v4867 = vshll.u32 %v4477, 16
  %v4869 = vor.u32 %v4866, %v4867
  %v4870 = vsel %vm2966, %v4862, %v4869
  %v4871 = vrot.slane %v4866, 4
  %v4873 = vshrl.u32 %v4478, 16
  %v4875 = vrot.slane %v4873, 7
  %v4876 = vshll.u32 %v4478, 16
  %v4878 = vor.u32 %v4875, %v4876
  %v4879 = vsel %vm2966, %v4871, %v4878
  %v4880 = vrot.slane %v4875, 4
  %v4882 = vshrl.u32 %v4479, 16
  %v4884 = vrot.slane %v4882, 7
  %v4885 = vshll.u32 %v4479, 16
  %v4887 = vor.u32 %v4884, %v4885
  %v4888 = vsel %vm2966, %v4880, %v4887
  %v4889 = vrot.slane %v4884, 4
  %v4891 = vshrl.u32 %v4480, 16
  %v4893 = vrot.slane %v4891, 7
  %v4894 = vshll.u32 %v4480, 16
  %v4896 = vor.u32 %v4893, %v4894
  %v4897 = vsel %vm2966, %v4889, %v4896
  %v4898 = vrot.slane %v4893, 4
  %v4900 = vshrl.u32 %v4481, 16
  %v4902 = vrot.slane %v4900, 7
  %v4903 = vshll.u32 %v4481, 16
  %v4905 = vor.u32 %v4902, %v4903
  %v4906 = vsel %vm2966, %v4898, %v4905
  %v4907 = vrot.slane %v4902, 4
  %v4909 = vshrl.u32 %v4482, 16
  %v4911 = vrot.slane %v4909, 7
  %v4912 = vshll.u32 %v4482, 16
  %v4914 = vor.u32 %v4911, %v4912
  %v4915 = vsel %vm2966, %v4907, %v4914
  %v4916 = vrot.slane %v4911, 4
  %v4918 = vshrl.u32 %v4483, 16
  %v4920 = vrot.slane %v4918, 7
  %v4921 = vshll.u32 %v4483, 16
  %v4923 = vor.u32 %v4920, %v4921
  %v4924 = vsel %vm2966, %v4916, %v4923
  %v4925 = vrot.slane %v4920, 4
  %v4927 = vshrl.u32 %v4484, 16
  %v4929 = vrot.slane %v4927, 7
  %v4930 = vshll.u32 %v4484, 16
  %v4932 = vor.u32 %v4929, %v4930
  %v4933 = vsel %vm2966, %v4925, %v4932
  %v4934 = vrot.slane %v4929, 4
  %v4936 = vshrl.u32 %v4485, 16
  %v4938 = vrot.slane %v4936, 7
  %v4939 = vshll.u32 %v4485, 16
  %v4941 = vor.u32 %v4938, %v4939
  %v4942 = vsel %vm2966, %v4934, %v4941
  %v4943 = vrot.slane %v4938, 4
  %v4945 = vshrl.u32 %v4486, 16
  %v4947 = vrot.slane %v4945, 7
  %v4948 = vshll.u32 %v4486, 16
  %v4950 = vor.u32 %v4947, %v4948
  %v4951 = vsel %vm2966, %v4943, %v4950
  %v4952 = vrot.slane %v4947, 4
  %v4954 = vshrl.u32 %v4487, 16
  %v4956 = vrot.slane %v4954, 7
  %v4957 = vshll.u32 %v4487, 16
  %v4959 = vor.u32 %v4956, %v4957
  %v4960 = vsel %vm2966, %v4952, %v4959
  %v4961 = vrot.slane %v4956, 4
  %v4963 = vshrl.u32 %v4488, 16
  %v4965 = vrot.slane %v4963, 7
  %v4966 = vshll.u32 %v4488, 16
  %v4968 = vor.u32 %v4965, %v4966
  %v4969 = vsel %vm2966, %v4961, %v4968
  %v4970 = vrot.slane %v4965, 4
  %v4972 = vshrl.u32 %v4489, 16
  %v4974 = vrot.slane %v4972, 7
  %v4975 = vshll.u32 %v4489, 16
  %v4977 = vor.u32 %v4974, %v4975
  %v4978 = vsel %vm2966, %v4970, %v4977
  %v4979 = vrot.slane %v4974, 4
  %v4981 = vshrl.u32 %v4490, 16
  %v4983 = vrot.slane %v4981, 7
  %v4984 = vshll.u32 %v4490, 16
  %v4986 = vor.u32 %v4983, %v4984
  %v4987 = vsel %vm2966, %v4979, %v4986
  %v4988 = vrot.slane %v4983, 4
  %v4990 = vshrl.u32 %v4491, 16
  %v4992 = vrot.slane %v4990, 7
  %v4993 = vshll.u32 %v4491, 16
  %v4995 = vor.u32 %v4992, %v4993
  %v4996 = vsel %vm2966, %v4988, %v4995
  %v4997 = vrot.slane %v4992, 4
  %v4999 = vshrl.u32 %v4492, 16
  %v5001 = vrot.slane %v4999, 7
  %v5002 = vshll.u32 %v4492, 16
  %v5004 = vor.u32 %v5001, %v5002
  %v5005 = vsel %vm2966, %v4997, %v5004
  %v5006 = vrot.slane %v5001, 4
  %v5008 = vshrl.u32 %v4493, 16
  %v5010 = vrot.slane %v5008, 7
  %v5011 = vshll.u32 %v4493, 16
  %v5013 = vor.u32 %v5010, %v5011
  %v5014 = vsel %vm2966, %v5006, %v5013
  %v5015 = vrot.slane %v5010, 4
  %v5017 = vshrl.u32 %v4494, 16
  %v5019 = vrot.slane %v5017, 7
  %v5020 = vshll.u32 %v4494, 16
  %v5022 = vor.u32 %v5019, %v5020
  %v5023 = vsel %vm2966, %v5015, %v5022
  %v5024 = vrot.slane %v5019, 4
  %v5026 = vshrl.u32 %v4495, 16
  %v5028 = vrot.slane %v5026, 7
  %v5029 = vshll.u32 %v4495, 16
  %v5031 = vor.u32 %v5028, %v5029
  %v5032 = vsel %vm2966, %v5024, %v5031
  %v5033 = vrot.slane %v5028, 4
  %v5035 = vshrl.u32 %v4496, 16
  %v5037 = vrot.slane %v5035, 7
  %v5038 = vshll.u32 %v4496, 16
  %v5040 = vor.u32 %v5037, %v5038
  %v5041 = vsel %vm2966, %v5033, %v5040
  %v5042 = vrot.slane %v5037, 4
  %v5044 = vshrl.u32 %v4497, 16
  %v5046 = vrot.slane %v5044, 7
  %v5047 = vshll.u32 %v4497, 16
  %v5049 = vor.u32 %v5046, %v5047
  %v5050 = vsel %vm2966, %v5042, %v5049
  %v5051 = vrot.slane %v5046, 4
  %v5053 = vshrl.u32 %v4498, 16
  %v5055 = vrot.slane %v5053, 7
  %v5056 = vshll.u32 %v4498, 16
  %v5058 = vor.u32 %v5055, %v5056
  %v5059 = vsel %vm2966, %v5051, %v5058
  %v5060 = vrot.slane %v5055, 4
  %v5062 = vshrl.u32 %v4499, 16
  %v5064 = vrot.slane %v5062, 7
  %v5065 = vshll.u32 %v4499, 16
  %v5067 = vor.u32 %v5064, %v5065
  %v5068 = vsel %vm2966, %v5060, %v5067
  %v5069 = vrot.slane %v5064, 4
  %v5071 = vshrl.u32 %v4500, 16
  %v5073 = vrot.slane %v5071, 7
  %v5074 = vshll.u32 %v4500, 16
  %v5076 = vor.u32 %v5073, %v5074
  %v5077 = vsel %vm2966, %v5069, %v5076
  %v5078 = vrot.slane %v5073, 4
  %v5080 = vshrl.u32 %v4501, 16
  %v5082 = vrot.slane %v5080, 7
  %v5083 = vshll.u32 %v4501, 16
  %v5085 = vor.u32 %v5082, %v5083
  %v5086 = vsel %vm2966, %v5078, %v5085
  %v5087 = vrot.slane %v5082, 4
  %v5089 = vshrl.u32 %v4502, 16
  %v5091 = vrot.slane %v5089, 7
  %v5092 = vshll.u32 %v4502, 16
  %v5094 = vor.u32 %v5091, %v5092
  %v5095 = vsel %vm2966, %v5087, %v5094
  %v5096 = vrot.slane %v5091, 4
  %v5098 = vshrl.u32 %v4503, 16
  %v5100 = vrot.slane %v5098, 7
  %v5101 = vshll.u32 %v4503, 16
  %v5103 = vor.u32 %v5100, %v5101
  %v5104 = vsel %vm2966, %v5096, %v5103
  %v5105 = vrot.slane %v5100, 4
  %v5107 = vshrl.u32 %v4504, 16
  %v5109 = vrot.slane %v5107, 7
  %v5110 = vshll.u32 %v4504, 16
  %v5112 = vor.u32 %v5109, %v5110
  %v5113 = vsel %vm2966, %v5105, %v5112
  %v5114 = vrot.slane %v5109, 4
  %v5116 = vshrl.u32 %v4505, 16
  %v5118 = vrot.slane %v5116, 7
  %v5119 = vshll.u32 %v4505, 16
  %v5121 = vor.u32 %v5118, %v5119
  %v5122 = vsel %vm2966, %v5114, %v5121
  %v5123 = vrot.slane %v5118, 4
  %v5125 = vshrl.u32 %v4506, 16
  %v5127 = vrot.slane %v5125, 7
  %v5128 = vshll.u32 %v4506, 16
  %v5130 = vor.u32 %v5127, %v5128
  %v5131 = vsel %vm2966, %v5123, %v5130
  %v5132 = vrot.slane %v5127, 4
  %v5134 = vshrl.u32 %v4507, 16
  %v5136 = vrot.slane %v5134, 7
  %v5137 = vshll.u32 %v4507, 16
  %v5139 = vor.u32 %v5136, %v5137
  %v5140 = vsel %vm2966, %v5132, %v5139
  %v5141 = vrot.slane %v5136, 4
  %v5143 = vshrl.u32 %v4508, 16
  %v5145 = vrot.slane %v5143, 7
  %v5146 = vshll.u32 %v4508, 16
  %v5148 = vor.u32 %v5145, %v5146
  %v5149 = vsel %vm2966, %v5141, %v5148
  %v5150 = vrot.slane %v5145, 4
  %v5152 = vshrl.u32 %v4509, 16
  %v5154 = vrot.slane %v5152, 7
  %v5155 = vshll.u32 %v4509, 16
  %v5157 = vor.u32 %v5154, %v5155
  %v5158 = vsel %vm2966, %v5150, %v5157
  %v5159 = vrot.slane %v5154, 4
  %v5161 = vshrl.u32 %v4510, 16
  %v5163 = vrot.slane %v5161, 7
  %v5164 = vshll.u32 %v4510, 16
  %v5166 = vor.u32 %v5163, %v5164
  %v5167 = vsel %vm2966, %v5159, %v5166
  %v5168 = vrot.slane %v5163, 4
  %v5170 = vshrl.u32 %v4511, 16
  %v5172 = vrot.slane %v5170, 7
  %v5173 = vshll.u32 %v4511, 16
  %v5175 = vor.u32 %v5172, %v5173
  %v5176 = vsel %vm2966, %v5168, %v5175
  %v5177 = vrot.slane %v5172, 4
  %v5179 = vshrl.u32 %v4512, 16
  %v5181 = vrot.slane %v5179, 7
  %v5182 = vshll.u32 %v4512, 16
  %v5184 = vor.u32 %v5181, %v5182
  %v5185 = vsel %vm2966, %v5177, %v5184
  %v5186 = vrot.slane %v5181, 4
  %v5188 = vshrl.u32 %v4513, 16
  %v5190 = vrot.slane %v5188, 7
  %v5191 = vshll.u32 %v4513, 16
  %v5193 = vor.u32 %v5190, %v5191
  %v5194 = vsel %vm2966, %v5186, %v5193
  %v5195 = vrot.slane %v5190, 4
  %v5197 = vshrl.u32 %v4514, 16
  %v5199 = vrot.slane %v5197, 7
  %v5200 = vshll.u32 %v4514, 16
  %v5202 = vor.u32 %v5199, %v5200
  %v5203 = vsel %vm2966, %v5195, %v5202
  %v5204 = vrot.slane %v5199, 4
  %v5206 = vshrl.u32 %v4515, 16
  %v5208 = vrot.slane %v5206, 7
  %v5209 = vshll.u32 %v4515, 16
  %v5211 = vor.u32 %v5208, %v5209
  %v5212 = vsel %vm2966, %v5204, %v5211
  %5213 = vrot.lane.b32.xlu0 %v4528, 96
  %v5214 = vpop.permute.xlu0 %5213
  %5215 = vrot.lane.b32.xlu0 %v4537, 96
  %v5216 = vpop.permute.xlu0 %5215
  %5217 = vrot.lane.b32.xlu0 %v4546, 96
  %v5218 = vpop.permute.xlu0 %5217
  %5219 = vrot.lane.b32.xlu0 %v4555, 96
  %v5220 = vpop.permute.xlu0 %5219
  %5221 = vrot.lane.b32.xlu0 %v4564, 96
  %v5222 = vpop.permute.xlu0 %5221
  %5223 = vrot.lane.b32.xlu0 %v4573, 96
  %v5224 = vpop.permute.xlu0 %5223
  %5225 = vrot.lane.b32.xlu0 %v4582, 96
  %v5226 = vpop.permute.xlu0 %5225
  %5227 = vrot.lane.b32.xlu0 %v4591, 96
  %v5228 = vpop.permute.xlu0 %5227
  %5229 = vrot.lane.b32.xlu0 %v4600, 96
  %v5230 = vpop.permute.xlu0 %5229
  %5231 = vrot.lane.b32.xlu0 %v4609, 96
  %v5232 = vpop.permute.xlu0 %5231
  %5233 = vrot.lane.b32.xlu0 %v4618, 96
  %v5234 = vpop.permute.xlu0 %5233
  %5235 = vrot.lane.b32.xlu0 %v4627, 96
  %v5236 = vpop.permute.xlu0 %5235
  %5237 = vrot.lane.b32.xlu0 %v4636, 96
  %v5238 = vpop.permute.xlu0 %5237
  %5239 = vrot.lane.b32.xlu0 %v4645, 96
  %v5240 = vpop.permute.xlu0 %5239
  %5241 = vrot.lane.b32.xlu0 %v4654, 96
  %v5242 = vpop.permute.xlu0 %5241
  %5243 = vrot.lane.b32.xlu0 %v4663, 96
  %v5244 = vpop.permute.xlu0 %5243
  %5245 = vrot.lane.b32.xlu0 %v4672, 96
  %v5246 = vpop.permute.xlu0 %5245
  %5247 = vrot.lane.b32.xlu0 %v4681, 96
  %v5248 = vpop.permute.xlu0 %5247
  %5249 = vrot.lane.b32.xlu0 %v4690, 96
  %v5250 = vpop.permute.xlu0 %5249
  %5251 = vrot.lane.b32.xlu0 %v4699, 96
  %v5252 = vpop.permute.xlu0 %5251
  %5253 = vrot.lane.b32.xlu0 %v4708, 96
  %v5254 = vpop.permute.xlu0 %5253
  %5255 = vrot.lane.b32.xlu0 %v4717, 96
  %v5256 = vpop.permute.xlu0 %5255
  %5257 = vrot.lane.b32.xlu0 %v4726, 96
  %v5258 = vpop.permute.xlu0 %5257
  %5259 = vrot.lane.b32.xlu0 %v4735, 96
  %v5260 = vpop.permute.xlu0 %5259
  %5261 = vrot.lane.b32.xlu0 %v4744, 96
  %v5262 = vpop.permute.xlu0 %5261
  %5263 = vrot.lane.b32.xlu0 %v4753, 96
  %v5264 = vpop.permute.xlu0 %5263
  %5265 = vrot.lane.b32.xlu0 %v4762, 96
  %v5266 = vpop.permute.xlu0 %5265
  %5267 = vrot.lane.b32.xlu0 %v4771, 96
  %v5268 = vpop.permute.xlu0 %5267
  %5269 = vrot.lane.b32.xlu0 %v4780, 96
  %v5270 = vpop.permute.xlu0 %5269
  %5271 = vrot.lane.b32.xlu0 %v4789, 96
  %v5272 = vpop.permute.xlu0 %5271
  %5273 = vrot.lane.b32.xlu0 %v4798, 96
  %v5274 = vpop.permute.xlu0 %5273
  %5275 = vrot.lane.b32.xlu0 %v4807, 96
  %v5276 = vpop.permute.xlu0 %5275
  %5277 = vrot.lane.b32.xlu0 %v4816, 96
  %v5278 = vpop.permute.xlu0 %5277
  %5279 = vrot.lane.b32.xlu0 %v4825, 96
  %v5280 = vpop.permute.xlu0 %5279
  %5281 = vrot.lane.b32.xlu0 %v4834, 96
  %v5282 = vpop.permute.xlu0 %5281
  %5283 = vrot.lane.b32.xlu0 %v4843, 96
  %v5284 = vpop.permute.xlu0 %5283
  %5285 = vrot.lane.b32.xlu0 %v4852, 96
  %v5286 = vpop.permute.xlu0 %5285
  %5287 = vrot.lane.b32.xlu0 %v4861, 96
  %v5288 = vpop.permute.xlu0 %5287
  %5289 = vrot.lane.b32.xlu0 %v4870, 96
  %v5290 = vpop.permute.xlu0 %5289
  %5291 = vrot.lane.b32.xlu0 %v4879, 96
  %v5292 = vpop.permute.xlu0 %5291
  %5293 = vrot.lane.b32.xlu0 %v4888, 96
  %v5294 = vpop.permute.xlu0 %5293
  %5295 = vrot.lane.b32.xlu0 %v4897, 96
  %v5296 = vpop.permute.xlu0 %5295
  %5297 = vrot.lane.b32.xlu0 %v4906, 96
  %v5298 = vpop.permute.xlu0 %5297
  %5299 = vrot.lane.b32.xlu0 %v4915, 96
  %v5300 = vpop.permute.xlu0 %5299
  %5301 = vrot.lane.b32.xlu0 %v4924, 96
  %v5302 = vpop.permute.xlu0 %5301
  %5303 = vrot.lane.b32.xlu0 %v4933, 96
  %v5304 = vpop.permute.xlu0 %5303
  %5305 = vrot.lane.b32.xlu0 %v4942, 96
  %v5306 = vpop.permute.xlu0 %5305
  %5307 = vrot.lane.b32.xlu0 %v4951, 96
  %v5308 = vpop.permute.xlu0 %5307
  %5309 = vrot.lane.b32.xlu0 %v4960, 96
  %v5310 = vpop.permute.xlu0 %5309
  %5311 = vrot.lane.b32.xlu0 %v4969, 96
  %v5312 = vpop.permute.xlu0 %5311
  %5313 = vrot.lane.b32.xlu0 %v4978, 96
  %v5314 = vpop.permute.xlu0 %5313
  %5315 = vrot.lane.b32.xlu0 %v4987, 96
  %v5316 = vpop.permute.xlu0 %5315
  %5317 = vrot.lane.b32.xlu0 %v4996, 96
  %v5318 = vpop.permute.xlu0 %5317
  %5319 = vrot.lane.b32.xlu0 %v5005, 96
  %v5320 = vpop.permute.xlu0 %5319
  %5321 = vrot.lane.b32.xlu0 %v5014, 96
  %v5322 = vpop.permute.xlu0 %5321
  %5323 = vrot.lane.b32.xlu0 %v5023, 96
  %v5324 = vpop.permute.xlu0 %5323
  %5325 = vrot.lane.b32.xlu0 %v5032, 96
  %v5326 = vpop.permute.xlu0 %5325
  %5327 = vrot.lane.b32.xlu0 %v5041, 96
  %v5328 = vpop.permute.xlu0 %5327
  %5329 = vrot.lane.b32.xlu0 %v5050, 96
  %v5330 = vpop.permute.xlu0 %5329
  %5331 = vrot.lane.b32.xlu0 %v5059, 96
  %v5332 = vpop.permute.xlu0 %5331
  %5333 = vrot.lane.b32.xlu0 %v5068, 96
  %v5334 = vpop.permute.xlu0 %5333
  %5335 = vrot.lane.b32.xlu0 %v5077, 96
  %v5336 = vpop.permute.xlu0 %5335
  %5337 = vrot.lane.b32.xlu0 %v5086, 96
  %v5338 = vpop.permute.xlu0 %5337
  %5339 = vrot.lane.b32.xlu0 %v5095, 96
  %v5340 = vpop.permute.xlu0 %5339
  %5341 = vrot.lane.b32.xlu0 %v5104, 96
  %v5342 = vpop.permute.xlu0 %5341
  %5343 = vrot.lane.b32.xlu0 %v5113, 96
  %v5344 = vpop.permute.xlu0 %5343
  %5345 = vrot.lane.b32.xlu0 %v5122, 96
  %v5346 = vpop.permute.xlu0 %5345
  %5347 = vrot.lane.b32.xlu0 %v5131, 96
  %v5348 = vpop.permute.xlu0 %5347
  %5349 = vrot.lane.b32.xlu0 %v5140, 96
  %v5350 = vpop.permute.xlu0 %5349
  %5351 = vrot.lane.b32.xlu0 %v5149, 96
  %v5352 = vpop.permute.xlu0 %5351
  %5353 = vrot.lane.b32.xlu0 %v5158, 96
  %v5354 = vpop.permute.xlu0 %5353
  %5355 = vrot.lane.b32.xlu0 %v5167, 96
  %v5356 = vpop.permute.xlu0 %5355
  %5357 = vrot.lane.b32.xlu0 %v5176, 96
  %v5358 = vpop.permute.xlu0 %5357
  %5359 = vrot.lane.b32.xlu0 %v5185, 96
  %v5360 = vpop.permute.xlu0 %5359
  %5361 = vrot.lane.b32.xlu0 %v5194, 96
  %v5362 = vpop.permute.xlu0 %5361
  %5363 = vrot.lane.b32.xlu0 %v5203, 96
  %v5364 = vpop.permute.xlu0 %5363
  %5365 = vrot.lane.b32.xlu0 %v5212, 96
  %v5366 = vpop.permute.xlu0 %5365
  %vm5444 = vcmask 1044224
  %5445 = vst.msk [vmem:[#allocation3] sm:$0xf] %vm5444, %v5214
  %5446 = vst.msk [vmem:[#allocation3 + $0xc] sm:$0xf] %vm5444, %v5216
  %5447 = vst.msk [vmem:[#allocation3 + $0x18] sm:$0xf] %vm5444, %v5218
  %5448 = vst.msk [vmem:[#allocation3 + $0x24] sm:$0xf] %vm5444, %v5220
  %5449 = vst.msk [vmem:[#allocation3 + $0x30] sm:$0xf] %vm5444, %v5222
  %5450 = vst.msk [vmem:[#allocation3 + $0x3c] sm:$0xf] %vm5444, %v5224
  %5451 = vst.msk [vmem:[#allocation3 + $0x48] sm:$0xf] %vm5444, %v5226
  %5452 = vst.msk [vmem:[#allocation3 + $0x54] sm:$0xf] %vm5444, %v5228
  %5453 = vst.msk [vmem:[#allocation3 + $0x60] sm:$0xf] %vm5444, %v5230
  %5454 = vst.msk [vmem:[#allocation3 + $0x6c] sm:$0xf] %vm5444, %v5232
  %5455 = vst.msk [vmem:[#allocation3 + $0x78] sm:$0xf] %vm5444, %v5234
  %5456 = vst.msk [vmem:[#allocation3 + $0x84] sm:$0xf] %vm5444, %v5236
  %5457 = vst.msk [vmem:[#allocation3 + $0x90] sm:$0xf] %vm5444, %v5238
  %5458 = vst.msk [vmem:[#allocation3 + $0x9c] sm:$0xf] %vm5444, %v5240
  %5459 = vst.msk [vmem:[#allocation3 + $0xa8] sm:$0xf] %vm5444, %v5242
  %5460 = vst.msk [vmem:[#allocation3 + $0xb4] sm:$0xf] %vm5444, %v5244
  %5461 = vst.msk [vmem:[#allocation3 + $0xc0] sm:$0xf] %vm5444, %v5246
  %5462 = vst.msk [vmem:[#allocation3 + $0xcc] sm:$0xf] %vm5444, %v5248
  %5463 = vst.msk [vmem:[#allocation3 + $0xd8] sm:$0xf] %vm5444, %v5250
  %5464 = vst.msk [vmem:[#allocation3 + $0xe4] sm:$0xf] %vm5444, %v5252
  %5465 = vst.msk [vmem:[#allocation3 + $0xf0] sm:$0xf] %vm5444, %v5254
  %5466 = vst.msk [vmem:[#allocation3 + $0xfc] sm:$0xf] %vm5444, %v5256
  %5467 = vst.msk [vmem:[#allocation3 + $0x108] sm:$0xf] %vm5444, %v5258
  %5468 = vst.msk [vmem:[#allocation3 + $0x114] sm:$0xf] %vm5444, %v5260
  %5469 = vst.msk [vmem:[#allocation3 + $0x120] sm:$0xf] %vm5444, %v5262
  %5470 = vst.msk [vmem:[#allocation3 + $0x12c] sm:$0xf] %vm5444, %v5264
  %5471 = vst.msk [vmem:[#allocation3 + $0x138] sm:$0xf] %vm5444, %v5266
  %5472 = vst.msk [vmem:[#allocation3 + $0x144] sm:$0xf] %vm5444, %v5268
  %5473 = vst.msk [vmem:[#allocation3 + $0x150] sm:$0xf] %vm5444, %v5270
  %5474 = vst.msk [vmem:[#allocation3 + $0x15c] sm:$0xf] %vm5444, %v5272
  %5475 = vst.msk [vmem:[#allocation3 + $0x168] sm:$0xf] %vm5444, %v5274
  %5476 = vst.msk [vmem:[#allocation3 + $0x174] sm:$0xf] %vm5444, %v5276
  %5477 = vst.msk [vmem:[#allocation3 + $0x180] sm:$0xf] %vm5444, %v5278
  %5478 = vst.msk [vmem:[#allocation3 + $0x18c] sm:$0xf] %vm5444, %v5280
  %5479 = vst.msk [vmem:[#allocation3 + $0x198] sm:$0xf] %vm5444, %v5282
  %5480 = vst.msk [vmem:[#allocation3 + $0x1a4] sm:$0xf] %vm5444, %v5284
  %5481 = vst.msk [vmem:[#allocation3 + $0x1b0] sm:$0xf] %vm5444, %v5286
  %5482 = vst.msk [vmem:[#allocation3 + $0x1bc] sm:$0xf] %vm5444, %v5288
  %5483 = vst.msk [vmem:[#allocation3 + $0x1c8] sm:$0xf] %vm5444, %v5290
  %5484 = vst.msk [vmem:[#allocation3 + $0x1d4] sm:$0xf] %vm5444, %v5292
  %5485 = vst.msk [vmem:[#allocation3 + $0x1e0] sm:$0xf] %vm5444, %v5294
  %5486 = vst.msk [vmem:[#allocation3 + $0x1ec] sm:$0xf] %vm5444, %v5296
  %5487 = vst.msk [vmem:[#allocation3 + $0x1f8] sm:$0xf] %vm5444, %v5298
  %5488 = vst.msk [vmem:[#allocation3 + $0x204] sm:$0xf] %vm5444, %v5300
  %5489 = vst.msk [vmem:[#allocation3 + $0x210] sm:$0xf] %vm5444, %v5302
  %5490 = vst.msk [vmem:[#allocation3 + $0x21c] sm:$0xf] %vm5444, %v5304
  %5491 = vst.msk [vmem:[#allocation3 + $0x228] sm:$0xf] %vm5444, %v5306
  %5492 = vst.msk [vmem:[#allocation3 + $0x234] sm:$0xf] %vm5444, %v5308
  %5493 = vst.msk [vmem:[#allocation3 + $0x240] sm:$0xf] %vm5444, %v5310
  %5494 = vst.msk [vmem:[#allocation3 + $0x24c] sm:$0xf] %vm5444, %v5312
  %5495 = vst.msk [vmem:[#allocation3 + $0x258] sm:$0xf] %vm5444, %v5314
  %5496 = vst.msk [vmem:[#allocation3 + $0x264] sm:$0xf] %vm5444, %v5316
  %5497 = vst.msk [vmem:[#allocation3 + $0x270] sm:$0xf] %vm5444, %v5318
  %5498 = vst.msk [vmem:[#allocation3 + $0x27c] sm:$0xf] %vm5444, %v5320
  %5499 = vst.msk [vmem:[#allocation3 + $0x288] sm:$0xf] %vm5444, %v5322
  %5500 = vst.msk [vmem:[#allocation3 + $0x294] sm:$0xf] %vm5444, %v5324
  %5501 = vst.msk [vmem:[#allocation3 + $0x2a0] sm:$0xf] %vm5444, %v5326
  %5502 = vst.msk [vmem:[#allocation3 + $0x2ac] sm:$0xf] %vm5444, %v5328
  %5503 = vst.msk [vmem:[#allocation3 + $0x2b8] sm:$0xf] %vm5444, %v5330
  %5504 = vst.msk [vmem:[#allocation3 + $0x2c4] sm:$0xf] %vm5444, %v5332
  %5505 = vst.msk [vmem:[#allocation3 + $0x2d0] sm:$0xf] %vm5444, %v5334
  %5506 = vst.msk [vmem:[#allocation3 + $0x2dc] sm:$0xf] %vm5444, %v5336
  %5507 = vst.msk [vmem:[#allocation3 + $0x2e8] sm:$0xf] %vm5444, %v5338
  %5508 = vst.msk [vmem:[#allocation3 + $0x2f4] sm:$0xf] %vm5444, %v5340
  %5509 = vst.msk [vmem:[#allocation3 + $0x300] sm:$0xf] %vm5444, %v5342
  %5510 = vst.msk [vmem:[#allocation3 + $0x30c] sm:$0xf] %vm5444, %v5344
  %5511 = vst.msk [vmem:[#allocation3 + $0x318] sm:$0xf] %vm5444, %v5346
  %5512 = vst.msk [vmem:[#allocation3 + $0x324] sm:$0xf] %vm5444, %v5348
  %5513 = vst.msk [vmem:[#allocation3 + $0x330] sm:$0xf] %vm5444, %v5350
  %5514 = vst.msk [vmem:[#allocation3 + $0x33c] sm:$0xf] %vm5444, %v5352
  %5515 = vst.msk [vmem:[#allocation3 + $0x348] sm:$0xf] %vm5444, %v5354
  %5516 = vst.msk [vmem:[#allocation3 + $0x354] sm:$0xf] %vm5444, %v5356
  %5517 = vst.msk [vmem:[#allocation3 + $0x360] sm:$0xf] %vm5444, %v5358
  %5518 = vst.msk [vmem:[#allocation3 + $0x36c] sm:$0xf] %vm5444, %v5360
  %5519 = vst.msk [vmem:[#allocation3 + $0x378] sm:$0xf] %vm5444, %v5362
  %5520 = vst.msk [vmem:[#allocation3 + $0x384] sm:$0xf] %vm5444, %v5364
  %vm5521 = vcmask 1042176
  %5522 = vst.msk [vmem:[#allocation3 + $0x390] sm:$0x3] %vm5521, %v5366
  %v5523 = vld [vmem:[#allocation2 + $0xc] sm:$0xf]
  %v5524 = vld [vmem:[#allocation2 + $0x10] sm:$0xf]
  %v5525 = vld [vmem:[#allocation2 + $0x14] sm:$0xf]
  %v5526 = vld [vmem:[#allocation2 + $0x18] sm:$0xf]
  %v5527 = vld [vmem:[#allocation2 + $0x1c] sm:$0xf]
  %v5528 = vld [vmem:[#allocation2 + $0x20] sm:$0xf]
  %v5529 = vld [vmem:[#allocation2 + $0x24] sm:$0xf]
  %v5530 = vld [vmem:[#allocation2 + $0x28] sm:$0xf]
  %v5531 = vld [vmem:[#allocation2 + $0x2c] sm:$0xf]
  %v5532 = vld [vmem:[#allocation2 + $0x30] sm:$0xf]
  %v5533 = vld [vmem:[#allocation2 + $0x34] sm:$0xf]
  %v5534 = vld [vmem:[#allocation2 + $0x38] sm:$0xf]
  %v5535 = vld [vmem:[#allocation2 + $0x3c] sm:$0xf]
  %v5536 = vld [vmem:[#allocation2 + $0x40] sm:$0xf]
  %v5537 = vld [vmem:[#allocation2 + $0x44] sm:$0xf]
  %v5538 = vld [vmem:[#allocation2 + $0x48] sm:$0xf]
  %v5539 = vld [vmem:[#allocation2 + $0x4c] sm:$0xf]
  %v5540 = vld [vmem:[#allocation2 + $0x50] sm:$0xf]
  %v5541 = vld [vmem:[#allocation2 + $0x54] sm:$0xf]
  %v5542 = vld [vmem:[#allocation2 + $0x58] sm:$0xf]
  %v5543 = vld [vmem:[#allocation2 + $0x5c] sm:$0xf]
  %v5544 = vld [vmem:[#allocation2 + $0x60] sm:$0xf]
  %v5545 = vld [vmem:[#allocation2 + $0x64] sm:$0xf]
  %v5546 = vld [vmem:[#allocation2 + $0x68] sm:$0xf]
  %v5547 = vld [vmem:[#allocation2 + $0x6c] sm:$0xf]
  %v5548 = vld [vmem:[#allocation2 + $0x70] sm:$0xf]
  %v5549 = vld [vmem:[#allocation2 + $0x74] sm:$0xf]
  %v5550 = vld [vmem:[#allocation2 + $0x78] sm:$0xf]
  %v5551 = vld [vmem:[#allocation2 + $0x7c] sm:$0xf]
  %v5552 = vld [vmem:[#allocation2 + $0x80] sm:$0xf]
  %v5553 = vld [vmem:[#allocation2 + $0x84] sm:$0xf]
  %v5554 = vld [vmem:[#allocation2 + $0x88] sm:$0xf]
  %v5555 = vld [vmem:[#allocation2 + $0x8c] sm:$0xf]
  %v5556 = vld [vmem:[#allocation2 + $0x90] sm:$0xf]
  %v5557 = vld [vmem:[#allocation2 + $0x94] sm:$0xf]
  %v5558 = vld [vmem:[#allocation2 + $0x98] sm:$0xf]
  %v5559 = vld [vmem:[#allocation2 + $0x9c] sm:$0xf]
  %v5560 = vld [vmem:[#allocation2 + $0xa0] sm:$0xf]
  %v5561 = vld [vmem:[#allocation2 + $0xa4] sm:$0xf]
  %v5562 = vld [vmem:[#allocation2 + $0xa8] sm:$0xf]
  %v5563 = vld [vmem:[#allocation2 + $0xac] sm:$0xf]
  %v5564 = vld [vmem:[#allocation2 + $0xb0] sm:$0xf]
  %v5565 = vld [vmem:[#allocation2 + $0xb4] sm:$0xf]
  %v5566 = vld [vmem:[#allocation2 + $0xb8] sm:$0xf]
  %v5567 = vld [vmem:[#allocation2 + $0xbc] sm:$0xf]
  %v5568 = vld [vmem:[#allocation2 + $0xc0] sm:$0xf]
  %v5569 = vld [vmem:[#allocation2 + $0xc4] sm:$0xf]
  %v5570 = vld [vmem:[#allocation2 + $0xc8] sm:$0xf]
  %v5571 = vld [vmem:[#allocation2 + $0xcc] sm:$0xf]
  %v5572 = vld [vmem:[#allocation2 + $0xd0] sm:$0xf]
  %v5573 = vld [vmem:[#allocation2 + $0xd4] sm:$0xf]
  %v5574 = vld [vmem:[#allocation2 + $0xd8] sm:$0xf]
  %v5575 = vld [vmem:[#allocation2 + $0xdc] sm:$0xf]
  %v5576 = vld [vmem:[#allocation2 + $0xe0] sm:$0xf]
  %v5577 = vld [vmem:[#allocation2 + $0xe4] sm:$0xf]
  %v5578 = vld [vmem:[#allocation2 + $0xe8] sm:$0xf]
  %v5579 = vld [vmem:[#allocation2 + $0xec] sm:$0xf]
  %v5580 = vld [vmem:[#allocation2 + $0xf0] sm:$0xf]
  %v5581 = vld [vmem:[#allocation2 + $0xf4] sm:$0xf]
  %v5582 = vld [vmem:[#allocation2 + $0xf8] sm:$0xf]
  %v5583 = vld [vmem:[#allocation2 + $0xfc] sm:$0xf]
  %v5584 = vld [vmem:[#allocation2 + $0x100] sm:$0xf]
  %v5585 = vld [vmem:[#allocation2 + $0x104] sm:$0xf]
  %v5586 = vld [vmem:[#allocation2 + $0x108] sm:$0xf]
  %v5587 = vld [vmem:[#allocation2 + $0x10c] sm:$0xf]
  %v5588 = vld [vmem:[#allocation2 + $0x110] sm:$0xf]
  %v5589 = vld [vmem:[#allocation2 + $0x114] sm:$0xf]
  %v5590 = vld [vmem:[#allocation2 + $0x118] sm:$0xf]
  %v5591 = vld [vmem:[#allocation2 + $0x11c] sm:$0xf]
  %v5592 = vld [vmem:[#allocation2 + $0x120] sm:$0xf]
  %v5593 = vld [vmem:[#allocation2 + $0x124] sm:$0xf]
  %v5594 = vld [vmem:[#allocation2 + $0x128] sm:$0xf]
  %v5595 = vld [vmem:[#allocation2 + $0x12c] sm:$0xf]
  %v5596 = vld [vmem:[#allocation2 + $0x130] sm:$0xf]
  %v5597 = vld [vmem:[#allocation2 + $0x134] sm:$0xf]
  %v5598 = vld [vmem:[#allocation2 + $0x138] sm:$0xf]
  %v5599 = vld [vmem:[#allocation2 + $0x13c] sm:$0x3]
  %5600 = vst.msk [vmem:[#allocation3 + $0x4] sm:$0xf] %vm987, %v5523
  %5601 = vst.msk [vmem:[#allocation3 + $0x10] sm:$0xf] %vm987, %v5524
  %5602 = vst.msk [vmem:[#allocation3 + $0x1c] sm:$0xf] %vm987, %v5525
  %5603 = vst.msk [vmem:[#allocation3 + $0x28] sm:$0xf] %vm987, %v5526
  %5604 = vst.msk [vmem:[#allocation3 + $0x34] sm:$0xf] %vm987, %v5527
  %5605 = vst.msk [vmem:[#allocation3 + $0x40] sm:$0xf] %vm987, %v5528
  %5606 = vst.msk [vmem:[#allocation3 + $0x4c] sm:$0xf] %vm987, %v5529
  %5607 = vst.msk [vmem:[#allocation3 + $0x58] sm:$0xf] %vm987, %v5530
  %5608 = vst.msk [vmem:[#allocation3 + $0x64] sm:$0xf] %vm987, %v5531
  %5609 = vst.msk [vmem:[#allocation3 + $0x70] sm:$0xf] %vm987, %v5532
  %5610 = vst.msk [vmem:[#allocation3 + $0x7c] sm:$0xf] %vm987, %v5533
  %5611 = vst.msk [vmem:[#allocation3 + $0x88] sm:$0xf] %vm987, %v5534
  %5612 = vst.msk [vmem:[#allocation3 + $0x94] sm:$0xf] %vm987, %v5535
  %5613 = vst.msk [vmem:[#allocation3 + $0xa0] sm:$0xf] %vm987, %v5536
  %5614 = vst.msk [vmem:[#allocation3 + $0xac] sm:$0xf] %vm987, %v5537
  %5615 = vst.msk [vmem:[#allocation3 + $0xb8] sm:$0xf] %vm987, %v5538
  %5616 = vst.msk [vmem:[#allocation3 + $0xc4] sm:$0xf] %vm987, %v5539
  %5617 = vst.msk [vmem:[#allocation3 + $0xd0] sm:$0xf] %vm987, %v5540
  %5618 = vst.msk [vmem:[#allocation3 + $0xdc] sm:$0xf] %vm987, %v5541
  %5619 = vst.msk [vmem:[#allocation3 + $0xe8] sm:$0xf] %vm987, %v5542
  %5620 = vst.msk [vmem:[#allocation3 + $0xf4] sm:$0xf] %vm987, %v5543
  %5621 = vst.msk [vmem:[#allocation3 + $0x100] sm:$0xf] %vm987, %v5544
  %5622 = vst.msk [vmem:[#allocation3 + $0x10c] sm:$0xf] %vm987, %v5545
  %5623 = vst.msk [vmem:[#allocation3 + $0x118] sm:$0xf] %vm987, %v5546
  %5624 = vst.msk [vmem:[#allocation3 + $0x124] sm:$0xf] %vm987, %v5547
  %5625 = vst.msk [vmem:[#allocation3 + $0x130] sm:$0xf] %vm987, %v5548
  %5626 = vst.msk [vmem:[#allocation3 + $0x13c] sm:$0xf] %vm987, %v5549
  %5627 = vst.msk [vmem:[#allocation3 + $0x148] sm:$0xf] %vm987, %v5550
  %5628 = vst.msk [vmem:[#allocation3 + $0x154] sm:$0xf] %vm987, %v5551
  %5629 = vst.msk [vmem:[#allocation3 + $0x160] sm:$0xf] %vm987, %v5552
  %5630 = vst.msk [vmem:[#allocation3 + $0x16c] sm:$0xf] %vm987, %v5553
  %5631 = vst.msk [vmem:[#allocation3 + $0x178] sm:$0xf] %vm987, %v5554
  %5632 = vst.msk [vmem:[#allocation3 + $0x184] sm:$0xf] %vm987, %v5555
  %5633 = vst.msk [vmem:[#allocation3 + $0x190] sm:$0xf] %vm987, %v5556
  %5634 = vst.msk [vmem:[#allocation3 + $0x19c] sm:$0xf] %vm987, %v5557
  %5635 = vst.msk [vmem:[#allocation3 + $0x1a8] sm:$0xf] %vm987, %v5558
  %5636 = vst.msk [vmem:[#allocation3 + $0x1b4] sm:$0xf] %vm987, %v5559
  %5637 = vst.msk [vmem:[#allocation3 + $0x1c0] sm:$0xf] %vm987, %v5560
  %5638 = vst.msk [vmem:[#allocation3 + $0x1cc] sm:$0xf] %vm987, %v5561
  %5639 = vst.msk [vmem:[#allocation3 + $0x1d8] sm:$0xf] %vm987, %v5562
  %5640 = vst.msk [vmem:[#allocation3 + $0x1e4] sm:$0xf] %vm987, %v5563
  %5641 = vst.msk [vmem:[#allocation3 + $0x1f0] sm:$0xf] %vm987, %v5564
  %5642 = vst.msk [vmem:[#allocation3 + $0x1fc] sm:$0xf] %vm987, %v5565
  %5643 = vst.msk [vmem:[#allocation3 + $0x208] sm:$0xf] %vm987, %v5566
  %5644 = vst.msk [vmem:[#allocation3 + $0x214] sm:$0xf] %vm987, %v5567
  %5645 = vst.msk [vmem:[#allocation3 + $0x220] sm:$0xf] %vm987, %v5568
  %5646 = vst.msk [vmem:[#allocation3 + $0x22c] sm:$0xf] %vm987, %v5569
  %5647 = vst.msk [vmem:[#allocation3 + $0x238] sm:$0xf] %vm987, %v5570
  %5648 = vst.msk [vmem:[#allocation3 + $0x244] sm:$0xf] %vm987, %v5571
  %5649 = vst.msk [vmem:[#allocation3 + $0x250] sm:$0xf] %vm987, %v5572
  %5650 = vst.msk [vmem:[#allocation3 + $0x25c] sm:$0xf] %vm987, %v5573
  %5651 = vst.msk [vmem:[#allocation3 + $0x268] sm:$0xf] %vm987, %v5574
  %5652 = vst.msk [vmem:[#allocation3 + $0x274] sm:$0xf] %vm987, %v5575
  %5653 = vst.msk [vmem:[#allocation3 + $0x280] sm:$0xf] %vm987, %v5576
  %5654 = vst.msk [vmem:[#allocation3 + $0x28c] sm:$0xf] %vm987, %v5577
  %5655 = vst.msk [vmem:[#allocation3 + $0x298] sm:$0xf] %vm987, %v5578
  %5656 = vst.msk [vmem:[#allocation3 + $0x2a4] sm:$0xf] %vm987, %v5579
  %5657 = vst.msk [vmem:[#allocation3 + $0x2b0] sm:$0xf] %vm987, %v5580
  %5658 = vst.msk [vmem:[#allocation3 + $0x2bc] sm:$0xf] %vm987, %v5581
  %5659 = vst.msk [vmem:[#allocation3 + $0x2c8] sm:$0xf] %vm987, %v5582
  %5660 = vst.msk [vmem:[#allocation3 + $0x2d4] sm:$0xf] %vm987, %v5583
  %5661 = vst.msk [vmem:[#allocation3 + $0x2e0] sm:$0xf] %vm987, %v5584
  %5662 = vst.msk [vmem:[#allocation3 + $0x2ec] sm:$0xf] %vm987, %v5585
  %5663 = vst.msk [vmem:[#allocation3 + $0x2f8] sm:$0xf] %vm987, %v5586
  %5664 = vst.msk [vmem:[#allocation3 + $0x304] sm:$0xf] %vm987, %v5587
  %5665 = vst.msk [vmem:[#allocation3 + $0x310] sm:$0xf] %vm987, %v5588
  %5666 = vst.msk [vmem:[#allocation3 + $0x31c] sm:$0xf] %vm987, %v5589
  %5667 = vst.msk [vmem:[#allocation3 + $0x328] sm:$0xf] %vm987, %v5590
  %5668 = vst.msk [vmem:[#allocation3 + $0x334] sm:$0xf] %vm987, %v5591
  %5669 = vst.msk [vmem:[#allocation3 + $0x340] sm:$0xf] %vm987, %v5592
  %5670 = vst.msk [vmem:[#allocation3 + $0x34c] sm:$0xf] %vm987, %v5593
  %5671 = vst.msk [vmem:[#allocation3 + $0x358] sm:$0xf] %vm987, %v5594
  %5672 = vst.msk [vmem:[#allocation3 + $0x364] sm:$0xf] %vm987, %v5595
  %5673 = vst.msk [vmem:[#allocation3 + $0x370] sm:$0xf] %vm987, %v5596
  %5674 = vst.msk [vmem:[#allocation3 + $0x37c] sm:$0xf] %vm987, %v5597
  %5675 = vst.msk [vmem:[#allocation3 + $0x388] sm:$0xf] %vm987, %v5598
  %5676 = vst.msk [vmem:[#allocation3 + $0x394] sm:$0x3] %vm1953, %v5599
  %v5677 = vld [vmem:[#allocation2 + $0xc] sm:$0xf]
  %v5678 = vld [vmem:[#allocation2 + $0x10] sm:$0xf]
  %v5679 = vld [vmem:[#allocation2 + $0x14] sm:$0xf]
  %v5680 = vld [vmem:[#allocation2 + $0x18] sm:$0xf]
  %v5681 = vld [vmem:[#allocation2 + $0x1c] sm:$0xf]
  %v5682 = vld [vmem:[#allocation2 + $0x20] sm:$0xf]
  %v5683 = vld [vmem:[#allocation2 + $0x24] sm:$0xf]
  %v5684 = vld [vmem:[#allocation2 + $0x28] sm:$0xf]
  %v5685 = vld [vmem:[#allocation2 + $0x2c] sm:$0xf]
  %v5686 = vld [vmem:[#allocation2 + $0x30] sm:$0xf]
  %v5687 = vld [vmem:[#allocation2 + $0x34] sm:$0xf]
  %v5688 = vld [vmem:[#allocation2 + $0x38] sm:$0xf]
  %v5689 = vld [vmem:[#allocation2 + $0x3c] sm:$0xf]
  %v5690 = vld [vmem:[#allocation2 + $0x40] sm:$0xf]
  %v5691 = vld [vmem:[#allocation2 + $0x44] sm:$0xf]
  %v5692 = vld [vmem:[#allocation2 + $0x48] sm:$0xf]
  %v5693 = vld [vmem:[#allocation2 + $0x4c] sm:$0xf]
  %v5694 = vld [vmem:[#allocation2 + $0x50] sm:$0xf]
  %v5695 = vld [vmem:[#allocation2 + $0x54] sm:$0xf]
  %v5696 = vld [vmem:[#allocation2 + $0x58] sm:$0xf]
  %v5697 = vld [vmem:[#allocation2 + $0x5c] sm:$0xf]
  %v5698 = vld [vmem:[#allocation2 + $0x60] sm:$0xf]
  %v5699 = vld [vmem:[#allocation2 + $0x64] sm:$0xf]
  %v5700 = vld [vmem:[#allocation2 + $0x68] sm:$0xf]
  %v5701 = vld [vmem:[#allocation2 + $0x6c] sm:$0xf]
  %v5702 = vld [vmem:[#allocation2 + $0x70] sm:$0xf]
  %v5703 = vld [vmem:[#allocation2 + $0x74] sm:$0xf]
  %v5704 = vld [vmem:[#allocation2 + $0x78] sm:$0xf]
  %v5705 = vld [vmem:[#allocation2 + $0x7c] sm:$0xf]
  %v5706 = vld [vmem:[#allocation2 + $0x80] sm:$0xf]
  %v5707 = vld [vmem:[#allocation2 + $0x84] sm:$0xf]
  %v5708 = vld [vmem:[#allocation2 + $0x88] sm:$0xf]
  %v5709 = vld [vmem:[#allocation2 + $0x8c] sm:$0xf]
  %v5710 = vld [vmem:[#allocation2 + $0x90] sm:$0xf]
  %v5711 = vld [vmem:[#allocation2 + $0x94] sm:$0xf]
  %v5712 = vld [vmem:[#allocation2 + $0x98] sm:$0xf]
  %v5713 = vld [vmem:[#allocation2 + $0x9c] sm:$0xf]
  %v5714 = vld [vmem:[#allocation2 + $0xa0] sm:$0xf]
  %v5715 = vld [vmem:[#allocation2 + $0xa4] sm:$0xf]
  %v5716 = vld [vmem:[#allocation2 + $0xa8] sm:$0xf]
  %v5717 = vld [vmem:[#allocation2 + $0xac] sm:$0xf]
  %v5718 = vld [vmem:[#allocation2 + $0xb0] sm:$0xf]
  %v5719 = vld [vmem:[#allocation2 + $0xb4] sm:$0xf]
  %v5720 = vld [vmem:[#allocation2 + $0xb8] sm:$0xf]
  %v5721 = vld [vmem:[#allocation2 + $0xbc] sm:$0xf]
  %v5722 = vld [vmem:[#allocation2 + $0xc0] sm:$0xf]
  %v5723 = vld [vmem:[#allocation2 + $0xc4] sm:$0xf]
  %v5724 = vld [vmem:[#allocation2 + $0xc8] sm:$0xf]
  %v5725 = vld [vmem:[#allocation2 + $0xcc] sm:$0xf]
  %v5726 = vld [vmem:[#allocation2 + $0xd0] sm:$0xf]
  %v5727 = vld [vmem:[#allocation2 + $0xd4] sm:$0xf]
  %v5728 = vld [vmem:[#allocation2 + $0xd8] sm:$0xf]
  %v5729 = vld [vmem:[#allocation2 + $0xdc] sm:$0xf]
  %v5730 = vld [vmem:[#allocation2 + $0xe0] sm:$0xf]
  %v5731 = vld [vmem:[#allocation2 + $0xe4] sm:$0xf]
  %v5732 = vld [vmem:[#allocation2 + $0xe8] sm:$0xf]
  %v5733 = vld [vmem:[#allocation2 + $0xec] sm:$0xf]
  %v5734 = vld [vmem:[#allocation2 + $0xf0] sm:$0xf]
  %v5735 = vld [vmem:[#allocation2 + $0xf4] sm:$0xf]
  %v5736 = vld [vmem:[#allocation2 + $0xf8] sm:$0xf]
  %v5737 = vld [vmem:[#allocation2 + $0xfc] sm:$0xf]
  %v5738 = vld [vmem:[#allocation2 + $0x100] sm:$0xf]
  %v5739 = vld [vmem:[#allocation2 + $0x104] sm:$0xf]
  %v5740 = vld [vmem:[#allocation2 + $0x108] sm:$0xf]
  %v5741 = vld [vmem:[#allocation2 + $0x10c] sm:$0xf]
  %v5742 = vld [vmem:[#allocation2 + $0x110] sm:$0xf]
  %v5743 = vld [vmem:[#allocation2 + $0x114] sm:$0xf]
  %v5744 = vld [vmem:[#allocation2 + $0x118] sm:$0xf]
  %v5745 = vld [vmem:[#allocation2 + $0x11c] sm:$0xf]
  %v5746 = vld [vmem:[#allocation2 + $0x120] sm:$0xf]
  %v5747 = vld [vmem:[#allocation2 + $0x124] sm:$0xf]
  %v5748 = vld [vmem:[#allocation2 + $0x128] sm:$0xf]
  %v5749 = vld [vmem:[#allocation2 + $0x12c] sm:$0xf]
  %v5750 = vld [vmem:[#allocation2 + $0x130] sm:$0xf]
  %v5751 = vld [vmem:[#allocation2 + $0x134] sm:$0xf]
  %v5752 = vld [vmem:[#allocation2 + $0x138] sm:$0xf]
  %v5753 = vld [vmem:[#allocation2 + $0x13c] sm:$0x7]
  %vm5754 = vsmask.f32 3328
  %vm5755 = vsmask.f32 7440
  %vm5756 = vmor %vm5754, %vm5755
  %v5758 = vshrl.u32 %v5677, 16
  %v5760 = vrot.slane %v5758, 4
  %v5761 = vshll.u32 %v5677, 16
  %v5763 = vrot.slane %v5761, 5
  %v5764 = vor.u32 %v5760, %v5763
  %v5765 = vrot.slane %v5764, 4
  %v5767 = vshll.u32 %v5678, 16
  %v5769 = vrot.slane %v5767, 5
  %v5770 = vsel %vm5756, %v5765, %v5769
  %v5771 = vshrl.u32 %v5678, 16
  %v5773 = vrot.slane %v5771, 4
  %v5774 = vor.u32 %v5773, %v5769
  %v5775 = vrot.slane %v5774, 4
  %v5777 = vshll.u32 %v5679, 16
  %v5779 = vrot.slane %v5777, 5
  %v5780 = vsel %vm5756, %v5775, %v5779
  %v5781 = vshrl.u32 %v5679, 16
  %v5783 = vrot.slane %v5781, 4
  %v5784 = vor.u32 %v5783, %v5779
  %v5785 = vrot.slane %v5784, 4
  %v5787 = vshll.u32 %v5680, 16
  %v5789 = vrot.slane %v5787, 5
  %v5790 = vsel %vm5756, %v5785, %v5789
  %v5791 = vshrl.u32 %v5680, 16
  %v5793 = vrot.slane %v5791, 4
  %v5794 = vor.u32 %v5793, %v5789
  %v5795 = vrot.slane %v5794, 4
  %v5797 = vshll.u32 %v5681, 16
  %v5799 = vrot.slane %v5797, 5
  %v5800 = vsel %vm5756, %v5795, %v5799
  %v5801 = vshrl.u32 %v5681, 16
  %v5803 = vrot.slane %v5801, 4
  %v5804 = vor.u32 %v5803, %v5799
  %v5805 = vrot.slane %v5804, 4
  %v5807 = vshll.u32 %v5682, 16
  %v5809 = vrot.slane %v5807, 5
  %v5810 = vsel %vm5756, %v5805, %v5809
  %v5811 = vshrl.u32 %v5682, 16
  %v5813 = vrot.slane %v5811, 4
  %v5814 = vor.u32 %v5813, %v5809
  %v5815 = vrot.slane %v5814, 4
  %v5817 = vshll.u32 %v5683, 16
  %v5819 = vrot.slane %v5817, 5
  %v5820 = vsel %vm5756, %v5815, %v5819
  %v5821 = vshrl.u32 %v5683, 16
  %v5823 = vrot.slane %v5821, 4
  %v5824 = vor.u32 %v5823, %v5819
  %v5825 = vrot.slane %v5824, 4
  %v5827 = vshll.u32 %v5684, 16
  %v5829 = vrot.slane %v5827, 5
  %v5830 = vsel %vm5756, %v5825, %v5829
  %v5831 = vshrl.u32 %v5684, 16
  %v5833 = vrot.slane %v5831, 4
  %v5834 = vor.u32 %v5833, %v5829
  %v5835 = vrot.slane %v5834, 4
  %v5837 = vshll.u32 %v5685, 16
  %v5839 = vrot.slane %v5837, 5
  %v5840 = vsel %vm5756, %v5835, %v5839
  %v5841 = vshrl.u32 %v5685, 16
  %v5843 = vrot.slane %v5841, 4
  %v5844 = vor.u32 %v5843, %v5839
  %v5845 = vrot.slane %v5844, 4
  %v5847 = vshll.u32 %v5686, 16
  %v5849 = vrot.slane %v5847, 5
  %v5850 = vsel %vm5756, %v5845, %v5849
  %v5851 = vshrl.u32 %v5686, 16
  %v5853 = vrot.slane %v5851, 4
  %v5854 = vor.u32 %v5853, %v5849
  %v5855 = vrot.slane %v5854, 4
  %v5857 = vshll.u32 %v5687, 16
  %v5859 = vrot.slane %v5857, 5
  %v5860 = vsel %vm5756, %v5855, %v5859
  %v5861 = vshrl.u32 %v5687, 16
  %v5863 = vrot.slane %v5861, 4
  %v5864 = vor.u32 %v5863, %v5859
  %v5865 = vrot.slane %v5864, 4
  %v5867 = vshll.u32 %v5688, 16
  %v5869 = vrot.slane %v5867, 5
  %v5870 = vsel %vm5756, %v5865, %v5869
  %v5871 = vshrl.u32 %v5688, 16
  %v5873 = vrot.slane %v5871, 4
  %v5874 = vor.u32 %v5873, %v5869
  %v5875 = vrot.slane %v5874, 4
  %v5877 = vshll.u32 %v5689, 16
  %v5879 = vrot.slane %v5877, 5
  %v5880 = vsel %vm5756, %v5875, %v5879
  %v5881 = vshrl.u32 %v5689, 16
  %v5883 = vrot.slane %v5881, 4
  %v5884 = vor.u32 %v5883, %v5879
  %v5885 = vrot.slane %v5884, 4
  %v5887 = vshll.u32 %v5690, 16
  %v5889 = vrot.slane %v5887, 5
  %v5890 = vsel %vm5756, %v5885, %v5889
  %v5891 = vshrl.u32 %v5690, 16
  %v5893 = vrot.slane %v5891, 4
  %v5894 = vor.u32 %v5893, %v5889
  %v5895 = vrot.slane %v5894, 4
  %v5897 = vshll.u32 %v5691, 16
  %v5899 = vrot.slane %v5897, 5
  %v5900 = vsel %vm5756, %v5895, %v5899
  %v5901 = vshrl.u32 %v5691, 16
  %v5903 = vrot.slane %v5901, 4
  %v5904 = vor.u32 %v5903, %v5899
  %v5905 = vrot.slane %v5904, 4
  %v5907 = vshll.u32 %v5692, 16
  %v5909 = vrot.slane %v5907, 5
  %v5910 = vsel %vm5756, %v5905, %v5909
  %v5911 = vshrl.u32 %v5692, 16
  %v5913 = vrot.slane %v5911, 4
  %v5914 = vor.u32 %v5913, %v5909
  %v5915 = vrot.slane %v5914, 4
  %v5917 = vshll.u32 %v5693, 16
  %v5919 = vrot.slane %v5917, 5
  %v5920 = vsel %vm5756, %v5915, %v5919
  %v5921 = vshrl.u32 %v5693, 16
  %v5923 = vrot.slane %v5921, 4
  %v5924 = vor.u32 %v5923, %v5919
  %v5925 = vrot.slane %v5924, 4
  %v5927 = vshll.u32 %v5694, 16
  %v5929 = vrot.slane %v5927, 5
  %v5930 = vsel %vm5756, %v5925, %v5929
  %v5931 = vshrl.u32 %v5694, 16
  %v5933 = vrot.slane %v5931, 4
  %v5934 = vor.u32 %v5933, %v5929
  %v5935 = vrot.slane %v5934, 4
  %v5937 = vshll.u32 %v5695, 16
  %v5939 = vrot.slane %v5937, 5
  %v5940 = vsel %vm5756, %v5935, %v5939
  %v5941 = vshrl.u32 %v5695, 16
  %v5943 = vrot.slane %v5941, 4
  %v5944 = vor.u32 %v5943, %v5939
  %v5945 = vrot.slane %v5944, 4
  %v5947 = vshll.u32 %v5696, 16
  %v5949 = vrot.slane %v5947, 5
  %v5950 = vsel %vm5756, %v5945, %v5949
  %v5951 = vshrl.u32 %v5696, 16
  %v5953 = vrot.slane %v5951, 4
  %v5954 = vor.u32 %v5953, %v5949
  %v5955 = vrot.slane %v5954, 4
  %v5957 = vshll.u32 %v5697, 16
  %v5959 = vrot.slane %v5957, 5
  %v5960 = vsel %vm5756, %v5955, %v5959
  %v5961 = vshrl.u32 %v5697, 16
  %v5963 = vrot.slane %v5961, 4
  %v5964 = vor.u32 %v5963, %v5959
  %v5965 = vrot.slane %v5964, 4
  %v5967 = vshll.u32 %v5698, 16
  %v5969 = vrot.slane %v5967, 5
  %v5970 = vsel %vm5756, %v5965, %v5969
  %v5971 = vshrl.u32 %v5698, 16
  %v5973 = vrot.slane %v5971, 4
  %v5974 = vor.u32 %v5973, %v5969
  %v5975 = vrot.slane %v5974, 4
  %v5977 = vshll.u32 %v5699, 16
  %v5979 = vrot.slane %v5977, 5
  %v5980 = vsel %vm5756, %v5975, %v5979
  %v5981 = vshrl.u32 %v5699, 16
  %v5983 = vrot.slane %v5981, 4
  %v5984 = vor.u32 %v5983, %v5979
  %v5985 = vrot.slane %v5984, 4
  %v5987 = vshll.u32 %v5700, 16
  %v5989 = vrot.slane %v5987, 5
  %v5990 = vsel %vm5756, %v5985, %v5989
  %v5991 = vshrl.u32 %v5700, 16
  %v5993 = vrot.slane %v5991, 4
  %v5994 = vor.u32 %v5993, %v5989
  %v5995 = vrot.slane %v5994, 4
  %v5997 = vshll.u32 %v5701, 16
  %v5999 = vrot.slane %v5997, 5
  %v6000 = vsel %vm5756, %v5995, %v5999
  %v6001 = vshrl.u32 %v5701, 16
  %v6003 = vrot.slane %v6001, 4
  %v6004 = vor.u32 %v6003, %v5999
  %v6005 = vrot.slane %v6004, 4
  %v6007 = vshll.u32 %v5702, 16
  %v6009 = vrot.slane %v6007, 5
  %v6010 = vsel %vm5756, %v6005, %v6009
  %v6011 = vshrl.u32 %v5702, 16
  %v6013 = vrot.slane %v6011, 4
  %v6014 = vor.u32 %v6013, %v6009
  %v6015 = vrot.slane %v6014, 4
  %v6017 = vshll.u32 %v5703, 16
  %v6019 = vrot.slane %v6017, 5
  %v6020 = vsel %vm5756, %v6015, %v6019
  %v6021 = vshrl.u32 %v5703, 16
  %v6023 = vrot.slane %v6021, 4
  %v6024 = vor.u32 %v6023, %v6019
  %v6025 = vrot.slane %v6024, 4
  %v6027 = vshll.u32 %v5704, 16
  %v6029 = vrot.slane %v6027, 5
  %v6030 = vsel %vm5756, %v6025, %v6029
  %v6031 = vshrl.u32 %v5704, 16
  %v6033 = vrot.slane %v6031, 4
  %v6034 = vor.u32 %v6033, %v6029
  %v6035 = vrot.slane %v6034, 4
  %v6037 = vshll.u32 %v5705, 16
  %v6039 = vrot.slane %v6037, 5
  %v6040 = vsel %vm5756, %v6035, %v6039
  %v6041 = vshrl.u32 %v5705, 16
  %v6043 = vrot.slane %v6041, 4
  %v6044 = vor.u32 %v6043, %v6039
  %v6045 = vrot.slane %v6044, 4
  %v6047 = vshll.u32 %v5706, 16
  %v6049 = vrot.slane %v6047, 5
  %v6050 = vsel %vm5756, %v6045, %v6049
  %v6051 = vshrl.u32 %v5706, 16
  %v6053 = vrot.slane %v6051, 4
  %v6054 = vor.u32 %v6053, %v6049
  %v6055 = vrot.slane %v6054, 4
  %v6057 = vshll.u32 %v5707, 16
  %v6059 = vrot.slane %v6057, 5
  %v6060 = vsel %vm5756, %v6055, %v6059
  %v6061 = vshrl.u32 %v5707, 16
  %v6063 = vrot.slane %v6061, 4
  %v6064 = vor.u32 %v6063, %v6059
  %v6065 = vrot.slane %v6064, 4
  %v6067 = vshll.u32 %v5708, 16
  %v6069 = vrot.slane %v6067, 5
  %v6070 = vsel %vm5756, %v6065, %v6069
  %v6071 = vshrl.u32 %v5708, 16
  %v6073 = vrot.slane %v6071, 4
  %v6074 = vor.u32 %v6073, %v6069
  %v6075 = vrot.slane %v6074, 4
  %v6077 = vshll.u32 %v5709, 16
  %v6079 = vrot.slane %v6077, 5
  %v6080 = vsel %vm5756, %v6075, %v6079
  %v6081 = vshrl.u32 %v5709, 16
  %v6083 = vrot.slane %v6081, 4
  %v6084 = vor.u32 %v6083, %v6079
  %v6085 = vrot.slane %v6084, 4
  %v6087 = vshll.u32 %v5710, 16
  %v6089 = vrot.slane %v6087, 5
  %v6090 = vsel %vm5756, %v6085, %v6089
  %v6091 = vshrl.u32 %v5710, 16
  %v6093 = vrot.slane %v6091, 4
  %v6094 = vor.u32 %v6093, %v6089
  %v6095 = vrot.slane %v6094, 4
  %v6097 = vshll.u32 %v5711, 16
  %v6099 = vrot.slane %v6097, 5
  %v6100 = vsel %vm5756, %v6095, %v6099
  %v6101 = vshrl.u32 %v5711, 16
  %v6103 = vrot.slane %v6101, 4
  %v6104 = vor.u32 %v6103, %v6099
  %v6105 = vrot.slane %v6104, 4
  %v6107 = vshll.u32 %v5712, 16
  %v6109 = vrot.slane %v6107, 5
  %v6110 = vsel %vm5756, %v6105, %v6109
  %v6111 = vshrl.u32 %v5712, 16
  %v6113 = vrot.slane %v6111, 4
  %v6114 = vor.u32 %v6113, %v6109
  %v6115 = vrot.slane %v6114, 4
  %v6117 = vshll.u32 %v5713, 16
  %v6119 = vrot.slane %v6117, 5
  %v6120 = vsel %vm5756, %v6115, %v6119
  %v6121 = vshrl.u32 %v5713, 16
  %v6123 = vrot.slane %v6121, 4
  %v6124 = vor.u32 %v6123, %v6119
  %v6125 = vrot.slane %v6124, 4
  %v6127 = vshll.u32 %v5714, 16
  %v6129 = vrot.slane %v6127, 5
  %v6130 = vsel %vm5756, %v6125, %v6129
  %v6131 = vshrl.u32 %v5714, 16
  %v6133 = vrot.slane %v6131, 4
  %v6134 = vor.u32 %v6133, %v6129
  %v6135 = vrot.slane %v6134, 4
  %v6137 = vshll.u32 %v5715, 16
  %v6139 = vrot.slane %v6137, 5
  %v6140 = vsel %vm5756, %v6135, %v6139
  %v6141 = vshrl.u32 %v5715, 16
  %v6143 = vrot.slane %v6141, 4
  %v6144 = vor.u32 %v6143, %v6139
  %v6145 = vrot.slane %v6144, 4
  %v6147 = vshll.u32 %v5716, 16
  %v6149 = vrot.slane %v6147, 5
  %v6150 = vsel %vm5756, %v6145, %v6149
  %v6151 = vshrl.u32 %v5716, 16
  %v6153 = vrot.slane %v6151, 4
  %v6154 = vor.u32 %v6153, %v6149
  %v6155 = vrot.slane %v6154, 4
  %v6157 = vshll.u32 %v5717, 16
  %v6159 = vrot.slane %v6157, 5
  %v6160 = vsel %vm5756, %v6155, %v6159
  %v6161 = vshrl.u32 %v5717, 16
  %v6163 = vrot.slane %v6161, 4
  %v6164 = vor.u32 %v6163, %v6159
  %v6165 = vrot.slane %v6164, 4
  %v6167 = vshll.u32 %v5718, 16
  %v6169 = vrot.slane %v6167, 5
  %v6170 = vsel %vm5756, %v6165, %v6169
  %v6171 = vshrl.u32 %v5718, 16
  %v6173 = vrot.slane %v6171, 4
  %v6174 = vor.u32 %v6173, %v6169
  %v6175 = vrot.slane %v6174, 4
  %v6177 = vshll.u32 %v5719, 16
  %v6179 = vrot.slane %v6177, 5
  %v6180 = vsel %vm5756, %v6175, %v6179
  %v6181 = vshrl.u32 %v5719, 16
  %v6183 = vrot.slane %v6181, 4
  %v6184 = vor.u32 %v6183, %v6179
  %v6185 = vrot.slane %v6184, 4
  %v6187 = vshll.u32 %v5720, 16
  %v6189 = vrot.slane %v6187, 5
  %v6190 = vsel %vm5756, %v6185, %v6189
  %v6191 = vshrl.u32 %v5720, 16
  %v6193 = vrot.slane %v6191, 4
  %v6194 = vor.u32 %v6193, %v6189
  %v6195 = vrot.slane %v6194, 4
  %v6197 = vshll.u32 %v5721, 16
  %v6199 = vrot.slane %v6197, 5
  %v6200 = vsel %vm5756, %v6195, %v6199
  %v6201 = vshrl.u32 %v5721, 16
  %v6203 = vrot.slane %v6201, 4
  %v6204 = vor.u32 %v6203, %v6199
  %v6205 = vrot.slane %v6204, 4
  %v6207 = vshll.u32 %v5722, 16
  %v6209 = vrot.slane %v6207, 5
  %v6210 = vsel %vm5756, %v6205, %v6209
  %v6211 = vshrl.u32 %v5722, 16
  %v6213 = vrot.slane %v6211, 4
  %v6214 = vor.u32 %v6213, %v6209
  %v6215 = vrot.slane %v6214, 4
  %v6217 = vshll.u32 %v5723, 16
  %v6219 = vrot.slane %v6217, 5
  %v6220 = vsel %vm5756, %v6215, %v6219
  %v6221 = vshrl.u32 %v5723, 16
  %v6223 = vrot.slane %v6221, 4
  %v6224 = vor.u32 %v6223, %v6219
  %v6225 = vrot.slane %v6224, 4
  %v6227 = vshll.u32 %v5724, 16
  %v6229 = vrot.slane %v6227, 5
  %v6230 = vsel %vm5756, %v6225, %v6229
  %v6231 = vshrl.u32 %v5724, 16
  %v6233 = vrot.slane %v6231, 4
  %v6234 = vor.u32 %v6233, %v6229
  %v6235 = vrot.slane %v6234, 4
  %v6237 = vshll.u32 %v5725, 16
  %v6239 = vrot.slane %v6237, 5
  %v6240 = vsel %vm5756, %v6235, %v6239
  %v6241 = vshrl.u32 %v5725, 16
  %v6243 = vrot.slane %v6241, 4
  %v6244 = vor.u32 %v6243, %v6239
  %v6245 = vrot.slane %v6244, 4
  %v6247 = vshll.u32 %v5726, 16
  %v6249 = vrot.slane %v6247, 5
  %v6250 = vsel %vm5756, %v6245, %v6249
  %v6251 = vshrl.u32 %v5726, 16
  %v6253 = vrot.slane %v6251, 4
  %v6254 = vor.u32 %v6253, %v6249
  %v6255 = vrot.slane %v6254, 4
  %v6257 = vshll.u32 %v5727, 16
  %v6259 = vrot.slane %v6257, 5
  %v6260 = vsel %vm5756, %v6255, %v6259
  %v6261 = vshrl.u32 %v5727, 16
  %v6263 = vrot.slane %v6261, 4
  %v6264 = vor.u32 %v6263, %v6259
  %v6265 = vrot.slane %v6264, 4
  %v6267 = vshll.u32 %v5728, 16
  %v6269 = vrot.slane %v6267, 5
  %v6270 = vsel %vm5756, %v6265, %v6269
  %v6271 = vshrl.u32 %v5728, 16
  %v6273 = vrot.slane %v6271, 4
  %v6274 = vor.u32 %v6273, %v6269
  %v6275 = vrot.slane %v6274, 4
  %v6277 = vshll.u32 %v5729, 16
  %v6279 = vrot.slane %v6277, 5
  %v6280 = vsel %vm5756, %v6275, %v6279
  %v6281 = vshrl.u32 %v5729, 16
  %v6283 = vrot.slane %v6281, 4
  %v6284 = vor.u32 %v6283, %v6279
  %v6285 = vrot.slane %v6284, 4
  %v6287 = vshll.u32 %v5730, 16
  %v6289 = vrot.slane %v6287, 5
  %v6290 = vsel %vm5756, %v6285, %v6289
  %v6291 = vshrl.u32 %v5730, 16
  %v6293 = vrot.slane %v6291, 4
  %v6294 = vor.u32 %v6293, %v6289
  %v6295 = vrot.slane %v6294, 4
  %v6297 = vshll.u32 %v5731, 16
  %v6299 = vrot.slane %v6297, 5
  %v6300 = vsel %vm5756, %v6295, %v6299
  %v6301 = vshrl.u32 %v5731, 16
  %v6303 = vrot.slane %v6301, 4
  %v6304 = vor.u32 %v6303, %v6299
  %v6305 = vrot.slane %v6304, 4
  %v6307 = vshll.u32 %v5732, 16
  %v6309 = vrot.slane %v6307, 5
  %v6310 = vsel %vm5756, %v6305, %v6309
  %v6311 = vshrl.u32 %v5732, 16
  %v6313 = vrot.slane %v6311, 4
  %v6314 = vor.u32 %v6313, %v6309
  %v6315 = vrot.slane %v6314, 4
  %v6317 = vshll.u32 %v5733, 16
  %v6319 = vrot.slane %v6317, 5
  %v6320 = vsel %vm5756, %v6315, %v6319
  %v6321 = vshrl.u32 %v5733, 16
  %v6323 = vrot.slane %v6321, 4
  %v6324 = vor.u32 %v6323, %v6319
  %v6325 = vrot.slane %v6324, 4
  %v6327 = vshll.u32 %v5734, 16
  %v6329 = vrot.slane %v6327, 5
  %v6330 = vsel %vm5756, %v6325, %v6329
  %v6331 = vshrl.u32 %v5734, 16
  %v6333 = vrot.slane %v6331, 4
  %v6334 = vor.u32 %v6333, %v6329
  %v6335 = vrot.slane %v6334, 4
  %v6337 = vshll.u32 %v5735, 16
  %v6339 = vrot.slane %v6337, 5
  %v6340 = vsel %vm5756, %v6335, %v6339
  %v6341 = vshrl.u32 %v5735, 16
  %v6343 = vrot.slane %v6341, 4
  %v6344 = vor.u32 %v6343, %v6339
  %v6345 = vrot.slane %v6344, 4
  %v6347 = vshll.u32 %v5736, 16
  %v6349 = vrot.slane %v6347, 5
  %v6350 = vsel %vm5756, %v6345, %v6349
  %v6351 = vshrl.u32 %v5736, 16
  %v6353 = vrot.slane %v6351, 4
  %v6354 = vor.u32 %v6353, %v6349
  %v6355 = vrot.slane %v6354, 4
  %v6357 = vshll.u32 %v5737, 16
  %v6359 = vrot.slane %v6357, 5
  %v6360 = vsel %vm5756, %v6355, %v6359
  %v6361 = vshrl.u32 %v5737, 16
  %v6363 = vrot.slane %v6361, 4
  %v6364 = vor.u32 %v6363, %v6359
  %v6365 = vrot.slane %v6364, 4
  %v6367 = vshll.u32 %v5738, 16
  %v6369 = vrot.slane %v6367, 5
  %v6370 = vsel %vm5756, %v6365, %v6369
  %v6371 = vshrl.u32 %v5738, 16
  %v6373 = vrot.slane %v6371, 4
  %v6374 = vor.u32 %v6373, %v6369
  %v6375 = vrot.slane %v6374, 4
  %v6377 = vshll.u32 %v5739, 16
  %v6379 = vrot.slane %v6377, 5
  %v6380 = vsel %vm5756, %v6375, %v6379
  %v6381 = vshrl.u32 %v5739, 16
  %v6383 = vrot.slane %v6381, 4
  %v6384 = vor.u32 %v6383, %v6379
  %v6385 = vrot.slane %v6384, 4
  %v6387 = vshll.u32 %v5740, 16
  %v6389 = vrot.slane %v6387, 5
  %v6390 = vsel %vm5756, %v6385, %v6389
  %v6391 = vshrl.u32 %v5740, 16
  %v6393 = vrot.slane %v6391, 4
  %v6394 = vor.u32 %v6393, %v6389
  %v6395 = vrot.slane %v6394, 4
  %v6397 = vshll.u32 %v5741, 16
  %v6399 = vrot.slane %v6397, 5
  %v6400 = vsel %vm5756, %v6395, %v6399
  %v6401 = vshrl.u32 %v5741, 16
  %v6403 = vrot.slane %v6401, 4
  %v6404 = vor.u32 %v6403, %v6399
  %v6405 = vrot.slane %v6404, 4
  %v6407 = vshll.u32 %v5742, 16
  %v6409 = vrot.slane %v6407, 5
  %v6410 = vsel %vm5756, %v6405, %v6409
  %v6411 = vshrl.u32 %v5742, 16
  %v6413 = vrot.slane %v6411, 4
  %v6414 = vor.u32 %v6413, %v6409
  %v6415 = vrot.slane %v6414, 4
  %v6417 = vshll.u32 %v5743, 16
  %v6419 = vrot.slane %v6417, 5
  %v6420 = vsel %vm5756, %v6415, %v6419
  %v6421 = vshrl.u32 %v5743, 16
  %v6423 = vrot.slane %v6421, 4
  %v6424 = vor.u32 %v6423, %v6419
  %v6425 = vrot.slane %v6424, 4
  %v6427 = vshll.u32 %v5744, 16
  %v6429 = vrot.slane %v6427, 5
  %v6430 = vsel %vm5756, %v6425, %v6429
  %v6431 = vshrl.u32 %v5744, 16
  %v6433 = vrot.slane %v6431, 4
  %v6434 = vor.u32 %v6433, %v6429
  %v6435 = vrot.slane %v6434, 4
  %v6437 = vshll.u32 %v5745, 16
  %v6439 = vrot.slane %v6437, 5
  %v6440 = vsel %vm5756, %v6435, %v6439
  %v6441 = vshrl.u32 %v5745, 16
  %v6443 = vrot.slane %v6441, 4
  %v6444 = vor.u32 %v6443, %v6439
  %v6445 = vrot.slane %v6444, 4
  %v6447 = vshll.u32 %v5746, 16
  %v6449 = vrot.slane %v6447, 5
  %v6450 = vsel %vm5756, %v6445, %v6449
  %v6451 = vshrl.u32 %v5746, 16
  %v6453 = vrot.slane %v6451, 4
  %v6454 = vor.u32 %v6453, %v6449
  %v6455 = vrot.slane %v6454, 4
  %v6457 = vshll.u32 %v5747, 16
  %v6459 = vrot.slane %v6457, 5
  %v6460 = vsel %vm5756, %v6455, %v6459
  %v6461 = vshrl.u32 %v5747, 16
  %v6463 = vrot.slane %v6461, 4
  %v6464 = vor.u32 %v6463, %v6459
  %v6465 = vrot.slane %v6464, 4
  %v6467 = vshll.u32 %v5748, 16
  %v6469 = vrot.slane %v6467, 5
  %v6470 = vsel %vm5756, %v6465, %v6469
  %v6471 = vshrl.u32 %v5748, 16
  %v6473 = vrot.slane %v6471, 4
  %v6474 = vor.u32 %v6473, %v6469
  %v6475 = vrot.slane %v6474, 4
  %v6477 = vshll.u32 %v5749, 16
  %v6479 = vrot.slane %v6477, 5
  %v6480 = vsel %vm5756, %v6475, %v6479
  %v6481 = vshrl.u32 %v5749, 16
  %v6483 = vrot.slane %v6481, 4
  %v6484 = vor.u32 %v6483, %v6479
  %v6485 = vrot.slane %v6484, 4
  %v6487 = vshll.u32 %v5750, 16
  %v6489 = vrot.slane %v6487, 5
  %v6490 = vsel %vm5756, %v6485, %v6489
  %v6491 = vshrl.u32 %v5750, 16
  %v6493 = vrot.slane %v6491, 4
  %v6494 = vor.u32 %v6493, %v6489
  %v6495 = vrot.slane %v6494, 4
  %v6497 = vshll.u32 %v5751, 16
  %v6499 = vrot.slane %v6497, 5
  %v6500 = vsel %vm5756, %v6495, %v6499
  %v6501 = vshrl.u32 %v5751, 16
  %v6503 = vrot.slane %v6501, 4
  %v6504 = vor.u32 %v6503, %v6499
  %v6505 = vrot.slane %v6504, 4
  %v6507 = vshll.u32 %v5752, 16
  %v6509 = vrot.slane %v6507, 5
  %v6510 = vsel %vm5756, %v6505, %v6509
  %v6511 = vshrl.u32 %v5752, 16
  %v6513 = vrot.slane %v6511, 4
  %v6514 = vor.u32 %v6513, %v6509
  %v6515 = vrot.slane %v6514, 4
  %v6517 = vshll.u32 %v5753, 16
  %v6519 = vrot.slane %v6517, 5
  %v6520 = vsel %vm5756, %v6515, %v6519
  %v6521 = vshrl.u32 %v5753, 16
  %v6523 = vrot.slane %v6521, 4
  %v6524 = vor.u32 %v6523, %v6519
  %v6525 = vrot.slane %v6524, 4
  %6526 = vrot.lane.b32.xlu0 %v5770, 32
  %v6527 = vpop.permute.xlu0 %6526
  %6528 = vrot.lane.b32.xlu0 %v5780, 32
  %v6529 = vpop.permute.xlu0 %6528
  %6530 = vrot.lane.b32.xlu0 %v5790, 32
  %v6531 = vpop.permute.xlu0 %6530
  %6532 = vrot.lane.b32.xlu0 %v5800, 32
  %v6533 = vpop.permute.xlu0 %6532
  %6534 = vrot.lane.b32.xlu0 %v5810, 32
  %v6535 = vpop.permute.xlu0 %6534
  %6536 = vrot.lane.b32.xlu0 %v5820, 32
  %v6537 = vpop.permute.xlu0 %6536
  %6538 = vrot.lane.b32.xlu0 %v5830, 32
  %v6539 = vpop.permute.xlu0 %6538
  %6540 = vrot.lane.b32.xlu0 %v5840, 32
  %v6541 = vpop.permute.xlu0 %6540
  %6542 = vrot.lane.b32.xlu0 %v5850, 32
  %v6543 = vpop.permute.xlu0 %6542
  %6544 = vrot.lane.b32.xlu0 %v5860, 32
  %v6545 = vpop.permute.xlu0 %6544
  %6546 = vrot.lane.b32.xlu0 %v5870, 32
  %v6547 = vpop.permute.xlu0 %6546
  %6548 = vrot.lane.b32.xlu0 %v5880, 32
  %v6549 = vpop.permute.xlu0 %6548
  %6550 = vrot.lane.b32.xlu0 %v5890, 32
  %v6551 = vpop.permute.xlu0 %6550
  %6552 = vrot.lane.b32.xlu0 %v5900, 32
  %v6553 = vpop.permute.xlu0 %6552
  %6554 = vrot.lane.b32.xlu0 %v5910, 32
  %v6555 = vpop.permute.xlu0 %6554
  %6556 = vrot.lane.b32.xlu0 %v5920, 32
  %v6557 = vpop.permute.xlu0 %6556
  %6558 = vrot.lane.b32.xlu0 %v5930, 32
  %v6559 = vpop.permute.xlu0 %6558
  %6560 = vrot.lane.b32.xlu0 %v5940, 32
  %v6561 = vpop.permute.xlu0 %6560
  %6562 = vrot.lane.b32.xlu0 %v5950, 32
  %v6563 = vpop.permute.xlu0 %6562
  %6564 = vrot.lane.b32.xlu0 %v5960, 32
  %v6565 = vpop.permute.xlu0 %6564
  %6566 = vrot.lane.b32.xlu0 %v5970, 32
  %v6567 = vpop.permute.xlu0 %6566
  %6568 = vrot.lane.b32.xlu0 %v5980, 32
  %v6569 = vpop.permute.xlu0 %6568
  %6570 = vrot.lane.b32.xlu0 %v5990, 32
  %v6571 = vpop.permute.xlu0 %6570
  %6572 = vrot.lane.b32.xlu0 %v6000, 32
  %v6573 = vpop.permute.xlu0 %6572
  %6574 = vrot.lane.b32.xlu0 %v6010, 32
  %v6575 = vpop.permute.xlu0 %6574
  %6576 = vrot.lane.b32.xlu0 %v6020, 32
  %v6577 = vpop.permute.xlu0 %6576
  %6578 = vrot.lane.b32.xlu0 %v6030, 32
  %v6579 = vpop.permute.xlu0 %6578
  %6580 = vrot.lane.b32.xlu0 %v6040, 32
  %v6581 = vpop.permute.xlu0 %6580
  %6582 = vrot.lane.b32.xlu0 %v6050, 32
  %v6583 = vpop.permute.xlu0 %6582
  %6584 = vrot.lane.b32.xlu0 %v6060, 32
  %v6585 = vpop.permute.xlu0 %6584
  %6586 = vrot.lane.b32.xlu0 %v6070, 32
  %v6587 = vpop.permute.xlu0 %6586
  %6588 = vrot.lane.b32.xlu0 %v6080, 32
  %v6589 = vpop.permute.xlu0 %6588
  %6590 = vrot.lane.b32.xlu0 %v6090, 32
  %v6591 = vpop.permute.xlu0 %6590
  %6592 = vrot.lane.b32.xlu0 %v6100, 32
  %v6593 = vpop.permute.xlu0 %6592
  %6594 = vrot.lane.b32.xlu0 %v6110, 32
  %v6595 = vpop.permute.xlu0 %6594
  %6596 = vrot.lane.b32.xlu0 %v6120, 32
  %v6597 = vpop.permute.xlu0 %6596
  %6598 = vrot.lane.b32.xlu0 %v6130, 32
  %v6599 = vpop.permute.xlu0 %6598
  %6600 = vrot.lane.b32.xlu0 %v6140, 32
  %v6601 = vpop.permute.xlu0 %6600
  %6602 = vrot.lane.b32.xlu0 %v6150, 32
  %v6603 = vpop.permute.xlu0 %6602
  %6604 = vrot.lane.b32.xlu0 %v6160, 32
  %v6605 = vpop.permute.xlu0 %6604
  %6606 = vrot.lane.b32.xlu0 %v6170, 32
  %v6607 = vpop.permute.xlu0 %6606
  %6608 = vrot.lane.b32.xlu0 %v6180, 32
  %v6609 = vpop.permute.xlu0 %6608
  %6610 = vrot.lane.b32.xlu0 %v6190, 32
  %v6611 = vpop.permute.xlu0 %6610
  %6612 = vrot.lane.b32.xlu0 %v6200, 32
  %v6613 = vpop.permute.xlu0 %6612
  %6614 = vrot.lane.b32.xlu0 %v6210, 32
  %v6615 = vpop.permute.xlu0 %6614
  %6616 = vrot.lane.b32.xlu0 %v6220, 32
  %v6617 = vpop.permute.xlu0 %6616
  %6618 = vrot.lane.b32.xlu0 %v6230, 32
  %v6619 = vpop.permute.xlu0 %6618
  %6620 = vrot.lane.b32.xlu0 %v6240, 32
  %v6621 = vpop.permute.xlu0 %6620
  %6622 = vrot.lane.b32.xlu0 %v6250, 32
  %v6623 = vpop.permute.xlu0 %6622
  %6624 = vrot.lane.b32.xlu0 %v6260, 32
  %v6625 = vpop.permute.xlu0 %6624
  %6626 = vrot.lane.b32.xlu0 %v6270, 32
  %v6627 = vpop.permute.xlu0 %6626
  %6628 = vrot.lane.b32.xlu0 %v6280, 32
  %v6629 = vpop.permute.xlu0 %6628
  %6630 = vrot.lane.b32.xlu0 %v6290, 32
  %v6631 = vpop.permute.xlu0 %6630
  %6632 = vrot.lane.b32.xlu0 %v6300, 32
  %v6633 = vpop.permute.xlu0 %6632
  %6634 = vrot.lane.b32.xlu0 %v6310, 32
  %v6635 = vpop.permute.xlu0 %6634
  %6636 = vrot.lane.b32.xlu0 %v6320, 32
  %v6637 = vpop.permute.xlu0 %6636
  %6638 = vrot.lane.b32.xlu0 %v6330, 32
  %v6639 = vpop.permute.xlu0 %6638
  %6640 = vrot.lane.b32.xlu0 %v6340, 32
  %v6641 = vpop.permute.xlu0 %6640
  %6642 = vrot.lane.b32.xlu0 %v6350, 32
  %v6643 = vpop.permute.xlu0 %6642
  %6644 = vrot.lane.b32.xlu0 %v6360, 32
  %v6645 = vpop.permute.xlu0 %6644
  %6646 = vrot.lane.b32.xlu0 %v6370, 32
  %v6647 = vpop.permute.xlu0 %6646
  %6648 = vrot.lane.b32.xlu0 %v6380, 32
  %v6649 = vpop.permute.xlu0 %6648
  %6650 = vrot.lane.b32.xlu0 %v6390, 32
  %v6651 = vpop.permute.xlu0 %6650
  %6652 = vrot.lane.b32.xlu0 %v6400, 32
  %v6653 = vpop.permute.xlu0 %6652
  %6654 = vrot.lane.b32.xlu0 %v6410, 32
  %v6655 = vpop.permute.xlu0 %6654
  %6656 = vrot.lane.b32.xlu0 %v6420, 32
  %v6657 = vpop.permute.xlu0 %6656
  %6658 = vrot.lane.b32.xlu0 %v6430, 32
  %v6659 = vpop.permute.xlu0 %6658
  %6660 = vrot.lane.b32.xlu0 %v6440, 32
  %v6661 = vpop.permute.xlu0 %6660
  %6662 = vrot.lane.b32.xlu0 %v6450, 32
  %v6663 = vpop.permute.xlu0 %6662
  %6664 = vrot.lane.b32.xlu0 %v6460, 32
  %v6665 = vpop.permute.xlu0 %6664
  %6666 = vrot.lane.b32.xlu0 %v6470, 32
  %v6667 = vpop.permute.xlu0 %6666
  %6668 = vrot.lane.b32.xlu0 %v6480, 32
  %v6669 = vpop.permute.xlu0 %6668
  %6670 = vrot.lane.b32.xlu0 %v6490, 32
  %v6671 = vpop.permute.xlu0 %6670
  %6672 = vrot.lane.b32.xlu0 %v6500, 32
  %v6673 = vpop.permute.xlu0 %6672
  %6674 = vrot.lane.b32.xlu0 %v6510, 32
  %v6675 = vpop.permute.xlu0 %6674
  %6676 = vrot.lane.b32.xlu0 %v6520, 32
  %v6677 = vpop.permute.xlu0 %6676
  %6678 = vrot.lane.b32.xlu0 %v6525, 32
  %v6679 = vpop.permute.xlu0 %6678
  %6757 = vst.msk [vmem:[#allocation3 + $0x4] sm:$0xf] %vm3895, %v6527
  %6758 = vst.msk [vmem:[#allocation3 + $0x10] sm:$0xf] %vm3895, %v6529
  %6759 = vst.msk [vmem:[#allocation3 + $0x1c] sm:$0xf] %vm3895, %v6531
  %6760 = vst.msk [vmem:[#allocation3 + $0x28] sm:$0xf] %vm3895, %v6533
  %6761 = vst.msk [vmem:[#allocation3 + $0x34] sm:$0xf] %vm3895, %v6535
  %6762 = vst.msk [vmem:[#allocation3 + $0x40] sm:$0xf] %vm3895, %v6537
  %6763 = vst.msk [vmem:[#allocation3 + $0x4c] sm:$0xf] %vm3895, %v6539
  %6764 = vst.msk [vmem:[#allocation3 + $0x58] sm:$0xf] %vm3895, %v6541
  %6765 = vst.msk [vmem:[#allocation3 + $0x64] sm:$0xf] %vm3895, %v6543
  %6766 = vst.msk [vmem:[#allocation3 + $0x70] sm:$0xf] %vm3895, %v6545
  %6767 = vst.msk [vmem:[#allocation3 + $0x7c] sm:$0xf] %vm3895, %v6547
  %6768 = vst.msk [vmem:[#allocation3 + $0x88] sm:$0xf] %vm3895, %v6549
  %6769 = vst.msk [vmem:[#allocation3 + $0x94] sm:$0xf] %vm3895, %v6551
  %6770 = vst.msk [vmem:[#allocation3 + $0xa0] sm:$0xf] %vm3895, %v6553
  %6771 = vst.msk [vmem:[#allocation3 + $0xac] sm:$0xf] %vm3895, %v6555
  %6772 = vst.msk [vmem:[#allocation3 + $0xb8] sm:$0xf] %vm3895, %v6557
  %6773 = vst.msk [vmem:[#allocation3 + $0xc4] sm:$0xf] %vm3895, %v6559
  %6774 = vst.msk [vmem:[#allocation3 + $0xd0] sm:$0xf] %vm3895, %v6561
  %6775 = vst.msk [vmem:[#allocation3 + $0xdc] sm:$0xf] %vm3895, %v6563
  %6776 = vst.msk [vmem:[#allocation3 + $0xe8] sm:$0xf] %vm3895, %v6565
  %6777 = vst.msk [vmem:[#allocation3 + $0xf4] sm:$0xf] %vm3895, %v6567
  %6778 = vst.msk [vmem:[#allocation3 + $0x100] sm:$0xf] %vm3895, %v6569
  %6779 = vst.msk [vmem:[#allocation3 + $0x10c] sm:$0xf] %vm3895, %v6571
  %6780 = vst.msk [vmem:[#allocation3 + $0x118] sm:$0xf] %vm3895, %v6573
  %6781 = vst.msk [vmem:[#allocation3 + $0x124] sm:$0xf] %vm3895, %v6575
  %6782 = vst.msk [vmem:[#allocation3 + $0x130] sm:$0xf] %vm3895, %v6577
  %6783 = vst.msk [vmem:[#allocation3 + $0x13c] sm:$0xf] %vm3895, %v6579
  %6784 = vst.msk [vmem:[#allocation3 + $0x148] sm:$0xf] %vm3895, %v6581
  %6785 = vst.msk [vmem:[#allocation3 + $0x154] sm:$0xf] %vm3895, %v6583
  %6786 = vst.msk [vmem:[#allocation3 + $0x160] sm:$0xf] %vm3895, %v6585
  %6787 = vst.msk [vmem:[#allocation3 + $0x16c] sm:$0xf] %vm3895, %v6587
  %6788 = vst.msk [vmem:[#allocation3 + $0x178] sm:$0xf] %vm3895, %v6589
  %6789 = vst.msk [vmem:[#allocation3 + $0x184] sm:$0xf] %vm3895, %v6591
  %6790 = vst.msk [vmem:[#allocation3 + $0x190] sm:$0xf] %vm3895, %v6593
  %6791 = vst.msk [vmem:[#allocation3 + $0x19c] sm:$0xf] %vm3895, %v6595
  %6792 = vst.msk [vmem:[#allocation3 + $0x1a8] sm:$0xf] %vm3895, %v6597
  %6793 = vst.msk [vmem:[#allocation3 + $0x1b4] sm:$0xf] %vm3895, %v6599
  %6794 = vst.msk [vmem:[#allocation3 + $0x1c0] sm:$0xf] %vm3895, %v6601
  %6795 = vst.msk [vmem:[#allocation3 + $0x1cc] sm:$0xf] %vm3895, %v6603
  %6796 = vst.msk [vmem:[#allocation3 + $0x1d8] sm:$0xf] %vm3895, %v6605
  %6797 = vst.msk [vmem:[#allocation3 + $0x1e4] sm:$0xf] %vm3895, %v6607
  %6798 = vst.msk [vmem:[#allocation3 + $0x1f0] sm:$0xf] %vm3895, %v6609
  %6799 = vst.msk [vmem:[#allocation3 + $0x1fc] sm:$0xf] %vm3895, %v6611
  %6800 = vst.msk [vmem:[#allocation3 + $0x208] sm:$0xf] %vm3895, %v6613
  %6801 = vst.msk [vmem:[#allocation3 + $0x214] sm:$0xf] %vm3895, %v6615
  %6802 = vst.msk [vmem:[#allocation3 + $0x220] sm:$0xf] %vm3895, %v6617
  %6803 = vst.msk [vmem:[#allocation3 + $0x22c] sm:$0xf] %vm3895, %v6619
  %6804 = vst.msk [vmem:[#allocation3 + $0x238] sm:$0xf] %vm3895, %v6621
  %6805 = vst.msk [vmem:[#allocation3 + $0x244] sm:$0xf] %vm3895, %v6623
  %6806 = vst.msk [vmem:[#allocation3 + $0x250] sm:$0xf] %vm3895, %v6625
  %6807 = vst.msk [vmem:[#allocation3 + $0x25c] sm:$0xf] %vm3895, %v6627
  %6808 = vst.msk [vmem:[#allocation3 + $0x268] sm:$0xf] %vm3895, %v6629
  %6809 = vst.msk [vmem:[#allocation3 + $0x274] sm:$0xf] %vm3895, %v6631
  %6810 = vst.msk [vmem:[#allocation3 + $0x280] sm:$0xf] %vm3895, %v6633
  %6811 = vst.msk [vmem:[#allocation3 + $0x28c] sm:$0xf] %vm3895, %v6635
  %6812 = vst.msk [vmem:[#allocation3 + $0x298] sm:$0xf] %vm3895, %v6637
  %6813 = vst.msk [vmem:[#allocation3 + $0x2a4] sm:$0xf] %vm3895, %v6639
  %6814 = vst.msk [vmem:[#allocation3 + $0x2b0] sm:$0xf] %vm3895, %v6641
  %6815 = vst.msk [vmem:[#allocation3 + $0x2bc] sm:$0xf] %vm3895, %v6643
  %6816 = vst.msk [vmem:[#allocation3 + $0x2c8] sm:$0xf] %vm3895, %v6645
  %6817 = vst.msk [vmem:[#allocation3 + $0x2d4] sm:$0xf] %vm3895, %v6647
  %6818 = vst.msk [vmem:[#allocation3 + $0x2e0] sm:$0xf] %vm3895, %v6649
  %6819 = vst.msk [vmem:[#allocation3 + $0x2ec] sm:$0xf] %vm3895, %v6651
  %6820 = vst.msk [vmem:[#allocation3 + $0x2f8] sm:$0xf] %vm3895, %v6653
  %6821 = vst.msk [vmem:[#allocation3 + $0x304] sm:$0xf] %vm3895, %v6655
  %6822 = vst.msk [vmem:[#allocation3 + $0x310] sm:$0xf] %vm3895, %v6657
  %6823 = vst.msk [vmem:[#allocation3 + $0x31c] sm:$0xf] %vm3895, %v6659
  %6824 = vst.msk [vmem:[#allocation3 + $0x328] sm:$0xf] %vm3895, %v6661
  %6825 = vst.msk [vmem:[#allocation3 + $0x334] sm:$0xf] %vm3895, %v6663
  %6826 = vst.msk [vmem:[#allocation3 + $0x340] sm:$0xf] %vm3895, %v6665
  %6827 = vst.msk [vmem:[#allocation3 + $0x34c] sm:$0xf] %vm3895, %v6667
  %6828 = vst.msk [vmem:[#allocation3 + $0x358] sm:$0xf] %vm3895, %v6669
  %6829 = vst.msk [vmem:[#allocation3 + $0x364] sm:$0xf] %vm3895, %v6671
  %6830 = vst.msk [vmem:[#allocation3 + $0x370] sm:$0xf] %vm3895, %v6673
  %6831 = vst.msk [vmem:[#allocation3 + $0x37c] sm:$0xf] %vm3895, %v6675
  %6832 = vst.msk [vmem:[#allocation3 + $0x388] sm:$0xf] %vm3895, %v6677
  %6833 = vst.msk [vmem:[#allocation3 + $0x394] sm:$0x3] %vm3972, %v6679
  %v6834 = vld [vmem:[#allocation2 + $0x14] sm:$0xf]
  %v6835 = vld [vmem:[#allocation2 + $0x18] sm:$0xf]
  %v6836 = vld [vmem:[#allocation2 + $0x1c] sm:$0xf]
  %v6837 = vld [vmem:[#allocation2 + $0x20] sm:$0xf]
  %v6838 = vld [vmem:[#allocation2 + $0x24] sm:$0xf]
  %v6839 = vld [vmem:[#allocation2 + $0x28] sm:$0xf]
  %v6840 = vld [vmem:[#allocation2 + $0x2c] sm:$0xf]
  %v6841 = vld [vmem:[#allocation2 + $0x30] sm:$0xf]
  %v6842 = vld [vmem:[#allocation2 + $0x34] sm:$0xf]
  %v6843 = vld [vmem:[#allocation2 + $0x38] sm:$0xf]
  %v6844 = vld [vmem:[#allocation2 + $0x3c] sm:$0xf]
  %v6845 = vld [vmem:[#allocation2 + $0x40] sm:$0xf]
  %v6846 = vld [vmem:[#allocation2 + $0x44] sm:$0xf]
  %v6847 = vld [vmem:[#allocation2 + $0x48] sm:$0xf]
  %v6848 = vld [vmem:[#allocation2 + $0x4c] sm:$0xf]
  %v6849 = vld [vmem:[#allocation2 + $0x50] sm:$0xf]
  %v6850 = vld [vmem:[#allocation2 + $0x54] sm:$0xf]
  %v6851 = vld [vmem:[#allocation2 + $0x58] sm:$0xf]
  %v6852 = vld [vmem:[#allocation2 + $0x5c] sm:$0xf]
  %v6853 = vld [vmem:[#allocation2 + $0x60] sm:$0xf]
  %v6854 = vld [vmem:[#allocation2 + $0x64] sm:$0xf]
  %v6855 = vld [vmem:[#allocation2 + $0x68] sm:$0xf]
  %v6856 = vld [vmem:[#allocation2 + $0x6c] sm:$0xf]
  %v6857 = vld [vmem:[#allocation2 + $0x70] sm:$0xf]
  %v6858 = vld [vmem:[#allocation2 + $0x74] sm:$0xf]
  %v6859 = vld [vmem:[#allocation2 + $0x78] sm:$0xf]
  %v6860 = vld [vmem:[#allocation2 + $0x7c] sm:$0xf]
  %v6861 = vld [vmem:[#allocation2 + $0x80] sm:$0xf]
  %v6862 = vld [vmem:[#allocation2 + $0x84] sm:$0xf]
  %v6863 = vld [vmem:[#allocation2 + $0x88] sm:$0xf]
  %v6864 = vld [vmem:[#allocation2 + $0x8c] sm:$0xf]
  %v6865 = vld [vmem:[#allocation2 + $0x90] sm:$0xf]
  %v6866 = vld [vmem:[#allocation2 + $0x94] sm:$0xf]
  %v6867 = vld [vmem:[#allocation2 + $0x98] sm:$0xf]
  %v6868 = vld [vmem:[#allocation2 + $0x9c] sm:$0xf]
  %v6869 = vld [vmem:[#allocation2 + $0xa0] sm:$0xf]
  %v6870 = vld [vmem:[#allocation2 + $0xa4] sm:$0xf]
  %v6871 = vld [vmem:[#allocation2 + $0xa8] sm:$0xf]
  %v6872 = vld [vmem:[#allocation2 + $0xac] sm:$0xf]
  %v6873 = vld [vmem:[#allocation2 + $0xb0] sm:$0xf]
  %v6874 = vld [vmem:[#allocation2 + $0xb4] sm:$0xf]
  %v6875 = vld [vmem:[#allocation2 + $0xb8] sm:$0xf]
  %v6876 = vld [vmem:[#allocation2 + $0xbc] sm:$0xf]
  %v6877 = vld [vmem:[#allocation2 + $0xc0] sm:$0xf]
  %v6878 = vld [vmem:[#allocation2 + $0xc4] sm:$0xf]
  %v6879 = vld [vmem:[#allocation2 + $0xc8] sm:$0xf]
  %v6880 = vld [vmem:[#allocation2 + $0xcc] sm:$0xf]
  %v6881 = vld [vmem:[#allocation2 + $0xd0] sm:$0xf]
  %v6882 = vld [vmem:[#allocation2 + $0xd4] sm:$0xf]
  %v6883 = vld [vmem:[#allocation2 + $0xd8] sm:$0xf]
  %v6884 = vld [vmem:[#allocation2 + $0xdc] sm:$0xf]
  %v6885 = vld [vmem:[#allocation2 + $0xe0] sm:$0xf]
  %v6886 = vld [vmem:[#allocation2 + $0xe4] sm:$0xf]
  %v6887 = vld [vmem:[#allocation2 + $0xe8] sm:$0xf]
  %v6888 = vld [vmem:[#allocation2 + $0xec] sm:$0xf]
  %v6889 = vld [vmem:[#allocation2 + $0xf0] sm:$0xf]
  %v6890 = vld [vmem:[#allocation2 + $0xf4] sm:$0xf]
  %v6891 = vld [vmem:[#allocation2 + $0xf8] sm:$0xf]
  %v6892 = vld [vmem:[#allocation2 + $0xfc] sm:$0xf]
  %v6893 = vld [vmem:[#allocation2 + $0x100] sm:$0xf]
  %v6894 = vld [vmem:[#allocation2 + $0x104] sm:$0xf]
  %v6895 = vld [vmem:[#allocation2 + $0x108] sm:$0xf]
  %v6896 = vld [vmem:[#allocation2 + $0x10c] sm:$0xf]
  %v6897 = vld [vmem:[#allocation2 + $0x110] sm:$0xf]
  %v6898 = vld [vmem:[#allocation2 + $0x114] sm:$0xf]
  %v6899 = vld [vmem:[#allocation2 + $0x118] sm:$0xf]
  %v6900 = vld [vmem:[#allocation2 + $0x11c] sm:$0xf]
  %v6901 = vld [vmem:[#allocation2 + $0x120] sm:$0xf]
  %v6902 = vld [vmem:[#allocation2 + $0x124] sm:$0xf]
  %v6903 = vld [vmem:[#allocation2 + $0x128] sm:$0xf]
  %v6904 = vld [vmem:[#allocation2 + $0x12c] sm:$0xf]
  %v6905 = vld [vmem:[#allocation2 + $0x130] sm:$0xf]
  %v6906 = vld [vmem:[#allocation2 + $0x134] sm:$0xf]
  %v6907 = vld [vmem:[#allocation2 + $0x138] sm:$0xf]
  %v6908 = vld [vmem:[#allocation2 + $0x13c] sm:$0xf]
  %v6909 = vld [vmem:[#allocation2 + $0x140] sm:$0xf]
  %v6910 = vld [vmem:[#allocation2 + $0x144] sm:$0x3]
  %6988 = vrot.lane.b32.xlu0 %v6834, 64
  %v6989 = vpop.permute.xlu0 %6988
  %6990 = vrot.lane.b32.xlu0 %v6835, 64
  %v6991 = vpop.permute.xlu0 %6990
  %6992 = vrot.lane.b32.xlu0 %v6836, 64
  %v6993 = vpop.permute.xlu0 %6992
  %6994 = vrot.lane.b32.xlu0 %v6837, 64
  %v6995 = vpop.permute.xlu0 %6994
  %6996 = vrot.lane.b32.xlu0 %v6838, 64
  %v6997 = vpop.permute.xlu0 %6996
  %6998 = vrot.lane.b32.xlu0 %v6839, 64
  %v6999 = vpop.permute.xlu0 %6998
  %7000 = vrot.lane.b32.xlu0 %v6840, 64
  %v7001 = vpop.permute.xlu0 %7000
  %7002 = vrot.lane.b32.xlu0 %v6841, 64
  %v7003 = vpop.permute.xlu0 %7002
  %7004 = vrot.lane.b32.xlu0 %v6842, 64
  %v7005 = vpop.permute.xlu0 %7004
  %7006 = vrot.lane.b32.xlu0 %v6843, 64
  %v7007 = vpop.permute.xlu0 %7006
  %7008 = vrot.lane.b32.xlu0 %v6844, 64
  %v7009 = vpop.permute.xlu0 %7008
  %7010 = vrot.lane.b32.xlu0 %v6845, 64
  %v7011 = vpop.permute.xlu0 %7010
  %7012 = vrot.lane.b32.xlu0 %v6846, 64
  %v7013 = vpop.permute.xlu0 %7012
  %7014 = vrot.lane.b32.xlu0 %v6847, 64
  %v7015 = vpop.permute.xlu0 %7014
  %7016 = vrot.lane.b32.xlu0 %v6848, 64
  %v7017 = vpop.permute.xlu0 %7016
  %7018 = vrot.lane.b32.xlu0 %v6849, 64
  %v7019 = vpop.permute.xlu0 %7018
  %7020 = vrot.lane.b32.xlu0 %v6850, 64
  %v7021 = vpop.permute.xlu0 %7020
  %7022 = vrot.lane.b32.xlu0 %v6851, 64
  %v7023 = vpop.permute.xlu0 %7022
  %7024 = vrot.lane.b32.xlu0 %v6852, 64
  %v7025 = vpop.permute.xlu0 %7024
  %7026 = vrot.lane.b32.xlu0 %v6853, 64
  %v7027 = vpop.permute.xlu0 %7026
  %7028 = vrot.lane.b32.xlu0 %v6854, 64
  %v7029 = vpop.permute.xlu0 %7028
  %7030 = vrot.lane.b32.xlu0 %v6855, 64
  %v7031 = vpop.permute.xlu0 %7030
  %7032 = vrot.lane.b32.xlu0 %v6856, 64
  %v7033 = vpop.permute.xlu0 %7032
  %7034 = vrot.lane.b32.xlu0 %v6857, 64
  %v7035 = vpop.permute.xlu0 %7034
  %7036 = vrot.lane.b32.xlu0 %v6858, 64
  %v7037 = vpop.permute.xlu0 %7036
  %7038 = vrot.lane.b32.xlu0 %v6859, 64
  %v7039 = vpop.permute.xlu0 %7038
  %7040 = vrot.lane.b32.xlu0 %v6860, 64
  %v7041 = vpop.permute.xlu0 %7040
  %7042 = vrot.lane.b32.xlu0 %v6861, 64
  %v7043 = vpop.permute.xlu0 %7042
  %7044 = vrot.lane.b32.xlu0 %v6862, 64
  %v7045 = vpop.permute.xlu0 %7044
  %7046 = vrot.lane.b32.xlu0 %v6863, 64
  %v7047 = vpop.permute.xlu0 %7046
  %7048 = vrot.lane.b32.xlu0 %v6864, 64
  %v7049 = vpop.permute.xlu0 %7048
  %7050 = vrot.lane.b32.xlu0 %v6865, 64
  %v7051 = vpop.permute.xlu0 %7050
  %7052 = vrot.lane.b32.xlu0 %v6866, 64
  %v7053 = vpop.permute.xlu0 %7052
  %7054 = vrot.lane.b32.xlu0 %v6867, 64
  %v7055 = vpop.permute.xlu0 %7054
  %7056 = vrot.lane.b32.xlu0 %v6868, 64
  %v7057 = vpop.permute.xlu0 %7056
  %7058 = vrot.lane.b32.xlu0 %v6869, 64
  %v7059 = vpop.permute.xlu0 %7058
  %7060 = vrot.lane.b32.xlu0 %v6870, 64
  %v7061 = vpop.permute.xlu0 %7060
  %7062 = vrot.lane.b32.xlu0 %v6871, 64
  %v7063 = vpop.permute.xlu0 %7062
  %7064 = vrot.lane.b32.xlu0 %v6872, 64
  %v7065 = vpop.permute.xlu0 %7064
  %7066 = vrot.lane.b32.xlu0 %v6873, 64
  %v7067 = vpop.permute.xlu0 %7066
  %7068 = vrot.lane.b32.xlu0 %v6874, 64
  %v7069 = vpop.permute.xlu0 %7068
  %7070 = vrot.lane.b32.xlu0 %v6875, 64
  %v7071 = vpop.permute.xlu0 %7070
  %7072 = vrot.lane.b32.xlu0 %v6876, 64
  %v7073 = vpop.permute.xlu0 %7072
  %7074 = vrot.lane.b32.xlu0 %v6877, 64
  %v7075 = vpop.permute.xlu0 %7074
  %7076 = vrot.lane.b32.xlu0 %v6878, 64
  %v7077 = vpop.permute.xlu0 %7076
  %7078 = vrot.lane.b32.xlu0 %v6879, 64
  %v7079 = vpop.permute.xlu0 %7078
  %7080 = vrot.lane.b32.xlu0 %v6880, 64
  %v7081 = vpop.permute.xlu0 %7080
  %7082 = vrot.lane.b32.xlu0 %v6881, 64
  %v7083 = vpop.permute.xlu0 %7082
  %7084 = vrot.lane.b32.xlu0 %v6882, 64
  %v7085 = vpop.permute.xlu0 %7084
  %7086 = vrot.lane.b32.xlu0 %v6883, 64
  %v7087 = vpop.permute.xlu0 %7086
  %7088 = vrot.lane.b32.xlu0 %v6884, 64
  %v7089 = vpop.permute.xlu0 %7088
  %7090 = vrot.lane.b32.xlu0 %v6885, 64
  %v7091 = vpop.permute.xlu0 %7090
  %7092 = vrot.lane.b32.xlu0 %v6886, 64
  %v7093 = vpop.permute.xlu0 %7092
  %7094 = vrot.lane.b32.xlu0 %v6887, 64
  %v7095 = vpop.permute.xlu0 %7094
  %7096 = vrot.lane.b32.xlu0 %v6888, 64
  %v7097 = vpop.permute.xlu0 %7096
  %7098 = vrot.lane.b32.xlu0 %v6889, 64
  %v7099 = vpop.permute.xlu0 %7098
  %7100 = vrot.lane.b32.xlu0 %v6890, 64
  %v7101 = vpop.permute.xlu0 %7100
  %7102 = vrot.lane.b32.xlu0 %v6891, 64
  %v7103 = vpop.permute.xlu0 %7102
  %7104 = vrot.lane.b32.xlu0 %v6892, 64
  %v7105 = vpop.permute.xlu0 %7104
  %7106 = vrot.lane.b32.xlu0 %v6893, 64
  %v7107 = vpop.permute.xlu0 %7106
  %7108 = vrot.lane.b32.xlu0 %v6894, 64
  %v7109 = vpop.permute.xlu0 %7108
  %7110 = vrot.lane.b32.xlu0 %v6895, 64
  %v7111 = vpop.permute.xlu0 %7110
  %7112 = vrot.lane.b32.xlu0 %v6896, 64
  %v7113 = vpop.permute.xlu0 %7112
  %7114 = vrot.lane.b32.xlu0 %v6897, 64
  %v7115 = vpop.permute.xlu0 %7114
  %7116 = vrot.lane.b32.xlu0 %v6898, 64
  %v7117 = vpop.permute.xlu0 %7116
  %7118 = vrot.lane.b32.xlu0 %v6899, 64
  %v7119 = vpop.permute.xlu0 %7118
  %7120 = vrot.lane.b32.xlu0 %v6900, 64
  %v7121 = vpop.permute.xlu0 %7120
  %7122 = vrot.lane.b32.xlu0 %v6901, 64
  %v7123 = vpop.permute.xlu0 %7122
  %7124 = vrot.lane.b32.xlu0 %v6902, 64
  %v7125 = vpop.permute.xlu0 %7124
  %7126 = vrot.lane.b32.xlu0 %v6903, 64
  %v7127 = vpop.permute.xlu0 %7126
  %7128 = vrot.lane.b32.xlu0 %v6904, 64
  %v7129 = vpop.permute.xlu0 %7128
  %7130 = vrot.lane.b32.xlu0 %v6905, 64
  %v7131 = vpop.permute.xlu0 %7130
  %7132 = vrot.lane.b32.xlu0 %v6906, 64
  %v7133 = vpop.permute.xlu0 %7132
  %7134 = vrot.lane.b32.xlu0 %v6907, 64
  %v7135 = vpop.permute.xlu0 %7134
  %7136 = vrot.lane.b32.xlu0 %v6908, 64
  %v7137 = vpop.permute.xlu0 %7136
  %7138 = vrot.lane.b32.xlu0 %v6909, 64
  %v7139 = vpop.permute.xlu0 %7138
  %7140 = vrot.lane.b32.xlu0 %v6910, 64
  %v7141 = vpop.permute.xlu0 %7140
  %7219 = vst.msk [vmem:[#allocation3 + $0x4] sm:$0xf] %vm4359, %v6989
  %7220 = vst.msk [vmem:[#allocation3 + $0x10] sm:$0xf] %vm4359, %v6991
  %7221 = vst.msk [vmem:[#allocation3 + $0x1c] sm:$0xf] %vm4359, %v6993
  %7222 = vst.msk [vmem:[#allocation3 + $0x28] sm:$0xf] %vm4359, %v6995
  %7223 = vst.msk [vmem:[#allocation3 + $0x34] sm:$0xf] %vm4359, %v6997
  %7224 = vst.msk [vmem:[#allocation3 + $0x40] sm:$0xf] %vm4359, %v6999
  %7225 = vst.msk [vmem:[#allocation3 + $0x4c] sm:$0xf] %vm4359, %v7001
  %7226 = vst.msk [vmem:[#allocation3 + $0x58] sm:$0xf] %vm4359, %v7003
  %7227 = vst.msk [vmem:[#allocation3 + $0x64] sm:$0xf] %vm4359, %v7005
  %7228 = vst.msk [vmem:[#allocation3 + $0x70] sm:$0xf] %vm4359, %v7007
  %7229 = vst.msk [vmem:[#allocation3 + $0x7c] sm:$0xf] %vm4359, %v7009
  %7230 = vst.msk [vmem:[#allocation3 + $0x88] sm:$0xf] %vm4359, %v7011
  %7231 = vst.msk [vmem:[#allocation3 + $0x94] sm:$0xf] %vm4359, %v7013
  %7232 = vst.msk [vmem:[#allocation3 + $0xa0] sm:$0xf] %vm4359, %v7015
  %7233 = vst.msk [vmem:[#allocation3 + $0xac] sm:$0xf] %vm4359, %v7017
  %7234 = vst.msk [vmem:[#allocation3 + $0xb8] sm:$0xf] %vm4359, %v7019
  %7235 = vst.msk [vmem:[#allocation3 + $0xc4] sm:$0xf] %vm4359, %v7021
  %7236 = vst.msk [vmem:[#allocation3 + $0xd0] sm:$0xf] %vm4359, %v7023
  %7237 = vst.msk [vmem:[#allocation3 + $0xdc] sm:$0xf] %vm4359, %v7025
  %7238 = vst.msk [vmem:[#allocation3 + $0xe8] sm:$0xf] %vm4359, %v7027
  %7239 = vst.msk [vmem:[#allocation3 + $0xf4] sm:$0xf] %vm4359, %v7029
  %7240 = vst.msk [vmem:[#allocation3 + $0x100] sm:$0xf] %vm4359, %v7031
  %7241 = vst.msk [vmem:[#allocation3 + $0x10c] sm:$0xf] %vm4359, %v7033
  %7242 = vst.msk [vmem:[#allocation3 + $0x118] sm:$0xf] %vm4359, %v7035
  %7243 = vst.msk [vmem:[#allocation3 + $0x124] sm:$0xf] %vm4359, %v7037
  %7244 = vst.msk [vmem:[#allocation3 + $0x130] sm:$0xf] %vm4359, %v7039
  %7245 = vst.msk [vmem:[#allocation3 + $0x13c] sm:$0xf] %vm4359, %v7041
  %7246 = vst.msk [vmem:[#allocation3 + $0x148] sm:$0xf] %vm4359, %v7043
  %7247 = vst.msk [vmem:[#allocation3 + $0x154] sm:$0xf] %vm4359, %v7045
  %7248 = vst.msk [vmem:[#allocation3 + $0x160] sm:$0xf] %vm4359, %v7047
  %7249 = vst.msk [vmem:[#allocation3 + $0x16c] sm:$0xf] %vm4359, %v7049
  %7250 = vst.msk [vmem:[#allocation3 + $0x178] sm:$0xf] %vm4359, %v7051
  %7251 = vst.msk [vmem:[#allocation3 + $0x184] sm:$0xf] %vm4359, %v7053
  %7252 = vst.msk [vmem:[#allocation3 + $0x190] sm:$0xf] %vm4359, %v7055
  %7253 = vst.msk [vmem:[#allocation3 + $0x19c] sm:$0xf] %vm4359, %v7057
  %7254 = vst.msk [vmem:[#allocation3 + $0x1a8] sm:$0xf] %vm4359, %v7059
  %7255 = vst.msk [vmem:[#allocation3 + $0x1b4] sm:$0xf] %vm4359, %v7061
  %7256 = vst.msk [vmem:[#allocation3 + $0x1c0] sm:$0xf] %vm4359, %v7063
  %7257 = vst.msk [vmem:[#allocation3 + $0x1cc] sm:$0xf] %vm4359, %v7065
  %7258 = vst.msk [vmem:[#allocation3 + $0x1d8] sm:$0xf] %vm4359, %v7067
  %7259 = vst.msk [vmem:[#allocation3 + $0x1e4] sm:$0xf] %vm4359, %v7069
  %7260 = vst.msk [vmem:[#allocation3 + $0x1f0] sm:$0xf] %vm4359, %v7071
  %7261 = vst.msk [vmem:[#allocation3 + $0x1fc] sm:$0xf] %vm4359, %v7073
  %7262 = vst.msk [vmem:[#allocation3 + $0x208] sm:$0xf] %vm4359, %v7075
  %7263 = vst.msk [vmem:[#allocation3 + $0x214] sm:$0xf] %vm4359, %v7077
  %7264 = vst.msk [vmem:[#allocation3 + $0x220] sm:$0xf] %vm4359, %v7079
  %7265 = vst.msk [vmem:[#allocation3 + $0x22c] sm:$0xf] %vm4359, %v7081
  %7266 = vst.msk [vmem:[#allocation3 + $0x238] sm:$0xf] %vm4359, %v7083
  %7267 = vst.msk [vmem:[#allocation3 + $0x244] sm:$0xf] %vm4359, %v7085
  %7268 = vst.msk [vmem:[#allocation3 + $0x250] sm:$0xf] %vm4359, %v7087
  %7269 = vst.msk [vmem:[#allocation3 + $0x25c] sm:$0xf] %vm4359, %v7089
  %7270 = vst.msk [vmem:[#allocation3 + $0x268] sm:$0xf] %vm4359, %v7091
  %7271 = vst.msk [vmem:[#allocation3 + $0x274] sm:$0xf] %vm4359, %v7093
  %7272 = vst.msk [vmem:[#allocation3 + $0x280] sm:$0xf] %vm4359, %v7095
  %7273 = vst.msk [vmem:[#allocation3 + $0x28c] sm:$0xf] %vm4359, %v7097
  %7274 = vst.msk [vmem:[#allocation3 + $0x298] sm:$0xf] %vm4359, %v7099
  %7275 = vst.msk [vmem:[#allocation3 + $0x2a4] sm:$0xf] %vm4359, %v7101
  %7276 = vst.msk [vmem:[#allocation3 + $0x2b0] sm:$0xf] %vm4359, %v7103
  %7277 = vst.msk [vmem:[#allocation3 + $0x2bc] sm:$0xf] %vm4359, %v7105
  %7278 = vst.msk [vmem:[#allocation3 + $0x2c8] sm:$0xf] %vm4359, %v7107
  %7279 = vst.msk [vmem:[#allocation3 + $0x2d4] sm:$0xf] %vm4359, %v7109
  %7280 = vst.msk [vmem:[#allocation3 + $0x2e0] sm:$0xf] %vm4359, %v7111
  %7281 = vst.msk [vmem:[#allocation3 + $0x2ec] sm:$0xf] %vm4359, %v7113
  %7282 = vst.msk [vmem:[#allocation3 + $0x2f8] sm:$0xf] %vm4359, %v7115
  %7283 = vst.msk [vmem:[#allocation3 + $0x304] sm:$0xf] %vm4359, %v7117
  %7284 = vst.msk [vmem:[#allocation3 + $0x310] sm:$0xf] %vm4359, %v7119
  %7285 = vst.msk [vmem:[#allocation3 + $0x31c] sm:$0xf] %vm4359, %v7121
  %7286 = vst.msk [vmem:[#allocation3 + $0x328] sm:$0xf] %vm4359, %v7123
  %7287 = vst.msk [vmem:[#allocation3 + $0x334] sm:$0xf] %vm4359, %v7125
  %7288 = vst.msk [vmem:[#allocation3 + $0x340] sm:$0xf] %vm4359, %v7127
  %7289 = vst.msk [vmem:[#allocation3 + $0x34c] sm:$0xf] %vm4359, %v7129
  %7290 = vst.msk [vmem:[#allocation3 + $0x358] sm:$0xf] %vm4359, %v7131
  %7291 = vst.msk [vmem:[#allocation3 + $0x364] sm:$0xf] %vm4359, %v7133
  %7292 = vst.msk [vmem:[#allocation3 + $0x370] sm:$0xf] %vm4359, %v7135
  %7293 = vst.msk [vmem:[#allocation3 + $0x37c] sm:$0xf] %vm4359, %v7137
  %7294 = vst.msk [vmem:[#allocation3 + $0x388] sm:$0xf] %vm4359, %v7139
  %7295 = vst.msk [vmem:[#allocation3 + $0x394] sm:$0x3] %vm4436, %v7141
  %v7296 = vld [vmem:[#allocation2 + $0x14] sm:$0xf]
  %v7297 = vld [vmem:[#allocation2 + $0x18] sm:$0xf]
  %v7298 = vld [vmem:[#allocation2 + $0x1c] sm:$0xf]
  %v7299 = vld [vmem:[#allocation2 + $0x20] sm:$0xf]
  %v7300 = vld [vmem:[#allocation2 + $0x24] sm:$0xf]
  %v7301 = vld [vmem:[#allocation2 + $0x28] sm:$0xf]
  %v7302 = vld [vmem:[#allocation2 + $0x2c] sm:$0xf]
  %v7303 = vld [vmem:[#allocation2 + $0x30] sm:$0xf]
  %v7304 = vld [vmem:[#allocation2 + $0x34] sm:$0xf]
  %v7305 = vld [vmem:[#allocation2 + $0x38] sm:$0xf]
  %v7306 = vld [vmem:[#allocation2 + $0x3c] sm:$0xf]
  %v7307 = vld [vmem:[#allocation2 + $0x40] sm:$0xf]
  %v7308 = vld [vmem:[#allocation2 + $0x44] sm:$0xf]
  %v7309 = vld [vmem:[#allocation2 + $0x48] sm:$0xf]
  %v7310 = vld [vmem:[#allocation2 + $0x4c] sm:$0xf]
  %v7311 = vld [vmem:[#allocation2 + $0x50] sm:$0xf]
  %v7312 = vld [vmem:[#allocation2 + $0x54] sm:$0xf]
  %v7313 = vld [vmem:[#allocation2 + $0x58] sm:$0xf]
  %v7314 = vld [vmem:[#allocation2 + $0x5c] sm:$0xf]
  %v7315 = vld [vmem:[#allocation2 + $0x60] sm:$0xf]
  %v7316 = vld [vmem:[#allocation2 + $0x64] sm:$0xf]
  %v7317 = vld [vmem:[#allocation2 + $0x68] sm:$0xf]
  %v7318 = vld [vmem:[#allocation2 + $0x6c] sm:$0xf]
  %v7319 = vld [vmem:[#allocation2 + $0x70] sm:$0xf]
  %v7320 = vld [vmem:[#allocation2 + $0x74] sm:$0xf]
  %v7321 = vld [vmem:[#allocation2 + $0x78] sm:$0xf]
  %v7322 = vld [vmem:[#allocation2 + $0x7c] sm:$0xf]
  %v7323 = vld [vmem:[#allocation2 + $0x80] sm:$0xf]
  %v7324 = vld [vmem:[#allocation2 + $0x84] sm:$0xf]
  %v7325 = vld [vmem:[#allocation2 + $0x88] sm:$0xf]
  %v7326 = vld [vmem:[#allocation2 + $0x8c] sm:$0xf]
  %v7327 = vld [vmem:[#allocation2 + $0x90] sm:$0xf]
  %v7328 = vld [vmem:[#allocation2 + $0x94] sm:$0xf]
  %v7329 = vld [vmem:[#allocation2 + $0x98] sm:$0xf]
  %v7330 = vld [vmem:[#allocation2 + $0x9c] sm:$0xf]
  %v7331 = vld [vmem:[#allocation2 + $0xa0] sm:$0xf]
  %v7332 = vld [vmem:[#allocation2 + $0xa4] sm:$0xf]
  %v7333 = vld [vmem:[#allocation2 + $0xa8] sm:$0xf]
  %v7334 = vld [vmem:[#allocation2 + $0xac] sm:$0xf]
  %v7335 = vld [vmem:[#allocation2 + $0xb0] sm:$0xf]
  %v7336 = vld [vmem:[#allocation2 + $0xb4] sm:$0xf]
  %v7337 = vld [vmem:[#allocation2 + $0xb8] sm:$0xf]
  %v7338 = vld [vmem:[#allocation2 + $0xbc] sm:$0xf]
  %v7339 = vld [vmem:[#allocation2 + $0xc0] sm:$0xf]
  %v7340 = vld [vmem:[#allocation2 + $0xc4] sm:$0xf]
  %v7341 = vld [vmem:[#allocation2 + $0xc8] sm:$0xf]
  %v7342 = vld [vmem:[#allocation2 + $0xcc] sm:$0xf]
  %v7343 = vld [vmem:[#allocation2 + $0xd0] sm:$0xf]
  %v7344 = vld [vmem:[#allocation2 + $0xd4] sm:$0xf]
  %v7345 = vld [vmem:[#allocation2 + $0xd8] sm:$0xf]
  %v7346 = vld [vmem:[#allocation2 + $0xdc] sm:$0xf]
  %v7347 = vld [vmem:[#allocation2 + $0xe0] sm:$0xf]
  %v7348 = vld [vmem:[#allocation2 + $0xe4] sm:$0xf]
  %v7349 = vld [vmem:[#allocation2 + $0xe8] sm:$0xf]
  %v7350 = vld [vmem:[#allocation2 + $0xec] sm:$0xf]
  %v7351 = vld [vmem:[#allocation2 + $0xf0] sm:$0xf]
  %v7352 = vld [vmem:[#allocation2 + $0xf4] sm:$0xf]
  %v7353 = vld [vmem:[#allocation2 + $0xf8] sm:$0xf]
  %v7354 = vld [vmem:[#allocation2 + $0xfc] sm:$0xf]
  %v7355 = vld [vmem:[#allocation2 + $0x100] sm:$0xf]
  %v7356 = vld [vmem:[#allocation2 + $0x104] sm:$0xf]
  %v7357 = vld [vmem:[#allocation2 + $0x108] sm:$0xf]
  %v7358 = vld [vmem:[#allocation2 + $0x10c] sm:$0xf]
  %v7359 = vld [vmem:[#allocation2 + $0x110] sm:$0xf]
  %v7360 = vld [vmem:[#allocation2 + $0x114] sm:$0xf]
  %v7361 = vld [vmem:[#allocation2 + $0x118] sm:$0xf]
  %v7362 = vld [vmem:[#allocation2 + $0x11c] sm:$0xf]
  %v7363 = vld [vmem:[#allocation2 + $0x120] sm:$0xf]
  %v7364 = vld [vmem:[#allocation2 + $0x124] sm:$0xf]
  %v7365 = vld [vmem:[#allocation2 + $0x128] sm:$0xf]
  %v7366 = vld [vmem:[#allocation2 + $0x12c] sm:$0xf]
  %v7367 = vld [vmem:[#allocation2 + $0x130] sm:$0xf]
  %v7368 = vld [vmem:[#allocation2 + $0x134] sm:$0xf]
  %v7369 = vld [vmem:[#allocation2 + $0x138] sm:$0xf]
  %v7370 = vld [vmem:[#allocation2 + $0x13c] sm:$0xf]
  %v7371 = vld [vmem:[#allocation2 + $0x140] sm:$0xf]
  %v7372 = vld [vmem:[#allocation2 + $0x144] sm:$0x7]
  %v7374 = vshrl.u32 %v7296, 16
  %v7376 = vrot.slane %v7374, 4
  %v7377 = vshll.u32 %v7296, 16
  %v7379 = vrot.slane %v7377, 5
  %v7380 = vor.u32 %v7376, %v7379
  %v7381 = vrot.slane %v7380, 4
  %v7383 = vshll.u32 %v7297, 16
  %v7385 = vrot.slane %v7383, 5
  %v7386 = vsel %vm5756, %v7381, %v7385
  %v7387 = vshrl.u32 %v7297, 16
  %v7389 = vrot.slane %v7387, 4
  %v7390 = vor.u32 %v7389, %v7385
  %v7391 = vrot.slane %v7390, 4
  %v7393 = vshll.u32 %v7298, 16
  %v7395 = vrot.slane %v7393, 5
  %v7396 = vsel %vm5756, %v7391, %v7395
  %v7397 = vshrl.u32 %v7298, 16
  %v7399 = vrot.slane %v7397, 4
  %v7400 = vor.u32 %v7399, %v7395
  %v7401 = vrot.slane %v7400, 4
  %v7403 = vshll.u32 %v7299, 16
  %v7405 = vrot.slane %v7403, 5
  %v7406 = vsel %vm5756, %v7401, %v7405
  %v7407 = vshrl.u32 %v7299, 16
  %v7409 = vrot.slane %v7407, 4
  %v7410 = vor.u32 %v7409, %v7405
  %v7411 = vrot.slane %v7410, 4
  %v7413 = vshll.u32 %v7300, 16
  %v7415 = vrot.slane %v7413, 5
  %v7416 = vsel %vm5756, %v7411, %v7415
  %v7417 = vshrl.u32 %v7300, 16
  %v7419 = vrot.slane %v7417, 4
  %v7420 = vor.u32 %v7419, %v7415
  %v7421 = vrot.slane %v7420, 4
  %v7423 = vshll.u32 %v7301, 16
  %v7425 = vrot.slane %v7423, 5
  %v7426 = vsel %vm5756, %v7421, %v7425
  %v7427 = vshrl.u32 %v7301, 16
  %v7429 = vrot.slane %v7427, 4
  %v7430 = vor.u32 %v7429, %v7425
  %v7431 = vrot.slane %v7430, 4
  %v7433 = vshll.u32 %v7302, 16
  %v7435 = vrot.slane %v7433, 5
  %v7436 = vsel %vm5756, %v7431, %v7435
  %v7437 = vshrl.u32 %v7302, 16
  %v7439 = vrot.slane %v7437, 4
  %v7440 = vor.u32 %v7439, %v7435
  %v7441 = vrot.slane %v7440, 4
  %v7443 = vshll.u32 %v7303, 16
  %v7445 = vrot.slane %v7443, 5
  %v7446 = vsel %vm5756, %v7441, %v7445
  %v7447 = vshrl.u32 %v7303, 16
  %v7449 = vrot.slane %v7447, 4
  %v7450 = vor.u32 %v7449, %v7445
  %v7451 = vrot.slane %v7450, 4
  %v7453 = vshll.u32 %v7304, 16
  %v7455 = vrot.slane %v7453, 5
  %v7456 = vsel %vm5756, %v7451, %v7455
  %v7457 = vshrl.u32 %v7304, 16
  %v7459 = vrot.slane %v7457, 4
  %v7460 = vor.u32 %v7459, %v7455
  %v7461 = vrot.slane %v7460, 4
  %v7463 = vshll.u32 %v7305, 16
  %v7465 = vrot.slane %v7463, 5
  %v7466 = vsel %vm5756, %v7461, %v7465
  %v7467 = vshrl.u32 %v7305, 16
  %v7469 = vrot.slane %v7467, 4
  %v7470 = vor.u32 %v7469, %v7465
  %v7471 = vrot.slane %v7470, 4
  %v7473 = vshll.u32 %v7306, 16
  %v7475 = vrot.slane %v7473, 5
  %v7476 = vsel %vm5756, %v7471, %v7475
  %v7477 = vshrl.u32 %v7306, 16
  %v7479 = vrot.slane %v7477, 4
  %v7480 = vor.u32 %v7479, %v7475
  %v7481 = vrot.slane %v7480, 4
  %v7483 = vshll.u32 %v7307, 16
  %v7485 = vrot.slane %v7483, 5
  %v7486 = vsel %vm5756, %v7481, %v7485
  %v7487 = vshrl.u32 %v7307, 16
  %v7489 = vrot.slane %v7487, 4
  %v7490 = vor.u32 %v7489, %v7485
  %v7491 = vrot.slane %v7490, 4
  %v7493 = vshll.u32 %v7308, 16
  %v7495 = vrot.slane %v7493, 5
  %v7496 = vsel %vm5756, %v7491, %v7495
  %v7497 = vshrl.u32 %v7308, 16
  %v7499 = vrot.slane %v7497, 4
  %v7500 = vor.u32 %v7499, %v7495
  %v7501 = vrot.slane %v7500, 4
  %v7503 = vshll.u32 %v7309, 16
  %v7505 = vrot.slane %v7503, 5
  %v7506 = vsel %vm5756, %v7501, %v7505
  %v7507 = vshrl.u32 %v7309, 16
  %v7509 = vrot.slane %v7507, 4
  %v7510 = vor.u32 %v7509, %v7505
  %v7511 = vrot.slane %v7510, 4
  %v7513 = vshll.u32 %v7310, 16
  %v7515 = vrot.slane %v7513, 5
  %v7516 = vsel %vm5756, %v7511, %v7515
  %v7517 = vshrl.u32 %v7310, 16
  %v7519 = vrot.slane %v7517, 4
  %v7520 = vor.u32 %v7519, %v7515
  %v7521 = vrot.slane %v7520, 4
  %v7523 = vshll.u32 %v7311, 16
  %v7525 = vrot.slane %v7523, 5
  %v7526 = vsel %vm5756, %v7521, %v7525
  %v7527 = vshrl.u32 %v7311, 16
  %v7529 = vrot.slane %v7527, 4
  %v7530 = vor.u32 %v7529, %v7525
  %v7531 = vrot.slane %v7530, 4
  %v7533 = vshll.u32 %v7312, 16
  %v7535 = vrot.slane %v7533, 5
  %v7536 = vsel %vm5756, %v7531, %v7535
  %v7537 = vshrl.u32 %v7312, 16
  %v7539 = vrot.slane %v7537, 4
  %v7540 = vor.u32 %v7539, %v7535
  %v7541 = vrot.slane %v7540, 4
  %v7543 = vshll.u32 %v7313, 16
  %v7545 = vrot.slane %v7543, 5
  %v7546 = vsel %vm5756, %v7541, %v7545
  %v7547 = vshrl.u32 %v7313, 16
  %v7549 = vrot.slane %v7547, 4
  %v7550 = vor.u32 %v7549, %v7545
  %v7551 = vrot.slane %v7550, 4
  %v7553 = vshll.u32 %v7314, 16
  %v7555 = vrot.slane %v7553, 5
  %v7556 = vsel %vm5756, %v7551, %v7555
  %v7557 = vshrl.u32 %v7314, 16
  %v7559 = vrot.slane %v7557, 4
  %v7560 = vor.u32 %v7559, %v7555
  %v7561 = vrot.slane %v7560, 4
  %v7563 = vshll.u32 %v7315, 16
  %v7565 = vrot.slane %v7563, 5
  %v7566 = vsel %vm5756, %v7561, %v7565
  %v7567 = vshrl.u32 %v7315, 16
  %v7569 = vrot.slane %v7567, 4
  %v7570 = vor.u32 %v7569, %v7565
  %v7571 = vrot.slane %v7570, 4
  %v7573 = vshll.u32 %v7316, 16
  %v7575 = vrot.slane %v7573, 5
  %v7576 = vsel %vm5756, %v7571, %v7575
  %v7577 = vshrl.u32 %v7316, 16
  %v7579 = vrot.slane %v7577, 4
  %v7580 = vor.u32 %v7579, %v7575
  %v7581 = vrot.slane %v7580, 4
  %v7583 = vshll.u32 %v7317, 16
  %v7585 = vrot.slane %v7583, 5
  %v7586 = vsel %vm5756, %v7581, %v7585
  %v7587 = vshrl.u32 %v7317, 16
  %v7589 = vrot.slane %v7587, 4
  %v7590 = vor.u32 %v7589, %v7585
  %v7591 = vrot.slane %v7590, 4
  %v7593 = vshll.u32 %v7318, 16
  %v7595 = vrot.slane %v7593, 5
  %v7596 = vsel %vm5756, %v7591, %v7595
  %v7597 = vshrl.u32 %v7318, 16
  %v7599 = vrot.slane %v7597, 4
  %v7600 = vor.u32 %v7599, %v7595
  %v7601 = vrot.slane %v7600, 4
  %v7603 = vshll.u32 %v7319, 16
  %v7605 = vrot.slane %v7603, 5
  %v7606 = vsel %vm5756, %v7601, %v7605
  %v7607 = vshrl.u32 %v7319, 16
  %v7609 = vrot.slane %v7607, 4
  %v7610 = vor.u32 %v7609, %v7605
  %v7611 = vrot.slane %v7610, 4
  %v7613 = vshll.u32 %v7320, 16
  %v7615 = vrot.slane %v7613, 5
  %v7616 = vsel %vm5756, %v7611, %v7615
  %v7617 = vshrl.u32 %v7320, 16
  %v7619 = vrot.slane %v7617, 4
  %v7620 = vor.u32 %v7619, %v7615
  %v7621 = vrot.slane %v7620, 4
  %v7623 = vshll.u32 %v7321, 16
  %v7625 = vrot.slane %v7623, 5
  %v7626 = vsel %vm5756, %v7621, %v7625
  %v7627 = vshrl.u32 %v7321, 16
  %v7629 = vrot.slane %v7627, 4
  %v7630 = vor.u32 %v7629, %v7625
  %v7631 = vrot.slane %v7630, 4
  %v7633 = vshll.u32 %v7322, 16
  %v7635 = vrot.slane %v7633, 5
  %v7636 = vsel %vm5756, %v7631, %v7635
  %v7637 = vshrl.u32 %v7322, 16
  %v7639 = vrot.slane %v7637, 4
  %v7640 = vor.u32 %v7639, %v7635
  %v7641 = vrot.slane %v7640, 4
  %v7643 = vshll.u32 %v7323, 16
  %v7645 = vrot.slane %v7643, 5
  %v7646 = vsel %vm5756, %v7641, %v7645
  %v7647 = vshrl.u32 %v7323, 16
  %v7649 = vrot.slane %v7647, 4
  %v7650 = vor.u32 %v7649, %v7645
  %v7651 = vrot.slane %v7650, 4
  %v7653 = vshll.u32 %v7324, 16
  %v7655 = vrot.slane %v7653, 5
  %v7656 = vsel %vm5756, %v7651, %v7655
  %v7657 = vshrl.u32 %v7324, 16
  %v7659 = vrot.slane %v7657, 4
  %v7660 = vor.u32 %v7659, %v7655
  %v7661 = vrot.slane %v7660, 4
  %v7663 = vshll.u32 %v7325, 16
  %v7665 = vrot.slane %v7663, 5
  %v7666 = vsel %vm5756, %v7661, %v7665
  %v7667 = vshrl.u32 %v7325, 16
  %v7669 = vrot.slane %v7667, 4
  %v7670 = vor.u32 %v7669, %v7665
  %v7671 = vrot.slane %v7670, 4
  %v7673 = vshll.u32 %v7326, 16
  %v7675 = vrot.slane %v7673, 5
  %v7676 = vsel %vm5756, %v7671, %v7675
  %v7677 = vshrl.u32 %v7326, 16
  %v7679 = vrot.slane %v7677, 4
  %v7680 = vor.u32 %v7679, %v7675
  %v7681 = vrot.slane %v7680, 4
  %v7683 = vshll.u32 %v7327, 16
  %v7685 = vrot.slane %v7683, 5
  %v7686 = vsel %vm5756, %v7681, %v7685
  %v7687 = vshrl.u32 %v7327, 16
  %v7689 = vrot.slane %v7687, 4
  %v7690 = vor.u32 %v7689, %v7685
  %v7691 = vrot.slane %v7690, 4
  %v7693 = vshll.u32 %v7328, 16
  %v7695 = vrot.slane %v7693, 5
  %v7696 = vsel %vm5756, %v7691, %v7695
  %v7697 = vshrl.u32 %v7328, 16
  %v7699 = vrot.slane %v7697, 4
  %v7700 = vor.u32 %v7699, %v7695
  %v7701 = vrot.slane %v7700, 4
  %v7703 = vshll.u32 %v7329, 16
  %v7705 = vrot.slane %v7703, 5
  %v7706 = vsel %vm5756, %v7701, %v7705
  %v7707 = vshrl.u32 %v7329, 16
  %v7709 = vrot.slane %v7707, 4
  %v7710 = vor.u32 %v7709, %v7705
  %v7711 = vrot.slane %v7710, 4
  %v7713 = vshll.u32 %v7330, 16
  %v7715 = vrot.slane %v7713, 5
  %v7716 = vsel %vm5756, %v7711, %v7715
  %v7717 = vshrl.u32 %v7330, 16
  %v7719 = vrot.slane %v7717, 4
  %v7720 = vor.u32 %v7719, %v7715
  %v7721 = vrot.slane %v7720, 4
  %v7723 = vshll.u32 %v7331, 16
  %v7725 = vrot.slane %v7723, 5
  %v7726 = vsel %vm5756, %v7721, %v7725
  %v7727 = vshrl.u32 %v7331, 16
  %v7729 = vrot.slane %v7727, 4
  %v7730 = vor.u32 %v7729, %v7725
  %v7731 = vrot.slane %v7730, 4
  %v7733 = vshll.u32 %v7332, 16
  %v7735 = vrot.slane %v7733, 5
  %v7736 = vsel %vm5756, %v7731, %v7735
  %v7737 = vshrl.u32 %v7332, 16
  %v7739 = vrot.slane %v7737, 4
  %v7740 = vor.u32 %v7739, %v7735
  %v7741 = vrot.slane %v7740, 4
  %v7743 = vshll.u32 %v7333, 16
  %v7745 = vrot.slane %v7743, 5
  %v7746 = vsel %vm5756, %v7741, %v7745
  %v7747 = vshrl.u32 %v7333, 16
  %v7749 = vrot.slane %v7747, 4
  %v7750 = vor.u32 %v7749, %v7745
  %v7751 = vrot.slane %v7750, 4
  %v7753 = vshll.u32 %v7334, 16
  %v7755 = vrot.slane %v7753, 5
  %v7756 = vsel %vm5756, %v7751, %v7755
  %v7757 = vshrl.u32 %v7334, 16
  %v7759 = vrot.slane %v7757, 4
  %v7760 = vor.u32 %v7759, %v7755
  %v7761 = vrot.slane %v7760, 4
  %v7763 = vshll.u32 %v7335, 16
  %v7765 = vrot.slane %v7763, 5
  %v7766 = vsel %vm5756, %v7761, %v7765
  %v7767 = vshrl.u32 %v7335, 16
  %v7769 = vrot.slane %v7767, 4
  %v7770 = vor.u32 %v7769, %v7765
  %v7771 = vrot.slane %v7770, 4
  %v7773 = vshll.u32 %v7336, 16
  %v7775 = vrot.slane %v7773, 5
  %v7776 = vsel %vm5756, %v7771, %v7775
  %v7777 = vshrl.u32 %v7336, 16
  %v7779 = vrot.slane %v7777, 4
  %v7780 = vor.u32 %v7779, %v7775
  %v7781 = vrot.slane %v7780, 4
  %v7783 = vshll.u32 %v7337, 16
  %v7785 = vrot.slane %v7783, 5
  %v7786 = vsel %vm5756, %v7781, %v7785
  %v7787 = vshrl.u32 %v7337, 16
  %v7789 = vrot.slane %v7787, 4
  %v7790 = vor.u32 %v7789, %v7785
  %v7791 = vrot.slane %v7790, 4
  %v7793 = vshll.u32 %v7338, 16
  %v7795 = vrot.slane %v7793, 5
  %v7796 = vsel %vm5756, %v7791, %v7795
  %v7797 = vshrl.u32 %v7338, 16
  %v7799 = vrot.slane %v7797, 4
  %v7800 = vor.u32 %v7799, %v7795
  %v7801 = vrot.slane %v7800, 4
  %v7803 = vshll.u32 %v7339, 16
  %v7805 = vrot.slane %v7803, 5
  %v7806 = vsel %vm5756, %v7801, %v7805
  %v7807 = vshrl.u32 %v7339, 16
  %v7809 = vrot.slane %v7807, 4
  %v7810 = vor.u32 %v7809, %v7805
  %v7811 = vrot.slane %v7810, 4
  %v7813 = vshll.u32 %v7340, 16
  %v7815 = vrot.slane %v7813, 5
  %v7816 = vsel %vm5756, %v7811, %v7815
  %v7817 = vshrl.u32 %v7340, 16
  %v7819 = vrot.slane %v7817, 4
  %v7820 = vor.u32 %v7819, %v7815
  %v7821 = vrot.slane %v7820, 4
  %v7823 = vshll.u32 %v7341, 16
  %v7825 = vrot.slane %v7823, 5
  %v7826 = vsel %vm5756, %v7821, %v7825
  %v7827 = vshrl.u32 %v7341, 16
  %v7829 = vrot.slane %v7827, 4
  %v7830 = vor.u32 %v7829, %v7825
  %v7831 = vrot.slane %v7830, 4
  %v7833 = vshll.u32 %v7342, 16
  %v7835 = vrot.slane %v7833, 5
  %v7836 = vsel %vm5756, %v7831, %v7835
  %v7837 = vshrl.u32 %v7342, 16
  %v7839 = vrot.slane %v7837, 4
  %v7840 = vor.u32 %v7839, %v7835
  %v7841 = vrot.slane %v7840, 4
  %v7843 = vshll.u32 %v7343, 16
  %v7845 = vrot.slane %v7843, 5
  %v7846 = vsel %vm5756, %v7841, %v7845
  %v7847 = vshrl.u32 %v7343, 16
  %v7849 = vrot.slane %v7847, 4
  %v7850 = vor.u32 %v7849, %v7845
  %v7851 = vrot.slane %v7850, 4
  %v7853 = vshll.u32 %v7344, 16
  %v7855 = vrot.slane %v7853, 5
  %v7856 = vsel %vm5756, %v7851, %v7855
  %v7857 = vshrl.u32 %v7344, 16
  %v7859 = vrot.slane %v7857, 4
  %v7860 = vor.u32 %v7859, %v7855
  %v7861 = vrot.slane %v7860, 4
  %v7863 = vshll.u32 %v7345, 16
  %v7865 = vrot.slane %v7863, 5
  %v7866 = vsel %vm5756, %v7861, %v7865
  %v7867 = vshrl.u32 %v7345, 16
  %v7869 = vrot.slane %v7867, 4
  %v7870 = vor.u32 %v7869, %v7865
  %v7871 = vrot.slane %v7870, 4
  %v7873 = vshll.u32 %v7346, 16
  %v7875 = vrot.slane %v7873, 5
  %v7876 = vsel %vm5756, %v7871, %v7875
  %v7877 = vshrl.u32 %v7346, 16
  %v7879 = vrot.slane %v7877, 4
  %v7880 = vor.u32 %v7879, %v7875
  %v7881 = vrot.slane %v7880, 4
  %v7883 = vshll.u32 %v7347, 16
  %v7885 = vrot.slane %v7883, 5
  %v7886 = vsel %vm5756, %v7881, %v7885
  %v7887 = vshrl.u32 %v7347, 16
  %v7889 = vrot.slane %v7887, 4
  %v7890 = vor.u32 %v7889, %v7885
  %v7891 = vrot.slane %v7890, 4
  %v7893 = vshll.u32 %v7348, 16
  %v7895 = vrot.slane %v7893, 5
  %v7896 = vsel %vm5756, %v7891, %v7895
  %v7897 = vshrl.u32 %v7348, 16
  %v7899 = vrot.slane %v7897, 4
  %v7900 = vor.u32 %v7899, %v7895
  %v7901 = vrot.slane %v7900, 4
  %v7903 = vshll.u32 %v7349, 16
  %v7905 = vrot.slane %v7903, 5
  %v7906 = vsel %vm5756, %v7901, %v7905
  %v7907 = vshrl.u32 %v7349, 16
  %v7909 = vrot.slane %v7907, 4
  %v7910 = vor.u32 %v7909, %v7905
  %v7911 = vrot.slane %v7910, 4
  %v7913 = vshll.u32 %v7350, 16
  %v7915 = vrot.slane %v7913, 5
  %v7916 = vsel %vm5756, %v7911, %v7915
  %v7917 = vshrl.u32 %v7350, 16
  %v7919 = vrot.slane %v7917, 4
  %v7920 = vor.u32 %v7919, %v7915
  %v7921 = vrot.slane %v7920, 4
  %v7923 = vshll.u32 %v7351, 16
  %v7925 = vrot.slane %v7923, 5
  %v7926 = vsel %vm5756, %v7921, %v7925
  %v7927 = vshrl.u32 %v7351, 16
  %v7929 = vrot.slane %v7927, 4
  %v7930 = vor.u32 %v7929, %v7925
  %v7931 = vrot.slane %v7930, 4
  %v7933 = vshll.u32 %v7352, 16
  %v7935 = vrot.slane %v7933, 5
  %v7936 = vsel %vm5756, %v7931, %v7935
  %v7937 = vshrl.u32 %v7352, 16
  %v7939 = vrot.slane %v7937, 4
  %v7940 = vor.u32 %v7939, %v7935
  %v7941 = vrot.slane %v7940, 4
  %v7943 = vshll.u32 %v7353, 16
  %v7945 = vrot.slane %v7943, 5
  %v7946 = vsel %vm5756, %v7941, %v7945
  %v7947 = vshrl.u32 %v7353, 16
  %v7949 = vrot.slane %v7947, 4
  %v7950 = vor.u32 %v7949, %v7945
  %v7951 = vrot.slane %v7950, 4
  %v7953 = vshll.u32 %v7354, 16
  %v7955 = vrot.slane %v7953, 5
  %v7956 = vsel %vm5756, %v7951, %v7955
  %v7957 = vshrl.u32 %v7354, 16
  %v7959 = vrot.slane %v7957, 4
  %v7960 = vor.u32 %v7959, %v7955
  %v7961 = vrot.slane %v7960, 4
  %v7963 = vshll.u32 %v7355, 16
  %v7965 = vrot.slane %v7963, 5
  %v7966 = vsel %vm5756, %v7961, %v7965
  %v7967 = vshrl.u32 %v7355, 16
  %v7969 = vrot.slane %v7967, 4
  %v7970 = vor.u32 %v7969, %v7965
  %v7971 = vrot.slane %v7970, 4
  %v7973 = vshll.u32 %v7356, 16
  %v7975 = vrot.slane %v7973, 5
  %v7976 = vsel %vm5756, %v7971, %v7975
  %v7977 = vshrl.u32 %v7356, 16
  %v7979 = vrot.slane %v7977, 4
  %v7980 = vor.u32 %v7979, %v7975
  %v7981 = vrot.slane %v7980, 4
  %v7983 = vshll.u32 %v7357, 16
  %v7985 = vrot.slane %v7983, 5
  %v7986 = vsel %vm5756, %v7981, %v7985
  %v7987 = vshrl.u32 %v7357, 16
  %v7989 = vrot.slane %v7987, 4
  %v7990 = vor.u32 %v7989, %v7985
  %v7991 = vrot.slane %v7990, 4
  %v7993 = vshll.u32 %v7358, 16
  %v7995 = vrot.slane %v7993, 5
  %v7996 = vsel %vm5756, %v7991, %v7995
  %v7997 = vshrl.u32 %v7358, 16
  %v7999 = vrot.slane %v7997, 4
  %v8000 = vor.u32 %v7999, %v7995
  %v8001 = vrot.slane %v8000, 4
  %v8003 = vshll.u32 %v7359, 16
  %v8005 = vrot.slane %v8003, 5
  %v8006 = vsel %vm5756, %v8001, %v8005
  %v8007 = vshrl.u32 %v7359, 16
  %v8009 = vrot.slane %v8007, 4
  %v8010 = vor.u32 %v8009, %v8005
  %v8011 = vrot.slane %v8010, 4
  %v8013 = vshll.u32 %v7360, 16
  %v8015 = vrot.slane %v8013, 5
  %v8016 = vsel %vm5756, %v8011, %v8015
  %v8017 = vshrl.u32 %v7360, 16
  %v8019 = vrot.slane %v8017, 4
  %v8020 = vor.u32 %v8019, %v8015
  %v8021 = vrot.slane %v8020, 4
  %v8023 = vshll.u32 %v7361, 16
  %v8025 = vrot.slane %v8023, 5
  %v8026 = vsel %vm5756, %v8021, %v8025
  %v8027 = vshrl.u32 %v7361, 16
  %v8029 = vrot.slane %v8027, 4
  %v8030 = vor.u32 %v8029, %v8025
  %v8031 = vrot.slane %v8030, 4
  %v8033 = vshll.u32 %v7362, 16
  %v8035 = vrot.slane %v8033, 5
  %v8036 = vsel %vm5756, %v8031, %v8035
  %v8037 = vshrl.u32 %v7362, 16
  %v8039 = vrot.slane %v8037, 4
  %v8040 = vor.u32 %v8039, %v8035
  %v8041 = vrot.slane %v8040, 4
  %v8043 = vshll.u32 %v7363, 16
  %v8045 = vrot.slane %v8043, 5
  %v8046 = vsel %vm5756, %v8041, %v8045
  %v8047 = vshrl.u32 %v7363, 16
  %v8049 = vrot.slane %v8047, 4
  %v8050 = vor.u32 %v8049, %v8045
  %v8051 = vrot.slane %v8050, 4
  %v8053 = vshll.u32 %v7364, 16
  %v8055 = vrot.slane %v8053, 5
  %v8056 = vsel %vm5756, %v8051, %v8055
  %v8057 = vshrl.u32 %v7364, 16
  %v8059 = vrot.slane %v8057, 4
  %v8060 = vor.u32 %v8059, %v8055
  %v8061 = vrot.slane %v8060, 4
  %v8063 = vshll.u32 %v7365, 16
  %v8065 = vrot.slane %v8063, 5
  %v8066 = vsel %vm5756, %v8061, %v8065
  %v8067 = vshrl.u32 %v7365, 16
  %v8069 = vrot.slane %v8067, 4
  %v8070 = vor.u32 %v8069, %v8065
  %v8071 = vrot.slane %v8070, 4
  %v8073 = vshll.u32 %v7366, 16
  %v8075 = vrot.slane %v8073, 5
  %v8076 = vsel %vm5756, %v8071, %v8075
  %v8077 = vshrl.u32 %v7366, 16
  %v8079 = vrot.slane %v8077, 4
  %v8080 = vor.u32 %v8079, %v8075
  %v8081 = vrot.slane %v8080, 4
  %v8083 = vshll.u32 %v7367, 16
  %v8085 = vrot.slane %v8083, 5
  %v8086 = vsel %vm5756, %v8081, %v8085
  %v8087 = vshrl.u32 %v7367, 16
  %v8089 = vrot.slane %v8087, 4
  %v8090 = vor.u32 %v8089, %v8085
  %v8091 = vrot.slane %v8090, 4
  %v8093 = vshll.u32 %v7368, 16
  %v8095 = vrot.slane %v8093, 5
  %v8096 = vsel %vm5756, %v8091, %v8095
  %v8097 = vshrl.u32 %v7368, 16
  %v8099 = vrot.slane %v8097, 4
  %v8100 = vor.u32 %v8099, %v8095
  %v8101 = vrot.slane %v8100, 4
  %v8103 = vshll.u32 %v7369, 16
  %v8105 = vrot.slane %v8103, 5
  %v8106 = vsel %vm5756, %v8101, %v8105
  %v8107 = vshrl.u32 %v7369, 16
  %v8109 = vrot.slane %v8107, 4
  %v8110 = vor.u32 %v8109, %v8105
  %v8111 = vrot.slane %v8110, 4
  %v8113 = vshll.u32 %v7370, 16
  %v8115 = vrot.slane %v8113, 5
  %v8116 = vsel %vm5756, %v8111, %v8115
  %v8117 = vshrl.u32 %v7370, 16
  %v8119 = vrot.slane %v8117, 4
  %v8120 = vor.u32 %v8119, %v8115
  %v8121 = vrot.slane %v8120, 4
  %v8123 = vshll.u32 %v7371, 16
  %v8125 = vrot.slane %v8123, 5
  %v8126 = vsel %vm5756, %v8121, %v8125
  %v8127 = vshrl.u32 %v7371, 16
  %v8129 = vrot.slane %v8127, 4
  %v8130 = vor.u32 %v8129, %v8125
  %v8131 = vrot.slane %v8130, 4
  %v8133 = vshll.u32 %v7372, 16
  %v8135 = vrot.slane %v8133, 5
  %v8136 = vsel %vm5756, %v8131, %v8135
  %v8137 = vshrl.u32 %v7372, 16
  %v8139 = vrot.slane %v8137, 4
  %v8140 = vor.u32 %v8139, %v8135
  %v8141 = vrot.slane %v8140, 4
  %8142 = vrot.lane.b32.xlu0 %v7386, 96
  %v8143 = vpop.permute.xlu0 %8142
  %8144 = vrot.lane.b32.xlu0 %v7396, 96
  %v8145 = vpop.permute.xlu0 %8144
  %8146 = vrot.lane.b32.xlu0 %v7406, 96
  %v8147 = vpop.permute.xlu0 %8146
  %8148 = vrot.lane.b32.xlu0 %v7416, 96
  %v8149 = vpop.permute.xlu0 %8148
  %8150 = vrot.lane.b32.xlu0 %v7426, 96
  %v8151 = vpop.permute.xlu0 %8150
  %8152 = vrot.lane.b32.xlu0 %v7436, 96
  %v8153 = vpop.permute.xlu0 %8152
  %8154 = vrot.lane.b32.xlu0 %v7446, 96
  %v8155 = vpop.permute.xlu0 %8154
  %8156 = vrot.lane.b32.xlu0 %v7456, 96
  %v8157 = vpop.permute.xlu0 %8156
  %8158 = vrot.lane.b32.xlu0 %v7466, 96
  %v8159 = vpop.permute.xlu0 %8158
  %8160 = vrot.lane.b32.xlu0 %v7476, 96
  %v8161 = vpop.permute.xlu0 %8160
  %8162 = vrot.lane.b32.xlu0 %v7486, 96
  %v8163 = vpop.permute.xlu0 %8162
  %8164 = vrot.lane.b32.xlu0 %v7496, 96
  %v8165 = vpop.permute.xlu0 %8164
  %8166 = vrot.lane.b32.xlu0 %v7506, 96
  %v8167 = vpop.permute.xlu0 %8166
  %8168 = vrot.lane.b32.xlu0 %v7516, 96
  %v8169 = vpop.permute.xlu0 %8168
  %8170 = vrot.lane.b32.xlu0 %v7526, 96
  %v8171 = vpop.permute.xlu0 %8170
  %8172 = vrot.lane.b32.xlu0 %v7536, 96
  %v8173 = vpop.permute.xlu0 %8172
  %8174 = vrot.lane.b32.xlu0 %v7546, 96
  %v8175 = vpop.permute.xlu0 %8174
  %8176 = vrot.lane.b32.xlu0 %v7556, 96
  %v8177 = vpop.permute.xlu0 %8176
  %8178 = vrot.lane.b32.xlu0 %v7566, 96
  %v8179 = vpop.permute.xlu0 %8178
  %8180 = vrot.lane.b32.xlu0 %v7576, 96
  %v8181 = vpop.permute.xlu0 %8180
  %8182 = vrot.lane.b32.xlu0 %v7586, 96
  %v8183 = vpop.permute.xlu0 %8182
  %8184 = vrot.lane.b32.xlu0 %v7596, 96
  %v8185 = vpop.permute.xlu0 %8184
  %8186 = vrot.lane.b32.xlu0 %v7606, 96
  %v8187 = vpop.permute.xlu0 %8186
  %8188 = vrot.lane.b32.xlu0 %v7616, 96
  %v8189 = vpop.permute.xlu0 %8188
  %8190 = vrot.lane.b32.xlu0 %v7626, 96
  %v8191 = vpop.permute.xlu0 %8190
  %8192 = vrot.lane.b32.xlu0 %v7636, 96
  %v8193 = vpop.permute.xlu0 %8192
  %8194 = vrot.lane.b32.xlu0 %v7646, 96
  %v8195 = vpop.permute.xlu0 %8194
  %8196 = vrot.lane.b32.xlu0 %v7656, 96
  %v8197 = vpop.permute.xlu0 %8196
  %8198 = vrot.lane.b32.xlu0 %v7666, 96
  %v8199 = vpop.permute.xlu0 %8198
  %8200 = vrot.lane.b32.xlu0 %v7676, 96
  %v8201 = vpop.permute.xlu0 %8200
  %8202 = vrot.lane.b32.xlu0 %v7686, 96
  %v8203 = vpop.permute.xlu0 %8202
  %8204 = vrot.lane.b32.xlu0 %v7696, 96
  %v8205 = vpop.permute.xlu0 %8204
  %8206 = vrot.lane.b32.xlu0 %v7706, 96
  %v8207 = vpop.permute.xlu0 %8206
  %8208 = vrot.lane.b32.xlu0 %v7716, 96
  %v8209 = vpop.permute.xlu0 %8208
  %8210 = vrot.lane.b32.xlu0 %v7726, 96
  %v8211 = vpop.permute.xlu0 %8210
  %8212 = vrot.lane.b32.xlu0 %v7736, 96
  %v8213 = vpop.permute.xlu0 %8212
  %8214 = vrot.lane.b32.xlu0 %v7746, 96
  %v8215 = vpop.permute.xlu0 %8214
  %8216 = vrot.lane.b32.xlu0 %v7756, 96
  %v8217 = vpop.permute.xlu0 %8216
  %8218 = vrot.lane.b32.xlu0 %v7766, 96
  %v8219 = vpop.permute.xlu0 %8218
  %8220 = vrot.lane.b32.xlu0 %v7776, 96
  %v8221 = vpop.permute.xlu0 %8220
  %8222 = vrot.lane.b32.xlu0 %v7786, 96
  %v8223 = vpop.permute.xlu0 %8222
  %8224 = vrot.lane.b32.xlu0 %v7796, 96
  %v8225 = vpop.permute.xlu0 %8224
  %8226 = vrot.lane.b32.xlu0 %v7806, 96
  %v8227 = vpop.permute.xlu0 %8226
  %8228 = vrot.lane.b32.xlu0 %v7816, 96
  %v8229 = vpop.permute.xlu0 %8228
  %8230 = vrot.lane.b32.xlu0 %v7826, 96
  %v8231 = vpop.permute.xlu0 %8230
  %8232 = vrot.lane.b32.xlu0 %v7836, 96
  %v8233 = vpop.permute.xlu0 %8232
  %8234 = vrot.lane.b32.xlu0 %v7846, 96
  %v8235 = vpop.permute.xlu0 %8234
  %8236 = vrot.lane.b32.xlu0 %v7856, 96
  %v8237 = vpop.permute.xlu0 %8236
  %8238 = vrot.lane.b32.xlu0 %v7866, 96
  %v8239 = vpop.permute.xlu0 %8238
  %8240 = vrot.lane.b32.xlu0 %v7876, 96
  %v8241 = vpop.permute.xlu0 %8240
  %8242 = vrot.lane.b32.xlu0 %v7886, 96
  %v8243 = vpop.permute.xlu0 %8242
  %8244 = vrot.lane.b32.xlu0 %v7896, 96
  %v8245 = vpop.permute.xlu0 %8244
  %8246 = vrot.lane.b32.xlu0 %v7906, 96
  %v8247 = vpop.permute.xlu0 %8246
  %8248 = vrot.lane.b32.xlu0 %v7916, 96
  %v8249 = vpop.permute.xlu0 %8248
  %8250 = vrot.lane.b32.xlu0 %v7926, 96
  %v8251 = vpop.permute.xlu0 %8250
  %8252 = vrot.lane.b32.xlu0 %v7936, 96
  %v8253 = vpop.permute.xlu0 %8252
  %8254 = vrot.lane.b32.xlu0 %v7946, 96
  %v8255 = vpop.permute.xlu0 %8254
  %8256 = vrot.lane.b32.xlu0 %v7956, 96
  %v8257 = vpop.permute.xlu0 %8256
  %8258 = vrot.lane.b32.xlu0 %v7966, 96
  %v8259 = vpop.permute.xlu0 %8258
  %8260 = vrot.lane.b32.xlu0 %v7976, 96
  %v8261 = vpop.permute.xlu0 %8260
  %8262 = vrot.lane.b32.xlu0 %v7986, 96
  %v8263 = vpop.permute.xlu0 %8262
  %8264 = vrot.lane.b32.xlu0 %v7996, 96
  %v8265 = vpop.permute.xlu0 %8264
  %8266 = vrot.lane.b32.xlu0 %v8006, 96
  %v8267 = vpop.permute.xlu0 %8266
  %8268 = vrot.lane.b32.xlu0 %v8016, 96
  %v8269 = vpop.permute.xlu0 %8268
  %8270 = vrot.lane.b32.xlu0 %v8026, 96
  %v8271 = vpop.permute.xlu0 %8270
  %8272 = vrot.lane.b32.xlu0 %v8036, 96
  %v8273 = vpop.permute.xlu0 %8272
  %8274 = vrot.lane.b32.xlu0 %v8046, 96
  %v8275 = vpop.permute.xlu0 %8274
  %8276 = vrot.lane.b32.xlu0 %v8056, 96
  %v8277 = vpop.permute.xlu0 %8276
  %8278 = vrot.lane.b32.xlu0 %v8066, 96
  %v8279 = vpop.permute.xlu0 %8278
  %8280 = vrot.lane.b32.xlu0 %v8076, 96
  %v8281 = vpop.permute.xlu0 %8280
  %8282 = vrot.lane.b32.xlu0 %v8086, 96
  %v8283 = vpop.permute.xlu0 %8282
  %8284 = vrot.lane.b32.xlu0 %v8096, 96
  %v8285 = vpop.permute.xlu0 %8284
  %8286 = vrot.lane.b32.xlu0 %v8106, 96
  %v8287 = vpop.permute.xlu0 %8286
  %8288 = vrot.lane.b32.xlu0 %v8116, 96
  %v8289 = vpop.permute.xlu0 %8288
  %8290 = vrot.lane.b32.xlu0 %v8126, 96
  %v8291 = vpop.permute.xlu0 %8290
  %8292 = vrot.lane.b32.xlu0 %v8136, 96
  %v8293 = vpop.permute.xlu0 %8292
  %8294 = vrot.lane.b32.xlu0 %v8141, 96
  %v8295 = vpop.permute.xlu0 %8294
  %8373 = vst.msk [vmem:[#allocation3 + $0x4] sm:$0xf] %vm5444, %v8143
  %8374 = vst.msk [vmem:[#allocation3 + $0x10] sm:$0xf] %vm5444, %v8145
  %8375 = vst.msk [vmem:[#allocation3 + $0x1c] sm:$0xf] %vm5444, %v8147
  %8376 = vst.msk [vmem:[#allocation3 + $0x28] sm:$0xf] %vm5444, %v8149
  %8377 = vst.msk [vmem:[#allocation3 + $0x34] sm:$0xf] %vm5444, %v8151
  %8378 = vst.msk [vmem:[#allocation3 + $0x40] sm:$0xf] %vm5444, %v8153
  %8379 = vst.msk [vmem:[#allocation3 + $0x4c] sm:$0xf] %vm5444, %v8155
  %8380 = vst.msk [vmem:[#allocation3 + $0x58] sm:$0xf] %vm5444, %v8157
  %8381 = vst.msk [vmem:[#allocation3 + $0x64] sm:$0xf] %vm5444, %v8159
  %8382 = vst.msk [vmem:[#allocation3 + $0x70] sm:$0xf] %vm5444, %v8161
  %8383 = vst.msk [vmem:[#allocation3 + $0x7c] sm:$0xf] %vm5444, %v8163
  %8384 = vst.msk [vmem:[#allocation3 + $0x88] sm:$0xf] %vm5444, %v8165
  %8385 = vst.msk [vmem:[#allocation3 + $0x94] sm:$0xf] %vm5444, %v8167
  %8386 = vst.msk [vmem:[#allocation3 + $0xa0] sm:$0xf] %vm5444, %v8169
  %8387 = vst.msk [vmem:[#allocation3 + $0xac] sm:$0xf] %vm5444, %v8171
  %8388 = vst.msk [vmem:[#allocation3 + $0xb8] sm:$0xf] %vm5444, %v8173
  %8389 = vst.msk [vmem:[#allocation3 + $0xc4] sm:$0xf] %vm5444, %v8175
  %8390 = vst.msk [vmem:[#allocation3 + $0xd0] sm:$0xf] %vm5444, %v8177
  %8391 = vst.msk [vmem:[#allocation3 + $0xdc] sm:$0xf] %vm5444, %v8179
  %8392 = vst.msk [vmem:[#allocation3 + $0xe8] sm:$0xf] %vm5444, %v8181
  %8393 = vst.msk [vmem:[#allocation3 + $0xf4] sm:$0xf] %vm5444, %v8183
  %8394 = vst.msk [vmem:[#allocation3 + $0x100] sm:$0xf] %vm5444, %v8185
  %8395 = vst.msk [vmem:[#allocation3 + $0x10c] sm:$0xf] %vm5444, %v8187
  %8396 = vst.msk [vmem:[#allocation3 + $0x118] sm:$0xf] %vm5444, %v8189
  %8397 = vst.msk [vmem:[#allocation3 + $0x124] sm:$0xf] %vm5444, %v8191
  %8398 = vst.msk [vmem:[#allocation3 + $0x130] sm:$0xf] %vm5444, %v8193
  %8399 = vst.msk [vmem:[#allocation3 + $0x13c] sm:$0xf] %vm5444, %v8195
  %8400 = vst.msk [vmem:[#allocation3 + $0x148] sm:$0xf] %vm5444, %v8197
  %8401 = vst.msk [vmem:[#allocation3 + $0x154] sm:$0xf] %vm5444, %v8199
  %8402 = vst.msk [vmem:[#allocation3 + $0x160] sm:$0xf] %vm5444, %v8201
  %8403 = vst.msk [vmem:[#allocation3 + $0x16c] sm:$0xf] %vm5444, %v8203
  %8404 = vst.msk [vmem:[#allocation3 + $0x178] sm:$0xf] %vm5444, %v8205
  %8405 = vst.msk [vmem:[#allocation3 + $0x184] sm:$0xf] %vm5444, %v8207
  %8406 = vst.msk [vmem:[#allocation3 + $0x190] sm:$0xf] %vm5444, %v8209
  %8407 = vst.msk [vmem:[#allocation3 + $0x19c] sm:$0xf] %vm5444, %v8211
  %8408 = vst.msk [vmem:[#allocation3 + $0x1a8] sm:$0xf] %vm5444, %v8213
  %8409 = vst.msk [vmem:[#allocation3 + $0x1b4] sm:$0xf] %vm5444, %v8215
  %8410 = vst.msk [vmem:[#allocation3 + $0x1c0] sm:$0xf] %vm5444, %v8217
  %8411 = vst.msk [vmem:[#allocation3 + $0x1cc] sm:$0xf] %vm5444, %v8219
  %8412 = vst.msk [vmem:[#allocation3 + $0x1d8] sm:$0xf] %vm5444, %v8221
  %8413 = vst.msk [vmem:[#allocation3 + $0x1e4] sm:$0xf] %vm5444, %v8223
  %8414 = vst.msk [vmem:[#allocation3 + $0x1f0] sm:$0xf] %vm5444, %v8225
  %8415 = vst.msk [vmem:[#allocation3 + $0x1fc] sm:$0xf] %vm5444, %v8227
  %8416 = vst.msk [vmem:[#allocation3 + $0x208] sm:$0xf] %vm5444, %v8229
  %8417 = vst.msk [vmem:[#allocation3 + $0x214] sm:$0xf] %vm5444, %v8231
  %8418 = vst.msk [vmem:[#allocation3 + $0x220] sm:$0xf] %vm5444, %v8233
  %8419 = vst.msk [vmem:[#allocation3 + $0x22c] sm:$0xf] %vm5444, %v8235
  %8420 = vst.msk [vmem:[#allocation3 + $0x238] sm:$0xf] %vm5444, %v8237
  %8421 = vst.msk [vmem:[#allocation3 + $0x244] sm:$0xf] %vm5444, %v8239
  %8422 = vst.msk [vmem:[#allocation3 + $0x250] sm:$0xf] %vm5444, %v8241
  %8423 = vst.msk [vmem:[#allocation3 + $0x25c] sm:$0xf] %vm5444, %v8243
  %8424 = vst.msk [vmem:[#allocation3 + $0x268] sm:$0xf] %vm5444, %v8245
  %8425 = vst.msk [vmem:[#allocation3 + $0x274] sm:$0xf] %vm5444, %v8247
  %8426 = vst.msk [vmem:[#allocation3 + $0x280] sm:$0xf] %vm5444, %v8249
  %8427 = vst.msk [vmem:[#allocation3 + $0x28c] sm:$0xf] %vm5444, %v8251
  %8428 = vst.msk [vmem:[#allocation3 + $0x298] sm:$0xf] %vm5444, %v8253
  %8429 = vst.msk [vmem:[#allocation3 + $0x2a4] sm:$0xf] %vm5444, %v8255
  %8430 = vst.msk [vmem:[#allocation3 + $0x2b0] sm:$0xf] %vm5444, %v8257
  %8431 = vst.msk [vmem:[#allocation3 + $0x2bc] sm:$0xf] %vm5444, %v8259
  %8432 = vst.msk [vmem:[#allocation3 + $0x2c8] sm:$0xf] %vm5444, %v8261
  %8433 = vst.msk [vmem:[#allocation3 + $0x2d4] sm:$0xf] %vm5444, %v8263
  %8434 = vst.msk [vmem:[#allocation3 + $0x2e0] sm:$0xf] %vm5444, %v8265
  %8435 = vst.msk [vmem:[#allocation3 + $0x2ec] sm:$0xf] %vm5444, %v8267
  %8436 = vst.msk [vmem:[#allocation3 + $0x2f8] sm:$0xf] %vm5444, %v8269
  %8437 = vst.msk [vmem:[#allocation3 + $0x304] sm:$0xf] %vm5444, %v8271
  %8438 = vst.msk [vmem:[#allocation3 + $0x310] sm:$0xf] %vm5444, %v8273
  %8439 = vst.msk [vmem:[#allocation3 + $0x31c] sm:$0xf] %vm5444, %v8275
  %8440 = vst.msk [vmem:[#allocation3 + $0x328] sm:$0xf] %vm5444, %v8277
  %8441 = vst.msk [vmem:[#allocation3 + $0x334] sm:$0xf] %vm5444, %v8279
  %8442 = vst.msk [vmem:[#allocation3 + $0x340] sm:$0xf] %vm5444, %v8281
  %8443 = vst.msk [vmem:[#allocation3 + $0x34c] sm:$0xf] %vm5444, %v8283
  %8444 = vst.msk [vmem:[#allocation3 + $0x358] sm:$0xf] %vm5444, %v8285
  %8445 = vst.msk [vmem:[#allocation3 + $0x364] sm:$0xf] %vm5444, %v8287
  %8446 = vst.msk [vmem:[#allocation3 + $0x370] sm:$0xf] %vm5444, %v8289
  %8447 = vst.msk [vmem:[#allocation3 + $0x37c] sm:$0xf] %vm5444, %v8291
  %8448 = vst.msk [vmem:[#allocation3 + $0x388] sm:$0xf] %vm5444, %v8293
  %8449 = vst.msk [vmem:[#allocation3 + $0x394] sm:$0x3] %vm5521, %v8295
  %v8450 = vld [vmem:[#allocation2 + $0x14] sm:$0xe]
  %v8451 = vld [vmem:[#allocation2 + $0x18] sm:$0xf]
  %v8452 = vld [vmem:[#allocation2 + $0x1c] sm:$0xf]
  %v8453 = vld [vmem:[#allocation2 + $0x20] sm:$0xf]
  %v8454 = vld [vmem:[#allocation2 + $0x24] sm:$0xf]
  %v8455 = vld [vmem:[#allocation2 + $0x28] sm:$0xf]
  %v8456 = vld [vmem:[#allocation2 + $0x2c] sm:$0xf]
  %v8457 = vld [vmem:[#allocation2 + $0x30] sm:$0xf]
  %v8458 = vld [vmem:[#allocation2 + $0x34] sm:$0xf]
  %v8459 = vld [vmem:[#allocation2 + $0x38] sm:$0xf]
  %v8460 = vld [vmem:[#allocation2 + $0x3c] sm:$0xf]
  %v8461 = vld [vmem:[#allocation2 + $0x40] sm:$0xf]
  %v8462 = vld [vmem:[#allocation2 + $0x44] sm:$0xf]
  %v8463 = vld [vmem:[#allocation2 + $0x48] sm:$0xf]
  %v8464 = vld [vmem:[#allocation2 + $0x4c] sm:$0xf]
  %v8465 = vld [vmem:[#allocation2 + $0x50] sm:$0xf]
  %v8466 = vld [vmem:[#allocation2 + $0x54] sm:$0xf]
  %v8467 = vld [vmem:[#allocation2 + $0x58] sm:$0xf]
  %v8468 = vld [vmem:[#allocation2 + $0x5c] sm:$0xf]
  %v8469 = vld [vmem:[#allocation2 + $0x60] sm:$0xf]
  %v8470 = vld [vmem:[#allocation2 + $0x64] sm:$0xf]
  %v8471 = vld [vmem:[#allocation2 + $0x68] sm:$0xf]
  %v8472 = vld [vmem:[#allocation2 + $0x6c] sm:$0xf]
  %v8473 = vld [vmem:[#allocation2 + $0x70] sm:$0xf]
  %v8474 = vld [vmem:[#allocation2 + $0x74] sm:$0xf]
  %v8475 = vld [vmem:[#allocation2 + $0x78] sm:$0xf]
  %v8476 = vld [vmem:[#allocation2 + $0x7c] sm:$0xf]
  %v8477 = vld [vmem:[#allocation2 + $0x80] sm:$0xf]
  %v8478 = vld [vmem:[#allocation2 + $0x84] sm:$0xf]
  %v8479 = vld [vmem:[#allocation2 + $0x88] sm:$0xf]
  %v8480 = vld [vmem:[#allocation2 + $0x8c] sm:$0xf]
  %v8481 = vld [vmem:[#allocation2 + $0x90] sm:$0xf]
  %v8482 = vld [vmem:[#allocation2 + $0x94] sm:$0xf]
  %v8483 = vld [vmem:[#allocation2 + $0x98] sm:$0xf]
  %v8484 = vld [vmem:[#allocation2 + $0x9c] sm:$0xf]
  %v8485 = vld [vmem:[#allocation2 + $0xa0] sm:$0xf]
  %v8486 = vld [vmem:[#allocation2 + $0xa4] sm:$0xf]
  %v8487 = vld [vmem:[#allocation2 + $0xa8] sm:$0xf]
  %v8488 = vld [vmem:[#allocation2 + $0xac] sm:$0xf]
  %v8489 = vld [vmem:[#allocation2 + $0xb0] sm:$0xf]
  %v8490 = vld [vmem:[#allocation2 + $0xb4] sm:$0xf]
  %v8491 = vld [vmem:[#allocation2 + $0xb8] sm:$0xf]
  %v8492 = vld [vmem:[#allocation2 + $0xbc] sm:$0xf]
  %v8493 = vld [vmem:[#allocation2 + $0xc0] sm:$0xf]
  %v8494 = vld [vmem:[#allocation2 + $0xc4] sm:$0xf]
  %v8495 = vld [vmem:[#allocation2 + $0xc8] sm:$0xf]
  %v8496 = vld [vmem:[#allocation2 + $0xcc] sm:$0xf]
  %v8497 = vld [vmem:[#allocation2 + $0xd0] sm:$0xf]
  %v8498 = vld [vmem:[#allocation2 + $0xd4] sm:$0xf]
  %v8499 = vld [vmem:[#allocation2 + $0xd8] sm:$0xf]
  %v8500 = vld [vmem:[#allocation2 + $0xdc] sm:$0xf]
  %v8501 = vld [vmem:[#allocation2 + $0xe0] sm:$0xf]
  %v8502 = vld [vmem:[#allocation2 + $0xe4] sm:$0xf]
  %v8503 = vld [vmem:[#allocation2 + $0xe8] sm:$0xf]
  %v8504 = vld [vmem:[#allocation2 + $0xec] sm:$0xf]
  %v8505 = vld [vmem:[#allocation2 + $0xf0] sm:$0xf]
  %v8506 = vld [vmem:[#allocation2 + $0xf4] sm:$0xf]
  %v8507 = vld [vmem:[#allocation2 + $0xf8] sm:$0xf]
  %v8508 = vld [vmem:[#allocation2 + $0xfc] sm:$0xf]
  %v8509 = vld [vmem:[#allocation2 + $0x100] sm:$0xf]
  %v8510 = vld [vmem:[#allocation2 + $0x104] sm:$0xf]
  %v8511 = vld [vmem:[#allocation2 + $0x108] sm:$0xf]
  %v8512 = vld [vmem:[#allocation2 + $0x10c] sm:$0xf]
  %v8513 = vld [vmem:[#allocation2 + $0x110] sm:$0xf]
  %v8514 = vld [vmem:[#allocation2 + $0x114] sm:$0xf]
  %v8515 = vld [vmem:[#allocation2 + $0x118] sm:$0xf]
  %v8516 = vld [vmem:[#allocation2 + $0x11c] sm:$0xf]
  %v8517 = vld [vmem:[#allocation2 + $0x120] sm:$0xf]
  %v8518 = vld [vmem:[#allocation2 + $0x124] sm:$0xf]
  %v8519 = vld [vmem:[#allocation2 + $0x128] sm:$0xf]
  %v8520 = vld [vmem:[#allocation2 + $0x12c] sm:$0xf]
  %v8521 = vld [vmem:[#allocation2 + $0x130] sm:$0xf]
  %v8522 = vld [vmem:[#allocation2 + $0x134] sm:$0xf]
  %v8523 = vld [vmem:[#allocation2 + $0x138] sm:$0xf]
  %v8524 = vld [vmem:[#allocation2 + $0x13c] sm:$0xf]
  %v8525 = vld [vmem:[#allocation2 + $0x140] sm:$0xf]
  %v8526 = vld [vmem:[#allocation2 + $0x144] sm:$0x7]
  %vm8604 = vcmask 1042432
  %vm8605 = vcmask 1046532
  %vm8606 = vmor %vm8604, %vm8605
  %v8607 = vrot.slane %v8450, 5
  %v8608 = vrot.slane %v8607, 4
  %v8609 = vrot.slane %v8451, 5
  %v8610 = vsel %vm8606, %v8608, %v8609
  %v8611 = vrot.slane %v8609, 4
  %v8612 = vrot.slane %v8452, 5
  %v8613 = vsel %vm8606, %v8611, %v8612
  %v8614 = vrot.slane %v8612, 4
  %v8615 = vrot.slane %v8453, 5
  %v8616 = vsel %vm8606, %v8614, %v8615
  %v8617 = vrot.slane %v8615, 4
  %v8618 = vrot.slane %v8454, 5
  %v8619 = vsel %vm8606, %v8617, %v8618
  %v8620 = vrot.slane %v8618, 4
  %v8621 = vrot.slane %v8455, 5
  %v8622 = vsel %vm8606, %v8620, %v8621
  %v8623 = vrot.slane %v8621, 4
  %v8624 = vrot.slane %v8456, 5
  %v8625 = vsel %vm8606, %v8623, %v8624
  %v8626 = vrot.slane %v8624, 4
  %v8627 = vrot.slane %v8457, 5
  %v8628 = vsel %vm8606, %v8626, %v8627
  %v8629 = vrot.slane %v8627, 4
  %v8630 = vrot.slane %v8458, 5
  %v8631 = vsel %vm8606, %v8629, %v8630
  %v8632 = vrot.slane %v8630, 4
  %v8633 = vrot.slane %v8459, 5
  %v8634 = vsel %vm8606, %v8632, %v8633
  %v8635 = vrot.slane %v8633, 4
  %v8636 = vrot.slane %v8460, 5
  %v8637 = vsel %vm8606, %v8635, %v8636
  %v8638 = vrot.slane %v8636, 4
  %v8639 = vrot.slane %v8461, 5
  %v8640 = vsel %vm8606, %v8638, %v8639
  %v8641 = vrot.slane %v8639, 4
  %v8642 = vrot.slane %v8462, 5
  %v8643 = vsel %vm8606, %v8641, %v8642
  %v8644 = vrot.slane %v8642, 4
  %v8645 = vrot.slane %v8463, 5
  %v8646 = vsel %vm8606, %v8644, %v8645
  %v8647 = vrot.slane %v8645, 4
  %v8648 = vrot.slane %v8464, 5
  %v8649 = vsel %vm8606, %v8647, %v8648
  %v8650 = vrot.slane %v8648, 4
  %v8651 = vrot.slane %v8465, 5
  %v8652 = vsel %vm8606, %v8650, %v8651
  %v8653 = vrot.slane %v8651, 4
  %v8654 = vrot.slane %v8466, 5
  %v8655 = vsel %vm8606, %v8653, %v8654
  %v8656 = vrot.slane %v8654, 4
  %v8657 = vrot.slane %v8467, 5
  %v8658 = vsel %vm8606, %v8656, %v8657
  %v8659 = vrot.slane %v8657, 4
  %v8660 = vrot.slane %v8468, 5
  %v8661 = vsel %vm8606, %v8659, %v8660
  %v8662 = vrot.slane %v8660, 4
  %v8663 = vrot.slane %v8469, 5
  %v8664 = vsel %vm8606, %v8662, %v8663
  %v8665 = vrot.slane %v8663, 4
  %v8666 = vrot.slane %v8470, 5
  %v8667 = vsel %vm8606, %v8665, %v8666
  %v8668 = vrot.slane %v8666, 4
  %v8669 = vrot.slane %v8471, 5
  %v8670 = vsel %vm8606, %v8668, %v8669
  %v8671 = vrot.slane %v8669, 4
  %v8672 = vrot.slane %v8472, 5
  %v8673 = vsel %vm8606, %v8671, %v8672
  %v8674 = vrot.slane %v8672, 4
  %v8675 = vrot.slane %v8473, 5
  %v8676 = vsel %vm8606, %v8674, %v8675
  %v8677 = vrot.slane %v8675, 4
  %v8678 = vrot.slane %v8474, 5
  %v8679 = vsel %vm8606, %v8677, %v8678
  %v8680 = vrot.slane %v8678, 4
  %v8681 = vrot.slane %v8475, 5
  %v8682 = vsel %vm8606, %v8680, %v8681
  %v8683 = vrot.slane %v8681, 4
  %v8684 = vrot.slane %v8476, 5
  %v8685 = vsel %vm8606, %v8683, %v8684
  %v8686 = vrot.slane %v8684, 4
  %v8687 = vrot.slane %v8477, 5
  %v8688 = vsel %vm8606, %v8686, %v8687
  %v8689 = vrot.slane %v8687, 4
  %v8690 = vrot.slane %v8478, 5
  %v8691 = vsel %vm8606, %v8689, %v8690
  %v8692 = vrot.slane %v8690, 4
  %v8693 = vrot.slane %v8479, 5
  %v8694 = vsel %vm8606, %v8692, %v8693
  %v8695 = vrot.slane %v8693, 4
  %v8696 = vrot.slane %v8480, 5
  %v8697 = vsel %vm8606, %v8695, %v8696
  %v8698 = vrot.slane %v8696, 4
  %v8699 = vrot.slane %v8481, 5
  %v8700 = vsel %vm8606, %v8698, %v8699
  %v8701 = vrot.slane %v8699, 4
  %v8702 = vrot.slane %v8482, 5
  %v8703 = vsel %vm8606, %v8701, %v8702
  %v8704 = vrot.slane %v8702, 4
  %v8705 = vrot.slane %v8483, 5
  %v8706 = vsel %vm8606, %v8704, %v8705
  %v8707 = vrot.slane %v8705, 4
  %v8708 = vrot.slane %v8484, 5
  %v8709 = vsel %vm8606, %v8707, %v8708
  %v8710 = vrot.slane %v8708, 4
  %v8711 = vrot.slane %v8485, 5
  %v8712 = vsel %vm8606, %v8710, %v8711
  %v8713 = vrot.slane %v8711, 4
  %v8714 = vrot.slane %v8486, 5
  %v8715 = vsel %vm8606, %v8713, %v8714
  %v8716 = vrot.slane %v8714, 4
  %v8717 = vrot.slane %v8487, 5
  %v8718 = vsel %vm8606, %v8716, %v8717
  %v8719 = vrot.slane %v8717, 4
  %v8720 = vrot.slane %v8488, 5
  %v8721 = vsel %vm8606, %v8719, %v8720
  %v8722 = vrot.slane %v8720, 4
  %v8723 = vrot.slane %v8489, 5
  %v8724 = vsel %vm8606, %v8722, %v8723
  %v8725 = vrot.slane %v8723, 4
  %v8726 = vrot.slane %v8490, 5
  %v8727 = vsel %vm8606, %v8725, %v8726
  %v8728 = vrot.slane %v8726, 4
  %v8729 = vrot.slane %v8491, 5
  %v8730 = vsel %vm8606, %v8728, %v8729
  %v8731 = vrot.slane %v8729, 4
  %v8732 = vrot.slane %v8492, 5
  %v8733 = vsel %vm8606, %v8731, %v8732
  %v8734 = vrot.slane %v8732, 4
  %v8735 = vrot.slane %v8493, 5
  %v8736 = vsel %vm8606, %v8734, %v8735
  %v8737 = vrot.slane %v8735, 4
  %v8738 = vrot.slane %v8494, 5
  %v8739 = vsel %vm8606, %v8737, %v8738
  %v8740 = vrot.slane %v8738, 4
  %v8741 = vrot.slane %v8495, 5
  %v8742 = vsel %vm8606, %v8740, %v8741
  %v8743 = vrot.slane %v8741, 4
  %v8744 = vrot.slane %v8496, 5
  %v8745 = vsel %vm8606, %v8743, %v8744
  %v8746 = vrot.slane %v8744, 4
  %v8747 = vrot.slane %v8497, 5
  %v8748 = vsel %vm8606, %v8746, %v8747
  %v8749 = vrot.slane %v8747, 4
  %v8750 = vrot.slane %v8498, 5
  %v8751 = vsel %vm8606, %v8749, %v8750
  %v8752 = vrot.slane %v8750, 4
  %v8753 = vrot.slane %v8499, 5
  %v8754 = vsel %vm8606, %v8752, %v8753
  %v8755 = vrot.slane %v8753, 4
  %v8756 = vrot.slane %v8500, 5
  %v8757 = vsel %vm8606, %v8755, %v8756
  %v8758 = vrot.slane %v8756, 4
  %v8759 = vrot.slane %v8501, 5
  %v8760 = vsel %vm8606, %v8758, %v8759
  %v8761 = vrot.slane %v8759, 4
  %v8762 = vrot.slane %v8502, 5
  %v8763 = vsel %vm8606, %v8761, %v8762
  %v8764 = vrot.slane %v8762, 4
  %v8765 = vrot.slane %v8503, 5
  %v8766 = vsel %vm8606, %v8764, %v8765
  %v8767 = vrot.slane %v8765, 4
  %v8768 = vrot.slane %v8504, 5
  %v8769 = vsel %vm8606, %v8767, %v8768
  %v8770 = vrot.slane %v8768, 4
  %v8771 = vrot.slane %v8505, 5
  %v8772 = vsel %vm8606, %v8770, %v8771
  %v8773 = vrot.slane %v8771, 4
  %v8774 = vrot.slane %v8506, 5
  %v8775 = vsel %vm8606, %v8773, %v8774
  %v8776 = vrot.slane %v8774, 4
  %v8777 = vrot.slane %v8507, 5
  %v8778 = vsel %vm8606, %v8776, %v8777
  %v8779 = vrot.slane %v8777, 4
  %v8780 = vrot.slane %v8508, 5
  %v8781 = vsel %vm8606, %v8779, %v8780
  %v8782 = vrot.slane %v8780, 4
  %v8783 = vrot.slane %v8509, 5
  %v8784 = vsel %vm8606, %v8782, %v8783
  %v8785 = vrot.slane %v8783, 4
  %v8786 = vrot.slane %v8510, 5
  %v8787 = vsel %vm8606, %v8785, %v8786
  %v8788 = vrot.slane %v8786, 4
  %v8789 = vrot.slane %v8511, 5
  %v8790 = vsel %vm8606, %v8788, %v8789
  %v8791 = vrot.slane %v8789, 4
  %v8792 = vrot.slane %v8512, 5
  %v8793 = vsel %vm8606, %v8791, %v8792
  %v8794 = vrot.slane %v8792, 4
  %v8795 = vrot.slane %v8513, 5
  %v8796 = vsel %vm8606, %v8794, %v8795
  %v8797 = vrot.slane %v8795, 4
  %v8798 = vrot.slane %v8514, 5
  %v8799 = vsel %vm8606, %v8797, %v8798
  %v8800 = vrot.slane %v8798, 4
  %v8801 = vrot.slane %v8515, 5
  %v8802 = vsel %vm8606, %v8800, %v8801
  %v8803 = vrot.slane %v8801, 4
  %v8804 = vrot.slane %v8516, 5
  %v8805 = vsel %vm8606, %v8803, %v8804
  %v8806 = vrot.slane %v8804, 4
  %v8807 = vrot.slane %v8517, 5
  %v8808 = vsel %vm8606, %v8806, %v8807
  %v8809 = vrot.slane %v8807, 4
  %v8810 = vrot.slane %v8518, 5
  %v8811 = vsel %vm8606, %v8809, %v8810
  %v8812 = vrot.slane %v8810, 4
  %v8813 = vrot.slane %v8519, 5
  %v8814 = vsel %vm8606, %v8812, %v8813
  %v8815 = vrot.slane %v8813, 4
  %v8816 = vrot.slane %v8520, 5
  %v8817 = vsel %vm8606, %v8815, %v8816
  %v8818 = vrot.slane %v8816, 4
  %v8819 = vrot.slane %v8521, 5
  %v8820 = vsel %vm8606, %v8818, %v8819
  %v8821 = vrot.slane %v8819, 4
  %v8822 = vrot.slane %v8522, 5
  %v8823 = vsel %vm8606, %v8821, %v8822
  %v8824 = vrot.slane %v8822, 4
  %v8825 = vrot.slane %v8523, 5
  %v8826 = vsel %vm8606, %v8824, %v8825
  %v8827 = vrot.slane %v8825, 4
  %v8828 = vrot.slane %v8524, 5
  %v8829 = vsel %vm8606, %v8827, %v8828
  %v8830 = vrot.slane %v8828, 4
  %v8831 = vrot.slane %v8525, 5
  %v8832 = vsel %vm8606, %v8830, %v8831
  %v8833 = vrot.slane %v8831, 4
  %v8834 = vrot.slane %v8526, 5
  %v8835 = vsel %vm8606, %v8833, %v8834
  %v8836 = vrot.slane %v8834, 4
  %8914 = vst.msk [vmem:[#allocation3 + $0x8] sm:$0xf] %vm987, %v8610
  %8915 = vst.msk [vmem:[#allocation3 + $0x14] sm:$0xf] %vm987, %v8613
  %8916 = vst.msk [vmem:[#allocation3 + $0x20] sm:$0xf] %vm987, %v8616
  %8917 = vst.msk [vmem:[#allocation3 + $0x2c] sm:$0xf] %vm987, %v8619
  %8918 = vst.msk [vmem:[#allocation3 + $0x38] sm:$0xf] %vm987, %v8622
  %8919 = vst.msk [vmem:[#allocation3 + $0x44] sm:$0xf] %vm987, %v8625
  %8920 = vst.msk [vmem:[#allocation3 + $0x50] sm:$0xf] %vm987, %v8628
  %8921 = vst.msk [vmem:[#allocation3 + $0x5c] sm:$0xf] %vm987, %v8631
  %8922 = vst.msk [vmem:[#allocation3 + $0x68] sm:$0xf] %vm987, %v8634
  %8923 = vst.msk [vmem:[#allocation3 + $0x74] sm:$0xf] %vm987, %v8637
  %8924 = vst.msk [vmem:[#allocation3 + $0x80] sm:$0xf] %vm987, %v8640
  %8925 = vst.msk [vmem:[#allocation3 + $0x8c] sm:$0xf] %vm987, %v8643
  %8926 = vst.msk [vmem:[#allocation3 + $0x98] sm:$0xf] %vm987, %v8646
  %8927 = vst.msk [vmem:[#allocation3 + $0xa4] sm:$0xf] %vm987, %v8649
  %8928 = vst.msk [vmem:[#allocation3 + $0xb0] sm:$0xf] %vm987, %v8652
  %8929 = vst.msk [vmem:[#allocation3 + $0xbc] sm:$0xf] %vm987, %v8655
  %8930 = vst.msk [vmem:[#allocation3 + $0xc8] sm:$0xf] %vm987, %v8658
  %8931 = vst.msk [vmem:[#allocation3 + $0xd4] sm:$0xf] %vm987, %v8661
  %8932 = vst.msk [vmem:[#allocation3 + $0xe0] sm:$0xf] %vm987, %v8664
  %8933 = vst.msk [vmem:[#allocation3 + $0xec] sm:$0xf] %vm987, %v8667
  %8934 = vst.msk [vmem:[#allocation3 + $0xf8] sm:$0xf] %vm987, %v8670
  %8935 = vst.msk [vmem:[#allocation3 + $0x104] sm:$0xf] %vm987, %v8673
  %8936 = vst.msk [vmem:[#allocation3 + $0x110] sm:$0xf] %vm987, %v8676
  %8937 = vst.msk [vmem:[#allocation3 + $0x11c] sm:$0xf] %vm987, %v8679
  %8938 = vst.msk [vmem:[#allocation3 + $0x128] sm:$0xf] %vm987, %v8682
  %8939 = vst.msk [vmem:[#allocation3 + $0x134] sm:$0xf] %vm987, %v8685
  %8940 = vst.msk [vmem:[#allocation3 + $0x140] sm:$0xf] %vm987, %v8688
  %8941 = vst.msk [vmem:[#allocation3 + $0x14c] sm:$0xf] %vm987, %v8691
  %8942 = vst.msk [vmem:[#allocation3 + $0x158] sm:$0xf] %vm987, %v8694
  %8943 = vst.msk [vmem:[#allocation3 + $0x164] sm:$0xf] %vm987, %v8697
  %8944 = vst.msk [vmem:[#allocation3 + $0x170] sm:$0xf] %vm987, %v8700
  %8945 = vst.msk [vmem:[#allocation3 + $0x17c] sm:$0xf] %vm987, %v8703
  %8946 = vst.msk [vmem:[#allocation3 + $0x188] sm:$0xf] %vm987, %v8706
  %8947 = vst.msk [vmem:[#allocation3 + $0x194] sm:$0xf] %vm987, %v8709
  %8948 = vst.msk [vmem:[#allocation3 + $0x1a0] sm:$0xf] %vm987, %v8712
  %8949 = vst.msk [vmem:[#allocation3 + $0x1ac] sm:$0xf] %vm987, %v8715
  %8950 = vst.msk [vmem:[#allocation3 + $0x1b8] sm:$0xf] %vm987, %v8718
  %8951 = vst.msk [vmem:[#allocation3 + $0x1c4] sm:$0xf] %vm987, %v8721
  %8952 = vst.msk [vmem:[#allocation3 + $0x1d0] sm:$0xf] %vm987, %v8724
  %8953 = vst.msk [vmem:[#allocation3 + $0x1dc] sm:$0xf] %vm987, %v8727
  %8954 = vst.msk [vmem:[#allocation3 + $0x1e8] sm:$0xf] %vm987, %v8730
  %8955 = vst.msk [vmem:[#allocation3 + $0x1f4] sm:$0xf] %vm987, %v8733
  %8956 = vst.msk [vmem:[#allocation3 + $0x200] sm:$0xf] %vm987, %v8736
  %8957 = vst.msk [vmem:[#allocation3 + $0x20c] sm:$0xf] %vm987, %v8739
  %8958 = vst.msk [vmem:[#allocation3 + $0x218] sm:$0xf] %vm987, %v8742
  %8959 = vst.msk [vmem:[#allocation3 + $0x224] sm:$0xf] %vm987, %v8745
  %8960 = vst.msk [vmem:[#allocation3 + $0x230] sm:$0xf] %vm987, %v8748
  %8961 = vst.msk [vmem:[#allocation3 + $0x23c] sm:$0xf] %vm987, %v8751
  %8962 = vst.msk [vmem:[#allocation3 + $0x248] sm:$0xf] %vm987, %v8754
  %8963 = vst.msk [vmem:[#allocation3 + $0x254] sm:$0xf] %vm987, %v8757
  %8964 = vst.msk [vmem:[#allocation3 + $0x260] sm:$0xf] %vm987, %v8760
  %8965 = vst.msk [vmem:[#allocation3 + $0x26c] sm:$0xf] %vm987, %v8763
  %8966 = vst.msk [vmem:[#allocation3 + $0x278] sm:$0xf] %vm987, %v8766
  %8967 = vst.msk [vmem:[#allocation3 + $0x284] sm:$0xf] %vm987, %v8769
  %8968 = vst.msk [vmem:[#allocation3 + $0x290] sm:$0xf] %vm987, %v8772
  %8969 = vst.msk [vmem:[#allocation3 + $0x29c] sm:$0xf] %vm987, %v8775
  %8970 = vst.msk [vmem:[#allocation3 + $0x2a8] sm:$0xf] %vm987, %v8778
  %8971 = vst.msk [vmem:[#allocation3 + $0x2b4] sm:$0xf] %vm987, %v8781
  %8972 = vst.msk [vmem:[#allocation3 + $0x2c0] sm:$0xf] %vm987, %v8784
  %8973 = vst.msk [vmem:[#allocation3 + $0x2cc] sm:$0xf] %vm987, %v8787
  %8974 = vst.msk [vmem:[#allocation3 + $0x2d8] sm:$0xf] %vm987, %v8790
  %8975 = vst.msk [vmem:[#allocation3 + $0x2e4] sm:$0xf] %vm987, %v8793
  %8976 = vst.msk [vmem:[#allocation3 + $0x2f0] sm:$0xf] %vm987, %v8796
  %8977 = vst.msk [vmem:[#allocation3 + $0x2fc] sm:$0xf] %vm987, %v8799
  %8978 = vst.msk [vmem:[#allocation3 + $0x308] sm:$0xf] %vm987, %v8802
  %8979 = vst.msk [vmem:[#allocation3 + $0x314] sm:$0xf] %vm987, %v8805
  %8980 = vst.msk [vmem:[#allocation3 + $0x320] sm:$0xf] %vm987, %v8808
  %8981 = vst.msk [vmem:[#allocation3 + $0x32c] sm:$0xf] %vm987, %v8811
  %8982 = vst.msk [vmem:[#allocation3 + $0x338] sm:$0xf] %vm987, %v8814
  %8983 = vst.msk [vmem:[#allocation3 + $0x344] sm:$0xf] %vm987, %v8817
  %8984 = vst.msk [vmem:[#allocation3 + $0x350] sm:$0xf] %vm987, %v8820
  %8985 = vst.msk [vmem:[#allocation3 + $0x35c] sm:$0xf] %vm987, %v8823
  %8986 = vst.msk [vmem:[#allocation3 + $0x368] sm:$0xf] %vm987, %v8826
  %8987 = vst.msk [vmem:[#allocation3 + $0x374] sm:$0xf] %vm987, %v8829
  %8988 = vst.msk [vmem:[#allocation3 + $0x380] sm:$0xf] %vm987, %v8832
  %8989 = vst.msk [vmem:[#allocation3 + $0x38c] sm:$0xf] %vm987, %v8835
  %8990 = vst.msk [vmem:[#allocation3 + $0x398] sm:$0x3] %vm1953, %v8836
  %v8991 = vld [vmem:[#allocation3] sm:$0xff]
  %v8992 = vld [vmem:[#allocation3 + $0x8] sm:$0xf]
  %v8993 = vld [vmem:[#allocation3 + $0xc] sm:$0xff]
  %v8994 = vld [vmem:[#allocation3 + $0x14] sm:$0xf]
  %v8995 = vld [vmem:[#allocation3 + $0x18] sm:$0xff]
  %v8996 = vld [vmem:[#allocation3 + $0x20] sm:$0xf]
  %v8997 = vld [vmem:[#allocation3 + $0x24] sm:$0xff]
  %v8998 = vld [vmem:[#allocation3 + $0x2c] sm:$0xf]
  %v8999 = vld [vmem:[#allocation3 + $0x30] sm:$0xff]
  %v9000 = vld [vmem:[#allocation3 + $0x38] sm:$0xf]
  %v9001 = vld [vmem:[#allocation3 + $0x3c] sm:$0xff]
  %v9002 = vld [vmem:[#allocation3 + $0x44] sm:$0xf]
  %v9003 = vld [vmem:[#allocation3 + $0x48] sm:$0xff]
  %v9004 = vld [vmem:[#allocation3 + $0x50] sm:$0xf]
  %v9005 = vld [vmem:[#allocation3 + $0x54] sm:$0xff]
  %v9006 = vld [vmem:[#allocation3 + $0x5c] sm:$0xf]
  %v9007 = vld [vmem:[#allocation3 + $0x60] sm:$0xff]
  %v9008 = vld [vmem:[#allocation3 + $0x68] sm:$0xf]
  %v9009 = vld [vmem:[#allocation3 + $0x6c] sm:$0xff]
  %v9010 = vld [vmem:[#allocation3 + $0x74] sm:$0xf]
  %v9011 = vld [vmem:[#allocation3 + $0x78] sm:$0xff]
  %v9012 = vld [vmem:[#allocation3 + $0x80] sm:$0xf]
  %v9013 = vld [vmem:[#allocation3 + $0x84] sm:$0xff]
  %v9014 = vld [vmem:[#allocation3 + $0x8c] sm:$0xf]
  %v9015 = vld [vmem:[#allocation3 + $0x90] sm:$0xff]
  %v9016 = vld [vmem:[#allocation3 + $0x98] sm:$0xf]
  %v9017 = vld [vmem:[#allocation3 + $0x9c] sm:$0xff]
  %v9018 = vld [vmem:[#allocation3 + $0xa4] sm:$0xf]
  %v9019 = vld [vmem:[#allocation3 + $0xa8] sm:$0xff]
  %v9020 = vld [vmem:[#allocation3 + $0xb0] sm:$0xf]
  %v9021 = vld [vmem:[#allocation3 + $0xb4] sm:$0xff]
  %v9022 = vld [vmem:[#allocation3 + $0xbc] sm:$0xf]
  %v9023 = vld [vmem:[#allocation3 + $0xc0] sm:$0xff]
  %v9024 = vld [vmem:[#allocation3 + $0xc8] sm:$0xf]
  %v9025 = vld [vmem:[#allocation3 + $0xcc] sm:$0xff]
  %v9026 = vld [vmem:[#allocation3 + $0xd4] sm:$0xf]
  %v9027 = vld [vmem:[#allocation3 + $0xd8] sm:$0xff]
  %v9028 = vld [vmem:[#allocation3 + $0xe0] sm:$0xf]
  %v9029 = vld [vmem:[#allocation3 + $0xe4] sm:$0xff]
  %v9030 = vld [vmem:[#allocation3 + $0xec] sm:$0xf]
  %v9031 = vld [vmem:[#allocation3 + $0xf0] sm:$0xff]
  %v9032 = vld [vmem:[#allocation3 + $0xf8] sm:$0xf]
  %v9033 = vld [vmem:[#allocation3 + $0xfc] sm:$0xff]
  %v9034 = vld [vmem:[#allocation3 + $0x104] sm:$0xf]
  %v9035 = vld [vmem:[#allocation3 + $0x108] sm:$0xff]
  %v9036 = vld [vmem:[#allocation3 + $0x110] sm:$0xf]
  %v9037 = vld [vmem:[#allocation3 + $0x114] sm:$0xff]
  %v9038 = vld [vmem:[#allocation3 + $0x11c] sm:$0xf]
  %v9039 = vld [vmem:[#allocation3 + $0x120] sm:$0xff]
  %v9040 = vld [vmem:[#allocation3 + $0x128] sm:$0xf]
  %v9041 = vld [vmem:[#allocation3 + $0x12c] sm:$0xff]
  %v9042 = vld [vmem:[#allocation3 + $0x134] sm:$0xf]
  %v9043 = vld [vmem:[#allocation3 + $0x138] sm:$0xff]
  %v9044 = vld [vmem:[#allocation3 + $0x140] sm:$0xf]
  %v9045 = vld [vmem:[#allocation3 + $0x144] sm:$0xff]
  %v9046 = vld [vmem:[#allocation3 + $0x14c] sm:$0xf]
  %v9047 = vld [vmem:[#allocation3 + $0x150] sm:$0xff]
  %v9048 = vld [vmem:[#allocation3 + $0x158] sm:$0xf]
  %v9049 = vld [vmem:[#allocation3 + $0x15c] sm:$0xff]
  %v9050 = vld [vmem:[#allocation3 + $0x164] sm:$0xf]
  %v9051 = vld [vmem:[#allocation3 + $0x168] sm:$0xff]
  %v9052 = vld [vmem:[#allocation3 + $0x170] sm:$0xf]
  %v9053 = vld [vmem:[#allocation3 + $0x174] sm:$0xff]
  %v9054 = vld [vmem:[#allocation3 + $0x17c] sm:$0xf]
  %v9055 = vld [vmem:[#allocation3 + $0x180] sm:$0xff]
  %v9056 = vld [vmem:[#allocation3 + $0x188] sm:$0xf]
  %v9057 = vld [vmem:[#allocation3 + $0x18c] sm:$0xff]
  %v9058 = vld [vmem:[#allocation3 + $0x194] sm:$0xf]
  %v9059 = vld [vmem:[#allocation3 + $0x198] sm:$0xff]
  %v9060 = vld [vmem:[#allocation3 + $0x1a0] sm:$0xf]
  %v9061 = vld [vmem:[#allocation3 + $0x1a4] sm:$0xff]
  %v9062 = vld [vmem:[#allocation3 + $0x1ac] sm:$0xf]
  %v9063 = vld [vmem:[#allocation3 + $0x1b0] sm:$0xff]
  %v9064 = vld [vmem:[#allocation3 + $0x1b8] sm:$0xf]
  %v9065 = vld [vmem:[#allocation3 + $0x1bc] sm:$0xff]
  %v9066 = vld [vmem:[#allocation3 + $0x1c4] sm:$0xf]
  %v9067 = vld [vmem:[#allocation3 + $0x1c8] sm:$0xff]
  %v9068 = vld [vmem:[#allocation3 + $0x1d0] sm:$0xf]
  %v9069 = vld [vmem:[#allocation3 + $0x1d4] sm:$0xff]
  %v9070 = vld [vmem:[#allocation3 + $0x1dc] sm:$0xf]
  %v9071 = vld [vmem:[#allocation3 + $0x1e0] sm:$0xff]
  %v9072 = vld [vmem:[#allocation3 + $0x1e8] sm:$0xf]
  %v9073 = vld [vmem:[#allocation3 + $0x1ec] sm:$0xff]
  %v9074 = vld [vmem:[#allocation3 + $0x1f4] sm:$0xf]
  %v9075 = vld [vmem:[#allocation3 + $0x1f8] sm:$0xff]
  %v9076 = vld [vmem:[#allocation3 + $0x200] sm:$0xf]
  %v9077 = vld [vmem:[#allocation3 + $0x204] sm:$0xff]
  %v9078 = vld [vmem:[#allocation3 + $0x20c] sm:$0xf]
  %v9079 = vld [vmem:[#allocation3 + $0x210] sm:$0xff]
  %v9080 = vld [vmem:[#allocation3 + $0x218] sm:$0xf]
  %v9081 = vld [vmem:[#allocation3 + $0x21c] sm:$0xff]
  %v9082 = vld [vmem:[#allocation3 + $0x224] sm:$0xf]
  %v9083 = vld [vmem:[#allocation3 + $0x228] sm:$0xff]
  %v9084 = vld [vmem:[#allocation3 + $0x230] sm:$0xf]
  %v9085 = vld [vmem:[#allocation3 + $0x234] sm:$0xff]
  %v9086 = vld [vmem:[#allocation3 + $0x23c] sm:$0xf]
  %v9087 = vld [vmem:[#allocation3 + $0x240] sm:$0xff]
  %v9088 = vld [vmem:[#allocation3 + $0x248] sm:$0xf]
  %v9089 = vld [vmem:[#allocation3 + $0x24c] sm:$0xff]
  %v9090 = vld [vmem:[#allocation3 + $0x254] sm:$0xf]
  %v9091 = vld [vmem:[#allocation3 + $0x258] sm:$0xff]
  %v9092 = vld [vmem:[#allocation3 + $0x260] sm:$0xf]
  %v9093 = vld [vmem:[#allocation3 + $0x264] sm:$0xff]
  %v9094 = vld [vmem:[#allocation3 + $0x26c] sm:$0xf]
  %v9095 = vld [vmem:[#allocation3 + $0x270] sm:$0xff]
  %v9096 = vld [vmem:[#allocation3 + $0x278] sm:$0xf]
  %v9097 = vld [vmem:[#allocation3 + $0x27c] sm:$0xff]
  %v9098 = vld [vmem:[#allocation3 + $0x284] sm:$0xf]
  %v9099 = vld [vmem:[#allocation3 + $0x288] sm:$0xff]
  %v9100 = vld [vmem:[#allocation3 + $0x290] sm:$0xf]
  %v9101 = vld [vmem:[#allocation3 + $0x294] sm:$0xff]
  %v9102 = vld [vmem:[#allocation3 + $0x29c] sm:$0xf]
  %v9103 = vld [vmem:[#allocation3 + $0x2a0] sm:$0xff]
  %v9104 = vld [vmem:[#allocation3 + $0x2a8] sm:$0xf]
  %v9105 = vld [vmem:[#allocation3 + $0x2ac] sm:$0xff]
  %v9106 = vld [vmem:[#allocation3 + $0x2b4] sm:$0xf]
  %v9107 = vld [vmem:[#allocation3 + $0x2b8] sm:$0xff]
  %v9108 = vld [vmem:[#allocation3 + $0x2c0] sm:$0xf]
  %v9109 = vld [vmem:[#allocation3 + $0x2c4] sm:$0xff]
  %v9110 = vld [vmem:[#allocation3 + $0x2cc] sm:$0xf]
  %v9111 = vld [vmem:[#allocation3 + $0x2d0] sm:$0xff]
  %v9112 = vld [vmem:[#allocation3 + $0x2d8] sm:$0xf]
  %v9113 = vld [vmem:[#allocation3 + $0x2dc] sm:$0xff]
  %v9114 = vld [vmem:[#allocation3 + $0x2e4] sm:$0xf]
  %v9115 = vld [vmem:[#allocation3 + $0x2e8] sm:$0xff]
  %v9116 = vld [vmem:[#allocation3 + $0x2f0] sm:$0xf]
  %v9117 = vld [vmem:[#allocation3 + $0x2f4] sm:$0xff]
  %v9118 = vld [vmem:[#allocation3 + $0x2fc] sm:$0xf]
  %v9119 = vld [vmem:[#allocation3 + $0x300] sm:$0xff]
  %v9120 = vld [vmem:[#allocation3 + $0x308] sm:$0xf]
  %v9121 = vld [vmem:[#allocation3 + $0x30c] sm:$0xff]
  %v9122 = vld [vmem:[#allocation3 + $0x314] sm:$0xf]
  %v9123 = vld [vmem:[#allocation3 + $0x318] sm:$0xff]
  %v9124 = vld [vmem:[#allocation3 + $0x320] sm:$0xf]
  %v9125 = vld [vmem:[#allocation3 + $0x324] sm:$0xff]
  %v9126 = vld [vmem:[#allocation3 + $0x32c] sm:$0xf]
  %v9127 = vld [vmem:[#allocation3 + $0x330] sm:$0xff]
  %v9128 = vld [vmem:[#allocation3 + $0x338] sm:$0xf]
  %v9129 = vld [vmem:[#allocation3 + $0x33c] sm:$0xff]
  %v9130 = vld [vmem:[#allocation3 + $0x344] sm:$0xf]
  %v9131 = vld [vmem:[#allocation3 + $0x348] sm:$0xff]
  %v9132 = vld [vmem:[#allocation3 + $0x350] sm:$0xf]
  %v9133 = vld [vmem:[#allocation3 + $0x354] sm:$0xff]
  %v9134 = vld [vmem:[#allocation3 + $0x35c] sm:$0xf]
  %v9135 = vld [vmem:[#allocation3 + $0x360] sm:$0xff]
  %v9136 = vld [vmem:[#allocation3 + $0x368] sm:$0xf]
  %v9137 = vld [vmem:[#allocation3 + $0x36c] sm:$0xff]
  %v9138 = vld [vmem:[#allocation3 + $0x374] sm:$0xf]
  %v9139 = vld [vmem:[#allocation3 + $0x378] sm:$0xff]
  %v9140 = vld [vmem:[#allocation3 + $0x380] sm:$0xf]
  %v9141 = vld [vmem:[#allocation3 + $0x384] sm:$0xff]
  %v9142 = vld [vmem:[#allocation3 + $0x38c] sm:$0xf]
  %v9143 = vld [vmem:[#allocation3 + $0x390] sm:$0x33]
  %v9144 = vld [vmem:[#allocation3 + $0x398] sm:$0x3]
  %v9145 = vld [vmem:[%s5] sm:$0xf]
  %v9146 = vld [vmem:[%s5 + $0x4] sm:$0xf]
  %v9147 = vld [vmem:[%s5 + $0x8] sm:$0xf]
  %v9148 = vld [vmem:[%s5 + $0xc] sm:$0xf]
  %v9149 = vld [vmem:[%s5 + $0x10] sm:$0xf]
  %v9150 = vld [vmem:[%s5 + $0x14] sm:$0xf]
  %v9151 = vld [vmem:[%s5 + $0x18] sm:$0xf]
  %v9152 = vld [vmem:[%s5 + $0x1c] sm:$0xf]
  %v9153 = vld [vmem:[%s5 + $0x20] sm:$0xf]
  %v9154 = vld [vmem:[%s5 + $0x24] sm:$0xf]
  %v9155 = vld [vmem:[%s5 + $0x28] sm:$0xf]
  %v9156 = vld [vmem:[%s5 + $0x2c] sm:$0xf]
  %v9157 = vld [vmem:[%s5 + $0x30] sm:$0xf]
  %v9158 = vld [vmem:[%s5 + $0x34] sm:$0xf]
  %v9159 = vld [vmem:[%s5 + $0x38] sm:$0xf]
  %v9160 = vld [vmem:[%s5 + $0x3c] sm:$0xf]
  %v9161 = vld [vmem:[%s5 + $0x40] sm:$0xf]
  %v9162 = vld [vmem:[%s5 + $0x44] sm:$0xf]
  %v9163 = vld [vmem:[%s5 + $0x48] sm:$0xf]
  %v9164 = vld [vmem:[%s5 + $0x4c] sm:$0xf]
  %v9165 = vld [vmem:[%s5 + $0x50] sm:$0xf]
  %v9166 = vld [vmem:[%s5 + $0x54] sm:$0xf]
  %v9167 = vld [vmem:[%s5 + $0x58] sm:$0xf]
  %v9168 = vld [vmem:[%s5 + $0x5c] sm:$0xf]
  %v9169 = vld [vmem:[%s5 + $0x60] sm:$0xf]
  %v9170 = vld [vmem:[%s5 + $0x64] sm:$0xf]
  %v9171 = vld [vmem:[%s5 + $0x68] sm:$0xf]
  %v9172 = vld [vmem:[%s5 + $0x6c] sm:$0xf]
  %v9173 = vld [vmem:[%s5 + $0x70] sm:$0xf]
  %v9174 = vld [vmem:[%s5 + $0x74] sm:$0xf]
  %v9175 = vld [vmem:[%s5 + $0x78] sm:$0xf]
  %v9176 = vld [vmem:[%s5 + $0x7c] sm:$0xf]
  %v9177 = vld [vmem:[%s5 + $0x80] sm:$0xf]
  %v9178 = vld [vmem:[%s5 + $0x84] sm:$0xf]
  %v9179 = vld [vmem:[%s5 + $0x88] sm:$0xf]
  %v9180 = vld [vmem:[%s5 + $0x8c] sm:$0xf]
  %v9335 = vunpack.c.l.b16 %v8991
  %v9336 = vunpack.c.h.b16 %v8991
  %v9337 = vunpack.c.l.b16 %v8992
  %v9338 = vunpack.c.l.b16 %v8993
  %v9339 = vunpack.c.h.b16 %v8993
  %v9340 = vunpack.c.l.b16 %v8994
  %v9341 = vunpack.c.l.b16 %v8995
  %v9342 = vunpack.c.h.b16 %v8995
  %v9343 = vunpack.c.l.b16 %v8996
  %v9344 = vunpack.c.l.b16 %v8997
  %v9345 = vunpack.c.h.b16 %v8997
  %v9346 = vunpack.c.l.b16 %v8998
  %v9347 = vunpack.c.l.b16 %v8999
  %v9348 = vunpack.c.h.b16 %v8999
  %v9349 = vunpack.c.l.b16 %v9000
  %v9350 = vunpack.c.l.b16 %v9001
  %v9351 = vunpack.c.h.b16 %v9001
  %v9352 = vunpack.c.l.b16 %v9002
  %v9353 = vunpack.c.l.b16 %v9003
  %v9354 = vunpack.c.h.b16 %v9003
  %v9355 = vunpack.c.l.b16 %v9004
  %v9356 = vunpack.c.l.b16 %v9005
  %v9357 = vunpack.c.h.b16 %v9005
  %v9358 = vunpack.c.l.b16 %v9006
  %v9359 = vunpack.c.l.b16 %v9007
  %v9360 = vunpack.c.h.b16 %v9007
  %v9361 = vunpack.c.l.b16 %v9008
  %v9362 = vunpack.c.l.b16 %v9009
  %v9363 = vunpack.c.h.b16 %v9009
  %v9364 = vunpack.c.l.b16 %v9010
  %v9365 = vunpack.c.l.b16 %v9011
  %v9366 = vunpack.c.h.b16 %v9011
  %v9367 = vunpack.c.l.b16 %v9012
  %v9368 = vunpack.c.l.b16 %v9013
  %v9369 = vunpack.c.h.b16 %v9013
  %v9370 = vunpack.c.l.b16 %v9014
  %v9371 = vunpack.c.l.b16 %v9015
  %v9372 = vunpack.c.h.b16 %v9015
  %v9373 = vunpack.c.l.b16 %v9016
  %v9374 = vunpack.c.l.b16 %v9017
  %v9375 = vunpack.c.h.b16 %v9017
  %v9376 = vunpack.c.l.b16 %v9018
  %v9377 = vunpack.c.l.b16 %v9019
  %v9378 = vunpack.c.h.b16 %v9019
  %v9379 = vunpack.c.l.b16 %v9020
  %v9380 = vunpack.c.l.b16 %v9021
  %v9381 = vunpack.c.h.b16 %v9021
  %v9382 = vunpack.c.l.b16 %v9022
  %v9383 = vunpack.c.l.b16 %v9023
  %v9384 = vunpack.c.h.b16 %v9023
  %v9385 = vunpack.c.l.b16 %v9024
  %v9386 = vunpack.c.l.b16 %v9025
  %v9387 = vunpack.c.h.b16 %v9025
  %v9388 = vunpack.c.l.b16 %v9026
  %v9389 = vunpack.c.l.b16 %v9027
  %v9390 = vunpack.c.h.b16 %v9027
  %v9391 = vunpack.c.l.b16 %v9028
  %v9392 = vunpack.c.l.b16 %v9029
  %v9393 = vunpack.c.h.b16 %v9029
  %v9394 = vunpack.c.l.b16 %v9030
  %v9395 = vunpack.c.l.b16 %v9031
  %v9396 = vunpack.c.h.b16 %v9031
  %v9397 = vunpack.c.l.b16 %v9032
  %v9398 = vunpack.c.l.b16 %v9033
  %v9399 = vunpack.c.h.b16 %v9033
  %v9400 = vunpack.c.l.b16 %v9034
  %v9401 = vunpack.c.l.b16 %v9035
  %v9402 = vunpack.c.h.b16 %v9035
  %v9403 = vunpack.c.l.b16 %v9036
  %v9404 = vunpack.c.l.b16 %v9037
  %v9405 = vunpack.c.h.b16 %v9037
  %v9406 = vunpack.c.l.b16 %v9038
  %v9407 = vunpack.c.l.b16 %v9039
  %v9408 = vunpack.c.h.b16 %v9039
  %v9409 = vunpack.c.l.b16 %v9040
  %v9410 = vunpack.c.l.b16 %v9041
  %v9411 = vunpack.c.h.b16 %v9041
  %v9412 = vunpack.c.l.b16 %v9042
  %v9413 = vunpack.c.l.b16 %v9043
  %v9414 = vunpack.c.h.b16 %v9043
  %v9415 = vunpack.c.l.b16 %v9044
  %v9416 = vunpack.c.l.b16 %v9045
  %v9417 = vunpack.c.h.b16 %v9045
  %v9418 = vunpack.c.l.b16 %v9046
  %v9419 = vunpack.c.l.b16 %v9047
  %v9420 = vunpack.c.h.b16 %v9047
  %v9421 = vunpack.c.l.b16 %v9048
  %v9422 = vunpack.c.l.b16 %v9049
  %v9423 = vunpack.c.h.b16 %v9049
  %v9424 = vunpack.c.l.b16 %v9050
  %v9425 = vunpack.c.l.b16 %v9051
  %v9426 = vunpack.c.h.b16 %v9051
  %v9427 = vunpack.c.l.b16 %v9052
  %v9428 = vunpack.c.l.b16 %v9053
  %v9429 = vunpack.c.h.b16 %v9053
  %v9430 = vunpack.c.l.b16 %v9054
  %v9431 = vunpack.c.l.b16 %v9055
  %v9432 = vunpack.c.h.b16 %v9055
  %v9433 = vunpack.c.l.b16 %v9056
  %v9434 = vunpack.c.l.b16 %v9057
  %v9435 = vunpack.c.h.b16 %v9057
  %v9436 = vunpack.c.l.b16 %v9058
  %v9437 = vunpack.c.l.b16 %v9059
  %v9438 = vunpack.c.h.b16 %v9059
  %v9439 = vunpack.c.l.b16 %v9060
  %v9440 = vunpack.c.l.b16 %v9061
  %v9441 = vunpack.c.h.b16 %v9061
  %v9442 = vunpack.c.l.b16 %v9062
  %v9443 = vunpack.c.l.b16 %v9063
  %v9444 = vunpack.c.h.b16 %v9063
  %v9445 = vunpack.c.l.b16 %v9064
  %v9446 = vunpack.c.l.b16 %v9065
  %v9447 = vunpack.c.h.b16 %v9065
  %v9448 = vunpack.c.l.b16 %v9066
  %v9449 = vunpack.c.l.b16 %v9067
  %v9450 = vunpack.c.h.b16 %v9067
  %v9451 = vunpack.c.l.b16 %v9068
  %v9452 = vunpack.c.l.b16 %v9069
  %v9453 = vunpack.c.h.b16 %v9069
  %v9454 = vunpack.c.l.b16 %v9070
  %v9455 = vunpack.c.l.b16 %v9071
  %v9456 = vunpack.c.h.b16 %v9071
  %v9457 = vunpack.c.l.b16 %v9072
  %v9458 = vunpack.c.l.b16 %v9073
  %v9459 = vunpack.c.h.b16 %v9073
  %v9460 = vunpack.c.l.b16 %v9074
  %v9461 = vunpack.c.l.b16 %v9075
  %v9462 = vunpack.c.h.b16 %v9075
  %v9463 = vunpack.c.l.b16 %v9076
  %v9464 = vunpack.c.l.b16 %v9077
  %v9465 = vunpack.c.h.b16 %v9077
  %v9466 = vunpack.c.l.b16 %v9078
  %v9467 = vunpack.c.l.b16 %v9079
  %v9468 = vunpack.c.h.b16 %v9079
  %v9469 = vunpack.c.l.b16 %v9080
  %v9470 = vunpack.c.l.b16 %v9081
  %v9471 = vunpack.c.h.b16 %v9081
  %v9472 = vunpack.c.l.b16 %v9082
  %v9473 = vunpack.c.l.b16 %v9083
  %v9474 = vunpack.c.h.b16 %v9083
  %v9475 = vunpack.c.l.b16 %v9084
  %v9476 = vunpack.c.l.b16 %v9085
  %v9477 = vunpack.c.h.b16 %v9085
  %v9478 = vunpack.c.l.b16 %v9086
  %v9479 = vunpack.c.l.b16 %v9087
  %v9480 = vunpack.c.h.b16 %v9087
  %v9481 = vunpack.c.l.b16 %v9088
  %v9482 = vunpack.c.l.b16 %v9089
  %v9483 = vunpack.c.h.b16 %v9089
  %v9484 = vunpack.c.l.b16 %v9090
  %v9485 = vunpack.c.l.b16 %v9091
  %v9486 = vunpack.c.h.b16 %v9091
  %v9487 = vunpack.c.l.b16 %v9092
  %v9488 = vunpack.c.l.b16 %v9093
  %v9489 = vunpack.c.h.b16 %v9093
  %v9490 = vunpack.c.l.b16 %v9094
  %v9491 = vunpack.c.l.b16 %v9095
  %v9492 = vunpack.c.h.b16 %v9095
  %v9493 = vunpack.c.l.b16 %v9096
  %v9494 = vunpack.c.l.b16 %v9097
  %v9495 = vunpack.c.h.b16 %v9097
  %v9496 = vunpack.c.l.b16 %v9098
  %v9497 = vunpack.c.l.b16 %v9099
  %v9498 = vunpack.c.h.b16 %v9099
  %v9499 = vunpack.c.l.b16 %v9100
  %v9500 = vunpack.c.l.b16 %v9101
  %v9501 = vunpack.c.h.b16 %v9101
  %v9502 = vunpack.c.l.b16 %v9102
  %v9503 = vunpack.c.l.b16 %v9103
  %v9504 = vunpack.c.h.b16 %v9103
  %v9505 = vunpack.c.l.b16 %v9104
  %v9506 = vunpack.c.l.b16 %v9105
  %v9507 = vunpack.c.h.b16 %v9105
  %v9508 = vunpack.c.l.b16 %v9106
  %v9509 = vunpack.c.l.b16 %v9107
  %v9510 = vunpack.c.h.b16 %v9107
  %v9511 = vunpack.c.l.b16 %v9108
  %v9512 = vunpack.c.l.b16 %v9109
  %v9513 = vunpack.c.h.b16 %v9109
  %v9514 = vunpack.c.l.b16 %v9110
  %v9515 = vunpack.c.l.b16 %v9111
  %v9516 = vunpack.c.h.b16 %v9111
  %v9517 = vunpack.c.l.b16 %v9112
  %v9518 = vunpack.c.l.b16 %v9113
  %v9519 = vunpack.c.h.b16 %v9113
  %v9520 = vunpack.c.l.b16 %v9114
  %v9521 = vunpack.c.l.b16 %v9115
  %v9522 = vunpack.c.h.b16 %v9115
  %v9523 = vunpack.c.l.b16 %v9116
  %v9524 = vunpack.c.l.b16 %v9117
  %v9525 = vunpack.c.h.b16 %v9117
  %v9526 = vunpack.c.l.b16 %v9118
  %v9527 = vunpack.c.l.b16 %v9119
  %v9528 = vunpack.c.h.b16 %v9119
  %v9529 = vunpack.c.l.b16 %v9120
  %v9530 = vunpack.c.l.b16 %v9121
  %v9531 = vunpack.c.h.b16 %v9121
  %v9532 = vunpack.c.l.b16 %v9122
  %v9533 = vunpack.c.l.b16 %v9123
  %v9534 = vunpack.c.h.b16 %v9123
  %v9535 = vunpack.c.l.b16 %v9124
  %v9536 = vunpack.c.l.b16 %v9125
  %v9537 = vunpack.c.h.b16 %v9125
  %v9538 = vunpack.c.l.b16 %v9126
  %v9539 = vunpack.c.l.b16 %v9127
  %v9540 = vunpack.c.h.b16 %v9127
  %v9541 = vunpack.c.l.b16 %v9128
  %v9542 = vunpack.c.l.b16 %v9129
  %v9543 = vunpack.c.h.b16 %v9129
  %v9544 = vunpack.c.l.b16 %v9130
  %v9545 = vunpack.c.l.b16 %v9131
  %v9546 = vunpack.c.h.b16 %v9131
  %v9547 = vunpack.c.l.b16 %v9132
  %v9548 = vunpack.c.l.b16 %v9133
  %v9549 = vunpack.c.h.b16 %v9133
  %v9550 = vunpack.c.l.b16 %v9134
  %v9551 = vunpack.c.l.b16 %v9135
  %v9552 = vunpack.c.h.b16 %v9135
  %v9553 = vunpack.c.l.b16 %v9136
  %v9554 = vunpack.c.l.b16 %v9137
  %v9555 = vunpack.c.h.b16 %v9137
  %v9556 = vunpack.c.l.b16 %v9138
  %v9557 = vunpack.c.l.b16 %v9139
  %v9558 = vunpack.c.h.b16 %v9139
  %v9559 = vunpack.c.l.b16 %v9140
  %v9560 = vunpack.c.l.b16 %v9141
  %v9561 = vunpack.c.h.b16 %v9141
  %v9562 = vunpack.c.l.b16 %v9142
  %v9563 = vunpack.c.l.b16 %v9143
  %v9564 = vunpack.c.h.b16 %v9143
  %v9565 = vunpack.c.l.b16 %v9144
  %v9566 = vpack.c.b16 %v9338, %v9335
  %v9567 = vpack.c.b16 %v9339, %v9336
  %v9568 = vpack.c.b16 %v9340, %v9337
  %v9569 = vpack.c.b16 %v9344, %v9341
  %v9570 = vpack.c.b16 %v9345, %v9342
  %v9571 = vpack.c.b16 %v9346, %v9343
  %v9572 = vpack.c.b16 %v9350, %v9347
  %v9573 = vpack.c.b16 %v9351, %v9348
  %v9574 = vpack.c.b16 %v9352, %v9349
  %v9575 = vpack.c.b16 %v9356, %v9353
  %v9576 = vpack.c.b16 %v9357, %v9354
  %v9577 = vpack.c.b16 %v9358, %v9355
  %v9578 = vpack.c.b16 %v9362, %v9359
  %v9579 = vpack.c.b16 %v9363, %v9360
  %v9580 = vpack.c.b16 %v9364, %v9361
  %v9581 = vpack.c.b16 %v9368, %v9365
  %v9582 = vpack.c.b16 %v9369, %v9366
  %v9583 = vpack.c.b16 %v9370, %v9367
  %v9584 = vpack.c.b16 %v9374, %v9371
  %v9585 = vpack.c.b16 %v9375, %v9372
  %v9586 = vpack.c.b16 %v9376, %v9373
  %v9587 = vpack.c.b16 %v9380, %v9377
  %v9588 = vpack.c.b16 %v9381, %v9378
  %v9589 = vpack.c.b16 %v9382, %v9379
  %v9590 = vpack.c.b16 %v9386, %v9383
  %v9591 = vpack.c.b16 %v9387, %v9384
  %v9592 = vpack.c.b16 %v9388, %v9385
  %v9593 = vpack.c.b16 %v9392, %v9389
  %v9594 = vpack.c.b16 %v9393, %v9390
  %v9595 = vpack.c.b16 %v9394, %v9391
  %v9596 = vpack.c.b16 %v9398, %v9395
  %v9597 = vpack.c.b16 %v9399, %v9396
  %v9598 = vpack.c.b16 %v9400, %v9397
  %v9599 = vpack.c.b16 %v9404, %v9401
  %v9600 = vpack.c.b16 %v9405, %v9402
  %v9601 = vpack.c.b16 %v9406, %v9403
  %v9602 = vpack.c.b16 %v9410, %v9407
  %v9603 = vpack.c.b16 %v9411, %v9408
  %v9604 = vpack.c.b16 %v9412, %v9409
  %v9605 = vpack.c.b16 %v9416, %v9413
  %v9606 = vpack.c.b16 %v9417, %v9414
  %v9607 = vpack.c.b16 %v9418, %v9415
  %v9608 = vpack.c.b16 %v9422, %v9419
  %v9609 = vpack.c.b16 %v9423, %v9420
  %v9610 = vpack.c.b16 %v9424, %v9421
  %v9611 = vpack.c.b16 %v9428, %v9425
  %v9612 = vpack.c.b16 %v9429, %v9426
  %v9613 = vpack.c.b16 %v9430, %v9427
  %v9614 = vpack.c.b16 %v9434, %v9431
  %v9615 = vpack.c.b16 %v9435, %v9432
  %v9616 = vpack.c.b16 %v9436, %v9433
  %v9617 = vpack.c.b16 %v9440, %v9437
  %v9618 = vpack.c.b16 %v9441, %v9438
  %v9619 = vpack.c.b16 %v9442, %v9439
  %v9620 = vpack.c.b16 %v9446, %v9443
  %v9621 = vpack.c.b16 %v9447, %v9444
  %v9622 = vpack.c.b16 %v9448, %v9445
  %v9623 = vpack.c.b16 %v9452, %v9449
  %v9624 = vpack.c.b16 %v9453, %v9450
  %v9625 = vpack.c.b16 %v9454, %v9451
  %v9626 = vpack.c.b16 %v9458, %v9455
  %v9627 = vpack.c.b16 %v9459, %v9456
  %v9628 = vpack.c.b16 %v9460, %v9457
  %v9629 = vpack.c.b16 %v9464, %v9461
  %v9630 = vpack.c.b16 %v9465, %v9462
  %v9631 = vpack.c.b16 %v9466, %v9463
  %v9632 = vpack.c.b16 %v9470, %v9467
  %v9633 = vpack.c.b16 %v9471, %v9468
  %v9634 = vpack.c.b16 %v9472, %v9469
  %v9635 = vpack.c.b16 %v9476, %v9473
  %v9636 = vpack.c.b16 %v9477, %v9474
  %v9637 = vpack.c.b16 %v9478, %v9475
  %v9638 = vpack.c.b16 %v9482, %v9479
  %v9639 = vpack.c.b16 %v9483, %v9480
  %v9640 = vpack.c.b16 %v9484, %v9481
  %v9641 = vpack.c.b16 %v9488, %v9485
  %v9642 = vpack.c.b16 %v9489, %v9486
  %v9643 = vpack.c.b16 %v9490, %v9487
  %v9644 = vpack.c.b16 %v9494, %v9491
  %v9645 = vpack.c.b16 %v9495, %v9492
  %v9646 = vpack.c.b16 %v9496, %v9493
  %v9647 = vpack.c.b16 %v9500, %v9497
  %v9648 = vpack.c.b16 %v9501, %v9498
  %v9649 = vpack.c.b16 %v9502, %v9499
  %v9650 = vpack.c.b16 %v9506, %v9503
  %v9651 = vpack.c.b16 %v9507, %v9504
  %v9652 = vpack.c.b16 %v9508, %v9505
  %v9653 = vpack.c.b16 %v9512, %v9509
  %v9654 = vpack.c.b16 %v9513, %v9510
  %v9655 = vpack.c.b16 %v9514, %v9511
  %v9656 = vpack.c.b16 %v9518, %v9515
  %v9657 = vpack.c.b16 %v9519, %v9516
  %v9658 = vpack.c.b16 %v9520, %v9517
  %v9659 = vpack.c.b16 %v9524, %v9521
  %v9660 = vpack.c.b16 %v9525, %v9522
  %v9661 = vpack.c.b16 %v9526, %v9523
  %v9662 = vpack.c.b16 %v9530, %v9527
  %v9663 = vpack.c.b16 %v9531, %v9528
  %v9664 = vpack.c.b16 %v9532, %v9529
  %v9665 = vpack.c.b16 %v9536, %v9533
  %v9666 = vpack.c.b16 %v9537, %v9534
  %v9667 = vpack.c.b16 %v9538, %v9535
  %v9668 = vpack.c.b16 %v9542, %v9539
  %v9669 = vpack.c.b16 %v9543, %v9540
  %v9670 = vpack.c.b16 %v9544, %v9541
  %v9671 = vpack.c.b16 %v9548, %v9545
  %v9672 = vpack.c.b16 %v9549, %v9546
  %v9673 = vpack.c.b16 %v9550, %v9547
  %v9674 = vpack.c.b16 %v9554, %v9551
  %v9675 = vpack.c.b16 %v9555, %v9552
  %v9676 = vpack.c.b16 %v9556, %v9553
  %v9677 = vpack.c.b16 %v9560, %v9557
  %v9678 = vpack.c.b16 %v9561, %v9558
  %v9679 = vpack.c.b16 %v9562, %v9559
  %v9680 = vpack.c.b16 %v9563, %v9563
  %v9681 = vpack.c.b16 %v9564, %v9564
  %v9682 = vpack.c.b16 %v9565, %v9565
  %v9797 = vunpack.c.l.b16 %v9145
  %v9798 = vunpack.c.l.b16 %v9146
  %v9799 = vunpack.c.l.b16 %v9147
  %v9800 = vunpack.c.l.b16 %v9148
  %v9801 = vunpack.c.l.b16 %v9149
  %v9802 = vunpack.c.l.b16 %v9150
  %v9803 = vunpack.c.l.b16 %v9151
  %v9804 = vunpack.c.l.b16 %v9152
  %v9805 = vunpack.c.l.b16 %v9153
  %v9806 = vunpack.c.l.b16 %v9154
  %v9807 = vunpack.c.l.b16 %v9155
  %v9808 = vunpack.c.l.b16 %v9156
  %v9809 = vunpack.c.l.b16 %v9157
  %v9810 = vunpack.c.l.b16 %v9158
  %v9811 = vunpack.c.l.b16 %v9159
  %v9812 = vunpack.c.l.b16 %v9160
  %v9813 = vunpack.c.l.b16 %v9161
  %v9814 = vunpack.c.l.b16 %v9162
  %v9815 = vunpack.c.l.b16 %v9163
  %v9816 = vunpack.c.l.b16 %v9164
  %v9817 = vunpack.c.l.b16 %v9165
  %v9818 = vunpack.c.l.b16 %v9166
  %v9819 = vunpack.c.l.b16 %v9167
  %v9820 = vunpack.c.l.b16 %v9168
  %v9821 = vunpack.c.l.b16 %v9169
  %v9822 = vunpack.c.l.b16 %v9170
  %v9823 = vunpack.c.l.b16 %v9171
  %v9824 = vunpack.c.l.b16 %v9172
  %v9825 = vunpack.c.l.b16 %v9173
  %v9826 = vunpack.c.l.b16 %v9174
  %v9827 = vunpack.c.l.b16 %v9175
  %v9828 = vunpack.c.l.b16 %v9176
  %v9829 = vunpack.c.l.b16 %v9177
  %v9830 = vunpack.c.l.b16 %v9178
  %v9831 = vunpack.c.l.b16 %v9179
  %v9832 = vunpack.c.l.b16 %v9180
  %v9833 = vpack.c.b16 %v9798, %v9797
  %v9834 = vpack.c.b16 %v9800, %v9799
  %v9835 = vpack.c.b16 %v9802, %v9801
  %v9836 = vpack.c.b16 %v9804, %v9803
  %v9837 = vpack.c.b16 %v9806, %v9805
  %v9838 = vpack.c.b16 %v9808, %v9807
  %v9839 = vpack.c.b16 %v9810, %v9809
  %v9840 = vpack.c.b16 %v9812, %v9811
  %v9841 = vpack.c.b16 %v9814, %v9813
  %v9842 = vpack.c.b16 %v9816, %v9815
  %v9843 = vpack.c.b16 %v9818, %v9817
  %v9844 = vpack.c.b16 %v9820, %v9819
  %v9845 = vpack.c.b16 %v9822, %v9821
  %v9846 = vpack.c.b16 %v9824, %v9823
  %v9847 = vpack.c.b16 %v9826, %v9825
  %v9848 = vpack.c.b16 %v9828, %v9827
  %v9849 = vpack.c.b16 %v9830, %v9829
  %v9850 = vpack.c.b16 %v9832, %v9831
  %v9870 = vsel %vm835, %v9568, 0
  %v9873 = vsel %vm835, %v9571, 0
  %v9876 = vsel %vm835, %v9574, 0
  %v9879 = vsel %vm835, %v9577, 0
  %v9882 = vsel %vm835, %v9580, 0
  %v9885 = vsel %vm835, %v9583, 0
  %v9888 = vsel %vm835, %v9586, 0
  %v9891 = vsel %vm835, %v9589, 0
  %v9894 = vsel %vm835, %v9592, 0
  %v9897 = vsel %vm835, %v9595, 0
  %v9900 = vsel %vm835, %v9598, 0
  %v9903 = vsel %vm835, %v9601, 0
  %v9906 = vsel %vm835, %v9604, 0
  %v9909 = vsel %vm835, %v9607, 0
  %v9912 = vsel %vm835, %v9610, 0
  %v9915 = vsel %vm835, %v9613, 0
  %v9918 = vsel %vm835, %v9616, 0
  %v9921 = vsel %vm835, %v9619, 0
  %v9924 = vsel %vm835, %v9622, 0
  %v9927 = vsel %vm835, %v9625, 0
  %v9930 = vsel %vm835, %v9628, 0
  %v9933 = vsel %vm835, %v9631, 0
  %v9936 = vsel %vm835, %v9634, 0
  %v9939 = vsel %vm835, %v9637, 0
  %v9942 = vsel %vm835, %v9640, 0
  %v9945 = vsel %vm835, %v9643, 0
  %v9948 = vsel %vm835, %v9646, 0
  %v9951 = vsel %vm835, %v9649, 0
  %v9954 = vsel %vm835, %v9652, 0
  %v9957 = vsel %vm835, %v9655, 0
  %v9960 = vsel %vm835, %v9658, 0
  %v9963 = vsel %vm835, %v9661, 0
  %v9966 = vsel %vm835, %v9664, 0
  %v9969 = vsel %vm835, %v9667, 0
  %v9972 = vsel %vm835, %v9670, 0
  %v9975 = vsel %vm835, %v9673, 0
  %v9978 = vsel %vm835, %v9676, 0
  %v9981 = vsel %vm835, %v9679, 0
  %v9984 = vsel %vm835, %v9682, 0
  %9986 = vmatprep.subr.bf16.mxu0 0
  %9987 = vmatpush1.bf16.msra.mxu0 %v9833
  %9988 = vmatprep.subr.bf16.mxu0 0
  %9989 = vmatpush1.bf16.msra.mxu0 %v9834
  %9990 = vmatprep.subr.bf16.mxu0 0
  %9991 = vmatpush1.bf16.msra.mxu0 %v9835
  %9992 = vmatprep.subr.bf16.mxu0 0
  %9993 = vmatpush1.bf16.msra.mxu0 %v9836
  %9994 = vmatprep.subr.bf16.mxu0 0
  %9995 = vmatpush1.bf16.msra.mxu0 %v9837
  %9996 = vmatprep.subr.bf16.mxu0 0
  %9997 = vmatpush1.bf16.msra.mxu0 %v9838
  %9998 = vmatprep.subr.bf16.mxu0 0
  %9999 = vmatpush1.bf16.msra.mxu0 %v9839
  %10000 = vmatprep.subr.bf16.mxu0 0
  %10001 = vmatpush1.bf16.msra.mxu0 %v9840
  %10002 = vmatprep.subr.bf16.mxu0 0
  %10003 = vmatpush1.bf16.msra.mxu0 %v9841
  %10004 = vmatprep.subr.bf16.mxu0 0
  %10005 = vmatpush1.bf16.msra.mxu0 %v9842
  %10006 = vmatprep.subr.bf16.mxu0 0
  %10007 = vmatpush1.bf16.msra.mxu0 %v9843
  %10008 = vmatprep.subr.bf16.mxu0 0
  %10009 = vmatpush1.bf16.msra.mxu0 %v9844
  %10010 = vmatprep.subr.bf16.mxu0 0
  %10011 = vmatpush1.bf16.msra.mxu0 %v9845
  %10012 = vmatprep.subr.bf16.mxu0 0
  %10013 = vmatpush1.bf16.msra.mxu0 %v9846
  %10014 = vmatprep.subr.bf16.mxu0 0
  %10015 = vmatpush1.bf16.msra.mxu0 %v9847
  %10016 = vmatprep.subr.bf16.mxu0 0
  %10017 = vmatpush1.bf16.msra.mxu0 %v9848
  %10018 = vmatprep.mubr.bf16.mxu0 %v9567
  %10019 = vmatmul.mubr.bf16.gmra.mrb[0].mxu0 %v9566
  %v10020 = vpop.f32.mrb[0].mxu0
  %v10021 = vadd.f32 0.0, %v10020
  %v10022 = vpop.f32.mrb[0].mxu0
  %v10023 = vpop.f32.mrb[0].mxu0
  %v10024 = vadd.f32 0.0, %v10023
  %v10025 = vpop.f32.mrb[0].mxu0
  %10026 = vmatprep.mubr.bf16.mxu0 %v9570
  %10027 = vmatmul.mubr.bf16.gmra.mrb[0].mxu0 %v9569
  %v10028 = vpop.f32.mrb[0].mxu0
  %v10029 = vadd.f32 0.0, %v10028
  %v10030 = vpop.f32.mrb[0].mxu0
  %v10031 = vpop.f32.mrb[0].mxu0
  %v10032 = vadd.f32 0.0, %v10031
  %v10033 = vpop.f32.mrb[0].mxu0
  %10034 = vmatprep.mubr.bf16.mxu0 %v9573
  %10035 = vmatmul.mubr.bf16.gmra.mrb[0].mxu0 %v9572
  %v10036 = vpop.f32.mrb[0].mxu0
  %v10037 = vadd.f32 0.0, %v10036
  %v10038 = vpop.f32.mrb[0].mxu0
  %v10039 = vpop.f32.mrb[0].mxu0
  %v10040 = vadd.f32 0.0, %v10039
  %v10041 = vpop.f32.mrb[0].mxu0
  %10042 = vmatprep.mubr.bf16.mxu0 %v9576
  %10043 = vmatmul.mubr.bf16.gmra.mrb[0].mxu0 %v9575
  %v10044 = vpop.f32.mrb[0].mxu0
  %v10045 = vadd.f32 0.0, %v10044
  %v10046 = vpop.f32.mrb[0].mxu0
  %v10047 = vpop.f32.mrb[0].mxu0
  %v10048 = vadd.f32 0.0, %v10047
  %v10049 = vpop.f32.mrb[0].mxu0
  %10050 = vmatprep.mubr.bf16.mxu0 %v9579
  %10051 = vmatmul.mubr.bf16.gmra.mrb[0].mxu0 %v9578
  %v10052 = vpop.f32.mrb[0].mxu0
  %v10053 = vadd.f32 0.0, %v10052
  %v10054 = vpop.f32.mrb[0].mxu0
  %v10055 = vpop.f32.mrb[0].mxu0
  %v10056 = vadd.f32 0.0, %v10055
  %v10057 = vpop.f32.mrb[0].mxu0
  %10058 = vmatprep.mubr.bf16.mxu0 %v9582
  %10059 = vmatmul.mubr.bf16.gmra.mrb[0].mxu0 %v9581
  %v10060 = vpop.f32.mrb[0].mxu0
  %v10061 = vadd.f32 0.0, %v10060
  %v10062 = vpop.f32.mrb[0].mxu0
  %v10063 = vpop.f32.mrb[0].mxu0
  %v10064 = vadd.f32 0.0, %v10063
  %v10065 = vpop.f32.mrb[0].mxu0
  %10066 = vmatprep.mubr.bf16.mxu0 %v9585
  %10067 = vmatmul.mubr.bf16.gmra.mrb[0].mxu0 %v9584
  %v10068 = vpop.f32.mrb[0].mxu0
  %v10069 = vadd.f32 0.0, %v10068
  %v10070 = vpop.f32.mrb[0].mxu0
  %v10071 = vpop.f32.mrb[0].mxu0
  %v10072 = vadd.f32 0.0, %v10071
  %v10073 = vpop.f32.mrb[0].mxu0
  %10074 = vmatprep.mubr.bf16.mxu0 %v9588
  %10075 = vmatmul.mubr.bf16.gmra.mrb[0].mxu0 %v9587
  %v10076 = vpop.f32.mrb[0].mxu0
  %v10077 = vadd.f32 0.0, %v10076
  %v10078 = vpop.f32.mrb[0].mxu0
  %v10079 = vpop.f32.mrb[0].mxu0
  %v10080 = vadd.f32 0.0, %v10079
  %v10081 = vpop.f32.mrb[0].mxu0
  %10082 = vmatprep.mubr.bf16.mxu0 %v9591
  %10083 = vmatmul.mubr.bf16.gmra.mrb[0].mxu0 %v9590
  %v10084 = vpop.f32.mrb[0].mxu0
  %v10085 = vadd.f32 0.0, %v10084
  %v10086 = vpop.f32.mrb[0].mxu0
  %v10087 = vpop.f32.mrb[0].mxu0
  %v10088 = vadd.f32 0.0, %v10087
  %v10089 = vpop.f32.mrb[0].mxu0
  %10090 = vmatprep.mubr.bf16.mxu0 %v9594
  %10091 = vmatmul.mubr.bf16.gmra.mrb[0].mxu0 %v9593
  %v10092 = vpop.f32.mrb[0].mxu0
  %v10093 = vadd.f32 0.0, %v10092
  %v10094 = vpop.f32.mrb[0].mxu0
  %v10095 = vpop.f32.mrb[0].mxu0
  %v10096 = vadd.f32 0.0, %v10095
  %v10097 = vpop.f32.mrb[0].mxu0
  %10098 = vmatprep.mubr.bf16.mxu0 %v9597
  %10099 = vmatmul.mubr.bf16.gmra.mrb[0].mxu0 %v9596
  %v10100 = vpop.f32.mrb[0].mxu0
  %v10101 = vadd.f32 0.0, %v10100
  %v10102 = vpop.f32.mrb[0].mxu0
  %v10103 = vpop.f32.mrb[0].mxu0
  %v10104 = vadd.f32 0.0, %v10103
  %v10105 = vpop.f32.mrb[0].mxu0
  %10106 = vmatprep.mubr.bf16.mxu0 %v9600
  %10107 = vmatmul.mubr.bf16.gmra.mrb[0].mxu0 %v9599
  %v10108 = vpop.f32.mrb[0].mxu0
  %v10109 = vadd.f32 0.0, %v10108
  %v10110 = vpop.f32.mrb[0].mxu0
  %v10111 = vpop.f32.mrb[0].mxu0
  %v10112 = vadd.f32 0.0, %v10111
  %v10113 = vpop.f32.mrb[0].mxu0
  %10114 = vmatprep.mubr.bf16.mxu0 %v9603
  %10115 = vmatmul.mubr.bf16.gmra.mrb[0].mxu0 %v9602
  %v10116 = vpop.f32.mrb[0].mxu0
  %v10117 = vadd.f32 0.0, %v10116
  %v10118 = vpop.f32.mrb[0].mxu0
  %v10119 = vpop.f32.mrb[0].mxu0
  %v10120 = vadd.f32 0.0, %v10119
  %v10121 = vpop.f32.mrb[0].mxu0
  %10122 = vmatprep.mubr.bf16.mxu0 %v9606
  %10123 = vmatmul.mubr.bf16.gmra.mrb[0].mxu0 %v9605
  %v10124 = vpop.f32.mrb[0].mxu0
  %v10125 = vadd.f32 0.0, %v10124
  %v10126 = vpop.f32.mrb[0].mxu0
  %v10127 = vpop.f32.mrb[0].mxu0
  %v10128 = vadd.f32 0.0, %v10127
  %v10129 = vpop.f32.mrb[0].mxu0
  %10130 = vmatprep.mubr.bf16.mxu0 %v9609
  %10131 = vmatmul.mubr.bf16.gmra.mrb[0].mxu0 %v9608
  %v10132 = vpop.f32.mrb[0].mxu0
  %v10133 = vadd.f32 0.0, %v10132
  %v10134 = vpop.f32.mrb[0].mxu0
  %v10135 = vpop.f32.mrb[0].mxu0
  %v10136 = vadd.f32 0.0, %v10135
  %v10137 = vpop.f32.mrb[0].mxu0
  %10138 = vmatprep.mubr.bf16.mxu0 %v9612
  %10139 = vmatmul.mubr.bf16.gmra.mrb[0].mxu0 %v9611
  %v10140 = vpop.f32.mrb[0].mxu0
  %v10141 = vadd.f32 0.0, %v10140
  %v10142 = vpop.f32.mrb[0].mxu0
  %v10143 = vpop.f32.mrb[0].mxu0
  %v10144 = vadd.f32 0.0, %v10143
  %v10145 = vpop.f32.mrb[0].mxu0
  %10146 = vmatprep.mubr.bf16.mxu0 %v9615
  %10147 = vmatmul.mubr.bf16.gmra.mrb[0].mxu0 %v9614
  %v10148 = vpop.f32.mrb[0].mxu0
  %v10149 = vadd.f32 0.0, %v10148
  %v10150 = vpop.f32.mrb[0].mxu0
  %v10151 = vpop.f32.mrb[0].mxu0
  %v10152 = vadd.f32 0.0, %v10151
  %v10153 = vpop.f32.mrb[0].mxu0
  %10154 = vmatprep.mubr.bf16.mxu0 %v9618
  %10155 = vmatmul.mubr.bf16.gmra.mrb[0].mxu0 %v9617
  %v10156 = vpop.f32.mrb[0].mxu0
  %v10157 = vadd.f32 0.0, %v10156
  %v10158 = vpop.f32.mrb[0].mxu0
  %v10159 = vpop.f32.mrb[0].mxu0
  %v10160 = vadd.f32 0.0, %v10159
  %v10161 = vpop.f32.mrb[0].mxu0
  %10162 = vmatprep.mubr.bf16.mxu0 %v9621
  %10163 = vmatmul.mubr.bf16.gmra.mrb[0].mxu0 %v9620
  %v10164 = vpop.f32.mrb[0].mxu0
  %v10165 = vadd.f32 0.0, %v10164
  %v10166 = vpop.f32.mrb[0].mxu0
  %v10167 = vpop.f32.mrb[0].mxu0
  %v10168 = vadd.f32 0.0, %v10167
  %v10169 = vpop.f32.mrb[0].mxu0
  %10170 = vmatprep.mubr.bf16.mxu0 %v9624
  %10171 = vmatmul.mubr.bf16.gmra.mrb[0].mxu0 %v9623
  %v10172 = vpop.f32.mrb[0].mxu0
  %v10173 = vadd.f32 0.0, %v10172
  %v10174 = vpop.f32.mrb[0].mxu0
  %v10175 = vpop.f32.mrb[0].mxu0
  %v10176 = vadd.f32 0.0, %v10175
  %v10177 = vpop.f32.mrb[0].mxu0
  %10178 = vmatprep.mubr.bf16.mxu0 %v9627
  %10179 = vmatmul.mubr.bf16.gmra.mrb[0].mxu0 %v9626
  %v10180 = vpop.f32.mrb[0].mxu0
  %v10181 = vadd.f32 0.0, %v10180
  %v10182 = vpop.f32.mrb[0].mxu0
  %v10183 = vpop.f32.mrb[0].mxu0
  %v10184 = vadd.f32 0.0, %v10183
  %v10185 = vpop.f32.mrb[0].mxu0
  %10186 = vmatprep.mubr.bf16.mxu0 %v9630
  %10187 = vmatmul.mubr.bf16.gmra.mrb[0].mxu0 %v9629
  %v10188 = vpop.f32.mrb[0].mxu0
  %v10189 = vadd.f32 0.0, %v10188
  %v10190 = vpop.f32.mrb[0].mxu0
  %v10191 = vpop.f32.mrb[0].mxu0
  %v10192 = vadd.f32 0.0, %v10191
  %v10193 = vpop.f32.mrb[0].mxu0
  %10194 = vmatprep.mubr.bf16.mxu0 %v9633
  %10195 = vmatmul.mubr.bf16.gmra.mrb[0].mxu0 %v9632
  %v10196 = vpop.f32.mrb[0].mxu0
  %v10197 = vadd.f32 0.0, %v10196
  %v10198 = vpop.f32.mrb[0].mxu0
  %v10199 = vpop.f32.mrb[0].mxu0
  %v10200 = vadd.f32 0.0, %v10199
  %v10201 = vpop.f32.mrb[0].mxu0
  %10202 = vmatprep.mubr.bf16.mxu0 %v9636
  %10203 = vmatmul.mubr.bf16.gmra.mrb[0].mxu0 %v9635
  %v10204 = vpop.f32.mrb[0].mxu0
  %v10205 = vadd.f32 0.0, %v10204
  %v10206 = vpop.f32.mrb[0].mxu0
  %v10207 = vpop.f32.mrb[0].mxu0
  %v10208 = vadd.f32 0.0, %v10207
  %v10209 = vpop.f32.mrb[0].mxu0
  %10210 = vmatprep.mubr.bf16.mxu0 %v9639
  %10211 = vmatmul.mubr.bf16.gmra.mrb[0].mxu0 %v9638
  %v10212 = vpop.f32.mrb[0].mxu0
  %v10213 = vadd.f32 0.0, %v10212
  %v10214 = vpop.f32.mrb[0].mxu0
  %v10215 = vpop.f32.mrb[0].mxu0
  %v10216 = vadd.f32 0.0, %v10215
  %v10217 = vpop.f32.mrb[0].mxu0
  %10218 = vmatprep.mubr.bf16.mxu0 %v9642
  %10219 = vmatmul.mubr.bf16.gmra.mrb[0].mxu0 %v9641
  %v10220 = vpop.f32.mrb[0].mxu0
  %v10221 = vadd.f32 0.0, %v10220
  %v10222 = vpop.f32.mrb[0].mxu0
  %v10223 = vpop.f32.mrb[0].mxu0
  %v10224 = vadd.f32 0.0, %v10223
  %v10225 = vpop.f32.mrb[0].mxu0
  %10226 = vmatprep.mubr.bf16.mxu0 %v9645
  %10227 = vmatmul.mubr.bf16.gmra.mrb[0].mxu0 %v9644
  %v10228 = vpop.f32.mrb[0].mxu0
  %v10229 = vadd.f32 0.0, %v10228
  %v10230 = vpop.f32.mrb[0].mxu0
  %v10231 = vpop.f32.mrb[0].mxu0
  %v10232 = vadd.f32 0.0, %v10231
  %v10233 = vpop.f32.mrb[0].mxu0
  %10234 = vmatprep.mubr.bf16.mxu0 %v9648
  %10235 = vmatmul.mubr.bf16.gmra.mrb[0].mxu0 %v9647
  %v10236 = vpop.f32.mrb[0].mxu0
  %v10237 = vadd.f32 0.0, %v10236
  %v10238 = vpop.f32.mrb[0].mxu0
  %v10239 = vpop.f32.mrb[0].mxu0
  %v10240 = vadd.f32 0.0, %v10239
  %v10241 = vpop.f32.mrb[0].mxu0
  %10242 = vmatprep.mubr.bf16.mxu0 %v9651
  %10243 = vmatmul.mubr.bf16.gmra.mrb[0].mxu0 %v9650
  %v10244 = vpop.f32.mrb[0].mxu0
  %v10245 = vadd.f32 0.0, %v10244
  %v10246 = vpop.f32.mrb[0].mxu0
  %v10247 = vpop.f32.mrb[0].mxu0
  %v10248 = vadd.f32 0.0, %v10247
  %v10249 = vpop.f32.mrb[0].mxu0
  %10250 = vmatprep.mubr.bf16.mxu0 %v9654
  %10251 = vmatmul.mubr.bf16.gmra.mrb[0].mxu0 %v9653
  %v10252 = vpop.f32.mrb[0].mxu0
  %v10253 = vadd.f32 0.0, %v10252
  %v10254 = vpop.f32.mrb[0].mxu0
  %v10255 = vpop.f32.mrb[0].mxu0
  %v10256 = vadd.f32 0.0, %v10255
  %v10257 = vpop.f32.mrb[0].mxu0
  %10258 = vmatprep.mubr.bf16.mxu0 %v9657
  %10259 = vmatmul.mubr.bf16.gmra.mrb[0].mxu0 %v9656
  %v10260 = vpop.f32.mrb[0].mxu0
  %v10261 = vadd.f32 0.0, %v10260
  %v10262 = vpop.f32.mrb[0].mxu0
  %v10263 = vpop.f32.mrb[0].mxu0
  %v10264 = vadd.f32 0.0, %v10263
  %v10265 = vpop.f32.mrb[0].mxu0
  %10266 = vmatprep.mubr.bf16.mxu0 %v9660
  %10267 = vmatmul.mubr.bf16.gmra.mrb[0].mxu0 %v9659
  %v10268 = vpop.f32.mrb[0].mxu0
  %v10269 = vadd.f32 0.0, %v10268
  %v10270 = vpop.f32.mrb[0].mxu0
  %v10271 = vpop.f32.mrb[0].mxu0
  %v10272 = vadd.f32 0.0, %v10271
  %v10273 = vpop.f32.mrb[0].mxu0
  %10274 = vmatprep.mubr.bf16.mxu0 %v9663
  %10275 = vmatmul.mubr.bf16.gmra.mrb[0].mxu0 %v9662
  %v10276 = vpop.f32.mrb[0].mxu0
  %v10277 = vadd.f32 0.0, %v10276
  %v10278 = vpop.f32.mrb[0].mxu0
  %v10279 = vpop.f32.mrb[0].mxu0
  %v10280 = vadd.f32 0.0, %v10279
  %v10281 = vpop.f32.mrb[0].mxu0
  %10282 = vmatprep.mubr.bf16.mxu0 %v9666
  %10283 = vmatmul.mubr.bf16.gmra.mrb[0].mxu0 %v9665
  %v10284 = vpop.f32.mrb[0].mxu0
  %v10285 = vadd.f32 0.0, %v10284
  %v10286 = vpop.f32.mrb[0].mxu0
  %v10287 = vpop.f32.mrb[0].mxu0
  %v10288 = vadd.f32 0.0, %v10287
  %v10289 = vpop.f32.mrb[0].mxu0
  %10290 = vmatprep.mubr.bf16.mxu0 %v9669
  %10291 = vmatmul.mubr.bf16.gmra.mrb[0].mxu0 %v9668
  %v10292 = vpop.f32.mrb[0].mxu0
  %v10293 = vadd.f32 0.0, %v10292
  %v10294 = vpop.f32.mrb[0].mxu0
  %v10295 = vpop.f32.mrb[0].mxu0
  %v10296 = vadd.f32 0.0, %v10295
  %v10297 = vpop.f32.mrb[0].mxu0
  %10298 = vmatprep.mubr.bf16.mxu0 %v9672
  %10299 = vmatmul.mubr.bf16.gmra.mrb[0].mxu0 %v9671
  %v10300 = vpop.f32.mrb[0].mxu0
  %v10301 = vadd.f32 0.0, %v10300
  %v10302 = vpop.f32.mrb[0].mxu0
  %v10303 = vpop.f32.mrb[0].mxu0
  %v10304 = vadd.f32 0.0, %v10303
  %v10305 = vpop.f32.mrb[0].mxu0
  %10306 = vmatprep.mubr.bf16.mxu0 %v9675
  %10307 = vmatmul.mubr.bf16.gmra.mrb[0].mxu0 %v9674
  %v10308 = vpop.f32.mrb[0].mxu0
  %v10309 = vadd.f32 0.0, %v10308
  %v10310 = vpop.f32.mrb[0].mxu0
  %v10311 = vpop.f32.mrb[0].mxu0
  %v10312 = vadd.f32 0.0, %v10311
  %v10313 = vpop.f32.mrb[0].mxu0
  %10314 = vmatprep.mubr.bf16.mxu0 %v9678
  %10315 = vmatmul.mubr.bf16.gmra.mrb[0].mxu0 %v9677
  %v10316 = vpop.f32.mrb[0].mxu0
  %v10317 = vadd.f32 0.0, %v10316
  %v10318 = vpop.f32.mrb[0].mxu0
  %v10319 = vpop.f32.mrb[0].mxu0
  %v10320 = vadd.f32 0.0, %v10319
  %v10321 = vpop.f32.mrb[0].mxu0
  %10322 = vmatprep.mubr.bf16.mxu0 %v9681
  %10323 = vmatmul.mubr.bf16.gmra.mrb[0].mxu0 %v9680
  %v10324 = vpop.f32.mrb[0].mxu0
  %v10325 = vadd.f32 0.0, %v10324
  %v10326 = vpop.f32.mrb[0].mxu0
  %v10327 = vpop.f32.mrb[0].mxu0
  %v10328 = vpop.f32.mrb[0].mxu0
  %10329 = vdwg.mxu0
  %10330 = vmatprep.subr.bf16.mxu0 0
  %10331 = vmatpush1.bf16.msra.mxu0 %v9849
  %10332 = vmatprep.subr.bf16.mxu0 0
  %10333 = vmatpush1.bf16.msra.mxu0 %v9850
  %10334 = vmatprep.subr.bf16.mxu0 0
  %10335 = vmatpush1.bf16.msra.mxu0 0
  %10336 = vmatprep.subr.bf16.mxu0 0
  %10337 = vmatpush1.bf16.msra.mxu0 0
  %10338 = vmatprep.subr.bf16.mxu0 0
  %10339 = vmatpush1.bf16.msra.mxu0 0
  %10340 = vmatprep.subr.bf16.mxu0 0
  %10341 = vmatpush1.bf16.msra.mxu0 0
  %10342 = vmatprep.subr.bf16.mxu0 0
  %10343 = vmatpush1.bf16.msra.mxu0 0
  %10344 = vmatprep.subr.bf16.mxu0 0
  %10345 = vmatpush1.bf16.msra.mxu0 0
  %10346 = vmatprep.subr.bf16.mxu0 0
  %10347 = vmatpush1.bf16.msra.mxu0 0
  %10348 = vmatprep.subr.bf16.mxu0 0
  %10349 = vmatpush1.bf16.msra.mxu0 0
  %10350 = vmatprep.subr.bf16.mxu0 0
  %10351 = vmatpush1.bf16.msra.mxu0 0
  %10352 = vmatprep.subr.bf16.mxu0 0
  %10353 = vmatpush1.bf16.msra.mxu0 0
  %10354 = vmatprep.subr.bf16.mxu0 0
  %10355 = vmatpush1.bf16.msra.mxu0 0
  %10356 = vmatprep.subr.bf16.mxu0 0
  %10357 = vmatpush1.bf16.msra.mxu0 0
  %10358 = vmatprep.subr.bf16.mxu0 0
  %10359 = vmatpush1.bf16.msra.mxu0 0
  %10360 = vmatprep.subr.bf16.mxu0 0
  %10361 = vmatpush1.bf16.msra.mxu0 0
  %10362 = vmatprep.mubr.bf16.mxu0 0
  %10363 = vmatmul.mubr.bf16.gmra.mrb[0].mxu0 %v9870
  %v10364 = vpop.f32.mrb[0].mxu0
  %v10365 = vadd.f32 %v10021, %v10364
  %v10366 = vpop.f32.mrb[0].mxu0
  %v10367 = vpop.f32.mrb[0].mxu0
  %v10368 = vadd.f32 %v10024, %v10367
  %v10369 = vpop.f32.mrb[0].mxu0
  %10370 = vmatprep.mubr.bf16.mxu0 0
  %10371 = vmatmul.mubr.bf16.gmra.mrb[0].mxu0 %v9873
  %v10372 = vpop.f32.mrb[0].mxu0
  %v10373 = vadd.f32 %v10029, %v10372
  %v10374 = vpop.f32.mrb[0].mxu0
  %v10375 = vpop.f32.mrb[0].mxu0
  %v10376 = vadd.f32 %v10032, %v10375
  %v10377 = vpop.f32.mrb[0].mxu0
  %10378 = vmatprep.mubr.bf16.mxu0 0
  %10379 = vmatmul.mubr.bf16.gmra.mrb[0].mxu0 %v9876
  %v10380 = vpop.f32.mrb[0].mxu0
  %v10381 = vadd.f32 %v10037, %v10380
  %v10382 = vpop.f32.mrb[0].mxu0
  %v10383 = vpop.f32.mrb[0].mxu0
  %v10384 = vadd.f32 %v10040, %v10383
  %v10385 = vpop.f32.mrb[0].mxu0
  %10386 = vmatprep.mubr.bf16.mxu0 0
  %10387 = vmatmul.mubr.bf16.gmra.mrb[0].mxu0 %v9879
  %v10388 = vpop.f32.mrb[0].mxu0
  %v10389 = vadd.f32 %v10045, %v10388
  %v10390 = vpop.f32.mrb[0].mxu0
  %v10391 = vpop.f32.mrb[0].mxu0
  %v10392 = vadd.f32 %v10048, %v10391
  %v10393 = vpop.f32.mrb[0].mxu0
  %10394 = vmatprep.mubr.bf16.mxu0 0
  %10395 = vmatmul.mubr.bf16.gmra.mrb[0].mxu0 %v9882
  %v10396 = vpop.f32.mrb[0].mxu0
  %v10397 = vadd.f32 %v10053, %v10396
  %v10398 = vpop.f32.mrb[0].mxu0
  %v10399 = vpop.f32.mrb[0].mxu0
  %v10400 = vadd.f32 %v10056, %v10399
  %v10401 = vpop.f32.mrb[0].mxu0
  %10402 = vmatprep.mubr.bf16.mxu0 0
  %10403 = vmatmul.mubr.bf16.gmra.mrb[0].mxu0 %v9885
  %v10404 = vpop.f32.mrb[0].mxu0
  %v10405 = vadd.f32 %v10061, %v10404
  %v10406 = vpop.f32.mrb[0].mxu0
  %v10407 = vpop.f32.mrb[0].mxu0
  %v10408 = vadd.f32 %v10064, %v10407
  %v10409 = vpop.f32.mrb[0].mxu0
  %10410 = vmatprep.mubr.bf16.mxu0 0
  %10411 = vmatmul.mubr.bf16.gmra.mrb[0].mxu0 %v9888
  %v10412 = vpop.f32.mrb[0].mxu0
  %v10413 = vadd.f32 %v10069, %v10412
  %v10414 = vpop.f32.mrb[0].mxu0
  %v10415 = vpop.f32.mrb[0].mxu0
  %v10416 = vadd.f32 %v10072, %v10415
  %v10417 = vpop.f32.mrb[0].mxu0
  %10418 = vmatprep.mubr.bf16.mxu0 0
  %10419 = vmatmul.mubr.bf16.gmra.mrb[0].mxu0 %v9891
  %v10420 = vpop.f32.mrb[0].mxu0
  %v10421 = vadd.f32 %v10077, %v10420
  %v10422 = vpop.f32.mrb[0].mxu0
  %v10423 = vpop.f32.mrb[0].mxu0
  %v10424 = vadd.f32 %v10080, %v10423
  %v10425 = vpop.f32.mrb[0].mxu0
  %10426 = vmatprep.mubr.bf16.mxu0 0
  %10427 = vmatmul.mubr.bf16.gmra.mrb[0].mxu0 %v9894
  %v10428 = vpop.f32.mrb[0].mxu0
  %v10429 = vadd.f32 %v10085, %v10428
  %v10430 = vpop.f32.mrb[0].mxu0
  %v10431 = vpop.f32.mrb[0].mxu0
  %v10432 = vadd.f32 %v10088, %v10431
  %v10433 = vpop.f32.mrb[0].mxu0
  %10434 = vmatprep.mubr.bf16.mxu0 0
  %10435 = vmatmul.mubr.bf16.gmra.mrb[0].mxu0 %v9897
  %v10436 = vpop.f32.mrb[0].mxu0
  %v10437 = vadd.f32 %v10093, %v10436
  %v10438 = vpop.f32.mrb[0].mxu0
  %v10439 = vpop.f32.mrb[0].mxu0
  %v10440 = vadd.f32 %v10096, %v10439
  %v10441 = vpop.f32.mrb[0].mxu0
  %10442 = vmatprep.mubr.bf16.mxu0 0
  %10443 = vmatmul.mubr.bf16.gmra.mrb[0].mxu0 %v9900
  %v10444 = vpop.f32.mrb[0].mxu0
  %v10445 = vadd.f32 %v10101, %v10444
  %v10446 = vpop.f32.mrb[0].mxu0
  %v10447 = vpop.f32.mrb[0].mxu0
  %v10448 = vadd.f32 %v10104, %v10447
  %v10449 = vpop.f32.mrb[0].mxu0
  %10450 = vmatprep.mubr.bf16.mxu0 0
  %10451 = vmatmul.mubr.bf16.gmra.mrb[0].mxu0 %v9903
  %v10452 = vpop.f32.mrb[0].mxu0
  %v10453 = vadd.f32 %v10109, %v10452
  %v10454 = vpop.f32.mrb[0].mxu0
  %v10455 = vpop.f32.mrb[0].mxu0
  %v10456 = vadd.f32 %v10112, %v10455
  %v10457 = vpop.f32.mrb[0].mxu0
  %10458 = vmatprep.mubr.bf16.mxu0 0
  %10459 = vmatmul.mubr.bf16.gmra.mrb[0].mxu0 %v9906
  %v10460 = vpop.f32.mrb[0].mxu0
  %v10461 = vadd.f32 %v10117, %v10460
  %v10462 = vpop.f32.mrb[0].mxu0
  %v10463 = vpop.f32.mrb[0].mxu0
  %v10464 = vadd.f32 %v10120, %v10463
  %v10465 = vpop.f32.mrb[0].mxu0
  %10466 = vmatprep.mubr.bf16.mxu0 0
  %10467 = vmatmul.mubr.bf16.gmra.mrb[0].mxu0 %v9909
  %v10468 = vpop.f32.mrb[0].mxu0
  %v10469 = vadd.f32 %v10125, %v10468
  %v10470 = vpop.f32.mrb[0].mxu0
  %v10471 = vpop.f32.mrb[0].mxu0
  %v10472 = vadd.f32 %v10128, %v10471
  %v10473 = vpop.f32.mrb[0].mxu0
  %10474 = vmatprep.mubr.bf16.mxu0 0
  %10475 = vmatmul.mubr.bf16.gmra.mrb[0].mxu0 %v9912
  %v10476 = vpop.f32.mrb[0].mxu0
  %v10477 = vadd.f32 %v10133, %v10476
  %v10478 = vpop.f32.mrb[0].mxu0
  %v10479 = vpop.f32.mrb[0].mxu0
  %v10480 = vadd.f32 %v10136, %v10479
  %v10481 = vpop.f32.mrb[0].mxu0
  %10482 = vmatprep.mubr.bf16.mxu0 0
  %10483 = vmatmul.mubr.bf16.gmra.mrb[0].mxu0 %v9915
  %v10484 = vpop.f32.mrb[0].mxu0
  %v10485 = vadd.f32 %v10141, %v10484
  %v10486 = vpop.f32.mrb[0].mxu0
  %v10487 = vpop.f32.mrb[0].mxu0
  %v10488 = vadd.f32 %v10144, %v10487
  %v10489 = vpop.f32.mrb[0].mxu0
  %10490 = vmatprep.mubr.bf16.mxu0 0
  %10491 = vmatmul.mubr.bf16.gmra.mrb[0].mxu0 %v9918
  %v10492 = vpop.f32.mrb[0].mxu0
  %v10493 = vadd.f32 %v10149, %v10492
  %v10494 = vpop.f32.mrb[0].mxu0
  %v10495 = vpop.f32.mrb[0].mxu0
  %v10496 = vadd.f32 %v10152, %v10495
  %v10497 = vpop.f32.mrb[0].mxu0
  %10498 = vmatprep.mubr.bf16.mxu0 0
  %10499 = vmatmul.mubr.bf16.gmra.mrb[0].mxu0 %v9921
  %v10500 = vpop.f32.mrb[0].mxu0
  %v10501 = vadd.f32 %v10157, %v10500
  %v10502 = vpop.f32.mrb[0].mxu0
  %v10503 = vpop.f32.mrb[0].mxu0
  %v10504 = vadd.f32 %v10160, %v10503
  %v10505 = vpop.f32.mrb[0].mxu0
  %10506 = vmatprep.mubr.bf16.mxu0 0
  %10507 = vmatmul.mubr.bf16.gmra.mrb[0].mxu0 %v9924
  %v10508 = vpop.f32.mrb[0].mxu0
  %v10509 = vadd.f32 %v10165, %v10508
  %v10510 = vpop.f32.mrb[0].mxu0
  %v10511 = vpop.f32.mrb[0].mxu0
  %v10512 = vadd.f32 %v10168, %v10511
  %v10513 = vpop.f32.mrb[0].mxu0
  %10514 = vmatprep.mubr.bf16.mxu0 0
  %10515 = vmatmul.mubr.bf16.gmra.mrb[0].mxu0 %v9927
  %v10516 = vpop.f32.mrb[0].mxu0
  %v10517 = vadd.f32 %v10173, %v10516
  %v10518 = vpop.f32.mrb[0].mxu0
  %v10519 = vpop.f32.mrb[0].mxu0
  %v10520 = vadd.f32 %v10176, %v10519
  %v10521 = vpop.f32.mrb[0].mxu0
  %10522 = vmatprep.mubr.bf16.mxu0 0
  %10523 = vmatmul.mubr.bf16.gmra.mrb[0].mxu0 %v9930
  %v10524 = vpop.f32.mrb[0].mxu0
  %v10525 = vadd.f32 %v10181, %v10524
  %v10526 = vpop.f32.mrb[0].mxu0
  %v10527 = vpop.f32.mrb[0].mxu0
  %v10528 = vadd.f32 %v10184, %v10527
  %v10529 = vpop.f32.mrb[0].mxu0
  %10530 = vmatprep.mubr.bf16.mxu0 0
  %10531 = vmatmul.mubr.bf16.gmra.mrb[0].mxu0 %v9933
  %v10532 = vpop.f32.mrb[0].mxu0
  %v10533 = vadd.f32 %v10189, %v10532
  %v10534 = vpop.f32.mrb[0].mxu0
  %v10535 = vpop.f32.mrb[0].mxu0
  %v10536 = vadd.f32 %v10192, %v10535
  %v10537 = vpop.f32.mrb[0].mxu0
  %10538 = vmatprep.mubr.bf16.mxu0 0
  %10539 = vmatmul.mubr.bf16.gmra.mrb[0].mxu0 %v9936
  %v10540 = vpop.f32.mrb[0].mxu0
  %v10541 = vadd.f32 %v10197, %v10540
  %v10542 = vpop.f32.mrb[0].mxu0
  %v10543 = vpop.f32.mrb[0].mxu0
  %v10544 = vadd.f32 %v10200, %v10543
  %v10545 = vpop.f32.mrb[0].mxu0
  %10546 = vmatprep.mubr.bf16.mxu0 0
  %10547 = vmatmul.mubr.bf16.gmra.mrb[0].mxu0 %v9939
  %v10548 = vpop.f32.mrb[0].mxu0
  %v10549 = vadd.f32 %v10205, %v10548
  %v10550 = vpop.f32.mrb[0].mxu0
  %v10551 = vpop.f32.mrb[0].mxu0
  %v10552 = vadd.f32 %v10208, %v10551
  %v10553 = vpop.f32.mrb[0].mxu0
  %10554 = vmatprep.mubr.bf16.mxu0 0
  %10555 = vmatmul.mubr.bf16.gmra.mrb[0].mxu0 %v9942
  %v10556 = vpop.f32.mrb[0].mxu0
  %v10557 = vadd.f32 %v10213, %v10556
  %v10558 = vpop.f32.mrb[0].mxu0
  %v10559 = vpop.f32.mrb[0].mxu0
  %v10560 = vadd.f32 %v10216, %v10559
  %v10561 = vpop.f32.mrb[0].mxu0
  %10562 = vmatprep.mubr.bf16.mxu0 0
  %10563 = vmatmul.mubr.bf16.gmra.mrb[0].mxu0 %v9945
  %v10564 = vpop.f32.mrb[0].mxu0
  %v10565 = vadd.f32 %v10221, %v10564
  %v10566 = vpop.f32.mrb[0].mxu0
  %v10567 = vpop.f32.mrb[0].mxu0
  %v10568 = vadd.f32 %v10224, %v10567
  %v10569 = vpop.f32.mrb[0].mxu0
  %10570 = vmatprep.mubr.bf16.mxu0 0
  %10571 = vmatmul.mubr.bf16.gmra.mrb[0].mxu0 %v9948
  %v10572 = vpop.f32.mrb[0].mxu0
  %v10573 = vadd.f32 %v10229, %v10572
  %v10574 = vpop.f32.mrb[0].mxu0
  %v10575 = vpop.f32.mrb[0].mxu0
  %v10576 = vadd.f32 %v10232, %v10575
  %v10577 = vpop.f32.mrb[0].mxu0
  %10578 = vmatprep.mubr.bf16.mxu0 0
  %10579 = vmatmul.mubr.bf16.gmra.mrb[0].mxu0 %v9951
  %v10580 = vpop.f32.mrb[0].mxu0
  %v10581 = vadd.f32 %v10237, %v10580
  %v10582 = vpop.f32.mrb[0].mxu0
  %v10583 = vpop.f32.mrb[0].mxu0
  %v10584 = vadd.f32 %v10240, %v10583
  %v10585 = vpop.f32.mrb[0].mxu0
  %10586 = vmatprep.mubr.bf16.mxu0 0
  %10587 = vmatmul.mubr.bf16.gmra.mrb[0].mxu0 %v9954
  %v10588 = vpop.f32.mrb[0].mxu0
  %v10589 = vadd.f32 %v10245, %v10588
  %v10590 = vpop.f32.mrb[0].mxu0
  %v10591 = vpop.f32.mrb[0].mxu0
  %v10592 = vadd.f32 %v10248, %v10591
  %v10593 = vpop.f32.mrb[0].mxu0
  %10594 = vmatprep.mubr.bf16.mxu0 0
  %10595 = vmatmul.mubr.bf16.gmra.mrb[0].mxu0 %v9957
  %v10596 = vpop.f32.mrb[0].mxu0
  %v10597 = vadd.f32 %v10253, %v10596
  %v10598 = vpop.f32.mrb[0].mxu0
  %v10599 = vpop.f32.mrb[0].mxu0
  %v10600 = vadd.f32 %v10256, %v10599
  %v10601 = vpop.f32.mrb[0].mxu0
  %10602 = vmatprep.mubr.bf16.mxu0 0
  %10603 = vmatmul.mubr.bf16.gmra.mrb[0].mxu0 %v9960
  %v10604 = vpop.f32.mrb[0].mxu0
  %v10605 = vadd.f32 %v10261, %v10604
  %v10606 = vpop.f32.mrb[0].mxu0
  %v10607 = vpop.f32.mrb[0].mxu0
  %v10608 = vadd.f32 %v10264, %v10607
  %v10609 = vpop.f32.mrb[0].mxu0
  %10610 = vmatprep.mubr.bf16.mxu0 0
  %10611 = vmatmul.mubr.bf16.gmra.mrb[0].mxu0 %v9963
  %v10612 = vpop.f32.mrb[0].mxu0
  %v10613 = vadd.f32 %v10269, %v10612
  %v10614 = vpop.f32.mrb[0].mxu0
  %v10615 = vpop.f32.mrb[0].mxu0
  %v10616 = vadd.f32 %v10272, %v10615
  %v10617 = vpop.f32.mrb[0].mxu0
  %10618 = vmatprep.mubr.bf16.mxu0 0
  %10619 = vmatmul.mubr.bf16.gmra.mrb[0].mxu0 %v9966
  %v10620 = vpop.f32.mrb[0].mxu0
  %v10621 = vadd.f32 %v10277, %v10620
  %v10622 = vpop.f32.mrb[0].mxu0
  %v10623 = vpop.f32.mrb[0].mxu0
  %v10624 = vadd.f32 %v10280, %v10623
  %v10625 = vpop.f32.mrb[0].mxu0
  %10626 = vmatprep.mubr.bf16.mxu0 0
  %10627 = vmatmul.mubr.bf16.gmra.mrb[0].mxu0 %v9969
  %v10628 = vpop.f32.mrb[0].mxu0
  %v10629 = vadd.f32 %v10285, %v10628
  %v10630 = vpop.f32.mrb[0].mxu0
  %v10631 = vpop.f32.mrb[0].mxu0
  %v10632 = vadd.f32 %v10288, %v10631
  %v10633 = vpop.f32.mrb[0].mxu0
  %10634 = vmatprep.mubr.bf16.mxu0 0
  %10635 = vmatmul.mubr.bf16.gmra.mrb[0].mxu0 %v9972
  %v10636 = vpop.f32.mrb[0].mxu0
  %v10637 = vadd.f32 %v10293, %v10636
  %v10638 = vpop.f32.mrb[0].mxu0
  %v10639 = vpop.f32.mrb[0].mxu0
  %v10640 = vadd.f32 %v10296, %v10639
  %v10641 = vpop.f32.mrb[0].mxu0
  %10642 = vmatprep.mubr.bf16.mxu0 0
  %10643 = vmatmul.mubr.bf16.gmra.mrb[0].mxu0 %v9975
  %v10644 = vpop.f32.mrb[0].mxu0
  %v10645 = vadd.f32 %v10301, %v10644
  %v10646 = vpop.f32.mrb[0].mxu0
  %v10647 = vpop.f32.mrb[0].mxu0
  %v10648 = vadd.f32 %v10304, %v10647
  %v10649 = vpop.f32.mrb[0].mxu0
  %10650 = vmatprep.mubr.bf16.mxu0 0
  %10651 = vmatmul.mubr.bf16.gmra.mrb[0].mxu0 %v9978
  %v10652 = vpop.f32.mrb[0].mxu0
  %v10653 = vadd.f32 %v10309, %v10652
  %v10654 = vpop.f32.mrb[0].mxu0
  %v10655 = vpop.f32.mrb[0].mxu0
  %v10656 = vadd.f32 %v10312, %v10655
  %v10657 = vpop.f32.mrb[0].mxu0
  %10658 = vmatprep.mubr.bf16.mxu0 0
  %10659 = vmatmul.mubr.bf16.gmra.mrb[0].mxu0 %v9981
  %v10660 = vpop.f32.mrb[0].mxu0
  %v10661 = vadd.f32 %v10317, %v10660
  %v10662 = vpop.f32.mrb[0].mxu0
  %v10663 = vpop.f32.mrb[0].mxu0
  %v10664 = vadd.f32 %v10320, %v10663
  %v10665 = vpop.f32.mrb[0].mxu0
  %10666 = vmatprep.mubr.bf16.mxu0 0
  %10667 = vmatmul.mubr.bf16.gmra.mrb[0].mxu0 %v9984
  %v10668 = vpop.f32.mrb[0].mxu0
  %v10669 = vadd.f32 %v10325, %v10668
  %v10670 = vpop.f32.mrb[0].mxu0
  %v10671 = vpop.f32.mrb[0].mxu0
  %v10672 = vpop.f32.mrb[0].mxu0
  %10673 = vdwg.mxu0
  %v10674 = vld [vmem:[%s6] sm:$0x1]
  %v10675 = vld [vmem:[%s7] sm:$0x1]
  %v10676 = vmul.f32 %v10365, %v1487
  %v10677 = vmul.f32 %v10368, %v1492
  %v10678 = vmul.f32 %v10373, %v1497
  %v10679 = vmul.f32 %v10376, %v1502
  %v10680 = vmul.f32 %v10381, %v1507
  %v10681 = vmul.f32 %v10384, %v1512
  %v10682 = vmul.f32 %v10389, %v1517
  %v10683 = vmul.f32 %v10392, %v1522
  %v10684 = vmul.f32 %v10397, %v1527
  %v10685 = vmul.f32 %v10400, %v1532
  %v10686 = vmul.f32 %v10405, %v1537
  %v10687 = vmul.f32 %v10408, %v1542
  %v10688 = vmul.f32 %v10413, %v1547
  %v10689 = vmul.f32 %v10416, %v1552
  %v10690 = vmul.f32 %v10421, %v1557
  %v10691 = vmul.f32 %v10424, %v1562
  %v10692 = vmul.f32 %v10429, %v1567
  %v10693 = vmul.f32 %v10432, %v1572
  %v10694 = vmul.f32 %v10437, %v1577
  %v10695 = vmul.f32 %v10440, %v1582
  %v10696 = vmul.f32 %v10445, %v1587
  %v10697 = vmul.f32 %v10448, %v1592
  %v10698 = vmul.f32 %v10453, %v1597
  %v10699 = vmul.f32 %v10456, %v1602
  %v10700 = vmul.f32 %v10461, %v1607
  %v10701 = vmul.f32 %v10464, %v1612
  %v10702 = vmul.f32 %v10469, %v1617
  %v10703 = vmul.f32 %v10472, %v1622
  %v10704 = vmul.f32 %v10477, %v1627
  %v10705 = vmul.f32 %v10480, %v1632
  %v10706 = vmul.f32 %v10485, %v1637
  %v10707 = vmul.f32 %v10488, %v1642
  %v10708 = vmul.f32 %v10493, %v1647
  %v10709 = vmul.f32 %v10496, %v1652
  %v10710 = vmul.f32 %v10501, %v1657
  %v10711 = vmul.f32 %v10504, %v1662
  %v10712 = vmul.f32 %v10509, %v1667
  %v10713 = vmul.f32 %v10512, %v1672
  %v10714 = vmul.f32 %v10517, %v1677
  %v10715 = vmul.f32 %v10520, %v1682
  %v10716 = vmul.f32 %v10525, %v1687
  %v10717 = vmul.f32 %v10528, %v1692
  %v10718 = vmul.f32 %v10533, %v1697
  %v10719 = vmul.f32 %v10536, %v1702
  %v10720 = vmul.f32 %v10541, %v1707
  %v10721 = vmul.f32 %v10544, %v1712
  %v10722 = vmul.f32 %v10549, %v1717
  %v10723 = vmul.f32 %v10552, %v1722
  %v10724 = vmul.f32 %v10557, %v1727
  %v10725 = vmul.f32 %v10560, %v1732
  %v10726 = vmul.f32 %v10565, %v1737
  %v10727 = vmul.f32 %v10568, %v1742
  %v10728 = vmul.f32 %v10573, %v1747
  %v10729 = vmul.f32 %v10576, %v1752
  %v10730 = vmul.f32 %v10581, %v1757
  %v10731 = vmul.f32 %v10584, %v1762
  %v10732 = vmul.f32 %v10589, %v1767
  %v10733 = vmul.f32 %v10592, %v1772
  %v10734 = vmul.f32 %v10597, %v1777
  %v10735 = vmul.f32 %v10600, %v1782
  %v10736 = vmul.f32 %v10605, %v1787
  %v10737 = vmul.f32 %v10608, %v1792
  %v10738 = vmul.f32 %v10613, %v1797
  %v10739 = vmul.f32 %v10616, %v1802
  %v10740 = vmul.f32 %v10621, %v1807
  %v10741 = vmul.f32 %v10624, %v1812
  %v10742 = vmul.f32 %v10629, %v1817
  %v10743 = vmul.f32 %v10632, %v1822
  %v10744 = vmul.f32 %v10637, %v1827
  %v10745 = vmul.f32 %v10640, %v1832
  %v10746 = vmul.f32 %v10645, %v1837
  %v10747 = vmul.f32 %v10648, %v1842
  %v10748 = vmul.f32 %v10653, %v1847
  %v10749 = vmul.f32 %v10656, %v1852
  %v10750 = vmul.f32 %v10661, %v1857
  %v10751 = vmul.f32 %v10664, %v1862
  %v10752 = vmul.f32 %v10669, %v1867
  %v10753 = vsel %vm835, %v10676, 0.0
  %v10754 = vsel %vm835, %v10677, 0.0
  %v10755 = vadd.f32 %v10753, %v10754
  %v10756 = vsel %vm835, %v10678, 0.0
  %v10757 = vadd.f32 %v10755, %v10756
  %v10758 = vsel %vm835, %v10679, 0.0
  %v10759 = vadd.f32 %v10757, %v10758
  %v10760 = vsel %vm835, %v10680, 0.0
  %v10761 = vadd.f32 %v10759, %v10760
  %v10762 = vsel %vm835, %v10681, 0.0
  %v10763 = vadd.f32 %v10761, %v10762
  %v10764 = vsel %vm835, %v10682, 0.0
  %v10765 = vadd.f32 %v10763, %v10764
  %v10766 = vsel %vm835, %v10683, 0.0
  %v10767 = vadd.f32 %v10765, %v10766
  %v10768 = vsel %vm835, %v10684, 0.0
  %v10769 = vadd.f32 %v10767, %v10768
  %v10770 = vsel %vm835, %v10685, 0.0
  %v10771 = vadd.f32 %v10769, %v10770
  %v10772 = vsel %vm835, %v10686, 0.0
  %v10773 = vadd.f32 %v10771, %v10772
  %v10774 = vsel %vm835, %v10687, 0.0
  %v10775 = vadd.f32 %v10773, %v10774
  %v10776 = vsel %vm835, %v10688, 0.0
  %v10777 = vadd.f32 %v10775, %v10776
  %v10778 = vsel %vm835, %v10689, 0.0
  %v10779 = vadd.f32 %v10777, %v10778
  %v10780 = vsel %vm835, %v10690, 0.0
  %v10781 = vadd.f32 %v10779, %v10780
  %v10782 = vsel %vm835, %v10691, 0.0
  %v10783 = vadd.f32 %v10781, %v10782
  %v10784 = vsel %vm835, %v10692, 0.0
  %v10785 = vadd.f32 %v10783, %v10784
  %v10786 = vsel %vm835, %v10693, 0.0
  %v10787 = vadd.f32 %v10785, %v10786
  %v10788 = vsel %vm835, %v10694, 0.0
  %v10789 = vadd.f32 %v10787, %v10788
  %v10790 = vsel %vm835, %v10695, 0.0
  %v10791 = vadd.f32 %v10789, %v10790
  %v10792 = vsel %vm835, %v10696, 0.0
  %v10793 = vadd.f32 %v10791, %v10792
  %v10794 = vsel %vm835, %v10697, 0.0
  %v10795 = vadd.f32 %v10793, %v10794
  %v10796 = vsel %vm835, %v10698, 0.0
  %v10797 = vadd.f32 %v10795, %v10796
  %v10798 = vsel %vm835, %v10699, 0.0
  %v10799 = vadd.f32 %v10797, %v10798
  %v10800 = vsel %vm835, %v10700, 0.0
  %v10801 = vadd.f32 %v10799, %v10800
  %v10802 = vsel %vm835, %v10701, 0.0
  %v10803 = vadd.f32 %v10801, %v10802
  %v10804 = vsel %vm835, %v10702, 0.0
  %v10805 = vadd.f32 %v10803, %v10804
  %v10806 = vsel %vm835, %v10703, 0.0
  %v10807 = vadd.f32 %v10805, %v10806
  %v10808 = vsel %vm835, %v10704, 0.0
  %v10809 = vadd.f32 %v10807, %v10808
  %v10810 = vsel %vm835, %v10705, 0.0
  %v10811 = vadd.f32 %v10809, %v10810
  %v10812 = vsel %vm835, %v10706, 0.0
  %v10813 = vadd.f32 %v10811, %v10812
  %v10814 = vsel %vm835, %v10707, 0.0
  %v10815 = vadd.f32 %v10813, %v10814
  %v10816 = vsel %vm835, %v10708, 0.0
  %v10817 = vadd.f32 %v10815, %v10816
  %v10818 = vsel %vm835, %v10709, 0.0
  %v10819 = vadd.f32 %v10817, %v10818
  %v10820 = vsel %vm835, %v10710, 0.0
  %v10821 = vadd.f32 %v10819, %v10820
  %v10822 = vsel %vm835, %v10711, 0.0
  %v10823 = vadd.f32 %v10821, %v10822
  %v10824 = vsel %vm835, %v10712, 0.0
  %v10825 = vadd.f32 %v10823, %v10824
  %v10826 = vsel %vm835, %v10713, 0.0
  %v10827 = vadd.f32 %v10825, %v10826
  %v10828 = vsel %vm835, %v10714, 0.0
  %v10829 = vadd.f32 %v10827, %v10828
  %v10830 = vsel %vm835, %v10715, 0.0
  %v10831 = vadd.f32 %v10829, %v10830
  %v10832 = vsel %vm835, %v10716, 0.0
  %v10833 = vadd.f32 %v10831, %v10832
  %v10834 = vsel %vm835, %v10717, 0.0
  %v10835 = vadd.f32 %v10833, %v10834
  %v10836 = vsel %vm835, %v10718, 0.0
  %v10837 = vadd.f32 %v10835, %v10836
  %v10838 = vsel %vm835, %v10719, 0.0
  %v10839 = vadd.f32 %v10837, %v10838
  %v10840 = vsel %vm835, %v10720, 0.0
  %v10841 = vadd.f32 %v10839, %v10840
  %v10842 = vsel %vm835, %v10721, 0.0
  %v10843 = vadd.f32 %v10841, %v10842
  %v10844 = vsel %vm835, %v10722, 0.0
  %v10845 = vadd.f32 %v10843, %v10844
  %v10846 = vsel %vm835, %v10723, 0.0
  %v10847 = vadd.f32 %v10845, %v10846
  %v10848 = vsel %vm835, %v10724, 0.0
  %v10849 = vadd.f32 %v10847, %v10848
  %v10850 = vsel %vm835, %v10725, 0.0
  %v10851 = vadd.f32 %v10849, %v10850
  %v10852 = vsel %vm835, %v10726, 0.0
  %v10853 = vadd.f32 %v10851, %v10852
  %v10854 = vsel %vm835, %v10727, 0.0
  %v10855 = vadd.f32 %v10853, %v10854
  %v10856 = vsel %vm835, %v10728, 0.0
  %v10857 = vadd.f32 %v10855, %v10856
  %v10858 = vsel %vm835, %v10729, 0.0
  %v10859 = vadd.f32 %v10857, %v10858
  %v10860 = vsel %vm835, %v10730, 0.0
  %v10861 = vadd.f32 %v10859, %v10860
  %v10862 = vsel %vm835, %v10731, 0.0
  %v10863 = vadd.f32 %v10861, %v10862
  %v10864 = vsel %vm835, %v10732, 0.0
  %v10865 = vadd.f32 %v10863, %v10864
  %v10866 = vsel %vm835, %v10733, 0.0
  %v10867 = vadd.f32 %v10865, %v10866
  %v10868 = vsel %vm835, %v10734, 0.0
  %v10869 = vadd.f32 %v10867, %v10868
  %v10870 = vsel %vm835, %v10735, 0.0
  %v10871 = vadd.f32 %v10869, %v10870
  %v10872 = vsel %vm835, %v10736, 0.0
  %v10873 = vadd.f32 %v10871, %v10872
  %v10874 = vsel %vm835, %v10737, 0.0
  %v10875 = vadd.f32 %v10873, %v10874
  %v10876 = vsel %vm835, %v10738, 0.0
  %v10877 = vadd.f32 %v10875, %v10876
  %v10878 = vsel %vm835, %v10739, 0.0
  %v10879 = vadd.f32 %v10877, %v10878
  %v10880 = vsel %vm835, %v10740, 0.0
  %v10881 = vadd.f32 %v10879, %v10880
  %v10882 = vsel %vm835, %v10741, 0.0
  %v10883 = vadd.f32 %v10881, %v10882
  %v10884 = vsel %vm835, %v10742, 0.0
  %v10885 = vadd.f32 %v10883, %v10884
  %v10886 = vsel %vm835, %v10743, 0.0
  %v10887 = vadd.f32 %v10885, %v10886
  %v10888 = vsel %vm835, %v10744, 0.0
  %v10889 = vadd.f32 %v10887, %v10888
  %v10890 = vsel %vm835, %v10745, 0.0
  %v10891 = vadd.f32 %v10889, %v10890
  %v10892 = vsel %vm835, %v10746, 0.0
  %v10893 = vadd.f32 %v10891, %v10892
  %v10894 = vsel %vm835, %v10747, 0.0
  %v10895 = vadd.f32 %v10893, %v10894
  %v10896 = vsel %vm835, %v10748, 0.0
  %v10897 = vadd.f32 %v10895, %v10896
  %v10898 = vsel %vm835, %v10749, 0.0
  %v10899 = vadd.f32 %v10897, %v10898
  %v10900 = vsel %vm835, %v10750, 0.0
  %v10901 = vadd.f32 %v10899, %v10900
  %v10902 = vsel %vm835, %v10751, 0.0
  %v10903 = vadd.f32 %v10901, %v10902
  %v10904 = vsel %vm987, %v10752, 0.0
  %v10905 = vadd.f32 %v10903, %v10904
  %v10906 = vrot.slane %v10905, 4
  %v10907 = vadd.f32 %v10905, %v10906
  %v10908 = vrot.slane %v10907, 2
  %v10909 = vadd.f32 %v10907, %v10908
  %v10910 = vrot.slane %v10909, 1
  %v10911 = vadd.f32 %v10909, %v10910
  %v10912 = vmul.f32 %v10676, %v10676
  %v10913 = vmul.f32 %v10677, %v10677
  %v10914 = vmul.f32 %v10678, %v10678
  %v10915 = vmul.f32 %v10679, %v10679
  %v10916 = vmul.f32 %v10680, %v10680
  %v10917 = vmul.f32 %v10681, %v10681
  %v10918 = vmul.f32 %v10682, %v10682
  %v10919 = vmul.f32 %v10683, %v10683
  %v10920 = vmul.f32 %v10684, %v10684
  %v10921 = vmul.f32 %v10685, %v10685
  %v10922 = vmul.f32 %v10686, %v10686
  %v10923 = vmul.f32 %v10687, %v10687
  %v10924 = vmul.f32 %v10688, %v10688
  %v10925 = vmul.f32 %v10689, %v10689
  %v10926 = vmul.f32 %v10690, %v10690
  %v10927 = vmul.f32 %v10691, %v10691
  %v10928 = vmul.f32 %v10692, %v10692
  %v10929 = vmul.f32 %v10693, %v10693
  %v10930 = vmul.f32 %v10694, %v10694
  %v10931 = vmul.f32 %v10695, %v10695
  %v10932 = vmul.f32 %v10696, %v10696
  %v10933 = vmul.f32 %v10697, %v10697
  %v10934 = vmul.f32 %v10698, %v10698
  %v10935 = vmul.f32 %v10699, %v10699
  %v10936 = vmul.f32 %v10700, %v10700
  %v10937 = vmul.f32 %v10701, %v10701
  %v10938 = vmul.f32 %v10702, %v10702
  %v10939 = vmul.f32 %v10703, %v10703
  %v10940 = vmul.f32 %v10704, %v10704
  %v10941 = vmul.f32 %v10705, %v10705
  %v10942 = vmul.f32 %v10706, %v10706
  %v10943 = vmul.f32 %v10707, %v10707
  %v10944 = vmul.f32 %v10708, %v10708
  %v10945 = vmul.f32 %v10709, %v10709
  %v10946 = vmul.f32 %v10710, %v10710
  %v10947 = vmul.f32 %v10711, %v10711
  %v10948 = vmul.f32 %v10712, %v10712
  %v10949 = vmul.f32 %v10713, %v10713
  %v10950 = vmul.f32 %v10714, %v10714
  %v10951 = vmul.f32 %v10715, %v10715
  %v10952 = vmul.f32 %v10716, %v10716
  %v10953 = vmul.f32 %v10717, %v10717
  %v10954 = vmul.f32 %v10718, %v10718
  %v10955 = vmul.f32 %v10719, %v10719
  %v10956 = vmul.f32 %v10720, %v10720
  %v10957 = vmul.f32 %v10721, %v10721
  %v10958 = vmul.f32 %v10722, %v10722
  %v10959 = vmul.f32 %v10723, %v10723
  %v10960 = vmul.f32 %v10724, %v10724
  %v10961 = vmul.f32 %v10725, %v10725
  %v10962 = vmul.f32 %v10726, %v10726
  %v10963 = vmul.f32 %v10727, %v10727
  %v10964 = vmul.f32 %v10728, %v10728
  %v10965 = vmul.f32 %v10729, %v10729
  %v10966 = vmul.f32 %v10730, %v10730
  %v10967 = vmul.f32 %v10731, %v10731
  %v10968 = vmul.f32 %v10732, %v10732
  %v10969 = vmul.f32 %v10733, %v10733
  %v10970 = vmul.f32 %v10734, %v10734
  %v10971 = vmul.f32 %v10735, %v10735
  %v10972 = vmul.f32 %v10736, %v10736
  %v10973 = vmul.f32 %v10737, %v10737
  %v10974 = vmul.f32 %v10738, %v10738
  %v10975 = vmul.f32 %v10739, %v10739
  %v10976 = vmul.f32 %v10740, %v10740
  %v10977 = vmul.f32 %v10741, %v10741
  %v10978 = vmul.f32 %v10742, %v10742
  %v10979 = vmul.f32 %v10743, %v10743
  %v10980 = vmul.f32 %v10744, %v10744
  %v10981 = vmul.f32 %v10745, %v10745
  %v10982 = vmul.f32 %v10746, %v10746
  %v10983 = vmul.f32 %v10747, %v10747
  %v10984 = vmul.f32 %v10748, %v10748
  %v10985 = vmul.f32 %v10749, %v10749
  %v10986 = vmul.f32 %v10750, %v10750
  %v10987 = vmul.f32 %v10751, %v10751
  %v10988 = vmul.f32 %v10752, %v10752
  %v10989 = vsel %vm835, %v10912, 0.0
  %v10990 = vsel %vm835, %v10913, 0.0
  %v10991 = vadd.f32 %v10989, %v10990
  %v10992 = vsel %vm835, %v10914, 0.0
  %v10993 = vadd.f32 %v10991, %v10992
  %v10994 = vsel %vm835, %v10915, 0.0
  %v10995 = vadd.f32 %v10993, %v10994
  %v10996 = vsel %vm835, %v10916, 0.0
  %v10997 = vadd.f32 %v10995, %v10996
  %v10998 = vsel %vm835, %v10917, 0.0
  %v10999 = vadd.f32 %v10997, %v10998
  %v11000 = vsel %vm835, %v10918, 0.0
  %v11001 = vadd.f32 %v10999, %v11000
  %v11002 = vsel %vm835, %v10919, 0.0
  %v11003 = vadd.f32 %v11001, %v11002
  %v11004 = vsel %vm835, %v10920, 0.0
  %v11005 = vadd.f32 %v11003, %v11004
  %v11006 = vsel %vm835, %v10921, 0.0
  %v11007 = vadd.f32 %v11005, %v11006
  %v11008 = vsel %vm835, %v10922, 0.0
  %v11009 = vadd.f32 %v11007, %v11008
  %v11010 = vsel %vm835, %v10923, 0.0
  %v11011 = vadd.f32 %v11009, %v11010
  %v11012 = vsel %vm835, %v10924, 0.0
  %v11013 = vadd.f32 %v11011, %v11012
  %v11014 = vsel %vm835, %v10925, 0.0
  %v11015 = vadd.f32 %v11013, %v11014
  %v11016 = vsel %vm835, %v10926, 0.0
  %v11017 = vadd.f32 %v11015, %v11016
  %v11018 = vsel %vm835, %v10927, 0.0
  %v11019 = vadd.f32 %v11017, %v11018
  %v11020 = vsel %vm835, %v10928, 0.0
  %v11021 = vadd.f32 %v11019, %v11020
  %v11022 = vsel %vm835, %v10929, 0.0
  %v11023 = vadd.f32 %v11021, %v11022
  %v11024 = vsel %vm835, %v10930, 0.0
  %v11025 = vadd.f32 %v11023, %v11024
  %v11026 = vsel %vm835, %v10931, 0.0
  %v11027 = vadd.f32 %v11025, %v11026
  %v11028 = vsel %vm835, %v10932, 0.0
  %v11029 = vadd.f32 %v11027, %v11028
  %v11030 = vsel %vm835, %v10933, 0.0
  %v11031 = vadd.f32 %v11029, %v11030
  %v11032 = vsel %vm835, %v10934, 0.0
  %v11033 = vadd.f32 %v11031, %v11032
  %v11034 = vsel %vm835, %v10935, 0.0
  %v11035 = vadd.f32 %v11033, %v11034
  %v11036 = vsel %vm835, %v10936, 0.0
  %v11037 = vadd.f32 %v11035, %v11036
  %v11038 = vsel %vm835, %v10937, 0.0
  %v11039 = vadd.f32 %v11037, %v11038
  %v11040 = vsel %vm835, %v10938, 0.0
  %v11041 = vadd.f32 %v11039, %v11040
  %v11042 = vsel %vm835, %v10939, 0.0
  %v11043 = vadd.f32 %v11041, %v11042
  %v11044 = vsel %vm835, %v10940, 0.0
  %v11045 = vadd.f32 %v11043, %v11044
  %v11046 = vsel %vm835, %v10941, 0.0
  %v11047 = vadd.f32 %v11045, %v11046
  %v11048 = vsel %vm835, %v10942, 0.0
  %v11049 = vadd.f32 %v11047, %v11048
  %v11050 = vsel %vm835, %v10943, 0.0
  %v11051 = vadd.f32 %v11049, %v11050
  %v11052 = vsel %vm835, %v10944, 0.0
  %v11053 = vadd.f32 %v11051, %v11052
  %v11054 = vsel %vm835, %v10945, 0.0
  %v11055 = vadd.f32 %v11053, %v11054
  %v11056 = vsel %vm835, %v10946, 0.0
  %v11057 = vadd.f32 %v11055, %v11056
  %v11058 = vsel %vm835, %v10947, 0.0
  %v11059 = vadd.f32 %v11057, %v11058
  %v11060 = vsel %vm835, %v10948, 0.0
  %v11061 = vadd.f32 %v11059, %v11060
  %v11062 = vsel %vm835, %v10949, 0.0
  %v11063 = vadd.f32 %v11061, %v11062
  %v11064 = vsel %vm835, %v10950, 0.0
  %v11065 = vadd.f32 %v11063, %v11064
  %v11066 = vsel %vm835, %v10951, 0.0
  %v11067 = vadd.f32 %v11065, %v11066
  %v11068 = vsel %vm835, %v10952, 0.0
  %v11069 = vadd.f32 %v11067, %v11068
  %v11070 = vsel %vm835, %v10953, 0.0
  %v11071 = vadd.f32 %v11069, %v11070
  %v11072 = vsel %vm835, %v10954, 0.0
  %v11073 = vadd.f32 %v11071, %v11072
  %v11074 = vsel %vm835, %v10955, 0.0
  %v11075 = vadd.f32 %v11073, %v11074
  %v11076 = vsel %vm835, %v10956, 0.0
  %v11077 = vadd.f32 %v11075, %v11076
  %v11078 = vsel %vm835, %v10957, 0.0
  %v11079 = vadd.f32 %v11077, %v11078
  %v11080 = vsel %vm835, %v10958, 0.0
  %v11081 = vadd.f32 %v11079, %v11080
  %v11082 = vsel %vm835, %v10959, 0.0
  %v11083 = vadd.f32 %v11081, %v11082
  %v11084 = vsel %vm835, %v10960, 0.0
  %v11085 = vadd.f32 %v11083, %v11084
  %v11086 = vsel %vm835, %v10961, 0.0
  %v11087 = vadd.f32 %v11085, %v11086
  %v11088 = vsel %vm835, %v10962, 0.0
  %v11089 = vadd.f32 %v11087, %v11088
  %v11090 = vsel %vm835, %v10963, 0.0
  %v11091 = vadd.f32 %v11089, %v11090
  %v11092 = vsel %vm835, %v10964, 0.0
  %v11093 = vadd.f32 %v11091, %v11092
  %v11094 = vsel %vm835, %v10965, 0.0
  %v11095 = vadd.f32 %v11093, %v11094
  %v11096 = vsel %vm835, %v10966, 0.0
  %v11097 = vadd.f32 %v11095, %v11096
  %v11098 = vsel %vm835, %v10967, 0.0
  %v11099 = vadd.f32 %v11097, %v11098
  %v11100 = vsel %vm835, %v10968, 0.0
  %v11101 = vadd.f32 %v11099, %v11100
  %v11102 = vsel %vm835, %v10969, 0.0
  %v11103 = vadd.f32 %v11101, %v11102
  %v11104 = vsel %vm835, %v10970, 0.0
  %v11105 = vadd.f32 %v11103, %v11104
  %v11106 = vsel %vm835, %v10971, 0.0
  %v11107 = vadd.f32 %v11105, %v11106
  %v11108 = vsel %vm835, %v10972, 0.0
  %v11109 = vadd.f32 %v11107, %v11108
  %v11110 = vsel %vm835, %v10973, 0.0
  %v11111 = vadd.f32 %v11109, %v11110
  %v11112 = vsel %vm835, %v10974, 0.0
  %v11113 = vadd.f32 %v11111, %v11112
  %v11114 = vsel %vm835, %v10975, 0.0
  %v11115 = vadd.f32 %v11113, %v11114
  %v11116 = vsel %vm835, %v10976, 0.0
  %v11117 = vadd.f32 %v11115, %v11116
  %v11118 = vsel %vm835, %v10977, 0.0
  %v11119 = vadd.f32 %v11117, %v11118
  %v11120 = vsel %vm835, %v10978, 0.0
  %v11121 = vadd.f32 %v11119, %v11120
  %v11122 = vsel %vm835, %v10979, 0.0
  %v11123 = vadd.f32 %v11121, %v11122
  %v11124 = vsel %vm835, %v10980, 0.0
  %v11125 = vadd.f32 %v11123, %v11124
  %v11126 = vsel %vm835, %v10981, 0.0
  %v11127 = vadd.f32 %v11125, %v11126
  %v11128 = vsel %vm835, %v10982, 0.0
  %v11129 = vadd.f32 %v11127, %v11128
  %v11130 = vsel %vm835, %v10983, 0.0
  %v11131 = vadd.f32 %v11129, %v11130
  %v11132 = vsel %vm835, %v10984, 0.0
  %v11133 = vadd.f32 %v11131, %v11132
  %v11134 = vsel %vm835, %v10985, 0.0
  %v11135 = vadd.f32 %v11133, %v11134
  %v11136 = vsel %vm835, %v10986, 0.0
  %v11137 = vadd.f32 %v11135, %v11136
  %v11138 = vsel %vm835, %v10987, 0.0
  %v11139 = vadd.f32 %v11137, %v11138
  %v11140 = vsel %vm987, %v10988, 0.0
  %v11141 = vadd.f32 %v11139, %v11140
  %v11142 = vrot.slane %v11141, 4
  %v11143 = vadd.f32 %v11141, %v11142
  %v11144 = vrot.slane %v11143, 2
  %v11145 = vadd.f32 %v11143, %v11144
  %v11146 = vrot.slane %v11145, 1
  %v11147 = vadd.f32 %v11145, %v11146
  %v11148 = vmul.f32 %v10911, 0.001953125
  %v11149 = vmul.f32 %v11147, 0.001953125
  %v11150 = vmul.f32 %v11148, %v11148
  %v11151 = vsub.f32 %v11149, %v11150
  %v11152 = vadd.f32 %v11151, 1e-05
  %v11153 = vrsqrt.pop %v11152
  %v11154 = vmul.f32 %v10674, %v11153
  %v11155 = vmul.f32 %v11148, %v11154
  %v11156 = vsub.f32 %v10675, %v11155
  %v11158 = vlaneseq
  %v11159 = vshrl.u32 %v11158, 7
  %v11160 = vsub.s32 0, %v11159
  %v11161 = vrot.slane %v11154, %v11160
  %v11163 = vmul.f32 %v10365, %v11161
  %v11164 = vmul.f32 %v10368, %v11161
  %v11165 = vmul.f32 %v10373, %v11161
  %v11166 = vmul.f32 %v10376, %v11161
  %v11167 = vmul.f32 %v10381, %v11161
  %v11168 = vmul.f32 %v10384, %v11161
  %v11169 = vmul.f32 %v10389, %v11161
  %v11170 = vmul.f32 %v10392, %v11161
  %v11171 = vmul.f32 %v10397, %v11161
  %v11172 = vmul.f32 %v10400, %v11161
  %v11173 = vmul.f32 %v10405, %v11161
  %v11174 = vmul.f32 %v10408, %v11161
  %v11175 = vmul.f32 %v10413, %v11161
  %v11176 = vmul.f32 %v10416, %v11161
  %v11177 = vmul.f32 %v10421, %v11161
  %v11178 = vmul.f32 %v10424, %v11161
  %v11179 = vmul.f32 %v10429, %v11161
  %v11180 = vmul.f32 %v10432, %v11161
  %v11181 = vmul.f32 %v10437, %v11161
  %v11182 = vmul.f32 %v10440, %v11161
  %v11183 = vmul.f32 %v10445, %v11161
  %v11184 = vmul.f32 %v10448, %v11161
  %v11185 = vmul.f32 %v10453, %v11161
  %v11186 = vmul.f32 %v10456, %v11161
  %v11187 = vmul.f32 %v10461, %v11161
  %v11188 = vmul.f32 %v10464, %v11161
  %v11189 = vmul.f32 %v10469, %v11161
  %v11190 = vmul.f32 %v10472, %v11161
  %v11191 = vmul.f32 %v10477, %v11161
  %v11192 = vmul.f32 %v10480, %v11161
  %v11193 = vmul.f32 %v10485, %v11161
  %v11194 = vmul.f32 %v10488, %v11161
  %v11195 = vmul.f32 %v10493, %v11161
  %v11196 = vmul.f32 %v10496, %v11161
  %v11197 = vmul.f32 %v10501, %v11161
  %v11198 = vmul.f32 %v10504, %v11161
  %v11199 = vmul.f32 %v10509, %v11161
  %v11200 = vmul.f32 %v10512, %v11161
  %v11201 = vmul.f32 %v10517, %v11161
  %v11202 = vmul.f32 %v10520, %v11161
  %v11203 = vmul.f32 %v10525, %v11161
  %v11204 = vmul.f32 %v10528, %v11161
  %v11205 = vmul.f32 %v10533, %v11161
  %v11206 = vmul.f32 %v10536, %v11161
  %v11207 = vmul.f32 %v10541, %v11161
  %v11208 = vmul.f32 %v10544, %v11161
  %v11209 = vmul.f32 %v10549, %v11161
  %v11210 = vmul.f32 %v10552, %v11161
  %v11211 = vmul.f32 %v10557, %v11161
  %v11212 = vmul.f32 %v10560, %v11161
  %v11213 = vmul.f32 %v10565, %v11161
  %v11214 = vmul.f32 %v10568, %v11161
  %v11215 = vmul.f32 %v10573, %v11161
  %v11216 = vmul.f32 %v10576, %v11161
  %v11217 = vmul.f32 %v10581, %v11161
  %v11218 = vmul.f32 %v10584, %v11161
  %v11219 = vmul.f32 %v10589, %v11161
  %v11220 = vmul.f32 %v10592, %v11161
  %v11221 = vmul.f32 %v10597, %v11161
  %v11222 = vmul.f32 %v10600, %v11161
  %v11223 = vmul.f32 %v10605, %v11161
  %v11224 = vmul.f32 %v10608, %v11161
  %v11225 = vmul.f32 %v10613, %v11161
  %v11226 = vmul.f32 %v10616, %v11161
  %v11227 = vmul.f32 %v10621, %v11161
  %v11228 = vmul.f32 %v10624, %v11161
  %v11229 = vmul.f32 %v10629, %v11161
  %v11230 = vmul.f32 %v10632, %v11161
  %v11231 = vmul.f32 %v10637, %v11161
  %v11232 = vmul.f32 %v10640, %v11161
  %v11233 = vmul.f32 %v10645, %v11161
  %v11234 = vmul.f32 %v10648, %v11161
  %v11235 = vmul.f32 %v10653, %v11161
  %v11236 = vmul.f32 %v10656, %v11161
  %v11237 = vmul.f32 %v10661, %v11161
  %v11238 = vmul.f32 %v10664, %v11161
  %v11239 = vmul.f32 %v10669, %v11161
  %v11241 = vlaneseq
  %v11242 = vshrl.u32 %v11241, 7
  %v11243 = vsub.s32 0, %v11242
  %v11244 = vrot.slane %v11156, %v11243
  %v11246 = vadd.f32 %v11163, %v11244
  %v11247 = vadd.f32 %v11164, %v11244
  %v11248 = vadd.f32 %v11165, %v11244
  %v11249 = vadd.f32 %v11166, %v11244
  %v11250 = vadd.f32 %v11167, %v11244
  %v11251 = vadd.f32 %v11168, %v11244
  %v11252 = vadd.f32 %v11169, %v11244
  %v11253 = vadd.f32 %v11170, %v11244
  %v11254 = vadd.f32 %v11171, %v11244
  %v11255 = vadd.f32 %v11172, %v11244
  %v11256 = vadd.f32 %v11173, %v11244
  %v11257 = vadd.f32 %v11174, %v11244
  %v11258 = vadd.f32 %v11175, %v11244
  %v11259 = vadd.f32 %v11176, %v11244
  %v11260 = vadd.f32 %v11177, %v11244
  %v11261 = vadd.f32 %v11178, %v11244
  %v11262 = vadd.f32 %v11179, %v11244
  %v11263 = vadd.f32 %v11180, %v11244
  %v11264 = vadd.f32 %v11181, %v11244
  %v11265 = vadd.f32 %v11182, %v11244
  %v11266 = vadd.f32 %v11183, %v11244
  %v11267 = vadd.f32 %v11184, %v11244
  %v11268 = vadd.f32 %v11185, %v11244
  %v11269 = vadd.f32 %v11186, %v11244
  %v11270 = vadd.f32 %v11187, %v11244
  %v11271 = vadd.f32 %v11188, %v11244
  %v11272 = vadd.f32 %v11189, %v11244
  %v11273 = vadd.f32 %v11190, %v11244
  %v11274 = vadd.f32 %v11191, %v11244
  %v11275 = vadd.f32 %v11192, %v11244
  %v11276 = vadd.f32 %v11193, %v11244
  %v11277 = vadd.f32 %v11194, %v11244
  %v11278 = vadd.f32 %v11195, %v11244
  %v11279 = vadd.f32 %v11196, %v11244
  %v11280 = vadd.f32 %v11197, %v11244
  %v11281 = vadd.f32 %v11198, %v11244
  %v11282 = vadd.f32 %v11199, %v11244
  %v11283 = vadd.f32 %v11200, %v11244
  %v11284 = vadd.f32 %v11201, %v11244
  %v11285 = vadd.f32 %v11202, %v11244
  %v11286 = vadd.f32 %v11203, %v11244
  %v11287 = vadd.f32 %v11204, %v11244
  %v11288 = vadd.f32 %v11205, %v11244
  %v11289 = vadd.f32 %v11206, %v11244
  %v11290 = vadd.f32 %v11207, %v11244
  %v11291 = vadd.f32 %v11208, %v11244
  %v11292 = vadd.f32 %v11209, %v11244
  %v11293 = vadd.f32 %v11210, %v11244
  %v11294 = vadd.f32 %v11211, %v11244
  %v11295 = vadd.f32 %v11212, %v11244
  %v11296 = vadd.f32 %v11213, %v11244
  %v11297 = vadd.f32 %v11214, %v11244
  %v11298 = vadd.f32 %v11215, %v11244
  %v11299 = vadd.f32 %v11216, %v11244
  %v11300 = vadd.f32 %v11217, %v11244
  %v11301 = vadd.f32 %v11218, %v11244
  %v11302 = vadd.f32 %v11219, %v11244
  %v11303 = vadd.f32 %v11220, %v11244
  %v11304 = vadd.f32 %v11221, %v11244
  %v11305 = vadd.f32 %v11222, %v11244
  %v11306 = vadd.f32 %v11223, %v11244
  %v11307 = vadd.f32 %v11224, %v11244
  %v11308 = vadd.f32 %v11225, %v11244
  %v11309 = vadd.f32 %v11226, %v11244
  %v11310 = vadd.f32 %v11227, %v11244
  %v11311 = vadd.f32 %v11228, %v11244
  %v11312 = vadd.f32 %v11229, %v11244
  %v11313 = vadd.f32 %v11230, %v11244
  %v11314 = vadd.f32 %v11231, %v11244
  %v11315 = vadd.f32 %v11232, %v11244
  %v11316 = vadd.f32 %v11233, %v11244
  %v11317 = vadd.f32 %v11234, %v11244
  %v11318 = vadd.f32 %v11235, %v11244
  %v11319 = vadd.f32 %v11236, %v11244
  %v11320 = vadd.f32 %v11237, %v11244
  %v11321 = vadd.f32 %v11238, %v11244
  %v11322 = vadd.f32 %v11239, %v11244
  %v11323 = vmax.f32 %v11246, 0.0
  %v11324 = vmax.f32 %v11247, 0.0
  %v11325 = vmax.f32 %v11248, 0.0
  %v11326 = vmax.f32 %v11249, 0.0
  %v11327 = vmax.f32 %v11250, 0.0
  %v11328 = vmax.f32 %v11251, 0.0
  %v11329 = vmax.f32 %v11252, 0.0
  %v11330 = vmax.f32 %v11253, 0.0
  %v11331 = vmax.f32 %v11254, 0.0
  %v11332 = vmax.f32 %v11255, 0.0
  %v11333 = vmax.f32 %v11256, 0.0
  %v11334 = vmax.f32 %v11257, 0.0
  %v11335 = vmax.f32 %v11258, 0.0
  %v11336 = vmax.f32 %v11259, 0.0
  %v11337 = vmax.f32 %v11260, 0.0
  %v11338 = vmax.f32 %v11261, 0.0
  %v11339 = vmax.f32 %v11262, 0.0
  %v11340 = vmax.f32 %v11263, 0.0
  %v11341 = vmax.f32 %v11264, 0.0
  %v11342 = vmax.f32 %v11265, 0.0
  %v11343 = vmax.f32 %v11266, 0.0
  %v11344 = vmax.f32 %v11267, 0.0
  %v11345 = vmax.f32 %v11268, 0.0
  %v11346 = vmax.f32 %v11269, 0.0
  %v11347 = vmax.f32 %v11270, 0.0
  %v11348 = vmax.f32 %v11271, 0.0
  %v11349 = vmax.f32 %v11272, 0.0
  %v11350 = vmax.f32 %v11273, 0.0
  %v11351 = vmax.f32 %v11274, 0.0
  %v11352 = vmax.f32 %v11275, 0.0
  %v11353 = vmax.f32 %v11276, 0.0
  %v11354 = vmax.f32 %v11277, 0.0
  %v11355 = vmax.f32 %v11278, 0.0
  %v11356 = vmax.f32 %v11279, 0.0
  %v11357 = vmax.f32 %v11280, 0.0
  %v11358 = vmax.f32 %v11281, 0.0
  %v11359 = vmax.f32 %v11282, 0.0
  %v11360 = vmax.f32 %v11283, 0.0
  %v11361 = vmax.f32 %v11284, 0.0
  %v11362 = vmax.f32 %v11285, 0.0
  %v11363 = vmax.f32 %v11286, 0.0
  %v11364 = vmax.f32 %v11287, 0.0
  %v11365 = vmax.f32 %v11288, 0.0
  %v11366 = vmax.f32 %v11289, 0.0
  %v11367 = vmax.f32 %v11290, 0.0
  %v11368 = vmax.f32 %v11291, 0.0
  %v11369 = vmax.f32 %v11292, 0.0
  %v11370 = vmax.f32 %v11293, 0.0
  %v11371 = vmax.f32 %v11294, 0.0
  %v11372 = vmax.f32 %v11295, 0.0
  %v11373 = vmax.f32 %v11296, 0.0
  %v11374 = vmax.f32 %v11297, 0.0
  %v11375 = vmax.f32 %v11298, 0.0
  %v11376 = vmax.f32 %v11299, 0.0
  %v11377 = vmax.f32 %v11300, 0.0
  %v11378 = vmax.f32 %v11301, 0.0
  %v11379 = vmax.f32 %v11302, 0.0
  %v11380 = vmax.f32 %v11303, 0.0
  %v11381 = vmax.f32 %v11304, 0.0
  %v11382 = vmax.f32 %v11305, 0.0
  %v11383 = vmax.f32 %v11306, 0.0
  %v11384 = vmax.f32 %v11307, 0.0
  %v11385 = vmax.f32 %v11308, 0.0
  %v11386 = vmax.f32 %v11309, 0.0
  %v11387 = vmax.f32 %v11310, 0.0
  %v11388 = vmax.f32 %v11311, 0.0
  %v11389 = vmax.f32 %v11312, 0.0
  %v11390 = vmax.f32 %v11313, 0.0
  %v11391 = vmax.f32 %v11314, 0.0
  %v11392 = vmax.f32 %v11315, 0.0
  %v11393 = vmax.f32 %v11316, 0.0
  %v11394 = vmax.f32 %v11317, 0.0
  %v11395 = vmax.f32 %v11318, 0.0
  %v11396 = vmax.f32 %v11319, 0.0
  %v11397 = vmax.f32 %v11320, 0.0
  %v11398 = vmax.f32 %v11321, 0.0
  %v11399 = vmax.f32 %v11322, 0.0
  %v11400 = vmul.f32 %v11323, %v1487
  %v11401 = vmul.f32 %v11324, %v1492
  %v11402 = vmul.f32 %v11325, %v1497
  %v11403 = vmul.f32 %v11326, %v1502
  %v11404 = vmul.f32 %v11327, %v1507
  %v11405 = vmul.f32 %v11328, %v1512
  %v11406 = vmul.f32 %v11329, %v1517
  %v11407 = vmul.f32 %v11330, %v1522
  %v11408 = vmul.f32 %v11331, %v1527
  %v11409 = vmul.f32 %v11332, %v1532
  %v11410 = vmul.f32 %v11333, %v1537
  %v11411 = vmul.f32 %v11334, %v1542
  %v11412 = vmul.f32 %v11335, %v1547
  %v11413 = vmul.f32 %v11336, %v1552
  %v11414 = vmul.f32 %v11337, %v1557
  %v11415 = vmul.f32 %v11338, %v1562
  %v11416 = vmul.f32 %v11339, %v1567
  %v11417 = vmul.f32 %v11340, %v1572
  %v11418 = vmul.f32 %v11341, %v1577
  %v11419 = vmul.f32 %v11342, %v1582
  %v11420 = vmul.f32 %v11343, %v1587
  %v11421 = vmul.f32 %v11344, %v1592
  %v11422 = vmul.f32 %v11345, %v1597
  %v11423 = vmul.f32 %v11346, %v1602
  %v11424 = vmul.f32 %v11347, %v1607
  %v11425 = vmul.f32 %v11348, %v1612
  %v11426 = vmul.f32 %v11349, %v1617
  %v11427 = vmul.f32 %v11350, %v1622
  %v11428 = vmul.f32 %v11351, %v1627
  %v11429 = vmul.f32 %v11352, %v1632
  %v11430 = vmul.f32 %v11353, %v1637
  %v11431 = vmul.f32 %v11354, %v1642
  %v11432 = vmul.f32 %v11355, %v1647
  %v11433 = vmul.f32 %v11356, %v1652
  %v11434 = vmul.f32 %v11357, %v1657
  %v11435 = vmul.f32 %v11358, %v1662
  %v11436 = vmul.f32 %v11359, %v1667
  %v11437 = vmul.f32 %v11360, %v1672
  %v11438 = vmul.f32 %v11361, %v1677
  %v11439 = vmul.f32 %v11362, %v1682
  %v11440 = vmul.f32 %v11363, %v1687
  %v11441 = vmul.f32 %v11364, %v1692
  %v11442 = vmul.f32 %v11365, %v1697
  %v11443 = vmul.f32 %v11366, %v1702
  %v11444 = vmul.f32 %v11367, %v1707
  %v11445 = vmul.f32 %v11368, %v1712
  %v11446 = vmul.f32 %v11369, %v1717
  %v11447 = vmul.f32 %v11370, %v1722
  %v11448 = vmul.f32 %v11371, %v1727
  %v11449 = vmul.f32 %v11372, %v1732
  %v11450 = vmul.f32 %v11373, %v1737
  %v11451 = vmul.f32 %v11374, %v1742
  %v11452 = vmul.f32 %v11375, %v1747
  %v11453 = vmul.f32 %v11376, %v1752
  %v11454 = vmul.f32 %v11377, %v1757
  %v11455 = vmul.f32 %v11378, %v1762
  %v11456 = vmul.f32 %v11379, %v1767
  %v11457 = vmul.f32 %v11380, %v1772
  %v11458 = vmul.f32 %v11381, %v1777
  %v11459 = vmul.f32 %v11382, %v1782
  %v11460 = vmul.f32 %v11383, %v1787
  %v11461 = vmul.f32 %v11384, %v1792
  %v11462 = vmul.f32 %v11385, %v1797
  %v11463 = vmul.f32 %v11386, %v1802
  %v11464 = vmul.f32 %v11387, %v1807
  %v11465 = vmul.f32 %v11388, %v1812
  %v11466 = vmul.f32 %v11389, %v1817
  %v11467 = vmul.f32 %v11390, %v1822
  %v11468 = vmul.f32 %v11391, %v1827
  %v11469 = vmul.f32 %v11392, %v1832
  %v11470 = vmul.f32 %v11393, %v1837
  %v11471 = vmul.f32 %v11394, %v1842
  %v11472 = vmul.f32 %v11395, %v1847
  %v11473 = vmul.f32 %v11396, %v1852
  %v11474 = vmul.f32 %v11397, %v1857
  %v11475 = vmul.f32 %v11398, %v1862
  %v11476 = vmul.f32 %v11399, %v1867
  %v11477 = vpack.c.bf16 %v11401, %v11400
  %v11478 = vpack.c.bf16 %v11403, %v11402
  %v11479 = vpack.c.bf16 %v11405, %v11404
  %v11480 = vpack.c.bf16 %v11407, %v11406
  %v11481 = vpack.c.bf16 %v11409, %v11408
  %v11482 = vpack.c.bf16 %v11411, %v11410
  %v11483 = vpack.c.bf16 %v11413, %v11412
  %v11484 = vpack.c.bf16 %v11415, %v11414
  %v11485 = vpack.c.bf16 %v11417, %v11416
  %v11486 = vpack.c.bf16 %v11419, %v11418
  %v11487 = vpack.c.bf16 %v11421, %v11420
  %v11488 = vpack.c.bf16 %v11423, %v11422
  %v11489 = vpack.c.bf16 %v11425, %v11424
  %v11490 = vpack.c.bf16 %v11427, %v11426
  %v11491 = vpack.c.bf16 %v11429, %v11428
  %v11492 = vpack.c.bf16 %v11431, %v11430
  %v11493 = vpack.c.bf16 %v11433, %v11432
  %v11494 = vpack.c.bf16 %v11435, %v11434
  %v11495 = vpack.c.bf16 %v11437, %v11436
  %v11496 = vpack.c.bf16 %v11439, %v11438
  %v11497 = vpack.c.bf16 %v11441, %v11440
  %v11498 = vpack.c.bf16 %v11443, %v11442
  %v11499 = vpack.c.bf16 %v11445, %v11444
  %v11500 = vpack.c.bf16 %v11447, %v11446
  %v11501 = vpack.c.bf16 %v11449, %v11448
  %v11502 = vpack.c.bf16 %v11451, %v11450
  %v11503 = vpack.c.bf16 %v11453, %v11452
  %v11504 = vpack.c.bf16 %v11455, %v11454
  %v11505 = vpack.c.bf16 %v11457, %v11456
  %v11506 = vpack.c.bf16 %v11459, %v11458
  %v11507 = vpack.c.bf16 %v11461, %v11460
  %v11508 = vpack.c.bf16 %v11463, %v11462
  %v11509 = vpack.c.bf16 %v11465, %v11464
  %v11510 = vpack.c.bf16 %v11467, %v11466
  %v11511 = vpack.c.bf16 %v11469, %v11468
  %v11512 = vpack.c.bf16 %v11471, %v11470
  %v11513 = vpack.c.bf16 %v11473, %v11472
  %v11514 = vpack.c.bf16 %v11475, %v11474
  %v11515 = vpack.c.bf16 %v11476, %v11476
  %v11516 = vld [vmem:[%s8] sm:$0xf]
  %v11517 = vld [vmem:[%s8 + $0x4] sm:$0xf]
  %v11518 = vld [vmem:[%s8 + $0x8] sm:$0xf]
  %v11519 = vld [vmem:[%s8 + $0xc] sm:$0xf]
  %v11524 = vunpack.c.l.b16 %v11516
  %v11525 = vunpack.c.l.b16 %v11517
  %v11526 = vunpack.c.l.b16 %v11518
  %v11527 = vunpack.c.l.b16 %v11519
  %v11528 = vpack.c.b16 %v11525, %v11524
  %v11529 = vpack.c.b16 %v11527, %v11526
  %v11533 = vsel %vm835, %v11477, 0
  %v11536 = vsel %vm835, %v11478, 0
  %v11539 = vsel %vm835, %v11479, 0
  %v11542 = vsel %vm835, %v11480, 0
  %v11545 = vsel %vm835, %v11481, 0
  %v11548 = vsel %vm835, %v11482, 0
  %v11551 = vsel %vm835, %v11483, 0
  %v11554 = vsel %vm835, %v11484, 0
  %v11557 = vsel %vm835, %v11485, 0
  %v11560 = vsel %vm835, %v11486, 0
  %v11563 = vsel %vm835, %v11487, 0
  %v11566 = vsel %vm835, %v11488, 0
  %v11569 = vsel %vm835, %v11489, 0
  %v11572 = vsel %vm835, %v11490, 0
  %v11575 = vsel %vm835, %v11491, 0
  %v11578 = vsel %vm835, %v11492, 0
  %v11581 = vsel %vm835, %v11493, 0
  %v11584 = vsel %vm835, %v11494, 0
  %v11587 = vsel %vm835, %v11495, 0
  %v11590 = vsel %vm835, %v11496, 0
  %v11593 = vsel %vm835, %v11497, 0
  %v11596 = vsel %vm835, %v11498, 0
  %v11599 = vsel %vm835, %v11499, 0
  %v11602 = vsel %vm835, %v11500, 0
  %v11605 = vsel %vm835, %v11501, 0
  %v11608 = vsel %vm835, %v11502, 0
  %v11611 = vsel %vm835, %v11503, 0
  %v11614 = vsel %vm835, %v11504, 0
  %v11617 = vsel %vm835, %v11505, 0
  %v11620 = vsel %vm835, %v11506, 0
  %v11623 = vsel %vm835, %v11507, 0
  %v11626 = vsel %vm835, %v11508, 0
  %v11629 = vsel %vm835, %v11509, 0
  %v11632 = vsel %vm835, %v11510, 0
  %v11635 = vsel %vm835, %v11511, 0
  %v11638 = vsel %vm835, %v11512, 0
  %v11641 = vsel %vm835, %v11513, 0
  %v11644 = vsel %vm835, %v11514, 0
  %v11647 = vsel %vm835, %v11515, 0
  %11649 = vmatprep.subr.bf16.mxu0 0
  %11650 = vmatpush1.bf16.msra.mxu0 %v11528
  %11651 = vmatprep.subr.bf16.mxu0 0
  %11652 = vmatpush1.bf16.msra.mxu0 %v11529
  %11653 = vmatprep.subr.bf16.mxu0 0
  %11654 = vmatpush1.bf16.msra.mxu0 0
  %11655 = vmatprep.subr.bf16.mxu0 0
  %11656 = vmatpush1.bf16.msra.mxu0 0
  %11657 = vmatprep.subr.bf16.mxu0 0
  %11658 = vmatpush1.bf16.msra.mxu0 0
  %11659 = vmatprep.subr.bf16.mxu0 0
  %11660 = vmatpush1.bf16.msra.mxu0 0
  %11661 = vmatprep.subr.bf16.mxu0 0
  %11662 = vmatpush1.bf16.msra.mxu0 0
  %11663 = vmatprep.subr.bf16.mxu0 0
  %11664 = vmatpush1.bf16.msra.mxu0 0
  %11665 = vmatprep.subr.bf16.mxu0 0
  %11666 = vmatpush1.bf16.msra.mxu0 0
  %11667 = vmatprep.subr.bf16.mxu0 0
  %11668 = vmatpush1.bf16.msra.mxu0 0
  %11669 = vmatprep.subr.bf16.mxu0 0
  %11670 = vmatpush1.bf16.msra.mxu0 0
  %11671 = vmatprep.subr.bf16.mxu0 0
  %11672 = vmatpush1.bf16.msra.mxu0 0
  %11673 = vmatprep.subr.bf16.mxu0 0
  %11674 = vmatpush1.bf16.msra.mxu0 0
  %11675 = vmatprep.subr.bf16.mxu0 0
  %11676 = vmatpush1.bf16.msra.mxu0 0
  %11677 = vmatprep.subr.bf16.mxu0 0
  %11678 = vmatpush1.bf16.msra.mxu0 0
  %11679 = vmatprep.subr.bf16.mxu0 0
  %11680 = vmatpush1.bf16.msra.mxu0 0
  %11681 = vmatprep.mubr.bf16.mxu0 0
  %11682 = vmatmul.mubr.bf16.gmra.mrb[0].mxu0 %v11533
  %v11683 = vpop.f32.mrb[0].mxu0
  %v11684 = vadd.f32 0.0, %v11683
  %v11685 = vpop.f32.mrb[0].mxu0
  %v11686 = vpop.f32.mrb[0].mxu0
  %v11687 = vadd.f32 0.0, %v11686
  %v11688 = vpop.f32.mrb[0].mxu0
  %11689 = vmatprep.mubr.bf16.mxu0 0
  %11690 = vmatmul.mubr.bf16.gmra.mrb[0].mxu0 %v11536
  %v11691 = vpop.f32.mrb[0].mxu0
  %v11692 = vadd.f32 0.0, %v11691
  %v11693 = vpop.f32.mrb[0].mxu0
  %v11694 = vpop.f32.mrb[0].mxu0
  %v11695 = vadd.f32 0.0, %v11694
  %v11696 = vpop.f32.mrb[0].mxu0
  %11697 = vmatprep.mubr.bf16.mxu0 0
  %11698 = vmatmul.mubr.bf16.gmra.mrb[0].mxu0 %v11539
  %v11699 = vpop.f32.mrb[0].mxu0
  %v11700 = vadd.f32 0.0, %v11699
  %v11701 = vpop.f32.mrb[0].mxu0
  %v11702 = vpop.f32.mrb[0].mxu0
  %v11703 = vadd.f32 0.0, %v11702
  %v11704 = vpop.f32.mrb[0].mxu0
  %11705 = vmatprep.mubr.bf16.mxu0 0
  %11706 = vmatmul.mubr.bf16.gmra.mrb[0].mxu0 %v11542
  %v11707 = vpop.f32.mrb[0].mxu0
  %v11708 = vadd.f32 0.0, %v11707
  %v11709 = vpop.f32.mrb[0].mxu0
  %v11710 = vpop.f32.mrb[0].mxu0
  %v11711 = vadd.f32 0.0, %v11710
  %v11712 = vpop.f32.mrb[0].mxu0
  %11713 = vmatprep.mubr.bf16.mxu0 0
  %11714 = vmatmul.mubr.bf16.gmra.mrb[0].mxu0 %v11545
  %v11715 = vpop.f32.mrb[0].mxu0
  %v11716 = vadd.f32 0.0, %v11715
  %v11717 = vpop.f32.mrb[0].mxu0
  %v11718 = vpop.f32.mrb[0].mxu0
  %v11719 = vadd.f32 0.0, %v11718
  %v11720 = vpop.f32.mrb[0].mxu0
  %11721 = vmatprep.mubr.bf16.mxu0 0
  %11722 = vmatmul.mubr.bf16.gmra.mrb[0].mxu0 %v11548
  %v11723 = vpop.f32.mrb[0].mxu0
  %v11724 = vadd.f32 0.0, %v11723
  %v11725 = vpop.f32.mrb[0].mxu0
  %v11726 = vpop.f32.mrb[0].mxu0
  %v11727 = vadd.f32 0.0, %v11726
  %v11728 = vpop.f32.mrb[0].mxu0
  %11729 = vmatprep.mubr.bf16.mxu0 0
  %11730 = vmatmul.mubr.bf16.gmra.mrb[0].mxu0 %v11551
  %v11731 = vpop.f32.mrb[0].mxu0
  %v11732 = vadd.f32 0.0, %v11731
  %v11733 = vpop.f32.mrb[0].mxu0
  %v11734 = vpop.f32.mrb[0].mxu0
  %v11735 = vadd.f32 0.0, %v11734
  %v11736 = vpop.f32.mrb[0].mxu0
  %11737 = vmatprep.mubr.bf16.mxu0 0
  %11738 = vmatmul.mubr.bf16.gmra.mrb[0].mxu0 %v11554
  %v11739 = vpop.f32.mrb[0].mxu0
  %v11740 = vadd.f32 0.0, %v11739
  %v11741 = vpop.f32.mrb[0].mxu0
  %v11742 = vpop.f32.mrb[0].mxu0
  %v11743 = vadd.f32 0.0, %v11742
  %v11744 = vpop.f32.mrb[0].mxu0
  %11745 = vmatprep.mubr.bf16.mxu0 0
  %11746 = vmatmul.mubr.bf16.gmra.mrb[0].mxu0 %v11557
  %v11747 = vpop.f32.mrb[0].mxu0
  %v11748 = vadd.f32 0.0, %v11747
  %v11749 = vpop.f32.mrb[0].mxu0
  %v11750 = vpop.f32.mrb[0].mxu0
  %v11751 = vadd.f32 0.0, %v11750
  %v11752 = vpop.f32.mrb[0].mxu0
  %11753 = vmatprep.mubr.bf16.mxu0 0
  %11754 = vmatmul.mubr.bf16.gmra.mrb[0].mxu0 %v11560
  %v11755 = vpop.f32.mrb[0].mxu0
  %v11756 = vadd.f32 0.0, %v11755
  %v11757 = vpop.f32.mrb[0].mxu0
  %v11758 = vpop.f32.mrb[0].mxu0
  %v11759 = vadd.f32 0.0, %v11758
  %v11760 = vpop.f32.mrb[0].mxu0
  %11761 = vmatprep.mubr.bf16.mxu0 0
  %11762 = vmatmul.mubr.bf16.gmra.mrb[0].mxu0 %v11563
  %v11763 = vpop.f32.mrb[0].mxu0
  %v11764 = vadd.f32 0.0, %v11763
  %v11765 = vpop.f32.mrb[0].mxu0
  %v11766 = vpop.f32.mrb[0].mxu0
  %v11767 = vadd.f32 0.0, %v11766
  %v11768 = vpop.f32.mrb[0].mxu0
  %11769 = vmatprep.mubr.bf16.mxu0 0
  %11770 = vmatmul.mubr.bf16.gmra.mrb[0].mxu0 %v11566
  %v11771 = vpop.f32.mrb[0].mxu0
  %v11772 = vadd.f32 0.0, %v11771
  %v11773 = vpop.f32.mrb[0].mxu0
  %v11774 = vpop.f32.mrb[0].mxu0
  %v11775 = vadd.f32 0.0, %v11774
  %v11776 = vpop.f32.mrb[0].mxu0
  %11777 = vmatprep.mubr.bf16.mxu0 0
  %11778 = vmatmul.mubr.bf16.gmra.mrb[0].mxu0 %v11569
  %v11779 = vpop.f32.mrb[0].mxu0
  %v11780 = vadd.f32 0.0, %v11779
  %v11781 = vpop.f32.mrb[0].mxu0
  %v11782 = vpop.f32.mrb[0].mxu0
  %v11783 = vadd.f32 0.0, %v11782
  %v11784 = vpop.f32.mrb[0].mxu0
  %11785 = vmatprep.mubr.bf16.mxu0 0
  %11786 = vmatmul.mubr.bf16.gmra.mrb[0].mxu0 %v11572
  %v11787 = vpop.f32.mrb[0].mxu0
  %v11788 = vadd.f32 0.0, %v11787
  %v11789 = vpop.f32.mrb[0].mxu0
  %v11790 = vpop.f32.mrb[0].mxu0
  %v11791 = vadd.f32 0.0, %v11790
  %v11792 = vpop.f32.mrb[0].mxu0
  %11793 = vmatprep.mubr.bf16.mxu0 0
  %11794 = vmatmul.mubr.bf16.gmra.mrb[0].mxu0 %v11575
  %v11795 = vpop.f32.mrb[0].mxu0
  %v11796 = vadd.f32 0.0, %v11795
  %v11797 = vpop.f32.mrb[0].mxu0
  %v11798 = vpop.f32.mrb[0].mxu0
  %v11799 = vadd.f32 0.0, %v11798
  %v11800 = vpop.f32.mrb[0].mxu0
  %11801 = vmatprep.mubr.bf16.mxu0 0
  %11802 = vmatmul.mubr.bf16.gmra.mrb[0].mxu0 %v11578
  %v11803 = vpop.f32.mrb[0].mxu0
  %v11804 = vadd.f32 0.0, %v11803
  %v11805 = vpop.f32.mrb[0].mxu0
  %v11806 = vpop.f32.mrb[0].mxu0
  %v11807 = vadd.f32 0.0, %v11806
  %v11808 = vpop.f32.mrb[0].mxu0
  %11809 = vmatprep.mubr.bf16.mxu0 0
  %11810 = vmatmul.mubr.bf16.gmra.mrb[0].mxu0 %v11581
  %v11811 = vpop.f32.mrb[0].mxu0
  %v11812 = vadd.f32 0.0, %v11811
  %v11813 = vpop.f32.mrb[0].mxu0
  %v11814 = vpop.f32.mrb[0].mxu0
  %v11815 = vadd.f32 0.0, %v11814
  %v11816 = vpop.f32.mrb[0].mxu0
  %11817 = vmatprep.mubr.bf16.mxu0 0
  %11818 = vmatmul.mubr.bf16.gmra.mrb[0].mxu0 %v11584
  %v11819 = vpop.f32.mrb[0].mxu0
  %v11820 = vadd.f32 0.0, %v11819
  %v11821 = vpop.f32.mrb[0].mxu0
  %v11822 = vpop.f32.mrb[0].mxu0
  %v11823 = vadd.f32 0.0, %v11822
  %v11824 = vpop.f32.mrb[0].mxu0
  %11825 = vmatprep.mubr.bf16.mxu0 0
  %11826 = vmatmul.mubr.bf16.gmra.mrb[0].mxu0 %v11587
  %v11827 = vpop.f32.mrb[0].mxu0
  %v11828 = vadd.f32 0.0, %v11827
  %v11829 = vpop.f32.mrb[0].mxu0
  %v11830 = vpop.f32.mrb[0].mxu0
  %v11831 = vadd.f32 0.0, %v11830
  %v11832 = vpop.f32.mrb[0].mxu0
  %11833 = vmatprep.mubr.bf16.mxu0 0
  %11834 = vmatmul.mubr.bf16.gmra.mrb[0].mxu0 %v11590
  %v11835 = vpop.f32.mrb[0].mxu0
  %v11836 = vadd.f32 0.0, %v11835
  %v11837 = vpop.f32.mrb[0].mxu0
  %v11838 = vpop.f32.mrb[0].mxu0
  %v11839 = vadd.f32 0.0, %v11838
  %v11840 = vpop.f32.mrb[0].mxu0
  %11841 = vmatprep.mubr.bf16.mxu0 0
  %11842 = vmatmul.mubr.bf16.gmra.mrb[0].mxu0 %v11593
  %v11843 = vpop.f32.mrb[0].mxu0
  %v11844 = vadd.f32 0.0, %v11843
  %v11845 = vpop.f32.mrb[0].mxu0
  %v11846 = vpop.f32.mrb[0].mxu0
  %v11847 = vadd.f32 0.0, %v11846
  %v11848 = vpop.f32.mrb[0].mxu0
  %11849 = vmatprep.mubr.bf16.mxu0 0
  %11850 = vmatmul.mubr.bf16.gmra.mrb[0].mxu0 %v11596
  %v11851 = vpop.f32.mrb[0].mxu0
  %v11852 = vadd.f32 0.0, %v11851
  %v11853 = vpop.f32.mrb[0].mxu0
  %v11854 = vpop.f32.mrb[0].mxu0
  %v11855 = vadd.f32 0.0, %v11854
  %v11856 = vpop.f32.mrb[0].mxu0
  %11857 = vmatprep.mubr.bf16.mxu0 0
  %11858 = vmatmul.mubr.bf16.gmra.mrb[0].mxu0 %v11599
  %v11859 = vpop.f32.mrb[0].mxu0
  %v11860 = vadd.f32 0.0, %v11859
  %v11861 = vpop.f32.mrb[0].mxu0
  %v11862 = vpop.f32.mrb[0].mxu0
  %v11863 = vadd.f32 0.0, %v11862
  %v11864 = vpop.f32.mrb[0].mxu0
  %11865 = vmatprep.mubr.bf16.mxu0 0
  %11866 = vmatmul.mubr.bf16.gmra.mrb[0].mxu0 %v11602
  %v11867 = vpop.f32.mrb[0].mxu0
  %v11868 = vadd.f32 0.0, %v11867
  %v11869 = vpop.f32.mrb[0].mxu0
  %v11870 = vpop.f32.mrb[0].mxu0
  %v11871 = vadd.f32 0.0, %v11870
  %v11872 = vpop.f32.mrb[0].mxu0
  %11873 = vmatprep.mubr.bf16.mxu0 0
  %11874 = vmatmul.mubr.bf16.gmra.mrb[0].mxu0 %v11605
  %v11875 = vpop.f32.mrb[0].mxu0
  %v11876 = vadd.f32 0.0, %v11875
  %v11877 = vpop.f32.mrb[0].mxu0
  %v11878 = vpop.f32.mrb[0].mxu0
  %v11879 = vadd.f32 0.0, %v11878
  %v11880 = vpop.f32.mrb[0].mxu0
  %11881 = vmatprep.mubr.bf16.mxu0 0
  %11882 = vmatmul.mubr.bf16.gmra.mrb[0].mxu0 %v11608
  %v11883 = vpop.f32.mrb[0].mxu0
  %v11884 = vadd.f32 0.0, %v11883
  %v11885 = vpop.f32.mrb[0].mxu0
  %v11886 = vpop.f32.mrb[0].mxu0
  %v11887 = vadd.f32 0.0, %v11886
  %v11888 = vpop.f32.mrb[0].mxu0
  %11889 = vmatprep.mubr.bf16.mxu0 0
  %11890 = vmatmul.mubr.bf16.gmra.mrb[0].mxu0 %v11611
  %v11891 = vpop.f32.mrb[0].mxu0
  %v11892 = vadd.f32 0.0, %v11891
  %v11893 = vpop.f32.mrb[0].mxu0
  %v11894 = vpop.f32.mrb[0].mxu0
  %v11895 = vadd.f32 0.0, %v11894
  %v11896 = vpop.f32.mrb[0].mxu0
  %11897 = vmatprep.mubr.bf16.mxu0 0
  %11898 = vmatmul.mubr.bf16.gmra.mrb[0].mxu0 %v11614
  %v11899 = vpop.f32.mrb[0].mxu0
  %v11900 = vadd.f32 0.0, %v11899
  %v11901 = vpop.f32.mrb[0].mxu0
  %v11902 = vpop.f32.mrb[0].mxu0
  %v11903 = vadd.f32 0.0, %v11902
  %v11904 = vpop.f32.mrb[0].mxu0
  %11905 = vmatprep.mubr.bf16.mxu0 0
  %11906 = vmatmul.mubr.bf16.gmra.mrb[0].mxu0 %v11617
  %v11907 = vpop.f32.mrb[0].mxu0
  %v11908 = vadd.f32 0.0, %v11907
  %v11909 = vpop.f32.mrb[0].mxu0
  %v11910 = vpop.f32.mrb[0].mxu0
  %v11911 = vadd.f32 0.0, %v11910
  %v11912 = vpop.f32.mrb[0].mxu0
  %11913 = vmatprep.mubr.bf16.mxu0 0
  %11914 = vmatmul.mubr.bf16.gmra.mrb[0].mxu0 %v11620
  %v11915 = vpop.f32.mrb[0].mxu0
  %v11916 = vadd.f32 0.0, %v11915
  %v11917 = vpop.f32.mrb[0].mxu0
  %v11918 = vpop.f32.mrb[0].mxu0
  %v11919 = vadd.f32 0.0, %v11918
  %v11920 = vpop.f32.mrb[0].mxu0
  %11921 = vmatprep.mubr.bf16.mxu0 0
  %11922 = vmatmul.mubr.bf16.gmra.mrb[0].mxu0 %v11623
  %v11923 = vpop.f32.mrb[0].mxu0
  %v11924 = vadd.f32 0.0, %v11923
  %v11925 = vpop.f32.mrb[0].mxu0
  %v11926 = vpop.f32.mrb[0].mxu0
  %v11927 = vadd.f32 0.0, %v11926
  %v11928 = vpop.f32.mrb[0].mxu0
  %11929 = vmatprep.mubr.bf16.mxu0 0
  %11930 = vmatmul.mubr.bf16.gmra.mrb[0].mxu0 %v11626
  %v11931 = vpop.f32.mrb[0].mxu0
  %v11932 = vadd.f32 0.0, %v11931
  %v11933 = vpop.f32.mrb[0].mxu0
  %v11934 = vpop.f32.mrb[0].mxu0
  %v11935 = vadd.f32 0.0, %v11934
  %v11936 = vpop.f32.mrb[0].mxu0
  %11937 = vmatprep.mubr.bf16.mxu0 0
  %11938 = vmatmul.mubr.bf16.gmra.mrb[0].mxu0 %v11629
  %v11939 = vpop.f32.mrb[0].mxu0
  %v11940 = vadd.f32 0.0, %v11939
  %v11941 = vpop.f32.mrb[0].mxu0
  %v11942 = vpop.f32.mrb[0].mxu0
  %v11943 = vadd.f32 0.0, %v11942
  %v11944 = vpop.f32.mrb[0].mxu0
  %11945 = vmatprep.mubr.bf16.mxu0 0
  %11946 = vmatmul.mubr.bf16.gmra.mrb[0].mxu0 %v11632
  %v11947 = vpop.f32.mrb[0].mxu0
  %v11948 = vadd.f32 0.0, %v11947
  %v11949 = vpop.f32.mrb[0].mxu0
  %v11950 = vpop.f32.mrb[0].mxu0
  %v11951 = vadd.f32 0.0, %v11950
  %v11952 = vpop.f32.mrb[0].mxu0
  %11953 = vmatprep.mubr.bf16.mxu0 0
  %11954 = vmatmul.mubr.bf16.gmra.mrb[0].mxu0 %v11635
  %v11955 = vpop.f32.mrb[0].mxu0
  %v11956 = vadd.f32 0.0, %v11955
  %v11957 = vpop.f32.mrb[0].mxu0
  %v11958 = vpop.f32.mrb[0].mxu0
  %v11959 = vadd.f32 0.0, %v11958
  %v11960 = vpop.f32.mrb[0].mxu0
  %11961 = vmatprep.mubr.bf16.mxu0 0
  %11962 = vmatmul.mubr.bf16.gmra.mrb[0].mxu0 %v11638
  %v11963 = vpop.f32.mrb[0].mxu0
  %v11964 = vadd.f32 0.0, %v11963
  %v11965 = vpop.f32.mrb[0].mxu0
  %v11966 = vpop.f32.mrb[0].mxu0
  %v11967 = vadd.f32 0.0, %v11966
  %v11968 = vpop.f32.mrb[0].mxu0
  %11969 = vmatprep.mubr.bf16.mxu0 0
  %11970 = vmatmul.mubr.bf16.gmra.mrb[0].mxu0 %v11641
  %v11971 = vpop.f32.mrb[0].mxu0
  %v11972 = vadd.f32 0.0, %v11971
  %v11973 = vpop.f32.mrb[0].mxu0
  %v11974 = vpop.f32.mrb[0].mxu0
  %v11975 = vadd.f32 0.0, %v11974
  %v11976 = vpop.f32.mrb[0].mxu0
  %11977 = vmatprep.mubr.bf16.mxu0 0
  %11978 = vmatmul.mubr.bf16.gmra.mrb[0].mxu0 %v11644
  %v11979 = vpop.f32.mrb[0].mxu0
  %v11980 = vadd.f32 0.0, %v11979
  %v11981 = vpop.f32.mrb[0].mxu0
  %v11982 = vpop.f32.mrb[0].mxu0
  %v11983 = vadd.f32 0.0, %v11982
  %v11984 = vpop.f32.mrb[0].mxu0
  %11985 = vmatprep.mubr.bf16.mxu0 0
  %11986 = vmatmul.mubr.bf16.gmra.mrb[0].mxu0 %v11647
  %v11987 = vpop.f32.mrb[0].mxu0
  %v11988 = vadd.f32 0.0, %v11987
  %v11989 = vpop.f32.mrb[0].mxu0
  %v11990 = vpop.f32.mrb[0].mxu0
  %v11991 = vpop.f32.mrb[0].mxu0
  %11992 = vdwg.mxu0
  %v11993 = vld [vmem:[%s9] sm:$0x1]
  %v11994 = vld [vmem:[%s10] sm:$0x1]
  %v11995 = vadd.f32 %v11684, %v11687
  %v11996 = vadd.f32 %v11995, %v11692
  %v11997 = vadd.f32 %v11996, %v11695
  %v11998 = vadd.f32 %v11997, %v11700
  %v11999 = vadd.f32 %v11998, %v11703
  %v12000 = vadd.f32 %v11999, %v11708
  %v12001 = vadd.f32 %v12000, %v11711
  %v12002 = vadd.f32 %v12001, %v11716
  %v12003 = vadd.f32 %v12002, %v11719
  %v12004 = vadd.f32 %v12003, %v11724
  %v12005 = vadd.f32 %v12004, %v11727
  %v12006 = vadd.f32 %v12005, %v11732
  %v12007 = vadd.f32 %v12006, %v11735
  %v12008 = vadd.f32 %v12007, %v11740
  %v12009 = vadd.f32 %v12008, %v11743
  %v12010 = vadd.f32 %v12009, %v11748
  %v12011 = vadd.f32 %v12010, %v11751
  %v12012 = vadd.f32 %v12011, %v11756
  %v12013 = vadd.f32 %v12012, %v11759
  %v12014 = vadd.f32 %v12013, %v11764
  %v12015 = vadd.f32 %v12014, %v11767
  %v12016 = vadd.f32 %v12015, %v11772
  %v12017 = vadd.f32 %v12016, %v11775
  %v12018 = vadd.f32 %v12017, %v11780
  %v12019 = vadd.f32 %v12018, %v11783
  %v12020 = vadd.f32 %v12019, %v11788
  %v12021 = vadd.f32 %v12020, %v11791
  %v12022 = vadd.f32 %v12021, %v11796
  %v12023 = vadd.f32 %v12022, %v11799
  %v12024 = vadd.f32 %v12023, %v11804
  %v12025 = vadd.f32 %v12024, %v11807
  %v12026 = vadd.f32 %v12025, %v11812
  %v12027 = vadd.f32 %v12026, %v11815
  %v12028 = vadd.f32 %v12027, %v11820
  %v12029 = vadd.f32 %v12028, %v11823
  %v12030 = vadd.f32 %v12029, %v11828
  %v12031 = vadd.f32 %v12030, %v11831
  %v12032 = vadd.f32 %v12031, %v11836
  %v12033 = vadd.f32 %v12032, %v11839
  %v12034 = vadd.f32 %v12033, %v11844
  %v12035 = vadd.f32 %v12034, %v11847
  %v12036 = vadd.f32 %v12035, %v11852
  %v12037 = vadd.f32 %v12036, %v11855
  %v12038 = vadd.f32 %v12037, %v11860
  %v12039 = vadd.f32 %v12038, %v11863
  %v12040 = vadd.f32 %v12039, %v11868
  %v12041 = vadd.f32 %v12040, %v11871
  %v12042 = vadd.f32 %v12041, %v11876
  %v12043 = vadd.f32 %v12042, %v11879
  %v12044 = vadd.f32 %v12043, %v11884
  %v12045 = vadd.f32 %v12044, %v11887
  %v12046 = vadd.f32 %v12045, %v11892
  %v12047 = vadd.f32 %v12046, %v11895
  %v12048 = vadd.f32 %v12047, %v11900
  %v12049 = vadd.f32 %v12048, %v11903
  %v12050 = vadd.f32 %v12049, %v11908
  %v12051 = vadd.f32 %v12050, %v11911
  %v12052 = vadd.f32 %v12051, %v11916
  %v12053 = vadd.f32 %v12052, %v11919
  %v12054 = vadd.f32 %v12053, %v11924
  %v12055 = vadd.f32 %v12054, %v11927
  %v12056 = vadd.f32 %v12055, %v11932
  %v12057 = vadd.f32 %v12056, %v11935
  %v12058 = vadd.f32 %v12057, %v11940
  %v12059 = vadd.f32 %v12058, %v11943
  %v12060 = vadd.f32 %v12059, %v11948
  %v12061 = vadd.f32 %v12060, %v11951
  %v12062 = vadd.f32 %v12061, %v11956
  %v12063 = vadd.f32 %v12062, %v11959
  %v12064 = vadd.f32 %v12063, %v11964
  %v12065 = vadd.f32 %v12064, %v11967
  %v12066 = vadd.f32 %v12065, %v11972
  %v12067 = vadd.f32 %v12066, %v11975
  %v12068 = vadd.f32 %v12067, %v11980
  %v12069 = vadd.f32 %v12068, %v11983
  %vm12070 = vcmask 1043456
  %v12071 = vsel %vm12070, %v11988, 0.0
  %v12072 = vadd.f32 %v12069, %v12071
  %v12073 = vrot.slane %v12072, 4
  %v12074 = vadd.f32 %v12072, %v12073
  %v12075 = vrot.slane %v12074, 2
  %v12076 = vadd.f32 %v12074, %v12075
  %v12077 = vrot.slane %v12076, 1
  %v12078 = vadd.f32 %v12076, %v12077
  %v12079 = vmul.f32 %v11684, %v11684
  %v12080 = vmul.f32 %v11687, %v11687
  %v12081 = vmul.f32 %v11692, %v11692
  %v12082 = vmul.f32 %v11695, %v11695
  %v12083 = vmul.f32 %v11700, %v11700
  %v12084 = vmul.f32 %v11703, %v11703
  %v12085 = vmul.f32 %v11708, %v11708
  %v12086 = vmul.f32 %v11711, %v11711
  %v12087 = vmul.f32 %v11716, %v11716
  %v12088 = vmul.f32 %v11719, %v11719
  %v12089 = vmul.f32 %v11724, %v11724
  %v12090 = vmul.f32 %v11727, %v11727
  %v12091 = vmul.f32 %v11732, %v11732
  %v12092 = vmul.f32 %v11735, %v11735
  %v12093 = vmul.f32 %v11740, %v11740
  %v12094 = vmul.f32 %v11743, %v11743
  %v12095 = vmul.f32 %v11748, %v11748
  %v12096 = vmul.f32 %v11751, %v11751
  %v12097 = vmul.f32 %v11756, %v11756
  %v12098 = vmul.f32 %v11759, %v11759
  %v12099 = vmul.f32 %v11764, %v11764
  %v12100 = vmul.f32 %v11767, %v11767
  %v12101 = vmul.f32 %v11772, %v11772
  %v12102 = vmul.f32 %v11775, %v11775
  %v12103 = vmul.f32 %v11780, %v11780
  %v12104 = vmul.f32 %v11783, %v11783
  %v12105 = vmul.f32 %v11788, %v11788
  %v12106 = vmul.f32 %v11791, %v11791
  %v12107 = vmul.f32 %v11796, %v11796
  %v12108 = vmul.f32 %v11799, %v11799
  %v12109 = vmul.f32 %v11804, %v11804
  %v12110 = vmul.f32 %v11807, %v11807
  %v12111 = vmul.f32 %v11812, %v11812
  %v12112 = vmul.f32 %v11815, %v11815
  %v12113 = vmul.f32 %v11820, %v11820
  %v12114 = vmul.f32 %v11823, %v11823
  %v12115 = vmul.f32 %v11828, %v11828
  %v12116 = vmul.f32 %v11831, %v11831
  %v12117 = vmul.f32 %v11836, %v11836
  %v12118 = vmul.f32 %v11839, %v11839
  %v12119 = vmul.f32 %v11844, %v11844
  %v12120 = vmul.f32 %v11847, %v11847
  %v12121 = vmul.f32 %v11852, %v11852
  %v12122 = vmul.f32 %v11855, %v11855
  %v12123 = vmul.f32 %v11860, %v11860
  %v12124 = vmul.f32 %v11863, %v11863
  %v12125 = vmul.f32 %v11868, %v11868
  %v12126 = vmul.f32 %v11871, %v11871
  %v12127 = vmul.f32 %v11876, %v11876
  %v12128 = vmul.f32 %v11879, %v11879
  %v12129 = vmul.f32 %v11884, %v11884
  %v12130 = vmul.f32 %v11887, %v11887
  %v12131 = vmul.f32 %v11892, %v11892
  %v12132 = vmul.f32 %v11895, %v11895
  %v12133 = vmul.f32 %v11900, %v11900
  %v12134 = vmul.f32 %v11903, %v11903
  %v12135 = vmul.f32 %v11908, %v11908
  %v12136 = vmul.f32 %v11911, %v11911
  %v12137 = vmul.f32 %v11916, %v11916
  %v12138 = vmul.f32 %v11919, %v11919
  %v12139 = vmul.f32 %v11924, %v11924
  %v12140 = vmul.f32 %v11927, %v11927
  %v12141 = vmul.f32 %v11932, %v11932
  %v12142 = vmul.f32 %v11935, %v11935
  %v12143 = vmul.f32 %v11940, %v11940
  %v12144 = vmul.f32 %v11943, %v11943
  %v12145 = vmul.f32 %v11948, %v11948
  %v12146 = vmul.f32 %v11951, %v11951
  %v12147 = vmul.f32 %v11956, %v11956
  %v12148 = vmul.f32 %v11959, %v11959
  %v12149 = vmul.f32 %v11964, %v11964
  %v12150 = vmul.f32 %v11967, %v11967
  %v12151 = vmul.f32 %v11972, %v11972
  %v12152 = vmul.f32 %v11975, %v11975
  %v12153 = vmul.f32 %v11980, %v11980
  %v12154 = vmul.f32 %v11983, %v11983
  %v12155 = vmul.f32 %v11988, %v11988
  %v12156 = vadd.f32 %v12079, %v12080
  %v12157 = vadd.f32 %v12156, %v12081
  %v12158 = vadd.f32 %v12157, %v12082
  %v12159 = vadd.f32 %v12158, %v12083
  %v12160 = vadd.f32 %v12159, %v12084
  %v12161 = vadd.f32 %v12160, %v12085
  %v12162 = vadd.f32 %v12161, %v12086
  %v12163 = vadd.f32 %v12162, %v12087
  %v12164 = vadd.f32 %v12163, %v12088
  %v12165 = vadd.f32 %v12164, %v12089
  %v12166 = vadd.f32 %v12165, %v12090
  %v12167 = vadd.f32 %v12166, %v12091
  %v12168 = vadd.f32 %v12167, %v12092
  %v12169 = vadd.f32 %v12168, %v12093
  %v12170 = vadd.f32 %v12169, %v12094
  %v12171 = vadd.f32 %v12170, %v12095
  %v12172 = vadd.f32 %v12171, %v12096
  %v12173 = vadd.f32 %v12172, %v12097
  %v12174 = vadd.f32 %v12173, %v12098
  %v12175 = vadd.f32 %v12174, %v12099
  %v12176 = vadd.f32 %v12175, %v12100
  %v12177 = vadd.f32 %v12176, %v12101
  %v12178 = vadd.f32 %v12177, %v12102
  %v12179 = vadd.f32 %v12178, %v12103
  %v12180 = vadd.f32 %v12179, %v12104
  %v12181 = vadd.f32 %v12180, %v12105
  %v12182 = vadd.f32 %v12181, %v12106
  %v12183 = vadd.f32 %v12182, %v12107
  %v12184 = vadd.f32 %v12183, %v12108
  %v12185 = vadd.f32 %v12184, %v12109
  %v12186 = vadd.f32 %v12185, %v12110
  %v12187 = vadd.f32 %v12186, %v12111
  %v12188 = vadd.f32 %v12187, %v12112
  %v12189 = vadd.f32 %v12188, %v12113
  %v12190 = vadd.f32 %v12189, %v12114
  %v12191 = vadd.f32 %v12190, %v12115
  %v12192 = vadd.f32 %v12191, %v12116
  %v12193 = vadd.f32 %v12192, %v12117
  %v12194 = vadd.f32 %v12193, %v12118
  %v12195 = vadd.f32 %v12194, %v12119
  %v12196 = vadd.f32 %v12195, %v12120
  %v12197 = vadd.f32 %v12196, %v12121
  %v12198 = vadd.f32 %v12197, %v12122
  %v12199 = vadd.f32 %v12198, %v12123
  %v12200 = vadd.f32 %v12199, %v12124
  %v12201 = vadd.f32 %v12200, %v12125
  %v12202 = vadd.f32 %v12201, %v12126
  %v12203 = vadd.f32 %v12202, %v12127
  %v12204 = vadd.f32 %v12203, %v12128
  %v12205 = vadd.f32 %v12204, %v12129
  %v12206 = vadd.f32 %v12205, %v12130
  %v12207 = vadd.f32 %v12206, %v12131
  %v12208 = vadd.f32 %v12207, %v12132
  %v12209 = vadd.f32 %v12208, %v12133
  %v12210 = vadd.f32 %v12209, %v12134
  %v12211 = vadd.f32 %v12210, %v12135
  %v12212 = vadd.f32 %v12211, %v12136
  %v12213 = vadd.f32 %v12212, %v12137
  %v12214 = vadd.f32 %v12213, %v12138
  %v12215 = vadd.f32 %v12214, %v12139
  %v12216 = vadd.f32 %v12215, %v12140
  %v12217 = vadd.f32 %v12216, %v12141
  %v12218 = vadd.f32 %v12217, %v12142
  %v12219 = vadd.f32 %v12218, %v12143
  %v12220 = vadd.f32 %v12219, %v12144
  %v12221 = vadd.f32 %v12220, %v12145
  %v12222 = vadd.f32 %v12221, %v12146
  %v12223 = vadd.f32 %v12222, %v12147
  %v12224 = vadd.f32 %v12223, %v12148
  %v12225 = vadd.f32 %v12224, %v12149
  %v12226 = vadd.f32 %v12225, %v12150
  %v12227 = vadd.f32 %v12226, %v12151
  %v12228 = vadd.f32 %v12227, %v12152
  %v12229 = vadd.f32 %v12228, %v12153
  %v12230 = vadd.f32 %v12229, %v12154
  %v12231 = vsel %vm12070, %v12155, 0.0
  %v12232 = vadd.f32 %v12230, %v12231
  %v12233 = vrot.slane %v12232, 4
  %v12234 = vadd.f32 %v12232, %v12233
  %v12235 = vrot.slane %v12234, 2
  %v12236 = vadd.f32 %v12234, %v12235
  %v12237 = vrot.slane %v12236, 1
  %v12238 = vadd.f32 %v12236, %v12237
  %v12239 = vmul.f32 %v12078, 0.001953125
  %v12240 = vmul.f32 %v12238, 0.001953125
  %v12241 = vmul.f32 %v12239, %v12239
  %v12242 = vsub.f32 %v12240, %v12241
  %v12243 = vadd.f32 %v12242, 1e-05
  %v12244 = vrsqrt.pop %v12243
  %v12245 = vmul.f32 %v11993, %v12244
  %v12246 = vmul.f32 %v12239, %v12245
  %v12247 = vsub.f32 %v11994, %v12246
  %v12249 = vlaneseq
  %v12250 = vshrl.u32 %v12249, 7
  %v12251 = vsub.s32 0, %v12250
  %v12252 = vrot.slane %v12245, %v12251
  %v12254 = vmul.f32 %v11684, %v12252
  %v12255 = vmul.f32 %v11687, %v12252
  %v12256 = vmul.f32 %v11692, %v12252
  %v12257 = vmul.f32 %v11695, %v12252
  %v12258 = vmul.f32 %v11700, %v12252
  %v12259 = vmul.f32 %v11703, %v12252
  %v12260 = vmul.f32 %v11708, %v12252
  %v12261 = vmul.f32 %v11711, %v12252
  %v12262 = vmul.f32 %v11716, %v12252
  %v12263 = vmul.f32 %v11719, %v12252
  %v12264 = vmul.f32 %v11724, %v12252
  %v12265 = vmul.f32 %v11727, %v12252
  %v12266 = vmul.f32 %v11732, %v12252
  %v12267 = vmul.f32 %v11735, %v12252
  %v12268 = vmul.f32 %v11740, %v12252
  %v12269 = vmul.f32 %v11743, %v12252
  %v12270 = vmul.f32 %v11748, %v12252
  %v12271 = vmul.f32 %v11751, %v12252
  %v12272 = vmul.f32 %v11756, %v12252
  %v12273 = vmul.f32 %v11759, %v12252
  %v12274 = vmul.f32 %v11764, %v12252
  %v12275 = vmul.f32 %v11767, %v12252
  %v12276 = vmul.f32 %v11772, %v12252
  %v12277 = vmul.f32 %v11775, %v12252
  %v12278 = vmul.f32 %v11780, %v12252
  %v12279 = vmul.f32 %v11783, %v12252
  %v12280 = vmul.f32 %v11788, %v12252
  %v12281 = vmul.f32 %v11791, %v12252
  %v12282 = vmul.f32 %v11796, %v12252
  %v12283 = vmul.f32 %v11799, %v12252
  %v12284 = vmul.f32 %v11804, %v12252
  %v12285 = vmul.f32 %v11807, %v12252
  %v12286 = vmul.f32 %v11812, %v12252
  %v12287 = vmul.f32 %v11815, %v12252
  %v12288 = vmul.f32 %v11820, %v12252
  %v12289 = vmul.f32 %v11823, %v12252
  %v12290 = vmul.f32 %v11828, %v12252
  %v12291 = vmul.f32 %v11831, %v12252
  %v12292 = vmul.f32 %v11836, %v12252
  %v12293 = vmul.f32 %v11839, %v12252
  %v12294 = vmul.f32 %v11844, %v12252
  %v12295 = vmul.f32 %v11847, %v12252
  %v12296 = vmul.f32 %v11852, %v12252
  %v12297 = vmul.f32 %v11855, %v12252
  %v12298 = vmul.f32 %v11860, %v12252
  %v12299 = vmul.f32 %v11863, %v12252
  %v12300 = vmul.f32 %v11868, %v12252
  %v12301 = vmul.f32 %v11871, %v12252
  %v12302 = vmul.f32 %v11876, %v12252
  %v12303 = vmul.f32 %v11879, %v12252
  %v12304 = vmul.f32 %v11884, %v12252
  %v12305 = vmul.f32 %v11887, %v12252
  %v12306 = vmul.f32 %v11892, %v12252
  %v12307 = vmul.f32 %v11895, %v12252
  %v12308 = vmul.f32 %v11900, %v12252
  %v12309 = vmul.f32 %v11903, %v12252
  %v12310 = vmul.f32 %v11908, %v12252
  %v12311 = vmul.f32 %v11911, %v12252
  %v12312 = vmul.f32 %v11916, %v12252
  %v12313 = vmul.f32 %v11919, %v12252
  %v12314 = vmul.f32 %v11924, %v12252
  %v12315 = vmul.f32 %v11927, %v12252
  %v12316 = vmul.f32 %v11932, %v12252
  %v12317 = vmul.f32 %v11935, %v12252
  %v12318 = vmul.f32 %v11940, %v12252
  %v12319 = vmul.f32 %v11943, %v12252
  %v12320 = vmul.f32 %v11948, %v12252
  %v12321 = vmul.f32 %v11951, %v12252
  %v12322 = vmul.f32 %v11956, %v12252
  %v12323 = vmul.f32 %v11959, %v12252
  %v12324 = vmul.f32 %v11964, %v12252
  %v12325 = vmul.f32 %v11967, %v12252
  %v12326 = vmul.f32 %v11972, %v12252
  %v12327 = vmul.f32 %v11975, %v12252
  %v12328 = vmul.f32 %v11980, %v12252
  %v12329 = vmul.f32 %v11983, %v12252
  %v12330 = vmul.f32 %v11988, %v12252
  %v12332 = vlaneseq
  %v12333 = vshrl.u32 %v12332, 7
  %v12334 = vsub.s32 0, %v12333
  %v12335 = vrot.slane %v12247, %v12334
  %v12337 = vadd.f32 %v12254, %v12335
  %v12338 = vadd.f32 %v12255, %v12335
  %v12339 = vadd.f32 %v12256, %v12335
  %v12340 = vadd.f32 %v12257, %v12335
  %v12341 = vadd.f32 %v12258, %v12335
  %v12342 = vadd.f32 %v12259, %v12335
  %v12343 = vadd.f32 %v12260, %v12335
  %v12344 = vadd.f32 %v12261, %v12335
  %v12345 = vadd.f32 %v12262, %v12335
  %v12346 = vadd.f32 %v12263, %v12335
  %v12347 = vadd.f32 %v12264, %v12335
  %v12348 = vadd.f32 %v12265, %v12335
  %v12349 = vadd.f32 %v12266, %v12335
  %v12350 = vadd.f32 %v12267, %v12335
  %v12351 = vadd.f32 %v12268, %v12335
  %v12352 = vadd.f32 %v12269, %v12335
  %v12353 = vadd.f32 %v12270, %v12335
  %v12354 = vadd.f32 %v12271, %v12335
  %v12355 = vadd.f32 %v12272, %v12335
  %v12356 = vadd.f32 %v12273, %v12335
  %v12357 = vadd.f32 %v12274, %v12335
  %v12358 = vadd.f32 %v12275, %v12335
  %v12359 = vadd.f32 %v12276, %v12335
  %v12360 = vadd.f32 %v12277, %v12335
  %v12361 = vadd.f32 %v12278, %v12335
  %v12362 = vadd.f32 %v12279, %v12335
  %v12363 = vadd.f32 %v12280, %v12335
  %v12364 = vadd.f32 %v12281, %v12335
  %v12365 = vadd.f32 %v12282, %v12335
  %v12366 = vadd.f32 %v12283, %v12335
  %v12367 = vadd.f32 %v12284, %v12335
  %v12368 = vadd.f32 %v12285, %v12335
  %v12369 = vadd.f32 %v12286, %v12335
  %v12370 = vadd.f32 %v12287, %v12335
  %v12371 = vadd.f32 %v12288, %v12335
  %v12372 = vadd.f32 %v12289, %v12335
  %v12373 = vadd.f32 %v12290, %v12335
  %v12374 = vadd.f32 %v12291, %v12335
  %v12375 = vadd.f32 %v12292, %v12335
  %v12376 = vadd.f32 %v12293, %v12335
  %v12377 = vadd.f32 %v12294, %v12335
  %v12378 = vadd.f32 %v12295, %v12335
  %v12379 = vadd.f32 %v12296, %v12335
  %v12380 = vadd.f32 %v12297, %v12335
  %v12381 = vadd.f32 %v12298, %v12335
  %v12382 = vadd.f32 %v12299, %v12335
  %v12383 = vadd.f32 %v12300, %v12335
  %v12384 = vadd.f32 %v12301, %v12335
  %v12385 = vadd.f32 %v12302, %v12335
  %v12386 = vadd.f32 %v12303, %v12335
  %v12387 = vadd.f32 %v12304, %v12335
  %v12388 = vadd.f32 %v12305, %v12335
  %v12389 = vadd.f32 %v12306, %v12335
  %v12390 = vadd.f32 %v12307, %v12335
  %v12391 = vadd.f32 %v12308, %v12335
  %v12392 = vadd.f32 %v12309, %v12335
  %v12393 = vadd.f32 %v12310, %v12335
  %v12394 = vadd.f32 %v12311, %v12335
  %v12395 = vadd.f32 %v12312, %v12335
  %v12396 = vadd.f32 %v12313, %v12335
  %v12397 = vadd.f32 %v12314, %v12335
  %v12398 = vadd.f32 %v12315, %v12335
  %v12399 = vadd.f32 %v12316, %v12335
  %v12400 = vadd.f32 %v12317, %v12335
  %v12401 = vadd.f32 %v12318, %v12335
  %v12402 = vadd.f32 %v12319, %v12335
  %v12403 = vadd.f32 %v12320, %v12335
  %v12404 = vadd.f32 %v12321, %v12335
  %v12405 = vadd.f32 %v12322, %v12335
  %v12406 = vadd.f32 %v12323, %v12335
  %v12407 = vadd.f32 %v12324, %v12335
  %v12408 = vadd.f32 %v12325, %v12335
  %v12409 = vadd.f32 %v12326, %v12335
  %v12410 = vadd.f32 %v12327, %v12335
  %v12411 = vadd.f32 %v12328, %v12335
  %v12412 = vadd.f32 %v12329, %v12335
  %v12413 = vadd.f32 %v12330, %v12335
  %v12414 = vld [vmem:[%s0] sm:$0xf]
  %v12415 = vld [vmem:[%s0 + $0x4] sm:$0xf]
  %v12416 = vld [vmem:[%s0 + $0x8] sm:$0xf]
  %v12417 = vld [vmem:[%s0 + $0xc] sm:$0xf]
  %v12418 = vld [vmem:[%s0 + $0x10] sm:$0xf]
  %v12419 = vld [vmem:[%s0 + $0x14] sm:$0xf]
  %v12420 = vld [vmem:[%s0 + $0x18] sm:$0xf]
  %v12421 = vld [vmem:[%s0 + $0x1c] sm:$0xf]
  %v12422 = vld [vmem:[%s0 + $0x20] sm:$0xf]
  %v12423 = vld [vmem:[%s0 + $0x24] sm:$0xf]
  %v12424 = vld [vmem:[%s0 + $0x28] sm:$0xf]
  %v12425 = vld [vmem:[%s0 + $0x2c] sm:$0xf]
  %v12426 = vld [vmem:[%s0 + $0x30] sm:$0xf]
  %v12427 = vld [vmem:[%s0 + $0x34] sm:$0xf]
  %v12428 = vld [vmem:[%s0 + $0x38] sm:$0xf]
  %v12429 = vld [vmem:[%s0 + $0x3c] sm:$0xf]
  %v12430 = vld [vmem:[%s0 + $0x40] sm:$0xf]
  %v12431 = vld [vmem:[%s0 + $0x44] sm:$0xf]
  %v12432 = vld [vmem:[%s0 + $0x48] sm:$0xf]
  %v12433 = vld [vmem:[%s0 + $0x4c] sm:$0xf]
  %v12434 = vld [vmem:[%s0 + $0x50] sm:$0xf]
  %v12435 = vld [vmem:[%s0 + $0x54] sm:$0xf]
  %v12436 = vld [vmem:[%s0 + $0x58] sm:$0xf]
  %v12437 = vld [vmem:[%s0 + $0x5c] sm:$0xf]
  %v12438 = vld [vmem:[%s0 + $0x60] sm:$0xf]
  %v12439 = vld [vmem:[%s0 + $0x64] sm:$0xf]
  %v12440 = vld [vmem:[%s0 + $0x68] sm:$0xf]
  %v12441 = vld [vmem:[%s0 + $0x6c] sm:$0xf]
  %v12442 = vld [vmem:[%s0 + $0x70] sm:$0xf]
  %v12443 = vld [vmem:[%s0 + $0x74] sm:$0xf]
  %v12444 = vld [vmem:[%s0 + $0x78] sm:$0xf]
  %v12445 = vld [vmem:[%s0 + $0x7c] sm:$0xf]
  %v12446 = vld [vmem:[%s0 + $0x80] sm:$0xf]
  %v12447 = vld [vmem:[%s0 + $0x84] sm:$0xf]
  %v12448 = vld [vmem:[%s0 + $0x88] sm:$0xf]
  %v12449 = vld [vmem:[%s0 + $0x8c] sm:$0xf]
  %v12450 = vld [vmem:[%s0 + $0x90] sm:$0xf]
  %v12451 = vld [vmem:[%s0 + $0x94] sm:$0xf]
  %v12452 = vld [vmem:[%s0 + $0x98] sm:$0xf]
  %v12453 = vld [vmem:[%s0 + $0x9c] sm:$0xf]
  %v12454 = vld [vmem:[%s0 + $0xa0] sm:$0xf]
  %v12455 = vld [vmem:[%s0 + $0xa4] sm:$0xf]
  %v12456 = vld [vmem:[%s0 + $0xa8] sm:$0xf]
  %v12457 = vld [vmem:[%s0 + $0xac] sm:$0xf]
  %v12458 = vld [vmem:[%s0 + $0xb0] sm:$0xf]
  %v12459 = vld [vmem:[%s0 + $0xb4] sm:$0xf]
  %v12460 = vld [vmem:[%s0 + $0xb8] sm:$0xf]
  %v12461 = vld [vmem:[%s0 + $0xbc] sm:$0xf]
  %v12462 = vld [vmem:[%s0 + $0xc0] sm:$0xf]
  %v12463 = vld [vmem:[%s0 + $0xc4] sm:$0xf]
  %v12464 = vld [vmem:[%s0 + $0xc8] sm:$0xf]
  %v12465 = vld [vmem:[%s0 + $0xcc] sm:$0xf]
  %v12466 = vld [vmem:[%s0 + $0xd0] sm:$0xf]
  %v12467 = vld [vmem:[%s0 + $0xd4] sm:$0xf]
  %v12468 = vld [vmem:[%s0 + $0xd8] sm:$0xf]
  %v12469 = vld [vmem:[%s0 + $0xdc] sm:$0xf]
  %v12470 = vld [vmem:[%s0 + $0xe0] sm:$0xf]
  %v12471 = vld [vmem:[%s0 + $0xe4] sm:$0xf]
  %v12472 = vld [vmem:[%s0 + $0xe8] sm:$0xf]
  %v12473 = vld [vmem:[%s0 + $0xec] sm:$0xf]
  %v12474 = vld [vmem:[%s0 + $0xf0] sm:$0xf]
  %v12475 = vld [vmem:[%s0 + $0xf4] sm:$0xf]
  %v12476 = vld [vmem:[%s0 + $0xf8] sm:$0xf]
  %v12477 = vld [vmem:[%s0 + $0xfc] sm:$0xf]
  %v12478 = vld [vmem:[%s0 + $0x100] sm:$0xf]
  %v12479 = vld [vmem:[%s0 + $0x104] sm:$0xf]
  %v12480 = vld [vmem:[%s0 + $0x108] sm:$0xf]
  %v12481 = vld [vmem:[%s0 + $0x10c] sm:$0xf]
  %v12482 = vld [vmem:[%s0 + $0x110] sm:$0xf]
  %v12483 = vld [vmem:[%s0 + $0x114] sm:$0xf]
  %v12484 = vld [vmem:[%s0 + $0x118] sm:$0xf]
  %v12485 = vld [vmem:[%s0 + $0x11c] sm:$0xf]
  %v12486 = vld [vmem:[%s0 + $0x120] sm:$0xf]
  %v12487 = vld [vmem:[%s0 + $0x124] sm:$0xf]
  %v12488 = vld [vmem:[%s0 + $0x128] sm:$0xf]
  %v12489 = vld [vmem:[%s0 + $0x12c] sm:$0xf]
  %v12490 = vld [vmem:[%s0 + $0x130] sm:$0x3]
  %v12491 = vunpack.c.l.bf16 %v12414
  %v12492 = vunpack.c.l.bf16 %v12415
  %v12493 = vunpack.c.l.bf16 %v12416
  %v12494 = vunpack.c.l.bf16 %v12417
  %v12495 = vunpack.c.l.bf16 %v12418
  %v12496 = vunpack.c.l.bf16 %v12419
  %v12497 = vunpack.c.l.bf16 %v12420
  %v12498 = vunpack.c.l.bf16 %v12421
  %v12499 = vunpack.c.l.bf16 %v12422
  %v12500 = vunpack.c.l.bf16 %v12423
  %v12501 = vunpack.c.l.bf16 %v12424
  %v12502 = vunpack.c.l.bf16 %v12425
  %v12503 = vunpack.c.l.bf16 %v12426
  %v12504 = vunpack.c.l.bf16 %v12427
  %v12505 = vunpack.c.l.bf16 %v12428
  %v12506 = vunpack.c.l.bf16 %v12429
  %v12507 = vunpack.c.l.bf16 %v12430
  %v12508 = vunpack.c.l.bf16 %v12431
  %v12509 = vunpack.c.l.bf16 %v12432
  %v12510 = vunpack.c.l.bf16 %v12433
  %v12511 = vunpack.c.l.bf16 %v12434
  %v12512 = vunpack.c.l.bf16 %v12435
  %v12513 = vunpack.c.l.bf16 %v12436
  %v12514 = vunpack.c.l.bf16 %v12437
  %v12515 = vunpack.c.l.bf16 %v12438
  %v12516 = vunpack.c.l.bf16 %v12439
  %v12517 = vunpack.c.l.bf16 %v12440
  %v12518 = vunpack.c.l.bf16 %v12441
  %v12519 = vunpack.c.l.bf16 %v12442
  %v12520 = vunpack.c.l.bf16 %v12443
  %v12521 = vunpack.c.l.bf16 %v12444
  %v12522 = vunpack.c.l.bf16 %v12445
  %v12523 = vunpack.c.l.bf16 %v12446
  %v12524 = vunpack.c.l.bf16 %v12447
  %v12525 = vunpack.c.l.bf16 %v12448
  %v12526 = vunpack.c.l.bf16 %v12449
  %v12527 = vunpack.c.l.bf16 %v12450
  %v12528 = vunpack.c.l.bf16 %v12451
  %v12529 = vunpack.c.l.bf16 %v12452
  %v12530 = vunpack.c.l.bf16 %v12453
  %v12531 = vunpack.c.l.bf16 %v12454
  %v12532 = vunpack.c.l.bf16 %v12455
  %v12533 = vunpack.c.l.bf16 %v12456
  %v12534 = vunpack.c.l.bf16 %v12457
  %v12535 = vunpack.c.l.bf16 %v12458
  %v12536 = vunpack.c.l.bf16 %v12459
  %v12537 = vunpack.c.l.bf16 %v12460
  %v12538 = vunpack.c.l.bf16 %v12461
  %v12539 = vunpack.c.l.bf16 %v12462
  %v12540 = vunpack.c.l.bf16 %v12463
  %v12541 = vunpack.c.l.bf16 %v12464
  %v12542 = vunpack.c.l.bf16 %v12465
  %v12543 = vunpack.c.l.bf16 %v12466
  %v12544 = vunpack.c.l.bf16 %v12467
  %v12545 = vunpack.c.l.bf16 %v12468
  %v12546 = vunpack.c.l.bf16 %v12469
  %v12547 = vunpack.c.l.bf16 %v12470
  %v12548 = vunpack.c.l.bf16 %v12471
  %v12549 = vunpack.c.l.bf16 %v12472
  %v12550 = vunpack.c.l.bf16 %v12473
  %v12551 = vunpack.c.l.bf16 %v12474
  %v12552 = vunpack.c.l.bf16 %v12475
  %v12553 = vunpack.c.l.bf16 %v12476
  %v12554 = vunpack.c.l.bf16 %v12477
  %v12555 = vunpack.c.l.bf16 %v12478
  %v12556 = vunpack.c.l.bf16 %v12479
  %v12557 = vunpack.c.l.bf16 %v12480
  %v12558 = vunpack.c.l.bf16 %v12481
  %v12559 = vunpack.c.l.bf16 %v12482
  %v12560 = vunpack.c.l.bf16 %v12483
  %v12561 = vunpack.c.l.bf16 %v12484
  %v12562 = vunpack.c.l.bf16 %v12485
  %v12563 = vunpack.c.l.bf16 %v12486
  %v12564 = vunpack.c.l.bf16 %v12487
  %v12565 = vunpack.c.l.bf16 %v12488
  %v12566 = vunpack.c.l.bf16 %v12489
  %v12567 = vunpack.c.l.bf16 %v12490
  %v12568 = vadd.f32 %v12337, %v12491
  %v12569 = vadd.f32 %v12338, %v12492
  %v12570 = vadd.f32 %v12339, %v12493
  %v12571 = vadd.f32 %v12340, %v12494
  %v12572 = vadd.f32 %v12341, %v12495
  %v12573 = vadd.f32 %v12342, %v12496
  %v12574 = vadd.f32 %v12343, %v12497
  %v12575 = vadd.f32 %v12344, %v12498
  %v12576 = vadd.f32 %v12345, %v12499
  %v12577 = vadd.f32 %v12346, %v12500
  %v12578 = vadd.f32 %v12347, %v12501
  %v12579 = vadd.f32 %v12348, %v12502
  %v12580 = vadd.f32 %v12349, %v12503
  %v12581 = vadd.f32 %v12350, %v12504
  %v12582 = vadd.f32 %v12351, %v12505
  %v12583 = vadd.f32 %v12352, %v12506
  %v12584 = vadd.f32 %v12353, %v12507
  %v12585 = vadd.f32 %v12354, %v12508
  %v12586 = vadd.f32 %v12355, %v12509
  %v12587 = vadd.f32 %v12356, %v12510
  %v12588 = vadd.f32 %v12357, %v12511
  %v12589 = vadd.f32 %v12358, %v12512
  %v12590 = vadd.f32 %v12359, %v12513
  %v12591 = vadd.f32 %v12360, %v12514
  %v12592 = vadd.f32 %v12361, %v12515
  %v12593 = vadd.f32 %v12362, %v12516
  %v12594 = vadd.f32 %v12363, %v12517
  %v12595 = vadd.f32 %v12364, %v12518
  %v12596 = vadd.f32 %v12365, %v12519
  %v12597 = vadd.f32 %v12366, %v12520
  %v12598 = vadd.f32 %v12367, %v12521
  %v12599 = vadd.f32 %v12368, %v12522
  %v12600 = vadd.f32 %v12369, %v12523
  %v12601 = vadd.f32 %v12370, %v12524
  %v12602 = vadd.f32 %v12371, %v12525
  %v12603 = vadd.f32 %v12372, %v12526
  %v12604 = vadd.f32 %v12373, %v12527
  %v12605 = vadd.f32 %v12374, %v12528
  %v12606 = vadd.f32 %v12375, %v12529
  %v12607 = vadd.f32 %v12376, %v12530
  %v12608 = vadd.f32 %v12377, %v12531
  %v12609 = vadd.f32 %v12378, %v12532
  %v12610 = vadd.f32 %v12379, %v12533
  %v12611 = vadd.f32 %v12380, %v12534
  %v12612 = vadd.f32 %v12381, %v12535
  %v12613 = vadd.f32 %v12382, %v12536
  %v12614 = vadd.f32 %v12383, %v12537
  %v12615 = vadd.f32 %v12384, %v12538
  %v12616 = vadd.f32 %v12385, %v12539
  %v12617 = vadd.f32 %v12386, %v12540
  %v12618 = vadd.f32 %v12387, %v12541
  %v12619 = vadd.f32 %v12388, %v12542
  %v12620 = vadd.f32 %v12389, %v12543
  %v12621 = vadd.f32 %v12390, %v12544
  %v12622 = vadd.f32 %v12391, %v12545
  %v12623 = vadd.f32 %v12392, %v12546
  %v12624 = vadd.f32 %v12393, %v12547
  %v12625 = vadd.f32 %v12394, %v12548
  %v12626 = vadd.f32 %v12395, %v12549
  %v12627 = vadd.f32 %v12396, %v12550
  %v12628 = vadd.f32 %v12397, %v12551
  %v12629 = vadd.f32 %v12398, %v12552
  %v12630 = vadd.f32 %v12399, %v12553
  %v12631 = vadd.f32 %v12400, %v12554
  %v12632 = vadd.f32 %v12401, %v12555
  %v12633 = vadd.f32 %v12402, %v12556
  %v12634 = vadd.f32 %v12403, %v12557
  %v12635 = vadd.f32 %v12404, %v12558
  %v12636 = vadd.f32 %v12405, %v12559
  %v12637 = vadd.f32 %v12406, %v12560
  %v12638 = vadd.f32 %v12407, %v12561
  %v12639 = vadd.f32 %v12408, %v12562
  %v12640 = vadd.f32 %v12409, %v12563
  %v12641 = vadd.f32 %v12410, %v12564
  %v12642 = vadd.f32 %v12411, %v12565
  %v12643 = vadd.f32 %v12412, %v12566
  %v12644 = vadd.f32 %v12413, %v12567
  %v12645 = vmax.f32 %v12568, 0.0
  %v12646 = vmax.f32 %v12569, 0.0
  %v12647 = vmax.f32 %v12570, 0.0
  %v12648 = vmax.f32 %v12571, 0.0
  %v12649 = vmax.f32 %v12572, 0.0
  %v12650 = vmax.f32 %v12573, 0.0
  %v12651 = vmax.f32 %v12574, 0.0
  %v12652 = vmax.f32 %v12575, 0.0
  %v12653 = vmax.f32 %v12576, 0.0
  %v12654 = vmax.f32 %v12577, 0.0
  %v12655 = vmax.f32 %v12578, 0.0
  %v12656 = vmax.f32 %v12579, 0.0
  %v12657 = vmax.f32 %v12580, 0.0
  %v12658 = vmax.f32 %v12581, 0.0
  %v12659 = vmax.f32 %v12582, 0.0
  %v12660 = vmax.f32 %v12583, 0.0
  %v12661 = vmax.f32 %v12584, 0.0
  %v12662 = vmax.f32 %v12585, 0.0
  %v12663 = vmax.f32 %v12586, 0.0
  %v12664 = vmax.f32 %v12587, 0.0
  %v12665 = vmax.f32 %v12588, 0.0
  %v12666 = vmax.f32 %v12589, 0.0
  %v12667 = vmax.f32 %v12590, 0.0
  %v12668 = vmax.f32 %v12591, 0.0
  %v12669 = vmax.f32 %v12592, 0.0
  %v12670 = vmax.f32 %v12593, 0.0
  %v12671 = vmax.f32 %v12594, 0.0
  %v12672 = vmax.f32 %v12595, 0.0
  %v12673 = vmax.f32 %v12596, 0.0
  %v12674 = vmax.f32 %v12597, 0.0
  %v12675 = vmax.f32 %v12598, 0.0
  %v12676 = vmax.f32 %v12599, 0.0
  %v12677 = vmax.f32 %v12600, 0.0
  %v12678 = vmax.f32 %v12601, 0.0
  %v12679 = vmax.f32 %v12602, 0.0
  %v12680 = vmax.f32 %v12603, 0.0
  %v12681 = vmax.f32 %v12604, 0.0
  %v12682 = vmax.f32 %v12605, 0.0
  %v12683 = vmax.f32 %v12606, 0.0
  %v12684 = vmax.f32 %v12607, 0.0
  %v12685 = vmax.f32 %v12608, 0.0
  %v12686 = vmax.f32 %v12609, 0.0
  %v12687 = vmax.f32 %v12610, 0.0
  %v12688 = vmax.f32 %v12611, 0.0
  %v12689 = vmax.f32 %v12612, 0.0
  %v12690 = vmax.f32 %v12613, 0.0
  %v12691 = vmax.f32 %v12614, 0.0
  %v12692 = vmax.f32 %v12615, 0.0
  %v12693 = vmax.f32 %v12616, 0.0
  %v12694 = vmax.f32 %v12617, 0.0
  %v12695 = vmax.f32 %v12618, 0.0
  %v12696 = vmax.f32 %v12619, 0.0
  %v12697 = vmax.f32 %v12620, 0.0
  %v12698 = vmax.f32 %v12621, 0.0
  %v12699 = vmax.f32 %v12622, 0.0
  %v12700 = vmax.f32 %v12623, 0.0
  %v12701 = vmax.f32 %v12624, 0.0
  %v12702 = vmax.f32 %v12625, 0.0
  %v12703 = vmax.f32 %v12626, 0.0
  %v12704 = vmax.f32 %v12627, 0.0
  %v12705 = vmax.f32 %v12628, 0.0
  %v12706 = vmax.f32 %v12629, 0.0
  %v12707 = vmax.f32 %v12630, 0.0
  %v12708 = vmax.f32 %v12631, 0.0
  %v12709 = vmax.f32 %v12632, 0.0
  %v12710 = vmax.f32 %v12633, 0.0
  %v12711 = vmax.f32 %v12634, 0.0
  %v12712 = vmax.f32 %v12635, 0.0
  %v12713 = vmax.f32 %v12636, 0.0
  %v12714 = vmax.f32 %v12637, 0.0
  %v12715 = vmax.f32 %v12638, 0.0
  %v12716 = vmax.f32 %v12639, 0.0
  %v12717 = vmax.f32 %v12640, 0.0
  %v12718 = vmax.f32 %v12641, 0.0
  %v12719 = vmax.f32 %v12642, 0.0
  %v12720 = vmax.f32 %v12643, 0.0
  %v12721 = vmax.f32 %v12644, 0.0
  %12722 = vst [vmem:[%s11] sm:$0xff] %v12645
  %12723 = vst [vmem:[%s11 + $0x8] sm:$0xff] %v12646
  %12724 = vst [vmem:[%s11 + $0x10] sm:$0xff] %v12647
  %12725 = vst [vmem:[%s11 + $0x18] sm:$0xff] %v12648
  %12726 = vst [vmem:[%s11 + $0x20] sm:$0xff] %v12649
  %12727 = vst [vmem:[%s11 + $0x28] sm:$0xff] %v12650
  %12728 = vst [vmem:[%s11 + $0x30] sm:$0xff] %v12651
  %12729 = vst [vmem:[%s11 + $0x38] sm:$0xff] %v12652
  %12730 = vst [vmem:[%s11 + $0x40] sm:$0xff] %v12653
  %12731 = vst [vmem:[%s11 + $0x48] sm:$0xff] %v12654
  %12732 = vst [vmem:[%s11 + $0x50] sm:$0xff] %v12655
  %12733 = vst [vmem:[%s11 + $0x58] sm:$0xff] %v12656
  %12734 = vst [vmem:[%s11 + $0x60] sm:$0xff] %v12657
  %12735 = vst [vmem:[%s11 + $0x68] sm:$0xff] %v12658
  %12736 = vst [vmem:[%s11 + $0x70] sm:$0xff] %v12659
  %12737 = vst [vmem:[%s11 + $0x78] sm:$0xff] %v12660
  %12738 = vst [vmem:[%s11 + $0x80] sm:$0xff] %v12661
  %12739 = vst [vmem:[%s11 + $0x88] sm:$0xff] %v12662
  %12740 = vst [vmem:[%s11 + $0x90] sm:$0xff] %v12663
  %12741 = vst [vmem:[%s11 + $0x98] sm:$0xff] %v12664
  %12742 = vst [vmem:[%s11 + $0xa0] sm:$0xff] %v12665
  %12743 = vst [vmem:[%s11 + $0xa8] sm:$0xff] %v12666
  %12744 = vst [vmem:[%s11 + $0xb0] sm:$0xff] %v12667
  %12745 = vst [vmem:[%s11 + $0xb8] sm:$0xff] %v12668
  %12746 = vst [vmem:[%s11 + $0xc0] sm:$0xff] %v12669
  %12747 = vst [vmem:[%s11 + $0xc8] sm:$0xff] %v12670
  %12748 = vst [vmem:[%s11 + $0xd0] sm:$0xff] %v12671
  %12749 = vst [vmem:[%s11 + $0xd8] sm:$0xff] %v12672
  %12750 = vst [vmem:[%s11 + $0xe0] sm:$0xff] %v12673
  %12751 = vst [vmem:[%s11 + $0xe8] sm:$0xff] %v12674
  %12752 = vst [vmem:[%s11 + $0xf0] sm:$0xff] %v12675
  %12753 = vst [vmem:[%s11 + $0xf8] sm:$0xff] %v12676
  %12754 = vst [vmem:[%s11 + $0x100] sm:$0xff] %v12677
  %12755 = vst [vmem:[%s11 + $0x108] sm:$0xff] %v12678
  %12756 = vst [vmem:[%s11 + $0x110] sm:$0xff] %v12679
  %12757 = vst [vmem:[%s11 + $0x118] sm:$0xff] %v12680
  %12758 = vst [vmem:[%s11 + $0x120] sm:$0xff] %v12681
  %12759 = vst [vmem:[%s11 + $0x128] sm:$0xff] %v12682
  %12760 = vst [vmem:[%s11 + $0x130] sm:$0xff] %v12683
  %12761 = vst [vmem:[%s11 + $0x138] sm:$0xff] %v12684
  %12762 = vst [vmem:[%s11 + $0x140] sm:$0xff] %v12685
  %12763 = vst [vmem:[%s11 + $0x148] sm:$0xff] %v12686
  %12764 = vst [vmem:[%s11 + $0x150] sm:$0xff] %v12687
  %12765 = vst [vmem:[%s11 + $0x158] sm:$0xff] %v12688
  %12766 = vst [vmem:[%s11 + $0x160] sm:$0xff] %v12689
  %12767 = vst [vmem:[%s11 + $0x168] sm:$0xff] %v12690
  %12768 = vst [vmem:[%s11 + $0x170] sm:$0xff] %v12691
  %12769 = vst [vmem:[%s11 + $0x178] sm:$0xff] %v12692
  %12770 = vst [vmem:[%s11 + $0x180] sm:$0xff] %v12693
  %12771 = vst [vmem:[%s11 + $0x188] sm:$0xff] %v12694
  %12772 = vst [vmem:[%s11 + $0x190] sm:$0xff] %v12695
  %12773 = vst [vmem:[%s11 + $0x198] sm:$0xff] %v12696
  %12774 = vst [vmem:[%s11 + $0x1a0] sm:$0xff] %v12697
  %12775 = vst [vmem:[%s11 + $0x1a8] sm:$0xff] %v12698
  %12776 = vst [vmem:[%s11 + $0x1b0] sm:$0xff] %v12699
  %12777 = vst [vmem:[%s11 + $0x1b8] sm:$0xff] %v12700
  %12778 = vst [vmem:[%s11 + $0x1c0] sm:$0xff] %v12701
  %12779 = vst [vmem:[%s11 + $0x1c8] sm:$0xff] %v12702
  %12780 = vst [vmem:[%s11 + $0x1d0] sm:$0xff] %v12703
  %12781 = vst [vmem:[%s11 + $0x1d8] sm:$0xff] %v12704
  %12782 = vst [vmem:[%s11 + $0x1e0] sm:$0xff] %v12705
  %12783 = vst [vmem:[%s11 + $0x1e8] sm:$0xff] %v12706
  %12784 = vst [vmem:[%s11 + $0x1f0] sm:$0xff] %v12707
  %12785 = vst [vmem:[%s11 + $0x1f8] sm:$0xff] %v12708
  %12786 = vst [vmem:[%s11 + $0x200] sm:$0xff] %v12709
  %12787 = vst [vmem:[%s11 + $0x208] sm:$0xff] %v12710
  %12788 = vst [vmem:[%s11 + $0x210] sm:$0xff] %v12711
  %12789 = vst [vmem:[%s11 + $0x218] sm:$0xff] %v12712
  %12790 = vst [vmem:[%s11 + $0x220] sm:$0xff] %v12713
  %12791 = vst [vmem:[%s11 + $0x228] sm:$0xff] %v12714
  %12792 = vst [vmem:[%s11 + $0x230] sm:$0xff] %v12715
  %12793 = vst [vmem:[%s11 + $0x238] sm:$0xff] %v12716
  %12794 = vst [vmem:[%s11 + $0x240] sm:$0xff] %v12717
  %12795 = vst [vmem:[%s11 + $0x248] sm:$0xff] %v12718
  %12796 = vst [vmem:[%s11 + $0x250] sm:$0xff] %v12719
  %12797 = vst [vmem:[%s11 + $0x258] sm:$0xff] %v12720
  %12798 = vst [vmem:[%s11 + $0x260] sm:$0xf] %v12721
  // Predicated region
  $region46: #{bottleneck_forward.1} parent=0 // pred_check
    _
  $region47: #{bottleneck_forward.1} parent=0 // pred_check_branch
    %12800 = sbr.rel (0) target = $region49
  $region48: #{bottleneck_forward.1} parent=0 // pred_region
    _
  $region49: #{bottleneck_forward.1} parent=0 // pred_fallthru
    _
  // Predicated region
  $region50: #{bottleneck_forward.1} parent=0 // pred_check
    _
  $region51: #{bottleneck_forward.1} parent=0 // pred_check_branch
    %12802 = sbr.rel (0) target = $region53
  $region52: #{bottleneck_forward.1} parent=0 // pred_region
    _
  $region53: #{bottleneck_forward.1} parent=0 // pred_fallthru
    _

</llo_original>
